<compile_context>
chip_gen: v5e
topology: v5e:2x2
jax: 0.10.0
libtpu: 0.0.40
codegen_flags: <defaults>
</compile_context>

<pallas_src>
import functools

import jax
import jax.numpy as jnp
from jax.experimental import pallas as pl
from jax.experimental.pallas import tpu as pltpu

BN_EPS = 1e-5
LRELU_SLOPE = 0.2
LANE = 128                      # K / C padded to multiples of the lane width
TILE_M_MAX = 512                # matmul rows per grid step
BN_TILE_CAP = 2048              # elementwise BN/act rows per grid step (bf16 I/O)
VMEM_LIMIT = 32 * 1024 * 1024   # safe on v5e/v6e/v7x


# ----------------------------------------------------------------------------
# small helpers
# ----------------------------------------------------------------------------
def _round_up(n, m):
    return (n + m - 1) // m * m


def _pick_tile_m(m):
    if m >= TILE_M_MAX:
        return TILE_M_MAX
    return _round_up(max(m, 8), 16)


def _pick_bn_tile(m_pad, cap=BN_TILE_CAP):
    """Largest multiple-of-8 divisor of m_pad not exceeding cap (full extent if small)."""
    if m_pad <= cap:
        return m_pad
    t = cap - (cap % 8)
    while t >= 8:
        if m_pad % t == 0:
            return t
        t -= 8
    return m_pad


def _pad2(a, rows, cols, fill=0.0):
    r, c = a.shape
    if r == rows and c == cols:
        return a
    return jnp.pad(a, ((0, rows - r), (0, cols - c)), constant_values=fill)


# ----------------------------------------------------------------------------
# Pallas kernels
# ----------------------------------------------------------------------------
def _matmul_stats_kernel(p_ref, w_ref, z_ref, sum_ref, ssq_ref):
    """Z tile = patches @ W (bf16 in, f32 MXU accumulate); bf16 Z store + per-tile
    partial channel sum / sum-of-squares taken from the f32 accumulator."""
    z = jnp.dot(p_ref[...], w_ref[...], preferred_element_type=jnp.float32)
    z_ref[...] = z.astype(z_ref.dtype)
    sum_ref[...] = jnp.broadcast_to(jnp.sum(z, axis=0, keepdims=True), sum_ref.shape)
    ssq_ref[...] = jnp.broadcast_to(jnp.sum(z * z, axis=0, keepdims=True), ssq_ref.shape)


def _mid_dec1_kernel(p_ref, wm_ref, bm_ref, wd_ref, z_ref, sum_ref, ssq_ref, *,
                     tile_m, m_real):
    """Fused conv_mid (1x1 + bias) -> dec1 (1x1 convT) + per-tile BN stats.
    The 1024-wide mid activation never leaves VMEM."""
    h = jnp.dot(p_ref[...], wm_ref[...], preferred_element_type=jnp.float32) + bm_ref[...]
    # Padded rows would otherwise pick up the bias and pollute the BN stats.
    row = pl.program_id(0) * tile_m + jax.lax.broadcasted_iota(jnp.int32, h.shape, 0)
    h = jnp.where(row < m_real, h, 0.0)
    z = jnp.dot(h.astype(jnp.bfloat16), wd_ref[...], preferred_element_type=jnp.float32)
    z_ref[...] = z.astype(z_ref.dtype)
    sum_ref[...] = jnp.broadcast_to(jnp.sum(z, axis=0, keepdims=True), sum_ref.shape)
    ssq_ref[...] = jnp.broadcast_to(jnp.sum(z * z, axis=0, keepdims=True), ssq_ref.shape)


def _bn_act_kernel(z_ref, scale_ref, shift_ref, o_ref, *, act, out_scale):
    """Elementwise BN normalize (folded scale/shift) + activation epilogue.
    bf16 in, f32 math, bf16 (or f32 for the final layer) out."""
    y = z_ref[...].astype(jnp.float32) * scale_ref[...] + shift_ref[...]
    if act == "lrelu":
        y = jnp.where(y >= 0.0, y, jnp.float32(LRELU_SLOPE) * y)
    elif act == "sigmoid":
        # exp -> EUP; approx reciprocal -> EUP slot too (divide stays off the VPU)
        y = pl.reciprocal(1.0 + jnp.exp(-y), approx=True)
    if out_scale != 1.0:
        y = y * jnp.float32(out_scale)
    o_ref[...] = y.astype(o_ref.dtype)


# ----------------------------------------------------------------------------
# pallas_call wrappers (M-tiled, lane-dense, bf16 MXU inputs, parallel grid)
# ----------------------------------------------------------------------------
def _matmul_stats_pallas(p2, w2, tile_m):
    M_pad, K = p2.shape
    C = w2.shape[1]
    n_m = M_pad // tile_m
    cost = pl.CostEstimate(
        flops=2 * M_pad * K * C, transcendentals=0,
        bytes_accessed=p2.size * 2 + n_m * w2.size * 2 + M_pad * C * 2
                       + 2 * n_m * 8 * C * 4)
    return pl.pallas_call(
        _matmul_stats_kernel,
        out_shape=(jax.ShapeDtypeStruct((M_pad, C), jnp.bfloat16),
                   jax.ShapeDtypeStruct((n_m * 8, C), jnp.float32),
                   jax.ShapeDtypeStruct((n_m * 8, C), jnp.float32)),
        grid=(n_m,),
        in_specs=[pl.BlockSpec((tile_m, K), lambda i: (i, 0)),
                  pl.BlockSpec((K, C), lambda i: (0, 0))],
        out_specs=(pl.BlockSpec((tile_m, C), lambda i: (i, 0)),
                   pl.BlockSpec((8, C), lambda i: (i, 0)),
                   pl.BlockSpec((8, C), lambda i: (i, 0))),
        compiler_params=pltpu.CompilerParams(
            dimension_semantics=("parallel",), vmem_limit_bytes=VMEM_LIMIT),
        cost_estimate=cost,
    )(p2, w2)


def _mid_dec1_pallas(p2, wm, bm, wd, tile_m, m_real):
    M_pad, K = p2.shape
    Cmid = wm.shape[1]
    C = wd.shape[1]
    n_m = M_pad // tile_m
    kern = functools.partial(_mid_dec1_kernel, tile_m=tile_m, m_real=m_real)
    cost = pl.CostEstimate(
        flops=2 * M_pad * K * Cmid + 2 * M_pad * Cmid * C, transcendentals=0,
        bytes_accessed=p2.size * 2 + n_m * (wm.size * 2 + wd.size * 2 + bm.size * 4)
                       + M_pad * C * 2 + 2 * n_m * 8 * C * 4)
    return pl.pallas_call(
        kern,
        out_shape=(jax.ShapeDtypeStruct((M_pad, C), jnp.bfloat16),
                   jax.ShapeDtypeStruct((n_m * 8, C), jnp.float32),
                   jax.ShapeDtypeStruct((n_m * 8, C), jnp.float32)),
        grid=(n_m,),
        in_specs=[pl.BlockSpec((tile_m, K), lambda i: (i, 0)),
                  pl.BlockSpec((K, Cmid), lambda i: (0, 0)),
                  pl.BlockSpec((1, Cmid), lambda i: (0, 0)),
                  pl.BlockSpec((Cmid, C), lambda i: (0, 0))],
        out_specs=(pl.BlockSpec((tile_m, C), lambda i: (i, 0)),
                   pl.BlockSpec((8, C), lambda i: (i, 0)),
                   pl.BlockSpec((8, C), lambda i: (i, 0))),
        compiler_params=pltpu.CompilerParams(
            dimension_semantics=("parallel",), vmem_limit_bytes=VMEM_LIMIT),
        cost_estimate=cost,
    )(p2, wm, bm, wd)


def _bn_act_pallas(z2, scale, shift, act, out_scale, out_dtype):
    M_pad, C = z2.shape
    bn_tile = _pick_bn_tile(M_pad)
    n_m = M_pad // bn_tile
    kern = functools.partial(_bn_act_kernel, act=act, out_scale=out_scale)
    obytes = 2 if out_dtype == jnp.bfloat16 else 4
    cost = pl.CostEstimate(
        flops=4 * z2.size,
        transcendentals=(z2.size if act == "sigmoid" else 0),
        bytes_accessed=z2.size * 2 + z2.size * obytes + 2 * C * 4)
    return pl.pallas_call(
        kern,
        out_shape=jax.ShapeDtypeStruct((M_pad, C), out_dtype),
        grid=(n_m,),
        in_specs=[pl.BlockSpec((bn_tile, C), lambda i: (i, 0)),
                  pl.BlockSpec((1, C), lambda i: (0, 0)),
                  pl.BlockSpec((1, C), lambda i: (0, 0))],
        out_specs=pl.BlockSpec((bn_tile, C), lambda i: (i, 0)),
        compiler_params=pltpu.CompilerParams(
            dimension_semantics=("parallel",), vmem_limit_bytes=VMEM_LIMIT),
        cost_estimate=cost,
    )(z2, scale, shift)


# ----------------------------------------------------------------------------
# Plain-JAX glue: im2col, weight packing, depth-to-space, BN fold
# (patch extraction / reshuffles have no clean Pallas equivalent; they stay XLA)
# ----------------------------------------------------------------------------
def _im2col_nhwc(x, kh, kw, stride, pt, pb, pleft, pright):
    """x: (N, H, W, C) -> patches (N*Ho*Wo, kh*kw*C), K-order (kh, kw, C)."""
    N, H, W, C = x.shape
    xp = jnp.pad(x, ((0, 0), (pt, pb), (pleft, pright), (0, 0)))
    Ho = (H + pt + pb - kh) // stride + 1
    Wo = (W + pleft + pright - kw) // stride + 1
    cols = []
    for a in range(kh):
        for b in range(kw):
            cols.append(xp[:, a:a + stride * (Ho - 1) + 1:stride,
                           b:b + stride * (Wo - 1) + 1:stride, :])
    st = jnp.stack(cols, axis=3)                    # (N, Ho, Wo, kh*kw, C)
    return st.reshape(N * Ho * Wo, kh * kw * C), (N, Ho, Wo)


def _conv_w_to_kc(w):
    """(Cout, Cin, kh, kw) -> (kh*kw*Cin, Cout) matching the im2col K-order."""
    cout, cin, kh, kw = w.shape
    return jnp.transpose(w, (2, 3, 1, 0)).reshape(kh * kw * cin, cout)


# ConvTranspose2d(k=4, s=2, p=1) phase-packed sub-pixel form: with a 3x3 patch
# centered at input pixel m (rows m-1, m, m+1; zero pad 1), the output phase
# (rh, rw) uses patch row a -> kernel tap taps[rh][a]:
#   even rows (rh=0):  x[m-1]*w[3] + x[m]*w[1]
#   odd  rows (rh=1):  x[m]  *w[2] + x[m+1]*w[0]
_PHASE_TAPS = ({0: 3, 1: 1}, {1: 2, 2: 0})


def _convT_packed_weight(w_t):
    """(Cin, Cout, 4, 4) ConvTranspose weight -> (9*Cin, 4*Cout), phase-major cols."""
    cin, cout = w_t.shape[0], w_t.shape[1]
    zero = jnp.zeros((cin, cout), w_t.dtype)
    phases = []
    for rh in range(2):
        for rw in range(2):
            rows = []
            for pa in range(3):
                blocks = []
                for pb in range(3):
                    ta = _PHASE_TAPS[rh].get(pa)
                    tb = _PHASE_TAPS[rw].get(pb)
                    blocks.append(w_t[:, :, ta, tb]
                                  if (ta is not None and tb is not None) else zero)
                rows.append(jnp.stack(blocks, axis=0))          # (3, Cin, Cout)
            w3 = jnp.stack(rows, axis=0)                        # (3, 3, Cin, Cout)
            phases.append(w3.reshape(9 * cin, cout))
    return jnp.concatenate(phases, axis=1)                      # (9*Cin, 4*Cout)


def _depth_to_space(y, N, H, W, cout):
    """(N*H*W, 4*cout) phase-major (rh, rw) -> (N, 2H, 2W, cout)."""
    t = y.reshape(N, H, W, 2, 2, cout)
    return t.transpose(0, 1, 3, 2, 4, 5).reshape(N, 2 * H, 2 * W, cout)


def _fold_bn(s_full, q_full, gamma, beta, cout, phase_mult, m_real, c_pad):
    """Training-mode BN (biased variance) folded to per-column scale/shift.
    Packed phase columns share one true channel; padded columns get 0/0."""
    s = s_full[: phase_mult * cout].reshape(phase_mult, cout).sum(axis=0)
    q = q_full[: phase_mult * cout].reshape(phase_mult, cout).sum(axis=0)
    count = jnp.float32(phase_mult * m_real)
    mean = s / count
    var = jnp.maximum(q / count - mean * mean, 0.0)
    scale_c = gamma.reshape(-1) * jax.lax.rsqrt(var + BN_EPS)
    shift_c = beta.reshape(-1) - mean * scale_c
    scale = jnp.pad(jnp.tile(scale_c, phase_mult), (0, c_pad - phase_mult * cout))
    shift = jnp.pad(jnp.tile(shift_c, phase_mult), (0, c_pad - phase_mult * cout))
    return scale[None, :], shift[None, :]


def _reduce_partial(stats, c_pad):
    """(n_m*8, C) partials (row-broadcast per tile) -> (C,) total."""
    return stats.reshape(-1, 8, c_pad)[:, 0, :].sum(axis=0)


def _bn_act_ref(z, scale, shift, act, out_scale, out_dtype):
    y = z.astype(jnp.float32) * scale + shift
    if act == "lrelu":
        y = jnp.where(y >= 0.0, y, LRELU_SLOPE * y)
    elif act == "sigmoid":
        y = 1.0 / (1.0 + jnp.exp(-y))
    if out_scale != 1.0:
        y = y * out_scale
    return y.astype(out_dtype)


# ----------------------------------------------------------------------------
# Layer cores (Pallas path and pure-JAX reference path share all padding/packing)
# ----------------------------------------------------------------------------
def _matmul_bn_act(patches, w_kc, gamma, beta, cout, phase_mult, act, out_scale,
                   out_dtype, use_pallas):
    M, K = patches.shape
    C = phase_mult * cout
    K_pad = _round_up(K, LANE)
    C_pad = _round_up(C, LANE)
    tile_m = _pick_tile_m(M)
    M_pad = _round_up(M, tile_m)
    p2 = _pad2(patches, M_pad, K_pad).astype(jnp.bfloat16)
    w2 = _pad2(w_kc, K_pad, C_pad).astype(jnp.bfloat16)

    if use_pallas:
        z, s_p, q_p = _matmul_stats_pallas(p2, w2, tile_m)
        s_full = _reduce_partial(s_p, C_pad)
        q_full = _reduce_partial(q_p, C_pad)
    else:
        zf = jnp.dot(p2, w2, preferred_element_type=jnp.float32)
        z = zf.astype(jnp.bfloat16)
        s_full = jnp.sum(zf, axis=0)
        q_full = jnp.sum(zf * zf, axis=0)

    # Zero-padded rows contribute exactly 0 (no bias precedes BN) -> exact stats.
    scale, shift = _fold_bn(s_full, q_full, gamma, beta, cout, phase_mult, M, C_pad)

    if use_pallas:
        y = _bn_act_pallas(z, scale, shift, act, out_scale, out_dtype)
    else:
        y = _bn_act_ref(z, scale, shift, act, out_scale, out_dtype)
    return y[:M, :C]


def _conv_bn_lrelu(x, w, gamma, beta, use_pallas):
    """Conv2d(k=4, s=2, p=1) -> training BN -> LeakyReLU(0.2); bias dropped (BN cancels)."""
    cout = w.shape[0]
    patches, (N, Ho, Wo) = _im2col_nhwc(x, 4, 4, 2, 1, 1, 1, 1)
    y = _matmul_bn_act(patches, _conv_w_to_kc(w), gamma, beta, cout, 1,
                       "lrelu", 1.0, jnp.bfloat16, use_pallas)
    return y.reshape(N, Ho, Wo, cout)


def _mid_dec1(x, w_mid, b_mid, w_dec1, gamma, beta, use_pallas):
    """Fused conv_mid (1x1 + bias) -> dec1 (1x1 convT) -> BN -> LeakyReLU."""
    N, H, W, Cin = x.shape
    cout = w_dec1.shape[1]
    flat = x.reshape(N * H * W, Cin)
    M, K = flat.shape
    Kp = _round_up(K, LANE)
    Cmid = w_mid.shape[0]
    Cmid_pad = _round_up(Cmid, LANE)
    Cout_pad = _round_up(cout, LANE)
    tile_m = _pick_tile_m(M)
    M_pad = _round_up(M, tile_m)

    p2 = _pad2(flat, M_pad, Kp).astype(jnp.bfloat16)
    wm = _pad2(w_mid[:, :, 0, 0].T, Kp, Cmid_pad).astype(jnp.bfloat16)
    bm = _pad2(b_mid, 1, Cmid_pad).astype(jnp.float32)
    wd = _pad2(w_dec1[:, :, 0, 0], Cmid_pad, Cout_pad).astype(jnp.bfloat16)

    if use_pallas:
        z, s_p, q_p = _mid_dec1_pallas(p2, wm, bm, wd, tile_m, M)
        s_full = _reduce_partial(s_p, Cout_pad)
        q_full = _reduce_partial(q_p, Cout_pad)
    else:
        h = jnp.dot(p2, wm, preferred_element_type=jnp.float32) + bm
        h = jnp.where(jnp.arange(M_pad)[:, None] < M, h, 0.0)
        zf = jnp.dot(h.astype(jnp.bfloat16), wd, preferred_element_type=jnp.float32)
        z = zf.astype(jnp.bfloat16)
        s_full = jnp.sum(zf, axis=0)
        q_full = jnp.sum(zf * zf, axis=0)

    scale, shift = _fold_bn(s_full, q_full, gamma, beta, cout, 1, M, Cout_pad)
    if use_pallas:
        y = _bn_act_pallas(z, scale, shift, "lrelu", 1.0, jnp.bfloat16)
    else:
        y = _bn_act_ref(z, scale, shift, "lrelu", 1.0, jnp.bfloat16)
    return y[:M, :cout].reshape(N, H, W, cout)


def _deconv_bn_act(x, w_t, gamma, beta, act, out_scale, out_dtype, use_pallas):
    """ConvTranspose2d(k=4, s=2, p=1) via phase-packed sub-pixel matmul -> BN -> act."""
    N, H, W, _ = x.shape
    cout = w_t.shape[1]
    patches, _ = _im2col_nhwc(x, 3, 3, 1, 1, 1, 1, 1)
    w_packed = _convT_packed_weight(w_t)                 # (9*Cin, 4*cout)
    y = _matmul_bn_act(patches, w_packed, gamma, beta, cout, 4,
                       act, out_scale, out_dtype, use_pallas)
    return _depth_to_space(y, N, H, W, cout)


# ----------------------------------------------------------------------------
# Generator: deterministic params + forward pass
# ----------------------------------------------------------------------------
def init_params(key):
    keys = iter(jax.random.split(key, 24))

    def nrm(shape, scale=0.05):
        return scale * jax.random.normal(next(keys), shape, dtype=jnp.float32)

    p = {}
    # NOTE: conv / convT biases preceding training-mode BatchNorm are exact
    # no-ops (cancelled by the batch-mean subtraction), so they are omitted.
    p["enc1_w"] = nrm((64, 3, 4, 4));    p["bn1_g"] = 1.0 + nrm((1, 64), 0.02);  p["bn1_b"] = nrm((1, 64), 0.02)
    p["enc2_w"] = nrm((128, 64, 4, 4));  p["bn2_g"] = 1.0 + nrm((1, 128), 0.02); p["bn2_b"] = nrm((1, 128), 0.02)
    p["enc3_w"] = nrm((256, 128, 4, 4)); p["bn3_g"] = 1.0 + nrm((1, 256), 0.02); p["bn3_b"] = nrm((1, 256), 0.02)
    p["mid_w"] = nrm((1000, 256, 1, 1)); p["mid_b"] = nrm((1, 1000))
    # decoder ConvTranspose weights use PyTorch layout (Cin, Cout, k, k)
    p["dec1_w"] = nrm((1000, 256, 1, 1)); p["bn4_g"] = 1.0 + nrm((1, 256), 0.02); p["bn4_b"] = nrm((1, 256), 0.02)
    p["dec2_w"] = nrm((256, 128, 4, 4));  p["bn5_g"] = 1.0 + nrm((1, 128), 0.02); p["bn5_b"] = nrm((1, 128), 0.02)
    p["dec3_w"] = nrm((128, 64, 4, 4));   p["bn6_g"] = 1.0 + nrm((1, 64), 0.02);  p["bn6_b"] = nrm((1, 64), 0.02)
    p["dec4_w"] = nrm((64, 3, 4, 4));     p["bn7_g"] = 1.0 + nrm((1, 3), 0.02);   p["bn7_b"] = nrm((1, 3), 0.02)
    return p


def generator_forward(params, x_nchw, use_pallas=True):
    p = params
    # NCHW -> NHWC once at the boundary; activations stay bf16 NHWC between layers.
    x = x_nchw.transpose(0, 2, 3, 1).astype(jnp.bfloat16)
    # Fold the *(1/255) input scaling into the enc1 weight (mathematically exact).
    w_enc1 = p["enc1_w"] * jnp.float32(1.0 / 255.0)

    # encoder: (Conv k=4 s=2 p=1 + BN + LeakyReLU(0.2)) x3
    x = _conv_bn_lrelu(x, w_enc1, p["bn1_g"], p["bn1_b"], use_pallas)
    x = _conv_bn_lrelu(x, p["enc2_w"], p["bn2_g"], p["bn2_b"], use_pallas)
    x = _conv_bn_lrelu(x, p["enc3_w"], p["bn3_g"], p["bn3_b"], use_pallas)

    # conv_mid (1x1 + bias) fused with dec1 (1x1 convT + BN + LeakyReLU)
    x = _mid_dec1(x, p["mid_w"], p["mid_b"], p["dec1_w"],
                  p["bn4_g"], p["bn4_b"], use_pallas)

    # decoder transposed convs (phase-packed)
    x = _deconv_bn_act(x, p["dec2_w"], p["bn5_g"], p["bn5_b"],
                       "lrelu", 1.0, jnp.bfloat16, use_pallas)
    x = _deconv_bn_act(x, p["dec3_w"], p["bn6_g"], p["bn6_b"],
                       "lrelu", 1.0, jnp.bfloat16, use_pallas)
    x = _deconv_bn_act(x, p["dec4_w"], p["bn7_g"], p["bn7_b"],
                       "sigmoid", 255.0, jnp.float32, use_pallas)

    return x.transpose(0, 3, 1, 2)   # back to NCHW


if __name__ == "__main__":
    key = jax.random.PRNGKey(0)
    k_param, k_x = jax.random.split(key)
    params = init_params(k_param)

    # Small input consistent with the module: NCHW, 3 channels, values in [0,255]
    x = jax.random.uniform(k_x, (2, 3, 16, 16), dtype=jnp.float32) * 255.0

    fwd = jax.jit(functools.partial(generator_forward, use_pallas=True))
    y = jax.block_until_ready(fwd(params, x))

    assert y.shape == (2, 3, 16, 16), y.shape
    assert bool(jnp.all(jnp.isfinite(y)))
    assert bool(jnp.all((y >= -1.0) & (y <= 256.5)))

    # Validate Pallas kernels against a pure-JAX reference of the same math
    # (identical bf16 matmul inputs / BN statistics; only MXU accumulation
    #  order and the approx reciprocal in the final sigmoid differ).
    ref = jax.jit(functools.partial(generator_forward, use_pallas=False))
    y_ref = jax.block_until_ready(ref(params, x))
    assert bool(jnp.allclose(y, y_ref, atol=1.0, rtol=1e-2)), (
        float(jnp.max(jnp.abs(y - y_ref))))

    print("KERNEL_OK")
</pallas_src>

<mosaic_0001>
module attributes {stable_mosaic.version = 11 : i64} {
  func.func @_matmul_stats_kernel(%arg0: i32, %arg1: memref<128x128xbf16, #tpu.memory_space<vmem>>, %arg2: memref<128x128xbf16, #tpu.memory_space<vmem>>, %arg3: memref<128x128xbf16, #tpu.memory_space<vmem>>, %arg4: memref<8x128xf32, #tpu.memory_space<vmem>>, %arg5: memref<8x128xf32, #tpu.memory_space<vmem>>) attributes {dimension_semantics = [#tpu.dimension_semantics<parallel>], iteration_bounds = array<i64: 1>, scalar_prefetch = 0 : i64, scratch_operands = 0 : i64, tpu.core_type = #tpu.core_type<tc>, window_params = [{transform_indices = @transform_0, window_bounds = array<i64: 128, 128>}, {pipeline_mode = #tpu.pipeline_mode<synchronous>, transform_indices = @transform_1, window_bounds = array<i64: 128, 128>}, {transform_indices = @transform_2, window_bounds = array<i64: 128, 128>}, {transform_indices = @transform_3, window_bounds = array<i64: 8, 128>}, {transform_indices = @transform_4, window_bounds = array<i64: 8, 128>}]} {
    %c0 = arith.constant 0 : index
    %c0_0 = arith.constant 0 : index
    %0 = vector.load %arg1[%c0, %c0_0] : memref<128x128xbf16, #tpu.memory_space<vmem>>, vector<128x128xbf16>
    %c0_1 = arith.constant 0 : index
    %c0_2 = arith.constant 0 : index
    %1 = vector.load %arg2[%c0_1, %c0_2] : memref<128x128xbf16, #tpu.memory_space<vmem>>, vector<128x128xbf16>
    %cst = arith.constant dense<0.000000e+00> : vector<128x128xf32>
    %2 = tpu.matmul %0, %1, %cst {dimension_numbers = #tpu.dot_dimension_numbers<[1], [0], [0], [1], [0, 0, 1, 1], [], []>} : vector<128x128xbf16>, vector<128x128xbf16>, vector<128x128xf32> -> vector<128x128xf32>
    %3 = arith.truncf %2 : vector<128x128xf32> to vector<128x128xbf16>
    %c0_3 = arith.constant 0 : index
    %c0_4 = arith.constant 0 : index
    %4 = vector.load %arg3[%c0_3, %c0_4] : memref<128x128xbf16, #tpu.memory_space<vmem>>, vector<128x128xbf16>
    tpu.vector_store %arg3[%c0_3, %c0_4], %3 {strides = array<i32>} : memref<128x128xbf16, #tpu.memory_space<vmem>>, vector<128x128xbf16>,
    %cst_5 = arith.constant dense<0.000000e+00> : vector<128xf32>
    %5 = vector.multi_reduction <add>, %2, %cst_5 [0] : vector<128x128xf32> to vector<128xf32>
    %6 = vector.shape_cast %5 : vector<128xf32> to vector<1x128xf32>
    %7 = vector.shape_cast %6 : vector<1x128xf32> to vector<1x128xf32>
    %8 = vector.broadcast %7 : vector<1x128xf32> to vector<8x128xf32>
    %c0_6 = arith.constant 0 : index
    %c0_7 = arith.constant 0 : index
    %9 = vector.load %arg4[%c0_6, %c0_7] : memref<8x128xf32, #tpu.memory_space<vmem>>, vector<8x128xf32>
    tpu.vector_store %arg4[%c0_6, %c0_7], %8 {strides = array<i32>} : memref<8x128xf32, #tpu.memory_space<vmem>>, vector<8x128xf32>,
    %10 = arith.mulf %2, %2 : vector<128x128xf32>
    %cst_8 = arith.constant dense<0.000000e+00> : vector<128xf32>
    %11 = vector.multi_reduction <add>, %10, %cst_8 [0] : vector<128x128xf32> to vector<128xf32>
    %12 = vector.shape_cast %11 : vector<128xf32> to vector<1x128xf32>
    %13 = vector.shape_cast %12 : vector<1x128xf32> to vector<1x128xf32>
    %14 = vector.broadcast %13 : vector<1x128xf32> to vector<8x128xf32>
    %c0_9 = arith.constant 0 : index
    %c0_10 = arith.constant 0 : index
    %15 = vector.load %arg5[%c0_9, %c0_10] : memref<8x128xf32, #tpu.memory_space<vmem>>, vector<8x128xf32>
    tpu.vector_store %arg5[%c0_9, %c0_10], %14 {strides = array<i32>} : memref<8x128xf32, #tpu.memory_space<vmem>>, vector<8x128xf32>,
    return
  }
  func.func @transform_0(%arg0: i32) -> (i32, i32) {
    %c0_i32 = arith.constant 0 : i32
    %c0_i32_0 = arith.constant 0 : i32
    return %arg0, %c0_i32 : i32, i32
  }
  func.func @transform_1(%arg0: i32) -> (i32, i32) {
    %c0_i32 = arith.constant 0 : i32
    %c0_i32_0 = arith.constant 0 : i32
    %c0_i32_1 = arith.constant 0 : i32
    return %c0_i32, %c0_i32_0 : i32, i32
  }
  func.func @transform_2(%arg0: i32) -> (i32, i32) {
    %c0_i32 = arith.constant 0 : i32
    %c0_i32_0 = arith.constant 0 : i32
    return %arg0, %c0_i32 : i32, i32
  }
  func.func @transform_3(%arg0: i32) -> (i32, i32) {
    %c0_i32 = arith.constant 0 : i32
    %c0_i32_0 = arith.constant 0 : i32
    return %arg0, %c0_i32 : i32, i32
  }
  func.func @transform_4(%arg0: i32) -> (i32, i32) {
    %c0_i32 = arith.constant 0 : i32
    %c0_i32_0 = arith.constant 0 : i32
    return %arg0, %c0_i32 : i32, i32
  }
}

module attributes {stable_mosaic.version = 11 : i64} {
  func.func @_bn_act_kernel(%arg0: i32, %arg1: memref<128x128xbf16, #tpu.memory_space<vmem>>, %arg2: memref<1x128xf32, #tpu.memory_space<vmem>>, %arg3: memref<1x128xf32, #tpu.memory_space<vmem>>, %arg4: memref<128x128xbf16, #tpu.memory_space<vmem>>) attributes {dimension_semantics = [#tpu.dimension_semantics<parallel>], iteration_bounds = array<i64: 1>, scalar_prefetch = 0 : i64, scratch_operands = 0 : i64, tpu.core_type = #tpu.core_type<tc>, window_params = [{transform_indices = @transform_0, window_bounds = array<i64: 128, 128>}, {pipeline_mode = #tpu.pipeline_mode<synchronous>, transform_indices = @transform_1, window_bounds = array<i64: 1, 128>}, {pipeline_mode = #tpu.pipeline_mode<synchronous>, transform_indices = @transform_2, window_bounds = array<i64: 1, 128>}, {transform_indices = @transform_3, window_bounds = array<i64: 128, 128>}]} {
    %c0 = arith.constant 0 : index
    %c0_0 = arith.constant 0 : index
    %0 = vector.load %arg1[%c0, %c0_0] : memref<128x128xbf16, #tpu.memory_space<vmem>>, vector<128x128xbf16>
    %1 = arith.extf %0 : vector<128x128xbf16> to vector<128x128xf32>
    %c0_1 = arith.constant 0 : index
    %c0_2 = arith.constant 0 : index
    %2 = vector.load %arg2[%c0_1, %c0_2] : memref<1x128xf32, #tpu.memory_space<vmem>>, vector<1x128xf32>
    %3 = vector.broadcast %2 : vector<1x128xf32> to vector<128x128xf32>
    %4 = arith.mulf %1, %3 : vector<128x128xf32>
    %c0_3 = arith.constant 0 : index
    %c0_4 = arith.constant 0 : index
    %5 = vector.load %arg3[%c0_3, %c0_4] : memref<1x128xf32, #tpu.memory_space<vmem>>, vector<1x128xf32>
    %6 = vector.broadcast %5 : vector<1x128xf32> to vector<128x128xf32>
    %7 = arith.addf %4, %6 : vector<128x128xf32>
    %cst = arith.constant 0.000000e+00 : f32
    %8 = vector.broadcast %cst : f32 to vector<128x128xf32>
    %9 = arith.cmpf oge, %7, %8 : vector<128x128xf32>
    %cst_5 = arith.constant 2.000000e-01 : f32
    %10 = vector.broadcast %cst_5 : f32 to vector<128x128xf32>
    %11 = arith.mulf %10, %7 : vector<128x128xf32>
    %12 = arith.select %9, %7, %11 : vector<128x128xi1>, vector<128x128xf32>
    %13 = arith.truncf %12 : vector<128x128xf32> to vector<128x128xbf16>
    %c0_6 = arith.constant 0 : index
    %c0_7 = arith.constant 0 : index
    %14 = vector.load %arg4[%c0_6, %c0_7] : memref<128x128xbf16, #tpu.memory_space<vmem>>, vector<128x128xbf16>
    tpu.vector_store %arg4[%c0_6, %c0_7], %13 {strides = array<i32>} : memref<128x128xbf16, #tpu.memory_space<vmem>>, vector<128x128xbf16>,
    return
  }
  func.func @transform_0(%arg0: i32) -> (i32, i32) {
    %c0_i32 = arith.constant 0 : i32
    %c0_i32_0 = arith.constant 0 : i32
    return %arg0, %c0_i32 : i32, i32
  }
  func.func @transform_1(%arg0: i32) -> (i32, i32) {
    %c0_i32 = arith.constant 0 : i32
    %c0_i32_0 = arith.constant 0 : i32
    %c0_i32_1 = arith.constant 0 : i32
    return %c0_i32, %c0_i32_0 : i32, i32
  }
  func.func @transform_2(%arg0: i32) -> (i32, i32) {
    %c0_i32 = arith.constant 0 : i32
    %c0_i32_0 = arith.constant 0 : i32
    %c0_i32_1 = arith.constant 0 : i32
    return %c0_i32, %c0_i32_0 : i32, i32
  }
  func.func @transform_3(%arg0: i32) -> (i32, i32) {
    %c0_i32 = arith.constant 0 : i32
    %c0_i32_0 = arith.constant 0 : i32
    return %arg0, %c0_i32 : i32, i32
  }
}

module attributes {stable_mosaic.version = 11 : i64} {
  func.func @_matmul_stats_kernel(%arg0: i32, %arg1: memref<32x1024xbf16, #tpu.memory_space<vmem>>, %arg2: memref<1024x128xbf16, #tpu.memory_space<vmem>>, %arg3: memref<32x128xbf16, #tpu.memory_space<vmem>>, %arg4: memref<8x128xf32, #tpu.memory_space<vmem>>, %arg5: memref<8x128xf32, #tpu.memory_space<vmem>>) attributes {dimension_semantics = [#tpu.dimension_semantics<parallel>], iteration_bounds = array<i64: 1>, scalar_prefetch = 0 : i64, scratch_operands = 0 : i64, tpu.core_type = #tpu.core_type<tc>, window_params = [{transform_indices = @transform_0, window_bounds = array<i64: 32, 1024>}, {pipeline_mode = #tpu.pipeline_mode<synchronous>, transform_indices = @transform_1, window_bounds = array<i64: 1024, 128>}, {transform_indices = @transform_2, window_bounds = array<i64: 32, 128>}, {transform_indices = @transform_3, window_bounds = array<i64: 8, 128>}, {transform_indices = @transform_4, window_bounds = array<i64: 8, 128>}]} {
    %c0 = arith.constant 0 : index
    %c0_0 = arith.constant 0 : index
    %0 = vector.load %arg1[%c0, %c0_0] : memref<32x1024xbf16, #tpu.memory_space<vmem>>, vector<32x1024xbf16>
    %c0_1 = arith.constant 0 : index
    %c0_2 = arith.constant 0 : index
    %1 = vector.load %arg2[%c0_1, %c0_2] : memref<1024x128xbf16, #tpu.memory_space<vmem>>, vector<1024x128xbf16>
    %cst = arith.constant dense<0.000000e+00> : vector<32x128xf32>
    %2 = tpu.matmul %0, %1, %cst {dimension_numbers = #tpu.dot_dimension_numbers<[1], [0], [0], [1], [0, 0, 1, 1], [], []>} : vector<32x1024xbf16>, vector<1024x128xbf16>, vector<32x128xf32> -> vector<32x128xf32>
    %3 = arith.truncf %2 : vector<32x128xf32> to vector<32x128xbf16>
    %c0_3 = arith.constant 0 : index
    %c0_4 = arith.constant 0 : index
    %4 = vector.load %arg3[%c0_3, %c0_4] : memref<32x128xbf16, #tpu.memory_space<vmem>>, vector<32x128xbf16>
    tpu.vector_store %arg3[%c0_3, %c0_4], %3 {strides = array<i32>} : memref<32x128xbf16, #tpu.memory_space<vmem>>, vector<32x128xbf16>,
    %cst_5 = arith.constant dense<0.000000e+00> : vector<128xf32>
    %5 = vector.multi_reduction <add>, %2, %cst_5 [0] : vector<32x128xf32> to vector<128xf32>
    %6 = vector.shape_cast %5 : vector<128xf32> to vector<1x128xf32>
    %7 = vector.shape_cast %6 : vector<1x128xf32> to vector<1x128xf32>
    %8 = vector.broadcast %7 : vector<1x128xf32> to vector<8x128xf32>
    %c0_6 = arith.constant 0 : index
    %c0_7 = arith.constant 0 : index
    %9 = vector.load %arg4[%c0_6, %c0_7] : memref<8x128xf32, #tpu.memory_space<vmem>>, vector<8x128xf32>
    tpu.vector_store %arg4[%c0_6, %c0_7], %8 {strides = array<i32>} : memref<8x128xf32, #tpu.memory_space<vmem>>, vector<8x128xf32>,
    %10 = arith.mulf %2, %2 : vector<32x128xf32>
    %cst_8 = arith.constant dense<0.000000e+00> : vector<128xf32>
    %11 = vector.multi_reduction <add>, %10, %cst_8 [0] : vector<32x128xf32> to vector<128xf32>
    %12 = vector.shape_cast %11 : vector<128xf32> to vector<1x128xf32>
    %13 = vector.shape_cast %12 : vector<1x128xf32> to vector<1x128xf32>
    %14 = vector.broadcast %13 : vector<1x128xf32> to vector<8x128xf32>
    %c0_9 = arith.constant 0 : index
    %c0_10 = arith.constant 0 : index
    %15 = vector.load %arg5[%c0_9, %c0_10] : memref<8x128xf32, #tpu.memory_space<vmem>>, vector<8x128xf32>
    tpu.vector_store %arg5[%c0_9, %c0_10], %14 {strides = array<i32>} : memref<8x128xf32, #tpu.memory_space<vmem>>, vector<8x128xf32>,
    return
  }
  func.func @transform_0(%arg0: i32) -> (i32, i32) {
    %c0_i32 = arith.constant 0 : i32
    %c0_i32_0 = arith.constant 0 : i32
    return %arg0, %c0_i32 : i32, i32
  }
  func.func @transform_1(%arg0: i32) -> (i32, i32) {
    %c0_i32 = arith.constant 0 : i32
    %c0_i32_0 = arith.constant 0 : i32
    %c0_i32_1 = arith.constant 0 : i32
    return %c0_i32, %c0_i32_0 : i32, i32
  }
  func.func @transform_2(%arg0: i32) -> (i32, i32) {
    %c0_i32 = arith.constant 0 : i32
    %c0_i32_0 = arith.constant 0 : i32
    return %arg0, %c0_i32 : i32, i32
  }
  func.func @transform_3(%arg0: i32) -> (i32, i32) {
    %c0_i32 = arith.constant 0 : i32
    %c0_i32_0 = arith.constant 0 : i32
    return %arg0, %c0_i32 : i32, i32
  }
  func.func @transform_4(%arg0: i32) -> (i32, i32) {
    %c0_i32 = arith.constant 0 : i32
    %c0_i32_0 = arith.constant 0 : i32
    return %arg0, %c0_i32 : i32, i32
  }
}

module attributes {stable_mosaic.version = 11 : i64} {
  func.func @_bn_act_kernel(%arg0: i32, %arg1: memref<32x128xbf16, #tpu.memory_space<vmem>>, %arg2: memref<1x128xf32, #tpu.memory_space<vmem>>, %arg3: memref<1x128xf32, #tpu.memory_space<vmem>>, %arg4: memref<32x128xbf16, #tpu.memory_space<vmem>>) attributes {dimension_semantics = [#tpu.dimension_semantics<parallel>], iteration_bounds = array<i64: 1>, scalar_prefetch = 0 : i64, scratch_operands = 0 : i64, tpu.core_type = #tpu.core_type<tc>, window_params = [{transform_indices = @transform_0, window_bounds = array<i64: 32, 128>}, {pipeline_mode = #tpu.pipeline_mode<synchronous>, transform_indices = @transform_1, window_bounds = array<i64: 1, 128>}, {pipeline_mode = #tpu.pipeline_mode<synchronous>, transform_indices = @transform_2, window_bounds = array<i64: 1, 128>}, {transform_indices = @transform_3, window_bounds = array<i64: 32, 128>}]} {
    %c0 = arith.constant 0 : index
    %c0_0 = arith.constant 0 : index
    %0 = vector.load %arg1[%c0, %c0_0] : memref<32x128xbf16, #tpu.memory_space<vmem>>, vector<32x128xbf16>
    %1 = arith.extf %0 : vector<32x128xbf16> to vector<32x128xf32>
    %c0_1 = arith.constant 0 : index
    %c0_2 = arith.constant 0 : index
    %2 = vector.load %arg2[%c0_1, %c0_2] : memref<1x128xf32, #tpu.memory_space<vmem>>, vector<1x128xf32>
    %3 = vector.broadcast %2 : vector<1x128xf32> to vector<32x128xf32>
    %4 = arith.mulf %1, %3 : vector<32x128xf32>
    %c0_3 = arith.constant 0 : index
    %c0_4 = arith.constant 0 : index
    %5 = vector.load %arg3[%c0_3, %c0_4] : memref<1x128xf32, #tpu.memory_space<vmem>>, vector<1x128xf32>
    %6 = vector.broadcast %5 : vector<1x128xf32> to vector<32x128xf32>
    %7 = arith.addf %4, %6 : vector<32x128xf32>
    %cst = arith.constant 0.000000e+00 : f32
    %8 = vector.broadcast %cst : f32 to vector<32x128xf32>
    %9 = arith.cmpf oge, %7, %8 : vector<32x128xf32>
    %cst_5 = arith.constant 2.000000e-01 : f32
    %10 = vector.broadcast %cst_5 : f32 to vector<32x128xf32>
    %11 = arith.mulf %10, %7 : vector<32x128xf32>
    %12 = arith.select %9, %7, %11 : vector<32x128xi1>, vector<32x128xf32>
    %13 = arith.truncf %12 : vector<32x128xf32> to vector<32x128xbf16>
    %c0_6 = arith.constant 0 : index
    %c0_7 = arith.constant 0 : index
    %14 = vector.load %arg4[%c0_6, %c0_7] : memref<32x128xbf16, #tpu.memory_space<vmem>>, vector<32x128xbf16>
    tpu.vector_store %arg4[%c0_6, %c0_7], %13 {strides = array<i32>} : memref<32x128xbf16, #tpu.memory_space<vmem>>, vector<32x128xbf16>,
    return
  }
  func.func @transform_0(%arg0: i32) -> (i32, i32) {
    %c0_i32 = arith.constant 0 : i32
    %c0_i32_0 = arith.constant 0 : i32
    return %arg0, %c0_i32 : i32, i32
  }
  func.func @transform_1(%arg0: i32) -> (i32, i32) {
    %c0_i32 = arith.constant 0 : i32
    %c0_i32_0 = arith.constant 0 : i32
    %c0_i32_1 = arith.constant 0 : i32
    return %c0_i32, %c0_i32_0 : i32, i32
  }
  func.func @transform_2(%arg0: i32) -> (i32, i32) {
    %c0_i32 = arith.constant 0 : i32
    %c0_i32_0 = arith.constant 0 : i32
    %c0_i32_1 = arith.constant 0 : i32
    return %c0_i32, %c0_i32_0 : i32, i32
  }
  func.func @transform_3(%arg0: i32) -> (i32, i32) {
    %c0_i32 = arith.constant 0 : i32
    %c0_i32_0 = arith.constant 0 : i32
    return %arg0, %c0_i32 : i32, i32
  }
}

module attributes {stable_mosaic.version = 11 : i64} {
  func.func @_matmul_stats_kernel(%arg0: i32, %arg1: memref<16x2048xbf16, #tpu.memory_space<vmem>>, %arg2: memref<2048x256xbf16, #tpu.memory_space<vmem>>, %arg3: memref<16x256xbf16, #tpu.memory_space<vmem>>, %arg4: memref<8x256xf32, #tpu.memory_space<vmem>>, %arg5: memref<8x256xf32, #tpu.memory_space<vmem>>) attributes {dimension_semantics = [#tpu.dimension_semantics<parallel>], iteration_bounds = array<i64: 1>, scalar_prefetch = 0 : i64, scratch_operands = 0 : i64, tpu.core_type = #tpu.core_type<tc>, window_params = [{transform_indices = @transform_0, window_bounds = array<i64: 16, 2048>}, {pipeline_mode = #tpu.pipeline_mode<synchronous>, transform_indices = @transform_1, window_bounds = array<i64: 2048, 256>}, {transform_indices = @transform_2, window_bounds = array<i64: 16, 256>}, {transform_indices = @transform_3, window_bounds = array<i64: 8, 256>}, {transform_indices = @transform_4, window_bounds = array<i64: 8, 256>}]} {
    %c0 = arith.constant 0 : index
    %c0_0 = arith.constant 0 : index
    %0 = vector.load %arg1[%c0, %c0_0] : memref<16x2048xbf16, #tpu.memory_space<vmem>>, vector<16x2048xbf16>
    %c0_1 = arith.constant 0 : index
    %c0_2 = arith.constant 0 : index
    %1 = vector.load %arg2[%c0_1, %c0_2] : memref<2048x256xbf16, #tpu.memory_space<vmem>>, vector<2048x256xbf16>
    %cst = arith.constant dense<0.000000e+00> : vector<16x256xf32>
    %2 = tpu.matmul %0, %1, %cst {dimension_numbers = #tpu.dot_dimension_numbers<[1], [0], [0], [1], [0, 0, 1, 1], [], []>} : vector<16x2048xbf16>, vector<2048x256xbf16>, vector<16x256xf32> -> vector<16x256xf32>
    %3 = arith.truncf %2 : vector<16x256xf32> to vector<16x256xbf16>
    %c0_3 = arith.constant 0 : index
    %c0_4 = arith.constant 0 : index
    %4 = vector.load %arg3[%c0_3, %c0_4] : memref<16x256xbf16, #tpu.memory_space<vmem>>, vector<16x256xbf16>
    tpu.vector_store %arg3[%c0_3, %c0_4], %3 {strides = array<i32>} : memref<16x256xbf16, #tpu.memory_space<vmem>>, vector<16x256xbf16>,
    %cst_5 = arith.constant dense<0.000000e+00> : vector<256xf32>
    %5 = vector.multi_reduction <add>, %2, %cst_5 [0] : vector<16x256xf32> to vector<256xf32>
    %6 = vector.shape_cast %5 : vector<256xf32> to vector<1x256xf32>
    %7 = vector.shape_cast %6 : vector<1x256xf32> to vector<1x256xf32>
    %8 = vector.broadcast %7 : vector<1x256xf32> to vector<8x256xf32>
    %c0_6 = arith.constant 0 : index
    %c0_7 = arith.constant 0 : index
    %9 = vector.load %arg4[%c0_6, %c0_7] : memref<8x256xf32, #tpu.memory_space<vmem>>, vector<8x256xf32>
    tpu.vector_store %arg4[%c0_6, %c0_7], %8 {strides = array<i32>} : memref<8x256xf32, #tpu.memory_space<vmem>>, vector<8x256xf32>,
    %10 = arith.mulf %2, %2 : vector<16x256xf32>
    %cst_8 = arith.constant dense<0.000000e+00> : vector<256xf32>
    %11 = vector.multi_reduction <add>, %10, %cst_8 [0] : vector<16x256xf32> to vector<256xf32>
    %12 = vector.shape_cast %11 : vector<256xf32> to vector<1x256xf32>
    %13 = vector.shape_cast %12 : vector<1x256xf32> to vector<1x256xf32>
    %14 = vector.broadcast %13 : vector<1x256xf32> to vector<8x256xf32>
    %c0_9 = arith.constant 0 : index
    %c0_10 = arith.constant 0 : index
    %15 = vector.load %arg5[%c0_9, %c0_10] : memref<8x256xf32, #tpu.memory_space<vmem>>, vector<8x256xf32>
    tpu.vector_store %arg5[%c0_9, %c0_10], %14 {strides = array<i32>} : memref<8x256xf32, #tpu.memory_space<vmem>>, vector<8x256xf32>,
    return
  }
  func.func @transform_0(%arg0: i32) -> (i32, i32) {
    %c0_i32 = arith.constant 0 : i32
    %c0_i32_0 = arith.constant 0 : i32
    return %arg0, %c0_i32 : i32, i32
  }
  func.func @transform_1(%arg0: i32) -> (i32, i32) {
    %c0_i32 = arith.constant 0 : i32
    %c0_i32_0 = arith.constant 0 : i32
    %c0_i32_1 = arith.constant 0 : i32
    return %c0_i32, %c0_i32_0 : i32, i32
  }
  func.func @transform_2(%arg0: i32) -> (i32, i32) {
    %c0_i32 = arith.constant 0 : i32
    %c0_i32_0 = arith.constant 0 : i32
    return %arg0, %c0_i32 : i32, i32
  }
  func.func @transform_3(%arg0: i32) -> (i32, i32) {
    %c0_i32 = arith.constant 0 : i32
    %c0_i32_0 = arith.constant 0 : i32
    return %arg0, %c0_i32 : i32, i32
  }
  func.func @transform_4(%arg0: i32) -> (i32, i32) {
    %c0_i32 = arith.constant 0 : i32
    %c0_i32_0 = arith.constant 0 : i32
    return %arg0, %c0_i32 : i32, i32
  }
}

module attributes {stable_mosaic.version = 11 : i64} {
  func.func @_bn_act_kernel(%arg0: i32, %arg1: memref<16x256xbf16, #tpu.memory_space<vmem>>, %arg2: memref<1x256xf32, #tpu.memory_space<vmem>>, %arg3: memref<1x256xf32, #tpu.memory_space<vmem>>, %arg4: memref<16x256xbf16, #tpu.memory_space<vmem>>) attributes {dimension_semantics = [#tpu.dimension_semantics<parallel>], iteration_bounds = array<i64: 1>, scalar_prefetch = 0 : i64, scratch_operands = 0 : i64, tpu.core_type = #tpu.core_type<tc>, window_params = [{transform_indices = @transform_0, window_bounds = array<i64: 16, 256>}, {pipeline_mode = #tpu.pipeline_mode<synchronous>, transform_indices = @transform_1, window_bounds = array<i64: 1, 256>}, {pipeline_mode = #tpu.pipeline_mode<synchronous>, transform_indices = @transform_2, window_bounds = array<i64: 1, 256>}, {transform_indices = @transform_3, window_bounds = array<i64: 16, 256>}]} {
    %c0 = arith.constant 0 : index
    %c0_0 = arith.constant 0 : index
    %0 = vector.load %arg1[%c0, %c0_0] : memref<16x256xbf16, #tpu.memory_space<vmem>>, vector<16x256xbf16>
    %1 = arith.extf %0 : vector<16x256xbf16> to vector<16x256xf32>
    %c0_1 = arith.constant 0 : index
    %c0_2 = arith.constant 0 : index
    %2 = vector.load %arg2[%c0_1, %c0_2] : memref<1x256xf32, #tpu.memory_space<vmem>>, vector<1x256xf32>
    %3 = vector.broadcast %2 : vector<1x256xf32> to vector<16x256xf32>
    %4 = arith.mulf %1, %3 : vector<16x256xf32>
    %c0_3 = arith.constant 0 : index
    %c0_4 = arith.constant 0 : index
    %5 = vector.load %arg3[%c0_3, %c0_4] : memref<1x256xf32, #tpu.memory_space<vmem>>, vector<1x256xf32>
    %6 = vector.broadcast %5 : vector<1x256xf32> to vector<16x256xf32>
    %7 = arith.addf %4, %6 : vector<16x256xf32>
    %cst = arith.constant 0.000000e+00 : f32
    %8 = vector.broadcast %cst : f32 to vector<16x256xf32>
    %9 = arith.cmpf oge, %7, %8 : vector<16x256xf32>
    %cst_5 = arith.constant 2.000000e-01 : f32
    %10 = vector.broadcast %cst_5 : f32 to vector<16x256xf32>
    %11 = arith.mulf %10, %7 : vector<16x256xf32>
    %12 = arith.select %9, %7, %11 : vector<16x256xi1>, vector<16x256xf32>
    %13 = arith.truncf %12 : vector<16x256xf32> to vector<16x256xbf16>
    %c0_6 = arith.constant 0 : index
    %c0_7 = arith.constant 0 : index
    %14 = vector.load %arg4[%c0_6, %c0_7] : memref<16x256xbf16, #tpu.memory_space<vmem>>, vector<16x256xbf16>
    tpu.vector_store %arg4[%c0_6, %c0_7], %13 {strides = array<i32>} : memref<16x256xbf16, #tpu.memory_space<vmem>>, vector<16x256xbf16>,
    return
  }
  func.func @transform_0(%arg0: i32) -> (i32, i32) {
    %c0_i32 = arith.constant 0 : i32
    %c0_i32_0 = arith.constant 0 : i32
    return %arg0, %c0_i32 : i32, i32
  }
  func.func @transform_1(%arg0: i32) -> (i32, i32) {
    %c0_i32 = arith.constant 0 : i32
    %c0_i32_0 = arith.constant 0 : i32
    %c0_i32_1 = arith.constant 0 : i32
    return %c0_i32, %c0_i32_0 : i32, i32
  }
  func.func @transform_2(%arg0: i32) -> (i32, i32) {
    %c0_i32 = arith.constant 0 : i32
    %c0_i32_0 = arith.constant 0 : i32
    %c0_i32_1 = arith.constant 0 : i32
    return %c0_i32, %c0_i32_0 : i32, i32
  }
  func.func @transform_3(%arg0: i32) -> (i32, i32) {
    %c0_i32 = arith.constant 0 : i32
    %c0_i32_0 = arith.constant 0 : i32
    return %arg0, %c0_i32 : i32, i32
  }
}

module attributes {stable_mosaic.version = 11 : i64} {
  func.func @_mid_dec1_kernel(%arg0: i32, %arg1: memref<16x256xbf16, #tpu.memory_space<vmem>>, %arg2: memref<256x1024xbf16, #tpu.memory_space<vmem>>, %arg3: memref<1x1024xf32, #tpu.memory_space<vmem>>, %arg4: memref<1024x256xbf16, #tpu.memory_space<vmem>>, %arg5: memref<16x256xbf16, #tpu.memory_space<vmem>>, %arg6: memref<8x256xf32, #tpu.memory_space<vmem>>, %arg7: memref<8x256xf32, #tpu.memory_space<vmem>>) attributes {dimension_semantics = [#tpu.dimension_semantics<parallel>], iteration_bounds = array<i64: 1>, scalar_prefetch = 0 : i64, scratch_operands = 0 : i64, tpu.core_type = #tpu.core_type<tc>, window_params = [{transform_indices = @transform_0, window_bounds = array<i64: 16, 256>}, {pipeline_mode = #tpu.pipeline_mode<synchronous>, transform_indices = @transform_1, window_bounds = array<i64: 256, 1024>}, {pipeline_mode = #tpu.pipeline_mode<synchronous>, transform_indices = @transform_2, window_bounds = array<i64: 1, 1024>}, {pipeline_mode = #tpu.pipeline_mode<synchronous>, transform_indices = @transform_3, window_bounds = array<i64: 1024, 256>}, {transform_indices = @transform_4, window_bounds = array<i64: 16, 256>}, {transform_indices = @transform_5, window_bounds = array<i64: 8, 256>}, {transform_indices = @transform_6, window_bounds = array<i64: 8, 256>}]} {
    %c0 = arith.constant 0 : index
    %c0_0 = arith.constant 0 : index
    %0 = vector.load %arg1[%c0, %c0_0] : memref<16x256xbf16, #tpu.memory_space<vmem>>, vector<16x256xbf16>
    %c0_1 = arith.constant 0 : index
    %c0_2 = arith.constant 0 : index
    %1 = vector.load %arg2[%c0_1, %c0_2] : memref<256x1024xbf16, #tpu.memory_space<vmem>>, vector<256x1024xbf16>
    %cst = arith.constant dense<0.000000e+00> : vector<16x1024xf32>
    %2 = tpu.matmul %0, %1, %cst {dimension_numbers = #tpu.dot_dimension_numbers<[1], [0], [0], [1], [0, 0, 1, 1], [], []>} : vector<16x256xbf16>, vector<256x1024xbf16>, vector<16x1024xf32> -> vector<16x1024xf32>
    %c0_3 = arith.constant 0 : index
    %c0_4 = arith.constant 0 : index
    %3 = vector.load %arg3[%c0_3, %c0_4] : memref<1x1024xf32, #tpu.memory_space<vmem>>, vector<1x1024xf32>
    %4 = vector.broadcast %3 : vector<1x1024xf32> to vector<16x1024xf32>
    %5 = arith.addf %2, %4 : vector<16x1024xf32>
    %c16_i32 = arith.constant 16 : i32
    %6 = arith.muli %arg0, %c16_i32 : i32
    %7 = tpu.iota {dimensions = array<i32: 0>} : vector<16x1024xi32>
    %8 = vector.broadcast %6 : i32 to vector<16x1024xi32>
    %9 = arith.addi %8, %7 : vector<16x1024xi32>
    %c8_i32 = arith.constant 8 : i32
    %10 = vector.broadcast %c8_i32 : i32 to vector<16x1024xi32>
    %11 = arith.cmpi slt, %9, %10 : vector<16x1024xi32>
    %cst_5 = arith.constant 0.000000e+00 : f32
    %12 = vector.broadcast %cst_5 : f32 to vector<16x1024xf32>
    %13 = arith.select %11, %5, %12 : vector<16x1024xi1>, vector<16x1024xf32>
    %14 = arith.truncf %13 : vector<16x1024xf32> to vector<16x1024xbf16>
    %c0_6 = arith.constant 0 : index
    %c0_7 = arith.constant 0 : index
    %15 = vector.load %arg4[%c0_6, %c0_7] : memref<1024x256xbf16, #tpu.memory_space<vmem>>, vector<1024x256xbf16>
    %cst_8 = arith.constant dense<0.000000e+00> : vector<16x256xf32>
    %16 = tpu.matmul %14, %15, %cst_8 {dimension_numbers = #tpu.dot_dimension_numbers<[1], [0], [0], [1], [0, 0, 1, 1], [], []>} : vector<16x1024xbf16>, vector<1024x256xbf16>, vector<16x256xf32> -> vector<16x256xf32>
    %17 = arith.truncf %16 : vector<16x256xf32> to vector<16x256xbf16>
    %c0_9 = arith.constant 0 : index
    %c0_10 = arith.constant 0 : index
    %18 = vector.load %arg5[%c0_9, %c0_10] : memref<16x256xbf16, #tpu.memory_space<vmem>>, vector<16x256xbf16>
    tpu.vector_store %arg5[%c0_9, %c0_10], %17 {strides = array<i32>} : memref<16x256xbf16, #tpu.memory_space<vmem>>, vector<16x256xbf16>,
    %cst_11 = arith.constant dense<0.000000e+00> : vector<256xf32>
    %19 = vector.multi_reduction <add>, %16, %cst_11 [0] : vector<16x256xf32> to vector<256xf32>
    %20 = vector.shape_cast %19 : vector<256xf32> to vector<1x256xf32>
    %21 = vector.shape_cast %20 : vector<1x256xf32> to vector<1x256xf32>
    %22 = vector.broadcast %21 : vector<1x256xf32> to vector<8x256xf32>
    %c0_12 = arith.constant 0 : index
    %c0_13 = arith.constant 0 : index
    %23 = vector.load %arg6[%c0_12, %c0_13] : memref<8x256xf32, #tpu.memory_space<vmem>>, vector<8x256xf32>
    tpu.vector_store %arg6[%c0_12, %c0_13], %22 {strides = array<i32>} : memref<8x256xf32, #tpu.memory_space<vmem>>, vector<8x256xf32>,
    %24 = arith.mulf %16, %16 : vector<16x256xf32>
    %cst_14 = arith.constant dense<0.000000e+00> : vector<256xf32>
    %25 = vector.multi_reduction <add>, %24, %cst_14 [0] : vector<16x256xf32> to vector<256xf32>
    %26 = vector.shape_cast %25 : vector<256xf32> to vector<1x256xf32>
    %27 = vector.shape_cast %26 : vector<1x256xf32> to vector<1x256xf32>
    %28 = vector.broadcast %27 : vector<1x256xf32> to vector<8x256xf32>
    %c0_15 = arith.constant 0 : index
    %c0_16 = arith.constant 0 : index
    %29 = vector.load %arg7[%c0_15, %c0_16] : memref<8x256xf32, #tpu.memory_space<vmem>>, vector<8x256xf32>
    tpu.vector_store %arg7[%c0_15, %c0_16], %28 {strides = array<i32>} : memref<8x256xf32, #tpu.memory_space<vmem>>, vector<8x256xf32>,
    return
  }
  func.func @transform_0(%arg0: i32) -> (i32, i32) {
    %c0_i32 = arith.constant 0 : i32
    %c0_i32_0 = arith.constant 0 : i32
    return %arg0, %c0_i32 : i32, i32
  }
  func.func @transform_1(%arg0: i32) -> (i32, i32) {
    %c0_i32 = arith.constant 0 : i32
    %c0_i32_0 = arith.constant 0 : i32
    %c0_i32_1 = arith.constant 0 : i32
    return %c0_i32, %c0_i32_0 : i32, i32
  }
  func.func @transform_2(%arg0: i32) -> (i32, i32) {
    %c0_i32 = arith.constant 0 : i32
    %c0_i32_0 = arith.constant 0 : i32
    %c0_i32_1 = arith.constant 0 : i32
    return %c0_i32, %c0_i32_0 : i32, i32
  }
  func.func @transform_3(%arg0: i32) -> (i32, i32) {
    %c0_i32 = arith.constant 0 : i32
    %c0_i32_0 = arith.constant 0 : i32
    %c0_i32_1 = arith.constant 0 : i32
    return %c0_i32, %c0_i32_0 : i32, i32
  }
  func.func @transform_4(%arg0: i32) -> (i32, i32) {
    %c0_i32 = arith.constant 0 : i32
    %c0_i32_0 = arith.constant 0 : i32
    return %arg0, %c0_i32 : i32, i32
  }
  func.func @transform_5(%arg0: i32) -> (i32, i32) {
    %c0_i32 = arith.constant 0 : i32
    %c0_i32_0 = arith.constant 0 : i32
    return %arg0, %c0_i32 : i32, i32
  }
  func.func @transform_6(%arg0: i32) -> (i32, i32) {
    %c0_i32 = arith.constant 0 : i32
    %c0_i32_0 = arith.constant 0 : i32
    return %arg0, %c0_i32 : i32, i32
  }
}

module attributes {stable_mosaic.version = 11 : i64} {
  func.func @_matmul_stats_kernel(%arg0: i32, %arg1: memref<16x2304xbf16, #tpu.memory_space<vmem>>, %arg2: memref<2304x512xbf16, #tpu.memory_space<vmem>>, %arg3: memref<16x512xbf16, #tpu.memory_space<vmem>>, %arg4: memref<8x512xf32, #tpu.memory_space<vmem>>, %arg5: memref<8x512xf32, #tpu.memory_space<vmem>>) attributes {dimension_semantics = [#tpu.dimension_semantics<parallel>], iteration_bounds = array<i64: 1>, scalar_prefetch = 0 : i64, scratch_operands = 0 : i64, tpu.core_type = #tpu.core_type<tc>, window_params = [{transform_indices = @transform_0, window_bounds = array<i64: 16, 2304>}, {pipeline_mode = #tpu.pipeline_mode<synchronous>, transform_indices = @transform_1, window_bounds = array<i64: 2304, 512>}, {transform_indices = @transform_2, window_bounds = array<i64: 16, 512>}, {transform_indices = @transform_3, window_bounds = array<i64: 8, 512>}, {transform_indices = @transform_4, window_bounds = array<i64: 8, 512>}]} {
    %c0 = arith.constant 0 : index
    %c0_0 = arith.constant 0 : index
    %0 = vector.load %arg1[%c0, %c0_0] : memref<16x2304xbf16, #tpu.memory_space<vmem>>, vector<16x2304xbf16>
    %c0_1 = arith.constant 0 : index
    %c0_2 = arith.constant 0 : index
    %1 = vector.load %arg2[%c0_1, %c0_2] : memref<2304x512xbf16, #tpu.memory_space<vmem>>, vector<2304x512xbf16>
    %cst = arith.constant dense<0.000000e+00> : vector<16x512xf32>
    %2 = tpu.matmul %0, %1, %cst {dimension_numbers = #tpu.dot_dimension_numbers<[1], [0], [0], [1], [0, 0, 1, 1], [], []>} : vector<16x2304xbf16>, vector<2304x512xbf16>, vector<16x512xf32> -> vector<16x512xf32>
    %3 = arith.truncf %2 : vector<16x512xf32> to vector<16x512xbf16>
    %c0_3 = arith.constant 0 : index
    %c0_4 = arith.constant 0 : index
    %4 = vector.load %arg3[%c0_3, %c0_4] : memref<16x512xbf16, #tpu.memory_space<vmem>>, vector<16x512xbf16>
    tpu.vector_store %arg3[%c0_3, %c0_4], %3 {strides = array<i32>} : memref<16x512xbf16, #tpu.memory_space<vmem>>, vector<16x512xbf16>,
    %cst_5 = arith.constant dense<0.000000e+00> : vector<512xf32>
    %5 = vector.multi_reduction <add>, %2, %cst_5 [0] : vector<16x512xf32> to vector<512xf32>
    %6 = vector.shape_cast %5 : vector<512xf32> to vector<1x512xf32>
    %7 = vector.shape_cast %6 : vector<1x512xf32> to vector<1x512xf32>
    %8 = vector.broadcast %7 : vector<1x512xf32> to vector<8x512xf32>
    %c0_6 = arith.constant 0 : index
    %c0_7 = arith.constant 0 : index
    %9 = vector.load %arg4[%c0_6, %c0_7] : memref<8x512xf32, #tpu.memory_space<vmem>>, vector<8x512xf32>
    tpu.vector_store %arg4[%c0_6, %c0_7], %8 {strides = array<i32>} : memref<8x512xf32, #tpu.memory_space<vmem>>, vector<8x512xf32>,
    %10 = arith.mulf %2, %2 : vector<16x512xf32>
    %cst_8 = arith.constant dense<0.000000e+00> : vector<512xf32>
    %11 = vector.multi_reduction <add>, %10, %cst_8 [0] : vector<16x512xf32> to vector<512xf32>
    %12 = vector.shape_cast %11 : vector<512xf32> to vector<1x512xf32>
    %13 = vector.shape_cast %12 : vector<1x512xf32> to vector<1x512xf32>
    %14 = vector.broadcast %13 : vector<1x512xf32> to vector<8x512xf32>
    %c0_9 = arith.constant 0 : index
    %c0_10 = arith.constant 0 : index
    %15 = vector.load %arg5[%c0_9, %c0_10] : memref<8x512xf32, #tpu.memory_space<vmem>>, vector<8x512xf32>
    tpu.vector_store %arg5[%c0_9, %c0_10], %14 {strides = array<i32>} : memref<8x512xf32, #tpu.memory_space<vmem>>, vector<8x512xf32>,
    return
  }
  func.func @transform_0(%arg0: i32) -> (i32, i32) {
    %c0_i32 = arith.constant 0 : i32
    %c0_i32_0 = arith.constant 0 : i32
    return %arg0, %c0_i32 : i32, i32
  }
  func.func @transform_1(%arg0: i32) -> (i32, i32) {
    %c0_i32 = arith.constant 0 : i32
    %c0_i32_0 = arith.constant 0 : i32
    %c0_i32_1 = arith.constant 0 : i32
    return %c0_i32, %c0_i32_0 : i32, i32
  }
  func.func @transform_2(%arg0: i32) -> (i32, i32) {
    %c0_i32 = arith.constant 0 : i32
    %c0_i32_0 = arith.constant 0 : i32
    return %arg0, %c0_i32 : i32, i32
  }
  func.func @transform_3(%arg0: i32) -> (i32, i32) {
    %c0_i32 = arith.constant 0 : i32
    %c0_i32_0 = arith.constant 0 : i32
    return %arg0, %c0_i32 : i32, i32
  }
  func.func @transform_4(%arg0: i32) -> (i32, i32) {
    %c0_i32 = arith.constant 0 : i32
    %c0_i32_0 = arith.constant 0 : i32
    return %arg0, %c0_i32 : i32, i32
  }
}

module attributes {stable_mosaic.version = 11 : i64} {
  func.func @_bn_act_kernel(%arg0: i32, %arg1: memref<16x512xbf16, #tpu.memory_space<vmem>>, %arg2: memref<1x512xf32, #tpu.memory_space<vmem>>, %arg3: memref<1x512xf32, #tpu.memory_space<vmem>>, %arg4: memref<16x512xbf16, #tpu.memory_space<vmem>>) attributes {dimension_semantics = [#tpu.dimension_semantics<parallel>], iteration_bounds = array<i64: 1>, scalar_prefetch = 0 : i64, scratch_operands = 0 : i64, tpu.core_type = #tpu.core_type<tc>, window_params = [{transform_indices = @transform_0, window_bounds = array<i64: 16, 512>}, {pipeline_mode = #tpu.pipeline_mode<synchronous>, transform_indices = @transform_1, window_bounds = array<i64: 1, 512>}, {pipeline_mode = #tpu.pipeline_mode<synchronous>, transform_indices = @transform_2, window_bounds = array<i64: 1, 512>}, {transform_indices = @transform_3, window_bounds = array<i64: 16, 512>}]} {
    %c0 = arith.constant 0 : index
    %c0_0 = arith.constant 0 : index
    %0 = vector.load %arg1[%c0, %c0_0] : memref<16x512xbf16, #tpu.memory_space<vmem>>, vector<16x512xbf16>
    %1 = arith.extf %0 : vector<16x512xbf16> to vector<16x512xf32>
    %c0_1 = arith.constant 0 : index
    %c0_2 = arith.constant 0 : index
    %2 = vector.load %arg2[%c0_1, %c0_2] : memref<1x512xf32, #tpu.memory_space<vmem>>, vector<1x512xf32>
    %3 = vector.broadcast %2 : vector<1x512xf32> to vector<16x512xf32>
    %4 = arith.mulf %1, %3 : vector<16x512xf32>
    %c0_3 = arith.constant 0 : index
    %c0_4 = arith.constant 0 : index
    %5 = vector.load %arg3[%c0_3, %c0_4] : memref<1x512xf32, #tpu.memory_space<vmem>>, vector<1x512xf32>
    %6 = vector.broadcast %5 : vector<1x512xf32> to vector<16x512xf32>
    %7 = arith.addf %4, %6 : vector<16x512xf32>
    %cst = arith.constant 0.000000e+00 : f32
    %8 = vector.broadcast %cst : f32 to vector<16x512xf32>
    %9 = arith.cmpf oge, %7, %8 : vector<16x512xf32>
    %cst_5 = arith.constant 2.000000e-01 : f32
    %10 = vector.broadcast %cst_5 : f32 to vector<16x512xf32>
    %11 = arith.mulf %10, %7 : vector<16x512xf32>
    %12 = arith.select %9, %7, %11 : vector<16x512xi1>, vector<16x512xf32>
    %13 = arith.truncf %12 : vector<16x512xf32> to vector<16x512xbf16>
    %c0_6 = arith.constant 0 : index
    %c0_7 = arith.constant 0 : index
    %14 = vector.load %arg4[%c0_6, %c0_7] : memref<16x512xbf16, #tpu.memory_space<vmem>>, vector<16x512xbf16>
    tpu.vector_store %arg4[%c0_6, %c0_7], %13 {strides = array<i32>} : memref<16x512xbf16, #tpu.memory_space<vmem>>, vector<16x512xbf16>,
    return
  }
  func.func @transform_0(%arg0: i32) -> (i32, i32) {
    %c0_i32 = arith.constant 0 : i32
    %c0_i32_0 = arith.constant 0 : i32
    return %arg0, %c0_i32 : i32, i32
  }
  func.func @transform_1(%arg0: i32) -> (i32, i32) {
    %c0_i32 = arith.constant 0 : i32
    %c0_i32_0 = arith.constant 0 : i32
    %c0_i32_1 = arith.constant 0 : i32
    return %c0_i32, %c0_i32_0 : i32, i32
  }
  func.func @transform_2(%arg0: i32) -> (i32, i32) {
    %c0_i32 = arith.constant 0 : i32
    %c0_i32_0 = arith.constant 0 : i32
    %c0_i32_1 = arith.constant 0 : i32
    return %c0_i32, %c0_i32_0 : i32, i32
  }
  func.func @transform_3(%arg0: i32) -> (i32, i32) {
    %c0_i32 = arith.constant 0 : i32
    %c0_i32_0 = arith.constant 0 : i32
    return %arg0, %c0_i32 : i32, i32
  }
}

module attributes {stable_mosaic.version = 11 : i64} {
  func.func @_matmul_stats_kernel(%arg0: i32, %arg1: memref<32x1152xbf16, #tpu.memory_space<vmem>>, %arg2: memref<1152x256xbf16, #tpu.memory_space<vmem>>, %arg3: memref<32x256xbf16, #tpu.memory_space<vmem>>, %arg4: memref<8x256xf32, #tpu.memory_space<vmem>>, %arg5: memref<8x256xf32, #tpu.memory_space<vmem>>) attributes {dimension_semantics = [#tpu.dimension_semantics<parallel>], iteration_bounds = array<i64: 1>, scalar_prefetch = 0 : i64, scratch_operands = 0 : i64, tpu.core_type = #tpu.core_type<tc>, window_params = [{transform_indices = @transform_0, window_bounds = array<i64: 32, 1152>}, {pipeline_mode = #tpu.pipeline_mode<synchronous>, transform_indices = @transform_1, window_bounds = array<i64: 1152, 256>}, {transform_indices = @transform_2, window_bounds = array<i64: 32, 256>}, {transform_indices = @transform_3, window_bounds = array<i64: 8, 256>}, {transform_indices = @transform_4, window_bounds = array<i64: 8, 256>}]} {
    %c0 = arith.constant 0 : index
    %c0_0 = arith.constant 0 : index
    %0 = vector.load %arg1[%c0, %c0_0] : memref<32x1152xbf16, #tpu.memory_space<vmem>>, vector<32x1152xbf16>
    %c0_1 = arith.constant 0 : index
    %c0_2 = arith.constant 0 : index
    %1 = vector.load %arg2[%c0_1, %c0_2] : memref<1152x256xbf16, #tpu.memory_space<vmem>>, vector<1152x256xbf16>
    %cst = arith.constant dense<0.000000e+00> : vector<32x256xf32>
    %2 = tpu.matmul %0, %1, %cst {dimension_numbers = #tpu.dot_dimension_numbers<[1], [0], [0], [1], [0, 0, 1, 1], [], []>} : vector<32x1152xbf16>, vector<1152x256xbf16>, vector<32x256xf32> -> vector<32x256xf32>
    %3 = arith.truncf %2 : vector<32x256xf32> to vector<32x256xbf16>
    %c0_3 = arith.constant 0 : index
    %c0_4 = arith.constant 0 : index
    %4 = vector.load %arg3[%c0_3, %c0_4] : memref<32x256xbf16, #tpu.memory_space<vmem>>, vector<32x256xbf16>
    tpu.vector_store %arg3[%c0_3, %c0_4], %3 {strides = array<i32>} : memref<32x256xbf16, #tpu.memory_space<vmem>>, vector<32x256xbf16>,
    %cst_5 = arith.constant dense<0.000000e+00> : vector<256xf32>
    %5 = vector.multi_reduction <add>, %2, %cst_5 [0] : vector<32x256xf32> to vector<256xf32>
    %6 = vector.shape_cast %5 : vector<256xf32> to vector<1x256xf32>
    %7 = vector.shape_cast %6 : vector<1x256xf32> to vector<1x256xf32>
    %8 = vector.broadcast %7 : vector<1x256xf32> to vector<8x256xf32>
    %c0_6 = arith.constant 0 : index
    %c0_7 = arith.constant 0 : index
    %9 = vector.load %arg4[%c0_6, %c0_7] : memref<8x256xf32, #tpu.memory_space<vmem>>, vector<8x256xf32>
    tpu.vector_store %arg4[%c0_6, %c0_7], %8 {strides = array<i32>} : memref<8x256xf32, #tpu.memory_space<vmem>>, vector<8x256xf32>,
    %10 = arith.mulf %2, %2 : vector<32x256xf32>
    %cst_8 = arith.constant dense<0.000000e+00> : vector<256xf32>
    %11 = vector.multi_reduction <add>, %10, %cst_8 [0] : vector<32x256xf32> to vector<256xf32>
    %12 = vector.shape_cast %11 : vector<256xf32> to vector<1x256xf32>
    %13 = vector.shape_cast %12 : vector<1x256xf32> to vector<1x256xf32>
    %14 = vector.broadcast %13 : vector<1x256xf32> to vector<8x256xf32>
    %c0_9 = arith.constant 0 : index
    %c0_10 = arith.constant 0 : index
    %15 = vector.load %arg5[%c0_9, %c0_10] : memref<8x256xf32, #tpu.memory_space<vmem>>, vector<8x256xf32>
    tpu.vector_store %arg5[%c0_9, %c0_10], %14 {strides = array<i32>} : memref<8x256xf32, #tpu.memory_space<vmem>>, vector<8x256xf32>,
    return
  }
  func.func @transform_0(%arg0: i32) -> (i32, i32) {
    %c0_i32 = arith.constant 0 : i32
    %c0_i32_0 = arith.constant 0 : i32
    return %arg0, %c0_i32 : i32, i32
  }
  func.func @transform_1(%arg0: i32) -> (i32, i32) {
    %c0_i32 = arith.constant 0 : i32
    %c0_i32_0 = arith.constant 0 : i32
    %c0_i32_1 = arith.constant 0 : i32
    return %c0_i32, %c0_i32_0 : i32, i32
  }
  func.func @transform_2(%arg0: i32) -> (i32, i32) {
    %c0_i32 = arith.constant 0 : i32
    %c0_i32_0 = arith.constant 0 : i32
    return %arg0, %c0_i32 : i32, i32
  }
  func.func @transform_3(%arg0: i32) -> (i32, i32) {
    %c0_i32 = arith.constant 0 : i32
    %c0_i32_0 = arith.constant 0 : i32
    return %arg0, %c0_i32 : i32, i32
  }
  func.func @transform_4(%arg0: i32) -> (i32, i32) {
    %c0_i32 = arith.constant 0 : i32
    %c0_i32_0 = arith.constant 0 : i32
    return %arg0, %c0_i32 : i32, i32
  }
}

module attributes {stable_mosaic.version = 11 : i64} {
  func.func @_bn_act_kernel(%arg0: i32, %arg1: memref<32x256xbf16, #tpu.memory_space<vmem>>, %arg2: memref<1x256xf32, #tpu.memory_space<vmem>>, %arg3: memref<1x256xf32, #tpu.memory_space<vmem>>, %arg4: memref<32x256xbf16, #tpu.memory_space<vmem>>) attributes {dimension_semantics = [#tpu.dimension_semantics<parallel>], iteration_bounds = array<i64: 1>, scalar_prefetch = 0 : i64, scratch_operands = 0 : i64, tpu.core_type = #tpu.core_type<tc>, window_params = [{transform_indices = @transform_0, window_bounds = array<i64: 32, 256>}, {pipeline_mode = #tpu.pipeline_mode<synchronous>, transform_indices = @transform_1, window_bounds = array<i64: 1, 256>}, {pipeline_mode = #tpu.pipeline_mode<synchronous>, transform_indices = @transform_2, window_bounds = array<i64: 1, 256>}, {transform_indices = @transform_3, window_bounds = array<i64: 32, 256>}]} {
    %c0 = arith.constant 0 : index
    %c0_0 = arith.constant 0 : index
    %0 = vector.load %arg1[%c0, %c0_0] : memref<32x256xbf16, #tpu.memory_space<vmem>>, vector<32x256xbf16>
    %1 = arith.extf %0 : vector<32x256xbf16> to vector<32x256xf32>
    %c0_1 = arith.constant 0 : index
    %c0_2 = arith.constant 0 : index
    %2 = vector.load %arg2[%c0_1, %c0_2] : memref<1x256xf32, #tpu.memory_space<vmem>>, vector<1x256xf32>
    %3 = vector.broadcast %2 : vector<1x256xf32> to vector<32x256xf32>
    %4 = arith.mulf %1, %3 : vector<32x256xf32>
    %c0_3 = arith.constant 0 : index
    %c0_4 = arith.constant 0 : index
    %5 = vector.load %arg3[%c0_3, %c0_4] : memref<1x256xf32, #tpu.memory_space<vmem>>, vector<1x256xf32>
    %6 = vector.broadcast %5 : vector<1x256xf32> to vector<32x256xf32>
    %7 = arith.addf %4, %6 : vector<32x256xf32>
    %cst = arith.constant 0.000000e+00 : f32
    %8 = vector.broadcast %cst : f32 to vector<32x256xf32>
    %9 = arith.cmpf oge, %7, %8 : vector<32x256xf32>
    %cst_5 = arith.constant 2.000000e-01 : f32
    %10 = vector.broadcast %cst_5 : f32 to vector<32x256xf32>
    %11 = arith.mulf %10, %7 : vector<32x256xf32>
    %12 = arith.select %9, %7, %11 : vector<32x256xi1>, vector<32x256xf32>
    %13 = arith.truncf %12 : vector<32x256xf32> to vector<32x256xbf16>
    %c0_6 = arith.constant 0 : index
    %c0_7 = arith.constant 0 : index
    %14 = vector.load %arg4[%c0_6, %c0_7] : memref<32x256xbf16, #tpu.memory_space<vmem>>, vector<32x256xbf16>
    tpu.vector_store %arg4[%c0_6, %c0_7], %13 {strides = array<i32>} : memref<32x256xbf16, #tpu.memory_space<vmem>>, vector<32x256xbf16>,
    return
  }
  func.func @transform_0(%arg0: i32) -> (i32, i32) {
    %c0_i32 = arith.constant 0 : i32
    %c0_i32_0 = arith.constant 0 : i32
    return %arg0, %c0_i32 : i32, i32
  }
  func.func @transform_1(%arg0: i32) -> (i32, i32) {
    %c0_i32 = arith.constant 0 : i32
    %c0_i32_0 = arith.constant 0 : i32
    %c0_i32_1 = arith.constant 0 : i32
    return %c0_i32, %c0_i32_0 : i32, i32
  }
  func.func @transform_2(%arg0: i32) -> (i32, i32) {
    %c0_i32 = arith.constant 0 : i32
    %c0_i32_0 = arith.constant 0 : i32
    %c0_i32_1 = arith.constant 0 : i32
    return %c0_i32, %c0_i32_0 : i32, i32
  }
  func.func @transform_3(%arg0: i32) -> (i32, i32) {
    %c0_i32 = arith.constant 0 : i32
    %c0_i32_0 = arith.constant 0 : i32
    return %arg0, %c0_i32 : i32, i32
  }
}

module attributes {stable_mosaic.version = 11 : i64} {
  func.func @_matmul_stats_kernel(%arg0: i32, %arg1: memref<128x640xbf16, #tpu.memory_space<vmem>>, %arg2: memref<640x128xbf16, #tpu.memory_space<vmem>>, %arg3: memref<128x128xbf16, #tpu.memory_space<vmem>>, %arg4: memref<8x128xf32, #tpu.memory_space<vmem>>, %arg5: memref<8x128xf32, #tpu.memory_space<vmem>>) attributes {dimension_semantics = [#tpu.dimension_semantics<parallel>], iteration_bounds = array<i64: 1>, scalar_prefetch = 0 : i64, scratch_operands = 0 : i64, tpu.core_type = #tpu.core_type<tc>, window_params = [{transform_indices = @transform_0, window_bounds = array<i64: 128, 640>}, {pipeline_mode = #tpu.pipeline_mode<synchronous>, transform_indices = @transform_1, window_bounds = array<i64: 640, 128>}, {transform_indices = @transform_2, window_bounds = array<i64: 128, 128>}, {transform_indices = @transform_3, window_bounds = array<i64: 8, 128>}, {transform_indices = @transform_4, window_bounds = array<i64: 8, 128>}]} {
    %c0 = arith.constant 0 : index
    %c0_0 = arith.constant 0 : index
    %0 = vector.load %arg1[%c0, %c0_0] : memref<128x640xbf16, #tpu.memory_space<vmem>>, vector<128x640xbf16>
    %c0_1 = arith.constant 0 : index
    %c0_2 = arith.constant 0 : index
    %1 = vector.load %arg2[%c0_1, %c0_2] : memref<640x128xbf16, #tpu.memory_space<vmem>>, vector<640x128xbf16>
    %cst = arith.constant dense<0.000000e+00> : vector<128x128xf32>
    %2 = tpu.matmul %0, %1, %cst {dimension_numbers = #tpu.dot_dimension_numbers<[1], [0], [0], [1], [0, 0, 1, 1], [], []>} : vector<128x640xbf16>, vector<640x128xbf16>, vector<128x128xf32> -> vector<128x128xf32>
    %3 = arith.truncf %2 : vector<128x128xf32> to vector<128x128xbf16>
    %c0_3 = arith.constant 0 : index
    %c0_4 = arith.constant 0 : index
    %4 = vector.load %arg3[%c0_3, %c0_4] : memref<128x128xbf16, #tpu.memory_space<vmem>>, vector<128x128xbf16>
    tpu.vector_store %arg3[%c0_3, %c0_4], %3 {strides = array<i32>} : memref<128x128xbf16, #tpu.memory_space<vmem>>, vector<128x128xbf16>,
    %cst_5 = arith.constant dense<0.000000e+00> : vector<128xf32>
    %5 = vector.multi_reduction <add>, %2, %cst_5 [0] : vector<128x128xf32> to vector<128xf32>
    %6 = vector.shape_cast %5 : vector<128xf32> to vector<1x128xf32>
    %7 = vector.shape_cast %6 : vector<1x128xf32> to vector<1x128xf32>
    %8 = vector.broadcast %7 : vector<1x128xf32> to vector<8x128xf32>
    %c0_6 = arith.constant 0 : index
    %c0_7 = arith.constant 0 : index
    %9 = vector.load %arg4[%c0_6, %c0_7] : memref<8x128xf32, #tpu.memory_space<vmem>>, vector<8x128xf32>
    tpu.vector_store %arg4[%c0_6, %c0_7], %8 {strides = array<i32>} : memref<8x128xf32, #tpu.memory_space<vmem>>, vector<8x128xf32>,
    %10 = arith.mulf %2, %2 : vector<128x128xf32>
    %cst_8 = arith.constant dense<0.000000e+00> : vector<128xf32>
    %11 = vector.multi_reduction <add>, %10, %cst_8 [0] : vector<128x128xf32> to vector<128xf32>
    %12 = vector.shape_cast %11 : vector<128xf32> to vector<1x128xf32>
    %13 = vector.shape_cast %12 : vector<1x128xf32> to vector<1x128xf32>
    %14 = vector.broadcast %13 : vector<1x128xf32> to vector<8x128xf32>
    %c0_9 = arith.constant 0 : index
    %c0_10 = arith.constant 0 : index
    %15 = vector.load %arg5[%c0_9, %c0_10] : memref<8x128xf32, #tpu.memory_space<vmem>>, vector<8x128xf32>
    tpu.vector_store %arg5[%c0_9, %c0_10], %14 {strides = array<i32>} : memref<8x128xf32, #tpu.memory_space<vmem>>, vector<8x128xf32>,
    return
  }
  func.func @transform_0(%arg0: i32) -> (i32, i32) {
    %c0_i32 = arith.constant 0 : i32
    %c0_i32_0 = arith.constant 0 : i32
    return %arg0, %c0_i32 : i32, i32
  }
  func.func @transform_1(%arg0: i32) -> (i32, i32) {
    %c0_i32 = arith.constant 0 : i32
    %c0_i32_0 = arith.constant 0 : i32
    %c0_i32_1 = arith.constant 0 : i32
    return %c0_i32, %c0_i32_0 : i32, i32
  }
  func.func @transform_2(%arg0: i32) -> (i32, i32) {
    %c0_i32 = arith.constant 0 : i32
    %c0_i32_0 = arith.constant 0 : i32
    return %arg0, %c0_i32 : i32, i32
  }
  func.func @transform_3(%arg0: i32) -> (i32, i32) {
    %c0_i32 = arith.constant 0 : i32
    %c0_i32_0 = arith.constant 0 : i32
    return %arg0, %c0_i32 : i32, i32
  }
  func.func @transform_4(%arg0: i32) -> (i32, i32) {
    %c0_i32 = arith.constant 0 : i32
    %c0_i32_0 = arith.constant 0 : i32
    return %arg0, %c0_i32 : i32, i32
  }
}

module attributes {stable_mosaic.version = 11 : i64} {
  func.func @_bn_act_kernel(%arg0: i32, %arg1: memref<128x128xbf16, #tpu.memory_space<vmem>>, %arg2: memref<1x128xf32, #tpu.memory_space<vmem>>, %arg3: memref<1x128xf32, #tpu.memory_space<vmem>>, %arg4: memref<128x128xf32, #tpu.memory_space<vmem>>) attributes {dimension_semantics = [#tpu.dimension_semantics<parallel>], iteration_bounds = array<i64: 1>, scalar_prefetch = 0 : i64, scratch_operands = 0 : i64, tpu.core_type = #tpu.core_type<tc>, window_params = [{transform_indices = @transform_0, window_bounds = array<i64: 128, 128>}, {pipeline_mode = #tpu.pipeline_mode<synchronous>, transform_indices = @transform_1, window_bounds = array<i64: 1, 128>}, {pipeline_mode = #tpu.pipeline_mode<synchronous>, transform_indices = @transform_2, window_bounds = array<i64: 1, 128>}, {transform_indices = @transform_3, window_bounds = array<i64: 128, 128>}]} {
    %c0 = arith.constant 0 : index
    %c0_0 = arith.constant 0 : index
    %0 = vector.load %arg1[%c0, %c0_0] : memref<128x128xbf16, #tpu.memory_space<vmem>>, vector<128x128xbf16>
    %1 = arith.extf %0 : vector<128x128xbf16> to vector<128x128xf32>
    %c0_1 = arith.constant 0 : index
    %c0_2 = arith.constant 0 : index
    %2 = vector.load %arg2[%c0_1, %c0_2] : memref<1x128xf32, #tpu.memory_space<vmem>>, vector<1x128xf32>
    %3 = vector.broadcast %2 : vector<1x128xf32> to vector<128x128xf32>
    %4 = arith.mulf %1, %3 : vector<128x128xf32>
    %c0_3 = arith.constant 0 : index
    %c0_4 = arith.constant 0 : index
    %5 = vector.load %arg3[%c0_3, %c0_4] : memref<1x128xf32, #tpu.memory_space<vmem>>, vector<1x128xf32>
    %6 = vector.broadcast %5 : vector<1x128xf32> to vector<128x128xf32>
    %7 = arith.addf %4, %6 : vector<128x128xf32>
    %cst = arith.constant 0.000000e+00 : f32
    %8 = vector.broadcast %cst : f32 to vector<128x128xf32>
    %9 = arith.subf %8, %7 : vector<128x128xf32>
    %10 = math.exp %9 : vector<128x128xf32>
    %cst_5 = arith.constant 1.000000e+00 : f32
    %11 = vector.broadcast %cst_5 : f32 to vector<128x128xf32>
    %12 = arith.addf %11, %10 : vector<128x128xf32>
    %13 = tpu.reciprocal %12 {approx = true} : vector<128x128xf32> -> vector<128x128xf32>
    %cst_6 = arith.constant 2.550000e+02 : f32
    %14 = vector.broadcast %cst_6 : f32 to vector<128x128xf32>
    %15 = arith.mulf %13, %14 : vector<128x128xf32>
    %c0_7 = arith.constant 0 : index
    %c0_8 = arith.constant 0 : index
    %16 = vector.load %arg4[%c0_7, %c0_8] : memref<128x128xf32, #tpu.memory_space<vmem>>, vector<128x128xf32>
    tpu.vector_store %arg4[%c0_7, %c0_8], %15 {strides = array<i32>} : memref<128x128xf32, #tpu.memory_space<vmem>>, vector<128x128xf32>,
    return
  }
  func.func @transform_0(%arg0: i32) -> (i32, i32) {
    %c0_i32 = arith.constant 0 : i32
    %c0_i32_0 = arith.constant 0 : i32
    return %arg0, %c0_i32 : i32, i32
  }
  func.func @transform_1(%arg0: i32) -> (i32, i32) {
    %c0_i32 = arith.constant 0 : i32
    %c0_i32_0 = arith.constant 0 : i32
    %c0_i32_1 = arith.constant 0 : i32
    return %c0_i32, %c0_i32_0 : i32, i32
  }
  func.func @transform_2(%arg0: i32) -> (i32, i32) {
    %c0_i32 = arith.constant 0 : i32
    %c0_i32_0 = arith.constant 0 : i32
    %c0_i32_1 = arith.constant 0 : i32
    return %c0_i32, %c0_i32_0 : i32, i32
  }
  func.func @transform_3(%arg0: i32) -> (i32, i32) {
    %c0_i32 = arith.constant 0 : i32
    %c0_i32_0 = arith.constant 0 : i32
    return %arg0, %c0_i32 : i32, i32
  }
}

</mosaic_0001>

<llo_original>
// kernel: generator_forward.14
$region0: #{generator_forward.14}
  #allocation0 [shape = 'u32[]', space=smem, size = 0x4, offset = 0x4, fixed_abs, tag = 'smem constant byte address 0x4 - core index']
  #allocation1 [shape = 'u32[72,128]{1,0:T(1,128)}', space=vmem, size = 0x9000, scoped, tag = 'internal scratch']
  %s0 = inlined_call_operand.vmem [shape: bf16[128,128], index: 0, kind: input, shape index: {}]
  %s1 = inlined_call_operand.vmem [shape: bf16[128,128], index: 1, kind: input, shape index: {}]
  %s2 = inlined_call_operand.vmem [shape: bf16[128,128], index: 2, kind: output, shape index: {0}]
  %s3 = inlined_call_operand.vmem [shape: f32[8,128], index: 3, kind: output, shape index: {1}]
  %s4 = inlined_call_operand.vmem [shape: f32[8,128], index: 4, kind: output, shape index: {2}]
  %5 = xla_tuple %s2, %s3, %s4
  %s6 = sld [smem:[#allocation0]]
  $region34: #{generator_forward.14} parent=0
    _
  %s8 = ssub.s32 1, %s6
  %s9 = scalar_select 0, %s8, %s6
  // Predicated region
  $region2: #{generator_forward.14} parent=0 // pred_check
    _
  $region3: #{generator_forward.14} parent=0 // pred_check_branch
    %11 = sbr.rel (0) target = $region5
  $region4: #{generator_forward.14} parent=0 // pred_region
    _
  $region5: #{generator_forward.14} parent=0 // pred_fallthru
    _
  // Predicated region
  $region6: #{generator_forward.14} parent=0 // pred_check
    _
  $region7: #{generator_forward.14} parent=0 // pred_check_branch
    %13 = sbr.rel (0) target = $region9
  $region8: #{generator_forward.14} parent=0 // pred_region
    _
  $region9: #{generator_forward.14} parent=0 // pred_fallthru
    _
  %v14 = vld [vmem:[%s0] sm:$0xf]
  %v15 = vld [vmem:[%s0 + $0x4] sm:$0xf]
  %v16 = vld [vmem:[%s0 + $0x8] sm:$0xf]
  %v17 = vld [vmem:[%s0 + $0xc] sm:$0xf]
  %v18 = vld [vmem:[%s0 + $0x10] sm:$0xf]
  %v19 = vld [vmem:[%s0 + $0x14] sm:$0xf]
  %v20 = vld [vmem:[%s0 + $0x18] sm:$0xf]
  %v21 = vld [vmem:[%s0 + $0x1c] sm:$0xf]
  %v22 = vld [vmem:[%s0 + $0x20] sm:$0xf]
  %v23 = vld [vmem:[%s0 + $0x24] sm:$0xf]
  %v24 = vld [vmem:[%s0 + $0x28] sm:$0xf]
  %v25 = vld [vmem:[%s0 + $0x2c] sm:$0xf]
  %v26 = vld [vmem:[%s0 + $0x30] sm:$0xf]
  %v27 = vld [vmem:[%s0 + $0x34] sm:$0xf]
  %v28 = vld [vmem:[%s0 + $0x38] sm:$0xf]
  %v29 = vld [vmem:[%s0 + $0x3c] sm:$0xf]
  %v30 = vld [vmem:[%s1] sm:$0xf]
  %v31 = vld [vmem:[%s1 + $0x4] sm:$0xf]
  %v32 = vld [vmem:[%s1 + $0x8] sm:$0xf]
  %v33 = vld [vmem:[%s1 + $0xc] sm:$0xf]
  %v34 = vld [vmem:[%s1 + $0x10] sm:$0xf]
  %v35 = vld [vmem:[%s1 + $0x14] sm:$0xf]
  %v36 = vld [vmem:[%s1 + $0x18] sm:$0xf]
  %v37 = vld [vmem:[%s1 + $0x1c] sm:$0xf]
  %v38 = vld [vmem:[%s1 + $0x20] sm:$0xf]
  %v39 = vld [vmem:[%s1 + $0x24] sm:$0xf]
  %v40 = vld [vmem:[%s1 + $0x28] sm:$0xf]
  %v41 = vld [vmem:[%s1 + $0x2c] sm:$0xf]
  %v42 = vld [vmem:[%s1 + $0x30] sm:$0xf]
  %v43 = vld [vmem:[%s1 + $0x34] sm:$0xf]
  %v44 = vld [vmem:[%s1 + $0x38] sm:$0xf]
  %v45 = vld [vmem:[%s1 + $0x3c] sm:$0xf]
  %v62 = vunpack.c.l.b16 %v14
  %v63 = vunpack.c.l.b16 %v15
  %v64 = vunpack.c.l.b16 %v16
  %v65 = vunpack.c.l.b16 %v17
  %v66 = vunpack.c.l.b16 %v18
  %v67 = vunpack.c.l.b16 %v19
  %v68 = vunpack.c.l.b16 %v20
  %v69 = vunpack.c.l.b16 %v21
  %v70 = vunpack.c.l.b16 %v22
  %v71 = vunpack.c.l.b16 %v23
  %v72 = vunpack.c.l.b16 %v24
  %v73 = vunpack.c.l.b16 %v25
  %v74 = vunpack.c.l.b16 %v26
  %v75 = vunpack.c.l.b16 %v27
  %v76 = vunpack.c.l.b16 %v28
  %v77 = vunpack.c.l.b16 %v29
  %v78 = vpack.c.b16 %v63, %v62
  %v79 = vpack.c.b16 %v65, %v64
  %v80 = vpack.c.b16 %v67, %v66
  %v81 = vpack.c.b16 %v69, %v68
  %v82 = vpack.c.b16 %v71, %v70
  %v83 = vpack.c.b16 %v73, %v72
  %v84 = vpack.c.b16 %v75, %v74
  %v85 = vpack.c.b16 %v77, %v76
  %v110 = vunpack.c.l.b16 %v30
  %v111 = vunpack.c.l.b16 %v31
  %v112 = vunpack.c.l.b16 %v32
  %v113 = vunpack.c.l.b16 %v33
  %v114 = vunpack.c.l.b16 %v34
  %v115 = vunpack.c.l.b16 %v35
  %v116 = vunpack.c.l.b16 %v36
  %v117 = vunpack.c.l.b16 %v37
  %v118 = vunpack.c.l.b16 %v38
  %v119 = vunpack.c.l.b16 %v39
  %v120 = vunpack.c.l.b16 %v40
  %v121 = vunpack.c.l.b16 %v41
  %v122 = vunpack.c.l.b16 %v42
  %v123 = vunpack.c.l.b16 %v43
  %v124 = vunpack.c.l.b16 %v44
  %v125 = vunpack.c.l.b16 %v45
  %v126 = vpack.c.b16 %v111, %v110
  %v127 = vpack.c.b16 %v113, %v112
  %v128 = vpack.c.b16 %v115, %v114
  %v129 = vpack.c.b16 %v117, %v116
  %v130 = vpack.c.b16 %v119, %v118
  %v131 = vpack.c.b16 %v121, %v120
  %v132 = vpack.c.b16 %v123, %v122
  %v133 = vpack.c.b16 %v125, %v124
  %142 = vmatpush.bf16.msra.mxu0 %v133
  %143 = vmatpush.bf16.msra.mxu0 %v132
  %144 = vmatpush.bf16.msra.mxu0 %v131
  %145 = vmatpush.bf16.msra.mxu0 %v130
  %146 = vmatpush.bf16.msra.mxu0 %v129
  %147 = vmatpush.bf16.msra.mxu0 %v128
  %148 = vmatpush.bf16.msra.mxu0 %v127
  %149 = vmatpush.bf16.msra.mxu0 %v126
  %150 = vmatmul.bf16.gmra.mxu0 %v78
  %v151 = vpop.f32.mrf.mxu0
  %v152 = vadd.f32 0.0, %v151
  %v153 = vpop.f32.mrf.mxu0
  %v154 = vadd.f32 0.0, %v153
  %155 = vmatmul.bf16.gmra.mxu0 %v79
  %v156 = vpop.f32.mrf.mxu0
  %v157 = vadd.f32 0.0, %v156
  %v158 = vpop.f32.mrf.mxu0
  %v159 = vadd.f32 0.0, %v158
  %160 = vmatmul.bf16.gmra.mxu0 %v80
  %v161 = vpop.f32.mrf.mxu0
  %v162 = vadd.f32 0.0, %v161
  %v163 = vpop.f32.mrf.mxu0
  %v164 = vadd.f32 0.0, %v163
  %165 = vmatmul.bf16.gmra.mxu0 %v81
  %v166 = vpop.f32.mrf.mxu0
  %v167 = vadd.f32 0.0, %v166
  %v168 = vpop.f32.mrf.mxu0
  %v169 = vadd.f32 0.0, %v168
  %170 = vmatmul.bf16.gmra.mxu0 %v82
  %v171 = vpop.f32.mrf.mxu0
  %v172 = vadd.f32 0.0, %v171
  %v173 = vpop.f32.mrf.mxu0
  %v174 = vadd.f32 0.0, %v173
  %175 = vmatmul.bf16.gmra.mxu0 %v83
  %v176 = vpop.f32.mrf.mxu0
  %v177 = vadd.f32 0.0, %v176
  %v178 = vpop.f32.mrf.mxu0
  %v179 = vadd.f32 0.0, %v178
  %180 = vmatmul.bf16.gmra.mxu0 %v84
  %v181 = vpop.f32.mrf.mxu0
  %v182 = vadd.f32 0.0, %v181
  %v183 = vpop.f32.mrf.mxu0
  %v184 = vadd.f32 0.0, %v183
  %185 = vmatmul.bf16.gmra.mxu0 %v85
  %v186 = vpop.f32.mrf.mxu0
  %v187 = vadd.f32 0.0, %v186
  %v188 = vpop.f32.mrf.mxu0
  %v189 = vadd.f32 0.0, %v188
  %190 = vdwg.mxu0
  %v191 = vpack.c.bf16 %v152, %v152
  %v192 = vpack.c.bf16 %v154, %v154
  %v193 = vpack.c.bf16 %v157, %v157
  %v194 = vpack.c.bf16 %v159, %v159
  %v195 = vpack.c.bf16 %v162, %v162
  %v196 = vpack.c.bf16 %v164, %v164
  %v197 = vpack.c.bf16 %v167, %v167
  %v198 = vpack.c.bf16 %v169, %v169
  %v199 = vpack.c.bf16 %v172, %v172
  %v200 = vpack.c.bf16 %v174, %v174
  %v201 = vpack.c.bf16 %v177, %v177
  %v202 = vpack.c.bf16 %v179, %v179
  %v203 = vpack.c.bf16 %v182, %v182
  %v204 = vpack.c.bf16 %v184, %v184
  %v205 = vpack.c.bf16 %v187, %v187
  %v206 = vpack.c.bf16 %v189, %v189
  %207 = vst [vmem:[%s2] sm:$0xf] %v191
  %208 = vst [vmem:[%s2 + $0x4] sm:$0xf] %v192
  %209 = vst [vmem:[%s2 + $0x8] sm:$0xf] %v193
  %210 = vst [vmem:[%s2 + $0xc] sm:$0xf] %v194
  %211 = vst [vmem:[%s2 + $0x10] sm:$0xf] %v195
  %212 = vst [vmem:[%s2 + $0x14] sm:$0xf] %v196
  %213 = vst [vmem:[%s2 + $0x18] sm:$0xf] %v197
  %214 = vst [vmem:[%s2 + $0x1c] sm:$0xf] %v198
  %215 = vst [vmem:[%s2 + $0x20] sm:$0xf] %v199
  %216 = vst [vmem:[%s2 + $0x24] sm:$0xf] %v200
  %217 = vst [vmem:[%s2 + $0x28] sm:$0xf] %v201
  %218 = vst [vmem:[%s2 + $0x2c] sm:$0xf] %v202
  %219 = vst [vmem:[%s2 + $0x30] sm:$0xf] %v203
  %220 = vst [vmem:[%s2 + $0x34] sm:$0xf] %v204
  %221 = vst [vmem:[%s2 + $0x38] sm:$0xf] %v205
  %222 = vst [vmem:[%s2 + $0x3c] sm:$0xf] %v206
  %v223 = vadd.f32 %v152, %v154
  %v224 = vadd.f32 %v223, %v157
  %v225 = vadd.f32 %v224, %v159
  %v226 = vadd.f32 %v225, %v162
  %v227 = vadd.f32 %v226, %v164
  %v228 = vadd.f32 %v227, %v167
  %v229 = vadd.f32 %v228, %v169
  %v230 = vadd.f32 %v229, %v172
  %v231 = vadd.f32 %v230, %v174
  %v232 = vadd.f32 %v231, %v177
  %v233 = vadd.f32 %v232, %v179
  %v234 = vadd.f32 %v233, %v182
  %v235 = vadd.f32 %v234, %v184
  %v236 = vadd.f32 %v235, %v187
  %v237 = vadd.f32 %v236, %v189
  %v238 = vrot.slane %v237, 4
  %v239 = vadd.f32 %v237, %v238
  %v240 = vrot.slane %v239, 2
  %v241 = vadd.f32 %v239, %v240
  %v242 = vrot.slane %v241, 1
  %v243 = vadd.f32 %v241, %v242
  %244 = vst [vmem:[%s3] sm:$0xff] %v243
  %v245 = vmul.f32 %v152, %v152
  %v246 = vmul.f32 %v154, %v154
  %v247 = vmul.f32 %v157, %v157
  %v248 = vmul.f32 %v159, %v159
  %v249 = vmul.f32 %v162, %v162
  %v250 = vmul.f32 %v164, %v164
  %v251 = vmul.f32 %v167, %v167
  %v252 = vmul.f32 %v169, %v169
  %v253 = vmul.f32 %v172, %v172
  %v254 = vmul.f32 %v174, %v174
  %v255 = vmul.f32 %v177, %v177
  %v256 = vmul.f32 %v179, %v179
  %v257 = vmul.f32 %v182, %v182
  %v258 = vmul.f32 %v184, %v184
  %v259 = vmul.f32 %v187, %v187
  %v260 = vmul.f32 %v189, %v189
  %v261 = vadd.f32 %v245, %v246
  %v262 = vadd.f32 %v261, %v247
  %v263 = vadd.f32 %v262, %v248
  %v264 = vadd.f32 %v263, %v249
  %v265 = vadd.f32 %v264, %v250
  %v266 = vadd.f32 %v265, %v251
  %v267 = vadd.f32 %v266, %v252
  %v268 = vadd.f32 %v267, %v253
  %v269 = vadd.f32 %v268, %v254
  %v270 = vadd.f32 %v269, %v255
  %v271 = vadd.f32 %v270, %v256
  %v272 = vadd.f32 %v271, %v257
  %v273 = vadd.f32 %v272, %v258
  %v274 = vadd.f32 %v273, %v259
  %v275 = vadd.f32 %v274, %v260
  %v276 = vrot.slane %v275, 4
  %v277 = vadd.f32 %v275, %v276
  %v278 = vrot.slane %v277, 2
  %v279 = vadd.f32 %v277, %v278
  %v280 = vrot.slane %v279, 1
  %v281 = vadd.f32 %v279, %v280
  %282 = vst [vmem:[%s4] sm:$0xff] %v281
  // Predicated region
  $region10: #{generator_forward.14} parent=0 // pred_check
    _
  $region11: #{generator_forward.14} parent=0 // pred_check_branch
    %284 = sbr.rel (0) target = $region13
  $region12: #{generator_forward.14} parent=0 // pred_region
    _
  $region13: #{generator_forward.14} parent=0 // pred_fallthru
    _
  // Predicated region
  $region14: #{generator_forward.14} parent=0 // pred_check
    _
  $region15: #{generator_forward.14} parent=0 // pred_check_branch
    %286 = sbr.rel (0) target = $region17
  $region16: #{generator_forward.14} parent=0 // pred_region
    _
  $region17: #{generator_forward.14} parent=0 // pred_fallthru
    _
  // Predicated region
  $region18: #{generator_forward.14} parent=0 // pred_check
    _
  $region19: #{generator_forward.14} parent=0 // pred_check_branch
    %288 = sbr.rel (0) target = $region21
  $region20: #{generator_forward.14} parent=0 // pred_region
    _
  $region21: #{generator_forward.14} parent=0 // pred_fallthru
    _
  // Predicated region
  $region22: #{generator_forward.14} parent=0 // pred_check
    _
  $region23: #{generator_forward.14} parent=0 // pred_check_branch
    %290 = sbr.rel (0) target = $region25
  $region24: #{generator_forward.14} parent=0 // pred_region
    _
  $region25: #{generator_forward.14} parent=0 // pred_fallthru
    _
  // Predicated region
  $region26: #{generator_forward.14} parent=0 // pred_check
    _
  $region27: #{generator_forward.14} parent=0 // pred_check_branch
    %292 = sbr.rel (0) target = $region29
  $region28: #{generator_forward.14} parent=0 // pred_region
    _
  $region29: #{generator_forward.14} parent=0 // pred_fallthru
    _
  // Predicated region
  $region30: #{generator_forward.14} parent=0 // pred_check
    _
  $region31: #{generator_forward.14} parent=0 // pred_check_branch
    %294 = sbr.rel (0) target = $region33
  $region32: #{generator_forward.14} parent=0 // pred_region
    _
  $region33: #{generator_forward.14} parent=0 // pred_fallthru
    _

// kernel: generator_forward.15
$region0: #{generator_forward.15}
  #allocation0 [shape = 'u32[]', space=smem, size = 0x4, offset = 0x4, fixed_abs, tag = 'smem constant byte address 0x4 - core index']
  #allocation1 [shape = 'u32[72,128]{1,0:T(1,128)}', space=vmem, size = 0x9000, scoped, tag = 'internal scratch']
  %s0 = inlined_call_operand.vmem [shape: bf16[128,128], index: 0, kind: input, shape index: {}]
  %s1 = inlined_call_operand.vmem [shape: f32[1,128], index: 1, kind: input, shape index: {}]
  %s2 = inlined_call_operand.vmem [shape: f32[1,128], index: 2, kind: input, shape index: {}]
  %s3 = inlined_call_operand.vmem [shape: bf16[128,128], index: 3, kind: output, shape index: {}]
  %s4 = sld [smem:[#allocation0]]
  $region22: #{generator_forward.15} parent=0
    _
  %s6 = ssub.s32 1, %s4
  %s7 = scalar_select 0, %s6, %s4
  // Predicated region
  $region2: #{generator_forward.15} parent=0 // pred_check
    _
  $region3: #{generator_forward.15} parent=0 // pred_check_branch
    %9 = sbr.rel (0) target = $region5
  $region4: #{generator_forward.15} parent=0 // pred_region
    _
  $region5: #{generator_forward.15} parent=0 // pred_fallthru
    _
  // Predicated region
  $region6: #{generator_forward.15} parent=0 // pred_check
    _
  $region7: #{generator_forward.15} parent=0 // pred_check_branch
    %11 = sbr.rel (0) target = $region9
  $region8: #{generator_forward.15} parent=0 // pred_region
    _
  $region9: #{generator_forward.15} parent=0 // pred_fallthru
    _
  // Predicated region
  $region10: #{generator_forward.15} parent=0 // pred_check
    _
  $region11: #{generator_forward.15} parent=0 // pred_check_branch
    %13 = sbr.rel (0) target = $region13
  $region12: #{generator_forward.15} parent=0 // pred_region
    _
  $region13: #{generator_forward.15} parent=0 // pred_fallthru
    _
  %v14 = vld [vmem:[%s0] sm:$0xf]
  %v15 = vld [vmem:[%s0 + $0x4] sm:$0xf]
  %v16 = vld [vmem:[%s0 + $0x8] sm:$0xf]
  %v17 = vld [vmem:[%s0 + $0xc] sm:$0xf]
  %v18 = vld [vmem:[%s0 + $0x10] sm:$0xf]
  %v19 = vld [vmem:[%s0 + $0x14] sm:$0xf]
  %v20 = vld [vmem:[%s0 + $0x18] sm:$0xf]
  %v21 = vld [vmem:[%s0 + $0x1c] sm:$0xf]
  %v22 = vld [vmem:[%s0 + $0x20] sm:$0xf]
  %v23 = vld [vmem:[%s0 + $0x24] sm:$0xf]
  %v24 = vld [vmem:[%s0 + $0x28] sm:$0xf]
  %v25 = vld [vmem:[%s0 + $0x2c] sm:$0xf]
  %v26 = vld [vmem:[%s0 + $0x30] sm:$0xf]
  %v27 = vld [vmem:[%s0 + $0x34] sm:$0xf]
  %v28 = vld [vmem:[%s0 + $0x38] sm:$0xf]
  %v29 = vld [vmem:[%s0 + $0x3c] sm:$0xf]
  %v30 = vunpack.c.l.bf16 %v14
  %v31 = vunpack.c.l.bf16 %v15
  %v32 = vunpack.c.l.bf16 %v16
  %v33 = vunpack.c.l.bf16 %v17
  %v34 = vunpack.c.l.bf16 %v18
  %v35 = vunpack.c.l.bf16 %v19
  %v36 = vunpack.c.l.bf16 %v20
  %v37 = vunpack.c.l.bf16 %v21
  %v38 = vunpack.c.l.bf16 %v22
  %v39 = vunpack.c.l.bf16 %v23
  %v40 = vunpack.c.l.bf16 %v24
  %v41 = vunpack.c.l.bf16 %v25
  %v42 = vunpack.c.l.bf16 %v26
  %v43 = vunpack.c.l.bf16 %v27
  %v44 = vunpack.c.l.bf16 %v28
  %v45 = vunpack.c.l.bf16 %v29
  %v46 = vld [vmem:[%s1] sm:$0x1]
  %v48 = vperm.slane %v46, 0
  %v50 = vmul.f32 %v30, %v48
  %v51 = vmul.f32 %v31, %v48
  %v52 = vmul.f32 %v32, %v48
  %v53 = vmul.f32 %v33, %v48
  %v54 = vmul.f32 %v34, %v48
  %v55 = vmul.f32 %v35, %v48
  %v56 = vmul.f32 %v36, %v48
  %v57 = vmul.f32 %v37, %v48
  %v58 = vmul.f32 %v38, %v48
  %v59 = vmul.f32 %v39, %v48
  %v60 = vmul.f32 %v40, %v48
  %v61 = vmul.f32 %v41, %v48
  %v62 = vmul.f32 %v42, %v48
  %v63 = vmul.f32 %v43, %v48
  %v64 = vmul.f32 %v44, %v48
  %v65 = vmul.f32 %v45, %v48
  %v66 = vld [vmem:[%s2] sm:$0x1]
  %v68 = vperm.slane %v66, 0
  %v70 = vadd.f32 %v50, %v68
  %v71 = vadd.f32 %v51, %v68
  %v72 = vadd.f32 %v52, %v68
  %v73 = vadd.f32 %v53, %v68
  %v74 = vadd.f32 %v54, %v68
  %v75 = vadd.f32 %v55, %v68
  %v76 = vadd.f32 %v56, %v68
  %v77 = vadd.f32 %v57, %v68
  %v78 = vadd.f32 %v58, %v68
  %v79 = vadd.f32 %v59, %v68
  %v80 = vadd.f32 %v60, %v68
  %v81 = vadd.f32 %v61, %v68
  %v82 = vadd.f32 %v62, %v68
  %v83 = vadd.f32 %v63, %v68
  %v84 = vadd.f32 %v64, %v68
  %v85 = vadd.f32 %v65, %v68
  %vm86 = vcmp.ge.f32.partialorder %v70, 0.0
  %vm87 = vcmp.ge.f32.partialorder %v71, 0.0
  %vm88 = vcmp.ge.f32.partialorder %v72, 0.0
  %vm89 = vcmp.ge.f32.partialorder %v73, 0.0
  %vm90 = vcmp.ge.f32.partialorder %v74, 0.0
  %vm91 = vcmp.ge.f32.partialorder %v75, 0.0
  %vm92 = vcmp.ge.f32.partialorder %v76, 0.0
  %vm93 = vcmp.ge.f32.partialorder %v77, 0.0
  %vm94 = vcmp.ge.f32.partialorder %v78, 0.0
  %vm95 = vcmp.ge.f32.partialorder %v79, 0.0
  %vm96 = vcmp.ge.f32.partialorder %v80, 0.0
  %vm97 = vcmp.ge.f32.partialorder %v81, 0.0
  %vm98 = vcmp.ge.f32.partialorder %v82, 0.0
  %vm99 = vcmp.ge.f32.partialorder %v83, 0.0
  %vm100 = vcmp.ge.f32.partialorder %v84, 0.0
  %vm101 = vcmp.ge.f32.partialorder %v85, 0.0
  %v102 = vmul.f32 %v70, 0.2
  %v103 = vmul.f32 %v71, 0.2
  %v104 = vmul.f32 %v72, 0.2
  %v105 = vmul.f32 %v73, 0.2
  %v106 = vmul.f32 %v74, 0.2
  %v107 = vmul.f32 %v75, 0.2
  %v108 = vmul.f32 %v76, 0.2
  %v109 = vmul.f32 %v77, 0.2
  %v110 = vmul.f32 %v78, 0.2
  %v111 = vmul.f32 %v79, 0.2
  %v112 = vmul.f32 %v80, 0.2
  %v113 = vmul.f32 %v81, 0.2
  %v114 = vmul.f32 %v82, 0.2
  %v115 = vmul.f32 %v83, 0.2
  %v116 = vmul.f32 %v84, 0.2
  %v117 = vmul.f32 %v85, 0.2
  %v118 = vsel %vm86, %v70, %v102
  %v119 = vsel %vm87, %v71, %v103
  %v120 = vsel %vm88, %v72, %v104
  %v121 = vsel %vm89, %v73, %v105
  %v122 = vsel %vm90, %v74, %v106
  %v123 = vsel %vm91, %v75, %v107
  %v124 = vsel %vm92, %v76, %v108
  %v125 = vsel %vm93, %v77, %v109
  %v126 = vsel %vm94, %v78, %v110
  %v127 = vsel %vm95, %v79, %v111
  %v128 = vsel %vm96, %v80, %v112
  %v129 = vsel %vm97, %v81, %v113
  %v130 = vsel %vm98, %v82, %v114
  %v131 = vsel %vm99, %v83, %v115
  %v132 = vsel %vm100, %v84, %v116
  %v133 = vsel %vm101, %v85, %v117
  %v134 = vpack.c.bf16 %v118, %v118
  %v135 = vpack.c.bf16 %v119, %v119
  %v136 = vpack.c.bf16 %v120, %v120
  %v137 = vpack.c.bf16 %v121, %v121
  %v138 = vpack.c.bf16 %v122, %v122
  %v139 = vpack.c.bf16 %v123, %v123
  %v140 = vpack.c.bf16 %v124, %v124
  %v141 = vpack.c.bf16 %v125, %v125
  %v142 = vpack.c.bf16 %v126, %v126
  %v143 = vpack.c.bf16 %v127, %v127
  %v144 = vpack.c.bf16 %v128, %v128
  %v145 = vpack.c.bf16 %v129, %v129
  %v146 = vpack.c.bf16 %v130, %v130
  %v147 = vpack.c.bf16 %v131, %v131
  %v148 = vpack.c.bf16 %v132, %v132
  %v149 = vpack.c.bf16 %v133, %v133
  %150 = vst [vmem:[%s3] sm:$0xf] %v134
  %151 = vst [vmem:[%s3 + $0x4] sm:$0xf] %v135
  %152 = vst [vmem:[%s3 + $0x8] sm:$0xf] %v136
  %153 = vst [vmem:[%s3 + $0xc] sm:$0xf] %v137
  %154 = vst [vmem:[%s3 + $0x10] sm:$0xf] %v138
  %155 = vst [vmem:[%s3 + $0x14] sm:$0xf] %v139
  %156 = vst [vmem:[%s3 + $0x18] sm:$0xf] %v140
  %157 = vst [vmem:[%s3 + $0x1c] sm:$0xf] %v141
  %158 = vst [vmem:[%s3 + $0x20] sm:$0xf] %v142
  %159 = vst [vmem:[%s3 + $0x24] sm:$0xf] %v143
  %160 = vst [vmem:[%s3 + $0x28] sm:$0xf] %v144
  %161 = vst [vmem:[%s3 + $0x2c] sm:$0xf] %v145
  %162 = vst [vmem:[%s3 + $0x30] sm:$0xf] %v146
  %163 = vst [vmem:[%s3 + $0x34] sm:$0xf] %v147
  %164 = vst [vmem:[%s3 + $0x38] sm:$0xf] %v148
  %165 = vst [vmem:[%s3 + $0x3c] sm:$0xf] %v149
  // Predicated region
  $region14: #{generator_forward.15} parent=0 // pred_check
    _
  $region15: #{generator_forward.15} parent=0 // pred_check_branch
    %167 = sbr.rel (0) target = $region17
  $region16: #{generator_forward.15} parent=0 // pred_region
    _
  $region17: #{generator_forward.15} parent=0 // pred_fallthru
    _
  // Predicated region
  $region18: #{generator_forward.15} parent=0 // pred_check
    _
  $region19: #{generator_forward.15} parent=0 // pred_check_branch
    %169 = sbr.rel (0) target = $region21
  $region20: #{generator_forward.15} parent=0 // pred_region
    _
  $region21: #{generator_forward.15} parent=0 // pred_fallthru
    _

// kernel: generator_forward.17
$region0: #{generator_forward.17}
  #allocation0 [shape = 'u32[]', space=smem, size = 0x4, offset = 0x4, fixed_abs, tag = 'smem constant byte address 0x4 - core index']
  #allocation1 [shape = 'u32[72,128]{1,0:T(1,128)}', space=vmem, size = 0x9000, scoped, tag = 'internal scratch']
  %s0 = inlined_call_operand.vmem [shape: bf16[32,128], index: 0, kind: input, shape index: {}]
  %s1 = inlined_call_operand.vmem [shape: f32[1,128], index: 1, kind: input, shape index: {}]
  %s2 = inlined_call_operand.vmem [shape: f32[1,128], index: 2, kind: input, shape index: {}]
  %s3 = inlined_call_operand.vmem [shape: bf16[32,128], index: 3, kind: output, shape index: {}]
  %s4 = sld [smem:[#allocation0]]
  $region22: #{generator_forward.17} parent=0
    _
  %s6 = ssub.s32 1, %s4
  %s7 = scalar_select 0, %s6, %s4
  // Predicated region
  $region2: #{generator_forward.17} parent=0 // pred_check
    _
  $region3: #{generator_forward.17} parent=0 // pred_check_branch
    %9 = sbr.rel (0) target = $region5
  $region4: #{generator_forward.17} parent=0 // pred_region
    _
  $region5: #{generator_forward.17} parent=0 // pred_fallthru
    _
  // Predicated region
  $region6: #{generator_forward.17} parent=0 // pred_check
    _
  $region7: #{generator_forward.17} parent=0 // pred_check_branch
    %11 = sbr.rel (0) target = $region9
  $region8: #{generator_forward.17} parent=0 // pred_region
    _
  $region9: #{generator_forward.17} parent=0 // pred_fallthru
    _
  // Predicated region
  $region10: #{generator_forward.17} parent=0 // pred_check
    _
  $region11: #{generator_forward.17} parent=0 // pred_check_branch
    %13 = sbr.rel (0) target = $region13
  $region12: #{generator_forward.17} parent=0 // pred_region
    _
  $region13: #{generator_forward.17} parent=0 // pred_fallthru
    _
  %v14 = vld [vmem:[%s0] sm:$0xf]
  %v15 = vld [vmem:[%s0 + $0x4] sm:$0xf]
  %v16 = vld [vmem:[%s0 + $0x8] sm:$0xf]
  %v17 = vld [vmem:[%s0 + $0xc] sm:$0xf]
  %v18 = vunpack.c.l.bf16 %v14
  %v19 = vunpack.c.l.bf16 %v15
  %v20 = vunpack.c.l.bf16 %v16
  %v21 = vunpack.c.l.bf16 %v17
  %v22 = vld [vmem:[%s1] sm:$0x1]
  %v24 = vperm.slane %v22, 0
  %v26 = vmul.f32 %v18, %v24
  %v27 = vmul.f32 %v19, %v24
  %v28 = vmul.f32 %v20, %v24
  %v29 = vmul.f32 %v21, %v24
  %v30 = vld [vmem:[%s2] sm:$0x1]
  %v32 = vperm.slane %v30, 0
  %v34 = vadd.f32 %v26, %v32
  %v35 = vadd.f32 %v27, %v32
  %v36 = vadd.f32 %v28, %v32
  %v37 = vadd.f32 %v29, %v32
  %vm38 = vcmp.ge.f32.partialorder %v34, 0.0
  %vm39 = vcmp.ge.f32.partialorder %v35, 0.0
  %vm40 = vcmp.ge.f32.partialorder %v36, 0.0
  %vm41 = vcmp.ge.f32.partialorder %v37, 0.0
  %v42 = vmul.f32 %v34, 0.2
  %v43 = vmul.f32 %v35, 0.2
  %v44 = vmul.f32 %v36, 0.2
  %v45 = vmul.f32 %v37, 0.2
  %v46 = vsel %vm38, %v34, %v42
  %v47 = vsel %vm39, %v35, %v43
  %v48 = vsel %vm40, %v36, %v44
  %v49 = vsel %vm41, %v37, %v45
  %v50 = vpack.c.bf16 %v46, %v46
  %v51 = vpack.c.bf16 %v47, %v47
  %v52 = vpack.c.bf16 %v48, %v48
  %v53 = vpack.c.bf16 %v49, %v49
  %54 = vst [vmem:[%s3] sm:$0xf] %v50
  %55 = vst [vmem:[%s3 + $0x4] sm:$0xf] %v51
  %56 = vst [vmem:[%s3 + $0x8] sm:$0xf] %v52
  %57 = vst [vmem:[%s3 + $0xc] sm:$0xf] %v53
  // Predicated region
  $region14: #{generator_forward.17} parent=0 // pred_check
    _
  $region15: #{generator_forward.17} parent=0 // pred_check_branch
    %59 = sbr.rel (0) target = $region17
  $region16: #{generator_forward.17} parent=0 // pred_region
    _
  $region17: #{generator_forward.17} parent=0 // pred_fallthru
    _
  // Predicated region
  $region18: #{generator_forward.17} parent=0 // pred_check
    _
  $region19: #{generator_forward.17} parent=0 // pred_check_branch
    %61 = sbr.rel (0) target = $region21
  $region20: #{generator_forward.17} parent=0 // pred_region
    _
  $region21: #{generator_forward.17} parent=0 // pred_fallthru
    _

// kernel: generator_forward.16
$region0: #{generator_forward.16}
  #allocation0 [shape = 'u32[]', space=smem, size = 0x4, offset = 0x4, fixed_abs, tag = 'smem constant byte address 0x4 - core index']
  #allocation1 [shape = 'u32[72,128]{1,0:T(1,128)}', space=vmem, size = 0x9000, scoped, tag = 'internal scratch']
  %s0 = inlined_call_operand.vmem [shape: bf16[32,1024], index: 0, kind: input, shape index: {}]
  %s1 = inlined_call_operand.vmem [shape: bf16[1024,128], index: 1, kind: input, shape index: {}]
  %s2 = inlined_call_operand.vmem [shape: bf16[32,128], index: 2, kind: output, shape index: {0}]
  %s3 = inlined_call_operand.vmem [shape: f32[8,128], index: 3, kind: output, shape index: {1}]
  %s4 = inlined_call_operand.vmem [shape: f32[8,128], index: 4, kind: output, shape index: {2}]
  %5 = xla_tuple %s2, %s3, %s4
  %s6 = sld [smem:[#allocation0]]
  $region34: #{generator_forward.16} parent=0
    _
  %s8 = ssub.s32 1, %s6
  %s9 = scalar_select 0, %s8, %s6
  // Predicated region
  $region2: #{generator_forward.16} parent=0 // pred_check
    _
  $region3: #{generator_forward.16} parent=0 // pred_check_branch
    %11 = sbr.rel (0) target = $region5
  $region4: #{generator_forward.16} parent=0 // pred_region
    _
  $region5: #{generator_forward.16} parent=0 // pred_fallthru
    _
  // Predicated region
  $region6: #{generator_forward.16} parent=0 // pred_check
    _
  $region7: #{generator_forward.16} parent=0 // pred_check_branch
    %13 = sbr.rel (0) target = $region9
  $region8: #{generator_forward.16} parent=0 // pred_region
    _
  $region9: #{generator_forward.16} parent=0 // pred_fallthru
    _
  %v14 = vld [vmem:[%s0] sm:$0xff]
  %v15 = vld [vmem:[%s0 + $0x8] sm:$0xff]
  %v16 = vld [vmem:[%s0 + $0x10] sm:$0xff]
  %v17 = vld [vmem:[%s0 + $0x18] sm:$0xff]
  %v18 = vld [vmem:[%s0 + $0x20] sm:$0xff]
  %v19 = vld [vmem:[%s0 + $0x28] sm:$0xff]
  %v20 = vld [vmem:[%s0 + $0x30] sm:$0xff]
  %v21 = vld [vmem:[%s0 + $0x38] sm:$0xff]
  %v22 = vld [vmem:[%s0 + $0x40] sm:$0xff]
  %v23 = vld [vmem:[%s0 + $0x48] sm:$0xff]
  %v24 = vld [vmem:[%s0 + $0x50] sm:$0xff]
  %v25 = vld [vmem:[%s0 + $0x58] sm:$0xff]
  %v26 = vld [vmem:[%s0 + $0x60] sm:$0xff]
  %v27 = vld [vmem:[%s0 + $0x68] sm:$0xff]
  %v28 = vld [vmem:[%s0 + $0x70] sm:$0xff]
  %v29 = vld [vmem:[%s0 + $0x78] sm:$0xff]
  %v30 = vld [vmem:[%s1] sm:$0xf]
  %v31 = vld [vmem:[%s1 + $0x4] sm:$0xf]
  %v32 = vld [vmem:[%s1 + $0x8] sm:$0xf]
  %v33 = vld [vmem:[%s1 + $0xc] sm:$0xf]
  %v34 = vld [vmem:[%s1 + $0x10] sm:$0xf]
  %v35 = vld [vmem:[%s1 + $0x14] sm:$0xf]
  %v36 = vld [vmem:[%s1 + $0x18] sm:$0xf]
  %v37 = vld [vmem:[%s1 + $0x1c] sm:$0xf]
  %v38 = vld [vmem:[%s1 + $0x20] sm:$0xf]
  %v39 = vld [vmem:[%s1 + $0x24] sm:$0xf]
  %v40 = vld [vmem:[%s1 + $0x28] sm:$0xf]
  %v41 = vld [vmem:[%s1 + $0x2c] sm:$0xf]
  %v42 = vld [vmem:[%s1 + $0x30] sm:$0xf]
  %v43 = vld [vmem:[%s1 + $0x34] sm:$0xf]
  %v44 = vld [vmem:[%s1 + $0x38] sm:$0xf]
  %v45 = vld [vmem:[%s1 + $0x3c] sm:$0xf]
  %v46 = vld [vmem:[%s1 + $0x40] sm:$0xf]
  %v47 = vld [vmem:[%s1 + $0x44] sm:$0xf]
  %v48 = vld [vmem:[%s1 + $0x48] sm:$0xf]
  %v49 = vld [vmem:[%s1 + $0x4c] sm:$0xf]
  %v50 = vld [vmem:[%s1 + $0x50] sm:$0xf]
  %v51 = vld [vmem:[%s1 + $0x54] sm:$0xf]
  %v52 = vld [vmem:[%s1 + $0x58] sm:$0xf]
  %v53 = vld [vmem:[%s1 + $0x5c] sm:$0xf]
  %v54 = vld [vmem:[%s1 + $0x60] sm:$0xf]
  %v55 = vld [vmem:[%s1 + $0x64] sm:$0xf]
  %v56 = vld [vmem:[%s1 + $0x68] sm:$0xf]
  %v57 = vld [vmem:[%s1 + $0x6c] sm:$0xf]
  %v58 = vld [vmem:[%s1 + $0x70] sm:$0xf]
  %v59 = vld [vmem:[%s1 + $0x74] sm:$0xf]
  %v60 = vld [vmem:[%s1 + $0x78] sm:$0xf]
  %v61 = vld [vmem:[%s1 + $0x7c] sm:$0xf]
  %v62 = vld [vmem:[%s1 + $0x80] sm:$0xf]
  %v63 = vld [vmem:[%s1 + $0x84] sm:$0xf]
  %v64 = vld [vmem:[%s1 + $0x88] sm:$0xf]
  %v65 = vld [vmem:[%s1 + $0x8c] sm:$0xf]
  %v66 = vld [vmem:[%s1 + $0x90] sm:$0xf]
  %v67 = vld [vmem:[%s1 + $0x94] sm:$0xf]
  %v68 = vld [vmem:[%s1 + $0x98] sm:$0xf]
  %v69 = vld [vmem:[%s1 + $0x9c] sm:$0xf]
  %v70 = vld [vmem:[%s1 + $0xa0] sm:$0xf]
  %v71 = vld [vmem:[%s1 + $0xa4] sm:$0xf]
  %v72 = vld [vmem:[%s1 + $0xa8] sm:$0xf]
  %v73 = vld [vmem:[%s1 + $0xac] sm:$0xf]
  %v74 = vld [vmem:[%s1 + $0xb0] sm:$0xf]
  %v75 = vld [vmem:[%s1 + $0xb4] sm:$0xf]
  %v76 = vld [vmem:[%s1 + $0xb8] sm:$0xf]
  %v77 = vld [vmem:[%s1 + $0xbc] sm:$0xf]
  %v78 = vld [vmem:[%s1 + $0xc0] sm:$0xf]
  %v79 = vld [vmem:[%s1 + $0xc4] sm:$0xf]
  %v80 = vld [vmem:[%s1 + $0xc8] sm:$0xf]
  %v81 = vld [vmem:[%s1 + $0xcc] sm:$0xf]
  %v82 = vld [vmem:[%s1 + $0xd0] sm:$0xf]
  %v83 = vld [vmem:[%s1 + $0xd4] sm:$0xf]
  %v84 = vld [vmem:[%s1 + $0xd8] sm:$0xf]
  %v85 = vld [vmem:[%s1 + $0xdc] sm:$0xf]
  %v86 = vld [vmem:[%s1 + $0xe0] sm:$0xf]
  %v87 = vld [vmem:[%s1 + $0xe4] sm:$0xf]
  %v88 = vld [vmem:[%s1 + $0xe8] sm:$0xf]
  %v89 = vld [vmem:[%s1 + $0xec] sm:$0xf]
  %v90 = vld [vmem:[%s1 + $0xf0] sm:$0xf]
  %v91 = vld [vmem:[%s1 + $0xf4] sm:$0xf]
  %v92 = vld [vmem:[%s1 + $0xf8] sm:$0xf]
  %v93 = vld [vmem:[%s1 + $0xfc] sm:$0xf]
  %v94 = vld [vmem:[%s1 + $0x100] sm:$0xf]
  %v95 = vld [vmem:[%s1 + $0x104] sm:$0xf]
  %v96 = vld [vmem:[%s1 + $0x108] sm:$0xf]
  %v97 = vld [vmem:[%s1 + $0x10c] sm:$0xf]
  %v98 = vld [vmem:[%s1 + $0x110] sm:$0xf]
  %v99 = vld [vmem:[%s1 + $0x114] sm:$0xf]
  %v100 = vld [vmem:[%s1 + $0x118] sm:$0xf]
  %v101 = vld [vmem:[%s1 + $0x11c] sm:$0xf]
  %v102 = vld [vmem:[%s1 + $0x120] sm:$0xf]
  %v103 = vld [vmem:[%s1 + $0x124] sm:$0xf]
  %v104 = vld [vmem:[%s1 + $0x128] sm:$0xf]
  %v105 = vld [vmem:[%s1 + $0x12c] sm:$0xf]
  %v106 = vld [vmem:[%s1 + $0x130] sm:$0xf]
  %v107 = vld [vmem:[%s1 + $0x134] sm:$0xf]
  %v108 = vld [vmem:[%s1 + $0x138] sm:$0xf]
  %v109 = vld [vmem:[%s1 + $0x13c] sm:$0xf]
  %v110 = vld [vmem:[%s1 + $0x140] sm:$0xf]
  %v111 = vld [vmem:[%s1 + $0x144] sm:$0xf]
  %v112 = vld [vmem:[%s1 + $0x148] sm:$0xf]
  %v113 = vld [vmem:[%s1 + $0x14c] sm:$0xf]
  %v114 = vld [vmem:[%s1 + $0x150] sm:$0xf]
  %v115 = vld [vmem:[%s1 + $0x154] sm:$0xf]
  %v116 = vld [vmem:[%s1 + $0x158] sm:$0xf]
  %v117 = vld [vmem:[%s1 + $0x15c] sm:$0xf]
  %v118 = vld [vmem:[%s1 + $0x160] sm:$0xf]
  %v119 = vld [vmem:[%s1 + $0x164] sm:$0xf]
  %v120 = vld [vmem:[%s1 + $0x168] sm:$0xf]
  %v121 = vld [vmem:[%s1 + $0x16c] sm:$0xf]
  %v122 = vld [vmem:[%s1 + $0x170] sm:$0xf]
  %v123 = vld [vmem:[%s1 + $0x174] sm:$0xf]
  %v124 = vld [vmem:[%s1 + $0x178] sm:$0xf]
  %v125 = vld [vmem:[%s1 + $0x17c] sm:$0xf]
  %v126 = vld [vmem:[%s1 + $0x180] sm:$0xf]
  %v127 = vld [vmem:[%s1 + $0x184] sm:$0xf]
  %v128 = vld [vmem:[%s1 + $0x188] sm:$0xf]
  %v129 = vld [vmem:[%s1 + $0x18c] sm:$0xf]
  %v130 = vld [vmem:[%s1 + $0x190] sm:$0xf]
  %v131 = vld [vmem:[%s1 + $0x194] sm:$0xf]
  %v132 = vld [vmem:[%s1 + $0x198] sm:$0xf]
  %v133 = vld [vmem:[%s1 + $0x19c] sm:$0xf]
  %v134 = vld [vmem:[%s1 + $0x1a0] sm:$0xf]
  %v135 = vld [vmem:[%s1 + $0x1a4] sm:$0xf]
  %v136 = vld [vmem:[%s1 + $0x1a8] sm:$0xf]
  %v137 = vld [vmem:[%s1 + $0x1ac] sm:$0xf]
  %v138 = vld [vmem:[%s1 + $0x1b0] sm:$0xf]
  %v139 = vld [vmem:[%s1 + $0x1b4] sm:$0xf]
  %v140 = vld [vmem:[%s1 + $0x1b8] sm:$0xf]
  %v141 = vld [vmem:[%s1 + $0x1bc] sm:$0xf]
  %v142 = vld [vmem:[%s1 + $0x1c0] sm:$0xf]
  %v143 = vld [vmem:[%s1 + $0x1c4] sm:$0xf]
  %v144 = vld [vmem:[%s1 + $0x1c8] sm:$0xf]
  %v145 = vld [vmem:[%s1 + $0x1cc] sm:$0xf]
  %v146 = vld [vmem:[%s1 + $0x1d0] sm:$0xf]
  %v147 = vld [vmem:[%s1 + $0x1d4] sm:$0xf]
  %v148 = vld [vmem:[%s1 + $0x1d8] sm:$0xf]
  %v149 = vld [vmem:[%s1 + $0x1dc] sm:$0xf]
  %v150 = vld [vmem:[%s1 + $0x1e0] sm:$0xf]
  %v151 = vld [vmem:[%s1 + $0x1e4] sm:$0xf]
  %v152 = vld [vmem:[%s1 + $0x1e8] sm:$0xf]
  %v153 = vld [vmem:[%s1 + $0x1ec] sm:$0xf]
  %v154 = vld [vmem:[%s1 + $0x1f0] sm:$0xf]
  %v155 = vld [vmem:[%s1 + $0x1f4] sm:$0xf]
  %v156 = vld [vmem:[%s1 + $0x1f8] sm:$0xf]
  %v157 = vld [vmem:[%s1 + $0x1fc] sm:$0xf]
  %v174 = vunpack.c.l.b16 %v14
  %v175 = vunpack.c.h.b16 %v14
  %v176 = vunpack.c.l.b16 %v15
  %v177 = vunpack.c.h.b16 %v15
  %v178 = vunpack.c.l.b16 %v16
  %v179 = vunpack.c.h.b16 %v16
  %v180 = vunpack.c.l.b16 %v17
  %v181 = vunpack.c.h.b16 %v17
  %v182 = vunpack.c.l.b16 %v18
  %v183 = vunpack.c.h.b16 %v18
  %v184 = vunpack.c.l.b16 %v19
  %v185 = vunpack.c.h.b16 %v19
  %v186 = vunpack.c.l.b16 %v20
  %v187 = vunpack.c.h.b16 %v20
  %v188 = vunpack.c.l.b16 %v21
  %v189 = vunpack.c.h.b16 %v21
  %v190 = vunpack.c.l.b16 %v22
  %v191 = vunpack.c.h.b16 %v22
  %v192 = vunpack.c.l.b16 %v23
  %v193 = vunpack.c.h.b16 %v23
  %v194 = vunpack.c.l.b16 %v24
  %v195 = vunpack.c.h.b16 %v24
  %v196 = vunpack.c.l.b16 %v25
  %v197 = vunpack.c.h.b16 %v25
  %v198 = vunpack.c.l.b16 %v26
  %v199 = vunpack.c.h.b16 %v26
  %v200 = vunpack.c.l.b16 %v27
  %v201 = vunpack.c.h.b16 %v27
  %v202 = vunpack.c.l.b16 %v28
  %v203 = vunpack.c.h.b16 %v28
  %v204 = vunpack.c.l.b16 %v29
  %v205 = vunpack.c.h.b16 %v29
  %v206 = vpack.c.b16 %v182, %v174
  %v207 = vpack.c.b16 %v183, %v175
  %v208 = vpack.c.b16 %v184, %v176
  %v209 = vpack.c.b16 %v185, %v177
  %v210 = vpack.c.b16 %v186, %v178
  %v211 = vpack.c.b16 %v187, %v179
  %v212 = vpack.c.b16 %v188, %v180
  %v213 = vpack.c.b16 %v189, %v181
  %v214 = vpack.c.b16 %v198, %v190
  %v215 = vpack.c.b16 %v199, %v191
  %v216 = vpack.c.b16 %v200, %v192
  %v217 = vpack.c.b16 %v201, %v193
  %v218 = vpack.c.b16 %v202, %v194
  %v219 = vpack.c.b16 %v203, %v195
  %v220 = vpack.c.b16 %v204, %v196
  %v221 = vpack.c.b16 %v205, %v197
  %v366 = vunpack.c.l.b16 %v30
  %v367 = vunpack.c.l.b16 %v31
  %v368 = vunpack.c.l.b16 %v32
  %v369 = vunpack.c.l.b16 %v33
  %v370 = vunpack.c.l.b16 %v34
  %v371 = vunpack.c.l.b16 %v35
  %v372 = vunpack.c.l.b16 %v36
  %v373 = vunpack.c.l.b16 %v37
  %v374 = vunpack.c.l.b16 %v38
  %v375 = vunpack.c.l.b16 %v39
  %v376 = vunpack.c.l.b16 %v40
  %v377 = vunpack.c.l.b16 %v41
  %v378 = vunpack.c.l.b16 %v42
  %v379 = vunpack.c.l.b16 %v43
  %v380 = vunpack.c.l.b16 %v44
  %v381 = vunpack.c.l.b16 %v45
  %v382 = vunpack.c.l.b16 %v46
  %v383 = vunpack.c.l.b16 %v47
  %v384 = vunpack.c.l.b16 %v48
  %v385 = vunpack.c.l.b16 %v49
  %v386 = vunpack.c.l.b16 %v50
  %v387 = vunpack.c.l.b16 %v51
  %v388 = vunpack.c.l.b16 %v52
  %v389 = vunpack.c.l.b16 %v53
  %v390 = vunpack.c.l.b16 %v54
  %v391 = vunpack.c.l.b16 %v55
  %v392 = vunpack.c.l.b16 %v56
  %v393 = vunpack.c.l.b16 %v57
  %v394 = vunpack.c.l.b16 %v58
  %v395 = vunpack.c.l.b16 %v59
  %v396 = vunpack.c.l.b16 %v60
  %v397 = vunpack.c.l.b16 %v61
  %v398 = vunpack.c.l.b16 %v62
  %v399 = vunpack.c.l.b16 %v63
  %v400 = vunpack.c.l.b16 %v64
  %v401 = vunpack.c.l.b16 %v65
  %v402 = vunpack.c.l.b16 %v66
  %v403 = vunpack.c.l.b16 %v67
  %v404 = vunpack.c.l.b16 %v68
  %v405 = vunpack.c.l.b16 %v69
  %v406 = vunpack.c.l.b16 %v70
  %v407 = vunpack.c.l.b16 %v71
  %v408 = vunpack.c.l.b16 %v72
  %v409 = vunpack.c.l.b16 %v73
  %v410 = vunpack.c.l.b16 %v74
  %v411 = vunpack.c.l.b16 %v75
  %v412 = vunpack.c.l.b16 %v76
  %v413 = vunpack.c.l.b16 %v77
  %v414 = vunpack.c.l.b16 %v78
  %v415 = vunpack.c.l.b16 %v79
  %v416 = vunpack.c.l.b16 %v80
  %v417 = vunpack.c.l.b16 %v81
  %v418 = vunpack.c.l.b16 %v82
  %v419 = vunpack.c.l.b16 %v83
  %v420 = vunpack.c.l.b16 %v84
  %v421 = vunpack.c.l.b16 %v85
  %v422 = vunpack.c.l.b16 %v86
  %v423 = vunpack.c.l.b16 %v87
  %v424 = vunpack.c.l.b16 %v88
  %v425 = vunpack.c.l.b16 %v89
  %v426 = vunpack.c.l.b16 %v90
  %v427 = vunpack.c.l.b16 %v91
  %v428 = vunpack.c.l.b16 %v92
  %v429 = vunpack.c.l.b16 %v93
  %v430 = vunpack.c.l.b16 %v94
  %v431 = vunpack.c.l.b16 %v95
  %v432 = vunpack.c.l.b16 %v96
  %v433 = vunpack.c.l.b16 %v97
  %v434 = vunpack.c.l.b16 %v98
  %v435 = vunpack.c.l.b16 %v99
  %v436 = vunpack.c.l.b16 %v100
  %v437 = vunpack.c.l.b16 %v101
  %v438 = vunpack.c.l.b16 %v102
  %v439 = vunpack.c.l.b16 %v103
  %v440 = vunpack.c.l.b16 %v104
  %v441 = vunpack.c.l.b16 %v105
  %v442 = vunpack.c.l.b16 %v106
  %v443 = vunpack.c.l.b16 %v107
  %v444 = vunpack.c.l.b16 %v108
  %v445 = vunpack.c.l.b16 %v109
  %v446 = vunpack.c.l.b16 %v110
  %v447 = vunpack.c.l.b16 %v111
  %v448 = vunpack.c.l.b16 %v112
  %v449 = vunpack.c.l.b16 %v113
  %v450 = vunpack.c.l.b16 %v114
  %v451 = vunpack.c.l.b16 %v115
  %v452 = vunpack.c.l.b16 %v116
  %v453 = vunpack.c.l.b16 %v117
  %v454 = vunpack.c.l.b16 %v118
  %v455 = vunpack.c.l.b16 %v119
  %v456 = vunpack.c.l.b16 %v120
  %v457 = vunpack.c.l.b16 %v121
  %v458 = vunpack.c.l.b16 %v122
  %v459 = vunpack.c.l.b16 %v123
  %v460 = vunpack.c.l.b16 %v124
  %v461 = vunpack.c.l.b16 %v125
  %v462 = vunpack.c.l.b16 %v126
  %v463 = vunpack.c.l.b16 %v127
  %v464 = vunpack.c.l.b16 %v128
  %v465 = vunpack.c.l.b16 %v129
  %v466 = vunpack.c.l.b16 %v130
  %v467 = vunpack.c.l.b16 %v131
  %v468 = vunpack.c.l.b16 %v132
  %v469 = vunpack.c.l.b16 %v133
  %v470 = vunpack.c.l.b16 %v134
  %v471 = vunpack.c.l.b16 %v135
  %v472 = vunpack.c.l.b16 %v136
  %v473 = vunpack.c.l.b16 %v137
  %v474 = vunpack.c.l.b16 %v138
  %v475 = vunpack.c.l.b16 %v139
  %v476 = vunpack.c.l.b16 %v140
  %v477 = vunpack.c.l.b16 %v141
  %v478 = vunpack.c.l.b16 %v142
  %v479 = vunpack.c.l.b16 %v143
  %v480 = vunpack.c.l.b16 %v144
  %v481 = vunpack.c.l.b16 %v145
  %v482 = vunpack.c.l.b16 %v146
  %v483 = vunpack.c.l.b16 %v147
  %v484 = vunpack.c.l.b16 %v148
  %v485 = vunpack.c.l.b16 %v149
  %v486 = vunpack.c.l.b16 %v150
  %v487 = vunpack.c.l.b16 %v151
  %v488 = vunpack.c.l.b16 %v152
  %v489 = vunpack.c.l.b16 %v153
  %v490 = vunpack.c.l.b16 %v154
  %v491 = vunpack.c.l.b16 %v155
  %v492 = vunpack.c.l.b16 %v156
  %v493 = vunpack.c.l.b16 %v157
  %v494 = vpack.c.b16 %v367, %v366
  %v495 = vpack.c.b16 %v369, %v368
  %v496 = vpack.c.b16 %v371, %v370
  %v497 = vpack.c.b16 %v373, %v372
  %v498 = vpack.c.b16 %v375, %v374
  %v499 = vpack.c.b16 %v377, %v376
  %v500 = vpack.c.b16 %v379, %v378
  %v501 = vpack.c.b16 %v381, %v380
  %v502 = vpack.c.b16 %v383, %v382
  %v503 = vpack.c.b16 %v385, %v384
  %v504 = vpack.c.b16 %v387, %v386
  %v505 = vpack.c.b16 %v389, %v388
  %v506 = vpack.c.b16 %v391, %v390
  %v507 = vpack.c.b16 %v393, %v392
  %v508 = vpack.c.b16 %v395, %v394
  %v509 = vpack.c.b16 %v397, %v396
  %v510 = vpack.c.b16 %v399, %v398
  %v511 = vpack.c.b16 %v401, %v400
  %v512 = vpack.c.b16 %v403, %v402
  %v513 = vpack.c.b16 %v405, %v404
  %v514 = vpack.c.b16 %v407, %v406
  %v515 = vpack.c.b16 %v409, %v408
  %v516 = vpack.c.b16 %v411, %v410
  %v517 = vpack.c.b16 %v413, %v412
  %v518 = vpack.c.b16 %v415, %v414
  %v519 = vpack.c.b16 %v417, %v416
  %v520 = vpack.c.b16 %v419, %v418
  %v521 = vpack.c.b16 %v421, %v420
  %v522 = vpack.c.b16 %v423, %v422
  %v523 = vpack.c.b16 %v425, %v424
  %v524 = vpack.c.b16 %v427, %v426
  %v525 = vpack.c.b16 %v429, %v428
  %v526 = vpack.c.b16 %v431, %v430
  %v527 = vpack.c.b16 %v433, %v432
  %v528 = vpack.c.b16 %v435, %v434
  %v529 = vpack.c.b16 %v437, %v436
  %v530 = vpack.c.b16 %v439, %v438
  %v531 = vpack.c.b16 %v441, %v440
  %v532 = vpack.c.b16 %v443, %v442
  %v533 = vpack.c.b16 %v445, %v444
  %v534 = vpack.c.b16 %v447, %v446
  %v535 = vpack.c.b16 %v449, %v448
  %v536 = vpack.c.b16 %v451, %v450
  %v537 = vpack.c.b16 %v453, %v452
  %v538 = vpack.c.b16 %v455, %v454
  %v539 = vpack.c.b16 %v457, %v456
  %v540 = vpack.c.b16 %v459, %v458
  %v541 = vpack.c.b16 %v461, %v460
  %v542 = vpack.c.b16 %v463, %v462
  %v543 = vpack.c.b16 %v465, %v464
  %v544 = vpack.c.b16 %v467, %v466
  %v545 = vpack.c.b16 %v469, %v468
  %v546 = vpack.c.b16 %v471, %v470
  %v547 = vpack.c.b16 %v473, %v472
  %v548 = vpack.c.b16 %v475, %v474
  %v549 = vpack.c.b16 %v477, %v476
  %v550 = vpack.c.b16 %v479, %v478
  %v551 = vpack.c.b16 %v481, %v480
  %v552 = vpack.c.b16 %v483, %v482
  %v553 = vpack.c.b16 %v485, %v484
  %v554 = vpack.c.b16 %v487, %v486
  %v555 = vpack.c.b16 %v489, %v488
  %v556 = vpack.c.b16 %v491, %v490
  %v557 = vpack.c.b16 %v493, %v492
  %622 = vmatpush.bf16.msra.mxu0 %v501
  %623 = vmatpush.bf16.msra.mxu0 %v500
  %624 = vmatpush.bf16.msra.mxu0 %v499
  %625 = vmatpush.bf16.msra.mxu0 %v498
  %626 = vmatpush.bf16.msra.mxu0 %v497
  %627 = vmatpush.bf16.msra.mxu0 %v496
  %628 = vmatpush.bf16.msra.mxu0 %v495
  %629 = vmatpush.bf16.msra.mxu0 %v494
  %630 = vmatmul.bf16.gmra.mxu0 %v206
  %v631 = vpop.f32.mrf.mxu0
  %v632 = vadd.f32 0.0, %v631
  %v633 = vpop.f32.mrf.mxu0
  %v634 = vadd.f32 0.0, %v633
  %635 = vmatmul.bf16.gmra.mxu0 %v214
  %v636 = vpop.f32.mrf.mxu0
  %v637 = vadd.f32 0.0, %v636
  %v638 = vpop.f32.mrf.mxu0
  %v639 = vadd.f32 0.0, %v638
  %640 = vdwg.mxu0
  %641 = vmatpush.bf16.msra.mxu0 %v509
  %642 = vmatpush.bf16.msra.mxu0 %v508
  %643 = vmatpush.bf16.msra.mxu0 %v507
  %644 = vmatpush.bf16.msra.mxu0 %v506
  %645 = vmatpush.bf16.msra.mxu0 %v505
  %646 = vmatpush.bf16.msra.mxu0 %v504
  %647 = vmatpush.bf16.msra.mxu0 %v503
  %648 = vmatpush.bf16.msra.mxu0 %v502
  %649 = vmatmul.bf16.gmra.mxu0 %v207
  %v650 = vpop.f32.mrf.mxu0
  %v651 = vadd.f32 %v632, %v650
  %v652 = vpop.f32.mrf.mxu0
  %v653 = vadd.f32 %v634, %v652
  %654 = vmatmul.bf16.gmra.mxu0 %v215
  %v655 = vpop.f32.mrf.mxu0
  %v656 = vadd.f32 %v637, %v655
  %v657 = vpop.f32.mrf.mxu0
  %v658 = vadd.f32 %v639, %v657
  %659 = vdwg.mxu0
  %660 = vmatpush.bf16.msra.mxu0 %v517
  %661 = vmatpush.bf16.msra.mxu0 %v516
  %662 = vmatpush.bf16.msra.mxu0 %v515
  %663 = vmatpush.bf16.msra.mxu0 %v514
  %664 = vmatpush.bf16.msra.mxu0 %v513
  %665 = vmatpush.bf16.msra.mxu0 %v512
  %666 = vmatpush.bf16.msra.mxu0 %v511
  %667 = vmatpush.bf16.msra.mxu0 %v510
  %668 = vmatmul.bf16.gmra.mxu0 %v208
  %v669 = vpop.f32.mrf.mxu0
  %v670 = vadd.f32 %v651, %v669
  %v671 = vpop.f32.mrf.mxu0
  %v672 = vadd.f32 %v653, %v671
  %673 = vmatmul.bf16.gmra.mxu0 %v216
  %v674 = vpop.f32.mrf.mxu0
  %v675 = vadd.f32 %v656, %v674
  %v676 = vpop.f32.mrf.mxu0
  %v677 = vadd.f32 %v658, %v676
  %678 = vdwg.mxu0
  %679 = vmatpush.bf16.msra.mxu0 %v525
  %680 = vmatpush.bf16.msra.mxu0 %v524
  %681 = vmatpush.bf16.msra.mxu0 %v523
  %682 = vmatpush.bf16.msra.mxu0 %v522
  %683 = vmatpush.bf16.msra.mxu0 %v521
  %684 = vmatpush.bf16.msra.mxu0 %v520
  %685 = vmatpush.bf16.msra.mxu0 %v519
  %686 = vmatpush.bf16.msra.mxu0 %v518
  %687 = vmatmul.bf16.gmra.mxu0 %v209
  %v688 = vpop.f32.mrf.mxu0
  %v689 = vadd.f32 %v670, %v688
  %v690 = vpop.f32.mrf.mxu0
  %v691 = vadd.f32 %v672, %v690
  %692 = vmatmul.bf16.gmra.mxu0 %v217
  %v693 = vpop.f32.mrf.mxu0
  %v694 = vadd.f32 %v675, %v693
  %v695 = vpop.f32.mrf.mxu0
  %v696 = vadd.f32 %v677, %v695
  %697 = vdwg.mxu0
  %698 = vmatpush.bf16.msra.mxu0 %v533
  %699 = vmatpush.bf16.msra.mxu0 %v532
  %700 = vmatpush.bf16.msra.mxu0 %v531
  %701 = vmatpush.bf16.msra.mxu0 %v530
  %702 = vmatpush.bf16.msra.mxu0 %v529
  %703 = vmatpush.bf16.msra.mxu0 %v528
  %704 = vmatpush.bf16.msra.mxu0 %v527
  %705 = vmatpush.bf16.msra.mxu0 %v526
  %706 = vmatmul.bf16.gmra.mxu0 %v210
  %v707 = vpop.f32.mrf.mxu0
  %v708 = vadd.f32 %v689, %v707
  %v709 = vpop.f32.mrf.mxu0
  %v710 = vadd.f32 %v691, %v709
  %711 = vmatmul.bf16.gmra.mxu0 %v218
  %v712 = vpop.f32.mrf.mxu0
  %v713 = vadd.f32 %v694, %v712
  %v714 = vpop.f32.mrf.mxu0
  %v715 = vadd.f32 %v696, %v714
  %716 = vdwg.mxu0
  %717 = vmatpush.bf16.msra.mxu0 %v541
  %718 = vmatpush.bf16.msra.mxu0 %v540
  %719 = vmatpush.bf16.msra.mxu0 %v539
  %720 = vmatpush.bf16.msra.mxu0 %v538
  %721 = vmatpush.bf16.msra.mxu0 %v537
  %722 = vmatpush.bf16.msra.mxu0 %v536
  %723 = vmatpush.bf16.msra.mxu0 %v535
  %724 = vmatpush.bf16.msra.mxu0 %v534
  %725 = vmatmul.bf16.gmra.mxu0 %v211
  %v726 = vpop.f32.mrf.mxu0
  %v727 = vadd.f32 %v708, %v726
  %v728 = vpop.f32.mrf.mxu0
  %v729 = vadd.f32 %v710, %v728
  %730 = vmatmul.bf16.gmra.mxu0 %v219
  %v731 = vpop.f32.mrf.mxu0
  %v732 = vadd.f32 %v713, %v731
  %v733 = vpop.f32.mrf.mxu0
  %v734 = vadd.f32 %v715, %v733
  %735 = vdwg.mxu0
  %736 = vmatpush.bf16.msra.mxu0 %v549
  %737 = vmatpush.bf16.msra.mxu0 %v548
  %738 = vmatpush.bf16.msra.mxu0 %v547
  %739 = vmatpush.bf16.msra.mxu0 %v546
  %740 = vmatpush.bf16.msra.mxu0 %v545
  %741 = vmatpush.bf16.msra.mxu0 %v544
  %742 = vmatpush.bf16.msra.mxu0 %v543
  %743 = vmatpush.bf16.msra.mxu0 %v542
  %744 = vmatmul.bf16.gmra.mxu0 %v212
  %v745 = vpop.f32.mrf.mxu0
  %v746 = vadd.f32 %v727, %v745
  %v747 = vpop.f32.mrf.mxu0
  %v748 = vadd.f32 %v729, %v747
  %749 = vmatmul.bf16.gmra.mxu0 %v220
  %v750 = vpop.f32.mrf.mxu0
  %v751 = vadd.f32 %v732, %v750
  %v752 = vpop.f32.mrf.mxu0
  %v753 = vadd.f32 %v734, %v752
  %754 = vdwg.mxu0
  %755 = vmatpush.bf16.msra.mxu0 %v557
  %756 = vmatpush.bf16.msra.mxu0 %v556
  %757 = vmatpush.bf16.msra.mxu0 %v555
  %758 = vmatpush.bf16.msra.mxu0 %v554
  %759 = vmatpush.bf16.msra.mxu0 %v553
  %760 = vmatpush.bf16.msra.mxu0 %v552
  %761 = vmatpush.bf16.msra.mxu0 %v551
  %762 = vmatpush.bf16.msra.mxu0 %v550
  %763 = vmatmul.bf16.gmra.mxu0 %v213
  %v764 = vpop.f32.mrf.mxu0
  %v765 = vadd.f32 %v746, %v764
  %v766 = vpop.f32.mrf.mxu0
  %v767 = vadd.f32 %v748, %v766
  %768 = vmatmul.bf16.gmra.mxu0 %v221
  %v769 = vpop.f32.mrf.mxu0
  %v770 = vadd.f32 %v751, %v769
  %v771 = vpop.f32.mrf.mxu0
  %v772 = vadd.f32 %v753, %v771
  %773 = vdwg.mxu0
  %v774 = vpack.c.bf16 %v765, %v765
  %v775 = vpack.c.bf16 %v767, %v767
  %v776 = vpack.c.bf16 %v770, %v770
  %v777 = vpack.c.bf16 %v772, %v772
  %778 = vst [vmem:[%s2] sm:$0xf] %v774
  %779 = vst [vmem:[%s2 + $0x4] sm:$0xf] %v775
  %780 = vst [vmem:[%s2 + $0x8] sm:$0xf] %v776
  %781 = vst [vmem:[%s2 + $0xc] sm:$0xf] %v777
  %v782 = vadd.f32 %v765, %v767
  %v783 = vadd.f32 %v782, %v770
  %v784 = vadd.f32 %v783, %v772
  %v785 = vrot.slane %v784, 4
  %v786 = vadd.f32 %v784, %v785
  %v787 = vrot.slane %v786, 2
  %v788 = vadd.f32 %v786, %v787
  %v789 = vrot.slane %v788, 1
  %v790 = vadd.f32 %v788, %v789
  %791 = vst [vmem:[%s3] sm:$0xff] %v790
  %v792 = vmul.f32 %v765, %v765
  %v793 = vmul.f32 %v767, %v767
  %v794 = vmul.f32 %v770, %v770
  %v795 = vmul.f32 %v772, %v772
  %v796 = vadd.f32 %v792, %v793
  %v797 = vadd.f32 %v796, %v794
  %v798 = vadd.f32 %v797, %v795
  %v799 = vrot.slane %v798, 4
  %v800 = vadd.f32 %v798, %v799
  %v801 = vrot.slane %v800, 2
  %v802 = vadd.f32 %v800, %v801
  %v803 = vrot.slane %v802, 1
  %v804 = vadd.f32 %v802, %v803
  %805 = vst [vmem:[%s4] sm:$0xff] %v804
  // Predicated region
  $region10: #{generator_forward.16} parent=0 // pred_check
    _
  $region11: #{generator_forward.16} parent=0 // pred_check_branch
    %807 = sbr.rel (0) target = $region13
  $region12: #{generator_forward.16} parent=0 // pred_region
    _
  $region13: #{generator_forward.16} parent=0 // pred_fallthru
    _
  // Predicated region
  $region14: #{generator_forward.16} parent=0 // pred_check
    _
  $region15: #{generator_forward.16} parent=0 // pred_check_branch
    %809 = sbr.rel (0) target = $region17
  $region16: #{generator_forward.16} parent=0 // pred_region
    _
  $region17: #{generator_forward.16} parent=0 // pred_fallthru
    _
  // Predicated region
  $region18: #{generator_forward.16} parent=0 // pred_check
    _
  $region19: #{generator_forward.16} parent=0 // pred_check_branch
    %811 = sbr.rel (0) target = $region21
  $region20: #{generator_forward.16} parent=0 // pred_region
    _
  $region21: #{generator_forward.16} parent=0 // pred_fallthru
    _
  // Predicated region
  $region22: #{generator_forward.16} parent=0 // pred_check
    _
  $region23: #{generator_forward.16} parent=0 // pred_check_branch
    %813 = sbr.rel (0) target = $region25
  $region24: #{generator_forward.16} parent=0 // pred_region
    _
  $region25: #{generator_forward.16} parent=0 // pred_fallthru
    _
  // Predicated region
  $region26: #{generator_forward.16} parent=0 // pred_check
    _
  $region27: #{generator_forward.16} parent=0 // pred_check_branch
    %815 = sbr.rel (0) target = $region29
  $region28: #{generator_forward.16} parent=0 // pred_region
    _
  $region29: #{generator_forward.16} parent=0 // pred_fallthru
    _
  // Predicated region
  $region30: #{generator_forward.16} parent=0 // pred_check
    _
  $region31: #{generator_forward.16} parent=0 // pred_check_branch
    %817 = sbr.rel (0) target = $region33
  $region32: #{generator_forward.16} parent=0 // pred_region
    _
  $region33: #{generator_forward.16} parent=0 // pred_fallthru
    _

// kernel: generator_forward.19
$region0: #{generator_forward.19}
  #allocation0 [shape = 'u32[]', space=smem, size = 0x4, offset = 0x4, fixed_abs, tag = 'smem constant byte address 0x4 - core index']
  #allocation1 [shape = 'u32[72,128]{1,0:T(1,128)}', space=vmem, size = 0x9000, scoped, tag = 'internal scratch']
  %s0 = inlined_call_operand.vmem [shape: bf16[16,256], index: 0, kind: input, shape index: {}]
  %s1 = inlined_call_operand.vmem [shape: f32[1,256], index: 1, kind: input, shape index: {}]
  %s2 = inlined_call_operand.vmem [shape: f32[1,256], index: 2, kind: input, shape index: {}]
  %s3 = inlined_call_operand.vmem [shape: bf16[16,256], index: 3, kind: output, shape index: {}]
  %s4 = sld [smem:[#allocation0]]
  $region22: #{generator_forward.19} parent=0
    _
  %s6 = ssub.s32 1, %s4
  %s7 = scalar_select 0, %s6, %s4
  // Predicated region
  $region2: #{generator_forward.19} parent=0 // pred_check
    _
  $region3: #{generator_forward.19} parent=0 // pred_check_branch
    %9 = sbr.rel (0) target = $region5
  $region4: #{generator_forward.19} parent=0 // pred_region
    _
  $region5: #{generator_forward.19} parent=0 // pred_fallthru
    _
  // Predicated region
  $region6: #{generator_forward.19} parent=0 // pred_check
    _
  $region7: #{generator_forward.19} parent=0 // pred_check_branch
    %11 = sbr.rel (0) target = $region9
  $region8: #{generator_forward.19} parent=0 // pred_region
    _
  $region9: #{generator_forward.19} parent=0 // pred_fallthru
    _
  // Predicated region
  $region10: #{generator_forward.19} parent=0 // pred_check
    _
  $region11: #{generator_forward.19} parent=0 // pred_check_branch
    %13 = sbr.rel (0) target = $region13
  $region12: #{generator_forward.19} parent=0 // pred_region
    _
  $region13: #{generator_forward.19} parent=0 // pred_fallthru
    _
  %v14 = vld [vmem:[%s0] sm:$0xff]
  %v15 = vld [vmem:[%s0 + $0x8] sm:$0xff]
  %v16 = vunpack.c.l.bf16 %v14
  %v17 = vunpack.c.h.bf16 %v14
  %v18 = vunpack.c.l.bf16 %v15
  %v19 = vunpack.c.h.bf16 %v15
  %v20 = vld [vmem:[%s1] sm:$0x3]
  %v22 = vperm.slane %v20, 0
  %v23 = vperm.slane %v20, 1
  %v26 = vmul.f32 %v16, %v22
  %v27 = vmul.f32 %v17, %v23
  %v28 = vmul.f32 %v18, %v22
  %v29 = vmul.f32 %v19, %v23
  %v30 = vld [vmem:[%s2] sm:$0x3]
  %v32 = vperm.slane %v30, 0
  %v33 = vperm.slane %v30, 1
  %v36 = vadd.f32 %v26, %v32
  %v37 = vadd.f32 %v27, %v33
  %v38 = vadd.f32 %v28, %v32
  %v39 = vadd.f32 %v29, %v33
  %vm40 = vcmp.ge.f32.partialorder %v36, 0.0
  %vm41 = vcmp.ge.f32.partialorder %v37, 0.0
  %vm42 = vcmp.ge.f32.partialorder %v38, 0.0
  %vm43 = vcmp.ge.f32.partialorder %v39, 0.0
  %v44 = vmul.f32 %v36, 0.2
  %v45 = vmul.f32 %v37, 0.2
  %v46 = vmul.f32 %v38, 0.2
  %v47 = vmul.f32 %v39, 0.2
  %v48 = vsel %vm40, %v36, %v44
  %v49 = vsel %vm41, %v37, %v45
  %v50 = vsel %vm42, %v38, %v46
  %v51 = vsel %vm43, %v39, %v47
  %v52 = vpack.c.bf16 %v49, %v48
  %v53 = vpack.c.bf16 %v51, %v50
  %54 = vst [vmem:[%s3] sm:$0xff] %v52
  %55 = vst [vmem:[%s3 + $0x8] sm:$0xff] %v53
  // Predicated region
  $region14: #{generator_forward.19} parent=0 // pred_check
    _
  $region15: #{generator_forward.19} parent=0 // pred_check_branch
    %57 = sbr.rel (0) target = $region17
  $region16: #{generator_forward.19} parent=0 // pred_region
    _
  $region17: #{generator_forward.19} parent=0 // pred_fallthru
    _
  // Predicated region
  $region18: #{generator_forward.19} parent=0 // pred_check
    _
  $region19: #{generator_forward.19} parent=0 // pred_check_branch
    %59 = sbr.rel (0) target = $region21
  $region20: #{generator_forward.19} parent=0 // pred_region
    _
  $region21: #{generator_forward.19} parent=0 // pred_fallthru
    _

// kernel: generator_forward.18
$region0: #{generator_forward.18}
  #allocation0 [shape = 'u32[]', space=smem, size = 0x4, offset = 0x4, fixed_abs, tag = 'smem constant byte address 0x4 - core index']
  #allocation1 [shape = 'u32[72,128]{1,0:T(1,128)}', space=vmem, size = 0x9000, scoped, tag = 'internal scratch']
  %s0 = inlined_call_operand.vmem [shape: bf16[16,2048], index: 0, kind: input, shape index: {}]
  %s1 = inlined_call_operand.vmem [shape: bf16[2048,256], index: 1, kind: input, shape index: {}]
  %s2 = inlined_call_operand.vmem [shape: bf16[16,256], index: 2, kind: output, shape index: {0}]
  %s3 = inlined_call_operand.vmem [shape: f32[8,256], index: 3, kind: output, shape index: {1}]
  %s4 = inlined_call_operand.vmem [shape: f32[8,256], index: 4, kind: output, shape index: {2}]
  %5 = xla_tuple %s2, %s3, %s4
  %s6 = sld [smem:[#allocation0]]
  $region34: #{generator_forward.18} parent=0
    _
  %s8 = ssub.s32 1, %s6
  %s9 = scalar_select 0, %s8, %s6
  // Predicated region
  $region2: #{generator_forward.18} parent=0 // pred_check
    _
  $region3: #{generator_forward.18} parent=0 // pred_check_branch
    %11 = sbr.rel (0) target = $region5
  $region4: #{generator_forward.18} parent=0 // pred_region
    _
  $region5: #{generator_forward.18} parent=0 // pred_fallthru
    _
  // Predicated region
  $region6: #{generator_forward.18} parent=0 // pred_check
    _
  $region7: #{generator_forward.18} parent=0 // pred_check_branch
    %13 = sbr.rel (0) target = $region9
  $region8: #{generator_forward.18} parent=0 // pred_region
    _
  $region9: #{generator_forward.18} parent=0 // pred_fallthru
    _
  %v14 = vld [vmem:[%s0] sm:$0xff]
  %v15 = vld [vmem:[%s0 + $0x8] sm:$0xff]
  %v16 = vld [vmem:[%s0 + $0x10] sm:$0xff]
  %v17 = vld [vmem:[%s0 + $0x18] sm:$0xff]
  %v18 = vld [vmem:[%s0 + $0x20] sm:$0xff]
  %v19 = vld [vmem:[%s0 + $0x28] sm:$0xff]
  %v20 = vld [vmem:[%s0 + $0x30] sm:$0xff]
  %v21 = vld [vmem:[%s0 + $0x38] sm:$0xff]
  %v22 = vld [vmem:[%s0 + $0x40] sm:$0xff]
  %v23 = vld [vmem:[%s0 + $0x48] sm:$0xff]
  %v24 = vld [vmem:[%s0 + $0x50] sm:$0xff]
  %v25 = vld [vmem:[%s0 + $0x58] sm:$0xff]
  %v26 = vld [vmem:[%s0 + $0x60] sm:$0xff]
  %v27 = vld [vmem:[%s0 + $0x68] sm:$0xff]
  %v28 = vld [vmem:[%s0 + $0x70] sm:$0xff]
  %v29 = vld [vmem:[%s0 + $0x78] sm:$0xff]
  %v30 = vld [vmem:[%s1] sm:$0xff]
  %v31 = vld [vmem:[%s1 + $0x8] sm:$0xff]
  %v32 = vld [vmem:[%s1 + $0x10] sm:$0xff]
  %v33 = vld [vmem:[%s1 + $0x18] sm:$0xff]
  %v34 = vld [vmem:[%s1 + $0x20] sm:$0xff]
  %v35 = vld [vmem:[%s1 + $0x28] sm:$0xff]
  %v36 = vld [vmem:[%s1 + $0x30] sm:$0xff]
  %v37 = vld [vmem:[%s1 + $0x38] sm:$0xff]
  %v38 = vld [vmem:[%s1 + $0x40] sm:$0xff]
  %v39 = vld [vmem:[%s1 + $0x48] sm:$0xff]
  %v40 = vld [vmem:[%s1 + $0x50] sm:$0xff]
  %v41 = vld [vmem:[%s1 + $0x58] sm:$0xff]
  %v42 = vld [vmem:[%s1 + $0x60] sm:$0xff]
  %v43 = vld [vmem:[%s1 + $0x68] sm:$0xff]
  %v44 = vld [vmem:[%s1 + $0x70] sm:$0xff]
  %v45 = vld [vmem:[%s1 + $0x78] sm:$0xff]
  %v46 = vld [vmem:[%s1 + $0x80] sm:$0xff]
  %v47 = vld [vmem:[%s1 + $0x88] sm:$0xff]
  %v48 = vld [vmem:[%s1 + $0x90] sm:$0xff]
  %v49 = vld [vmem:[%s1 + $0x98] sm:$0xff]
  %v50 = vld [vmem:[%s1 + $0xa0] sm:$0xff]
  %v51 = vld [vmem:[%s1 + $0xa8] sm:$0xff]
  %v52 = vld [vmem:[%s1 + $0xb0] sm:$0xff]
  %v53 = vld [vmem:[%s1 + $0xb8] sm:$0xff]
  %v54 = vld [vmem:[%s1 + $0xc0] sm:$0xff]
  %v55 = vld [vmem:[%s1 + $0xc8] sm:$0xff]
  %v56 = vld [vmem:[%s1 + $0xd0] sm:$0xff]
  %v57 = vld [vmem:[%s1 + $0xd8] sm:$0xff]
  %v58 = vld [vmem:[%s1 + $0xe0] sm:$0xff]
  %v59 = vld [vmem:[%s1 + $0xe8] sm:$0xff]
  %v60 = vld [vmem:[%s1 + $0xf0] sm:$0xff]
  %v61 = vld [vmem:[%s1 + $0xf8] sm:$0xff]
  %v62 = vld [vmem:[%s1 + $0x100] sm:$0xff]
  %v63 = vld [vmem:[%s1 + $0x108] sm:$0xff]
  %v64 = vld [vmem:[%s1 + $0x110] sm:$0xff]
  %v65 = vld [vmem:[%s1 + $0x118] sm:$0xff]
  %v66 = vld [vmem:[%s1 + $0x120] sm:$0xff]
  %v67 = vld [vmem:[%s1 + $0x128] sm:$0xff]
  %v68 = vld [vmem:[%s1 + $0x130] sm:$0xff]
  %v69 = vld [vmem:[%s1 + $0x138] sm:$0xff]
  %v70 = vld [vmem:[%s1 + $0x140] sm:$0xff]
  %v71 = vld [vmem:[%s1 + $0x148] sm:$0xff]
  %v72 = vld [vmem:[%s1 + $0x150] sm:$0xff]
  %v73 = vld [vmem:[%s1 + $0x158] sm:$0xff]
  %v74 = vld [vmem:[%s1 + $0x160] sm:$0xff]
  %v75 = vld [vmem:[%s1 + $0x168] sm:$0xff]
  %v76 = vld [vmem:[%s1 + $0x170] sm:$0xff]
  %v77 = vld [vmem:[%s1 + $0x178] sm:$0xff]
  %v78 = vld [vmem:[%s1 + $0x180] sm:$0xff]
  %v79 = vld [vmem:[%s1 + $0x188] sm:$0xff]
  %v80 = vld [vmem:[%s1 + $0x190] sm:$0xff]
  %v81 = vld [vmem:[%s1 + $0x198] sm:$0xff]
  %v82 = vld [vmem:[%s1 + $0x1a0] sm:$0xff]
  %v83 = vld [vmem:[%s1 + $0x1a8] sm:$0xff]
  %v84 = vld [vmem:[%s1 + $0x1b0] sm:$0xff]
  %v85 = vld [vmem:[%s1 + $0x1b8] sm:$0xff]
  %v86 = vld [vmem:[%s1 + $0x1c0] sm:$0xff]
  %v87 = vld [vmem:[%s1 + $0x1c8] sm:$0xff]
  %v88 = vld [vmem:[%s1 + $0x1d0] sm:$0xff]
  %v89 = vld [vmem:[%s1 + $0x1d8] sm:$0xff]
  %v90 = vld [vmem:[%s1 + $0x1e0] sm:$0xff]
  %v91 = vld [vmem:[%s1 + $0x1e8] sm:$0xff]
  %v92 = vld [vmem:[%s1 + $0x1f0] sm:$0xff]
  %v93 = vld [vmem:[%s1 + $0x1f8] sm:$0xff]
  %v94 = vld [vmem:[%s1 + $0x200] sm:$0xff]
  %v95 = vld [vmem:[%s1 + $0x208] sm:$0xff]
  %v96 = vld [vmem:[%s1 + $0x210] sm:$0xff]
  %v97 = vld [vmem:[%s1 + $0x218] sm:$0xff]
  %v98 = vld [vmem:[%s1 + $0x220] sm:$0xff]
  %v99 = vld [vmem:[%s1 + $0x228] sm:$0xff]
  %v100 = vld [vmem:[%s1 + $0x230] sm:$0xff]
  %v101 = vld [vmem:[%s1 + $0x238] sm:$0xff]
  %v102 = vld [vmem:[%s1 + $0x240] sm:$0xff]
  %v103 = vld [vmem:[%s1 + $0x248] sm:$0xff]
  %v104 = vld [vmem:[%s1 + $0x250] sm:$0xff]
  %v105 = vld [vmem:[%s1 + $0x258] sm:$0xff]
  %v106 = vld [vmem:[%s1 + $0x260] sm:$0xff]
  %v107 = vld [vmem:[%s1 + $0x268] sm:$0xff]
  %v108 = vld [vmem:[%s1 + $0x270] sm:$0xff]
  %v109 = vld [vmem:[%s1 + $0x278] sm:$0xff]
  %v110 = vld [vmem:[%s1 + $0x280] sm:$0xff]
  %v111 = vld [vmem:[%s1 + $0x288] sm:$0xff]
  %v112 = vld [vmem:[%s1 + $0x290] sm:$0xff]
  %v113 = vld [vmem:[%s1 + $0x298] sm:$0xff]
  %v114 = vld [vmem:[%s1 + $0x2a0] sm:$0xff]
  %v115 = vld [vmem:[%s1 + $0x2a8] sm:$0xff]
  %v116 = vld [vmem:[%s1 + $0x2b0] sm:$0xff]
  %v117 = vld [vmem:[%s1 + $0x2b8] sm:$0xff]
  %v118 = vld [vmem:[%s1 + $0x2c0] sm:$0xff]
  %v119 = vld [vmem:[%s1 + $0x2c8] sm:$0xff]
  %v120 = vld [vmem:[%s1 + $0x2d0] sm:$0xff]
  %v121 = vld [vmem:[%s1 + $0x2d8] sm:$0xff]
  %v122 = vld [vmem:[%s1 + $0x2e0] sm:$0xff]
  %v123 = vld [vmem:[%s1 + $0x2e8] sm:$0xff]
  %v124 = vld [vmem:[%s1 + $0x2f0] sm:$0xff]
  %v125 = vld [vmem:[%s1 + $0x2f8] sm:$0xff]
  %v126 = vld [vmem:[%s1 + $0x300] sm:$0xff]
  %v127 = vld [vmem:[%s1 + $0x308] sm:$0xff]
  %v128 = vld [vmem:[%s1 + $0x310] sm:$0xff]
  %v129 = vld [vmem:[%s1 + $0x318] sm:$0xff]
  %v130 = vld [vmem:[%s1 + $0x320] sm:$0xff]
  %v131 = vld [vmem:[%s1 + $0x328] sm:$0xff]
  %v132 = vld [vmem:[%s1 + $0x330] sm:$0xff]
  %v133 = vld [vmem:[%s1 + $0x338] sm:$0xff]
  %v134 = vld [vmem:[%s1 + $0x340] sm:$0xff]
  %v135 = vld [vmem:[%s1 + $0x348] sm:$0xff]
  %v136 = vld [vmem:[%s1 + $0x350] sm:$0xff]
  %v137 = vld [vmem:[%s1 + $0x358] sm:$0xff]
  %v138 = vld [vmem:[%s1 + $0x360] sm:$0xff]
  %v139 = vld [vmem:[%s1 + $0x368] sm:$0xff]
  %v140 = vld [vmem:[%s1 + $0x370] sm:$0xff]
  %v141 = vld [vmem:[%s1 + $0x378] sm:$0xff]
  %v142 = vld [vmem:[%s1 + $0x380] sm:$0xff]
  %v143 = vld [vmem:[%s1 + $0x388] sm:$0xff]
  %v144 = vld [vmem:[%s1 + $0x390] sm:$0xff]
  %v145 = vld [vmem:[%s1 + $0x398] sm:$0xff]
  %v146 = vld [vmem:[%s1 + $0x3a0] sm:$0xff]
  %v147 = vld [vmem:[%s1 + $0x3a8] sm:$0xff]
  %v148 = vld [vmem:[%s1 + $0x3b0] sm:$0xff]
  %v149 = vld [vmem:[%s1 + $0x3b8] sm:$0xff]
  %v150 = vld [vmem:[%s1 + $0x3c0] sm:$0xff]
  %v151 = vld [vmem:[%s1 + $0x3c8] sm:$0xff]
  %v152 = vld [vmem:[%s1 + $0x3d0] sm:$0xff]
  %v153 = vld [vmem:[%s1 + $0x3d8] sm:$0xff]
  %v154 = vld [vmem:[%s1 + $0x3e0] sm:$0xff]
  %v155 = vld [vmem:[%s1 + $0x3e8] sm:$0xff]
  %v156 = vld [vmem:[%s1 + $0x3f0] sm:$0xff]
  %v157 = vld [vmem:[%s1 + $0x3f8] sm:$0xff]
  %v158 = vld [vmem:[%s1 + $0x400] sm:$0xff]
  %v159 = vld [vmem:[%s1 + $0x408] sm:$0xff]
  %v160 = vld [vmem:[%s1 + $0x410] sm:$0xff]
  %v161 = vld [vmem:[%s1 + $0x418] sm:$0xff]
  %v162 = vld [vmem:[%s1 + $0x420] sm:$0xff]
  %v163 = vld [vmem:[%s1 + $0x428] sm:$0xff]
  %v164 = vld [vmem:[%s1 + $0x430] sm:$0xff]
  %v165 = vld [vmem:[%s1 + $0x438] sm:$0xff]
  %v166 = vld [vmem:[%s1 + $0x440] sm:$0xff]
  %v167 = vld [vmem:[%s1 + $0x448] sm:$0xff]
  %v168 = vld [vmem:[%s1 + $0x450] sm:$0xff]
  %v169 = vld [vmem:[%s1 + $0x458] sm:$0xff]
  %v170 = vld [vmem:[%s1 + $0x460] sm:$0xff]
  %v171 = vld [vmem:[%s1 + $0x468] sm:$0xff]
  %v172 = vld [vmem:[%s1 + $0x470] sm:$0xff]
  %v173 = vld [vmem:[%s1 + $0x478] sm:$0xff]
  %v174 = vld [vmem:[%s1 + $0x480] sm:$0xff]
  %v175 = vld [vmem:[%s1 + $0x488] sm:$0xff]
  %v176 = vld [vmem:[%s1 + $0x490] sm:$0xff]
  %v177 = vld [vmem:[%s1 + $0x498] sm:$0xff]
  %v178 = vld [vmem:[%s1 + $0x4a0] sm:$0xff]
  %v179 = vld [vmem:[%s1 + $0x4a8] sm:$0xff]
  %v180 = vld [vmem:[%s1 + $0x4b0] sm:$0xff]
  %v181 = vld [vmem:[%s1 + $0x4b8] sm:$0xff]
  %v182 = vld [vmem:[%s1 + $0x4c0] sm:$0xff]
  %v183 = vld [vmem:[%s1 + $0x4c8] sm:$0xff]
  %v184 = vld [vmem:[%s1 + $0x4d0] sm:$0xff]
  %v185 = vld [vmem:[%s1 + $0x4d8] sm:$0xff]
  %v186 = vld [vmem:[%s1 + $0x4e0] sm:$0xff]
  %v187 = vld [vmem:[%s1 + $0x4e8] sm:$0xff]
  %v188 = vld [vmem:[%s1 + $0x4f0] sm:$0xff]
  %v189 = vld [vmem:[%s1 + $0x4f8] sm:$0xff]
  %v190 = vld [vmem:[%s1 + $0x500] sm:$0xff]
  %v191 = vld [vmem:[%s1 + $0x508] sm:$0xff]
  %v192 = vld [vmem:[%s1 + $0x510] sm:$0xff]
  %v193 = vld [vmem:[%s1 + $0x518] sm:$0xff]
  %v194 = vld [vmem:[%s1 + $0x520] sm:$0xff]
  %v195 = vld [vmem:[%s1 + $0x528] sm:$0xff]
  %v196 = vld [vmem:[%s1 + $0x530] sm:$0xff]
  %v197 = vld [vmem:[%s1 + $0x538] sm:$0xff]
  %v198 = vld [vmem:[%s1 + $0x540] sm:$0xff]
  %v199 = vld [vmem:[%s1 + $0x548] sm:$0xff]
  %v200 = vld [vmem:[%s1 + $0x550] sm:$0xff]
  %v201 = vld [vmem:[%s1 + $0x558] sm:$0xff]
  %v202 = vld [vmem:[%s1 + $0x560] sm:$0xff]
  %v203 = vld [vmem:[%s1 + $0x568] sm:$0xff]
  %v204 = vld [vmem:[%s1 + $0x570] sm:$0xff]
  %v205 = vld [vmem:[%s1 + $0x578] sm:$0xff]
  %v206 = vld [vmem:[%s1 + $0x580] sm:$0xff]
  %v207 = vld [vmem:[%s1 + $0x588] sm:$0xff]
  %v208 = vld [vmem:[%s1 + $0x590] sm:$0xff]
  %v209 = vld [vmem:[%s1 + $0x598] sm:$0xff]
  %v210 = vld [vmem:[%s1 + $0x5a0] sm:$0xff]
  %v211 = vld [vmem:[%s1 + $0x5a8] sm:$0xff]
  %v212 = vld [vmem:[%s1 + $0x5b0] sm:$0xff]
  %v213 = vld [vmem:[%s1 + $0x5b8] sm:$0xff]
  %v214 = vld [vmem:[%s1 + $0x5c0] sm:$0xff]
  %v215 = vld [vmem:[%s1 + $0x5c8] sm:$0xff]
  %v216 = vld [vmem:[%s1 + $0x5d0] sm:$0xff]
  %v217 = vld [vmem:[%s1 + $0x5d8] sm:$0xff]
  %v218 = vld [vmem:[%s1 + $0x5e0] sm:$0xff]
  %v219 = vld [vmem:[%s1 + $0x5e8] sm:$0xff]
  %v220 = vld [vmem:[%s1 + $0x5f0] sm:$0xff]
  %v221 = vld [vmem:[%s1 + $0x5f8] sm:$0xff]
  %v222 = vld [vmem:[%s1 + $0x600] sm:$0xff]
  %v223 = vld [vmem:[%s1 + $0x608] sm:$0xff]
  %v224 = vld [vmem:[%s1 + $0x610] sm:$0xff]
  %v225 = vld [vmem:[%s1 + $0x618] sm:$0xff]
  %v226 = vld [vmem:[%s1 + $0x620] sm:$0xff]
  %v227 = vld [vmem:[%s1 + $0x628] sm:$0xff]
  %v228 = vld [vmem:[%s1 + $0x630] sm:$0xff]
  %v229 = vld [vmem:[%s1 + $0x638] sm:$0xff]
  %v230 = vld [vmem:[%s1 + $0x640] sm:$0xff]
  %v231 = vld [vmem:[%s1 + $0x648] sm:$0xff]
  %v232 = vld [vmem:[%s1 + $0x650] sm:$0xff]
  %v233 = vld [vmem:[%s1 + $0x658] sm:$0xff]
  %v234 = vld [vmem:[%s1 + $0x660] sm:$0xff]
  %v235 = vld [vmem:[%s1 + $0x668] sm:$0xff]
  %v236 = vld [vmem:[%s1 + $0x670] sm:$0xff]
  %v237 = vld [vmem:[%s1 + $0x678] sm:$0xff]
  %v238 = vld [vmem:[%s1 + $0x680] sm:$0xff]
  %v239 = vld [vmem:[%s1 + $0x688] sm:$0xff]
  %v240 = vld [vmem:[%s1 + $0x690] sm:$0xff]
  %v241 = vld [vmem:[%s1 + $0x698] sm:$0xff]
  %v242 = vld [vmem:[%s1 + $0x6a0] sm:$0xff]
  %v243 = vld [vmem:[%s1 + $0x6a8] sm:$0xff]
  %v244 = vld [vmem:[%s1 + $0x6b0] sm:$0xff]
  %v245 = vld [vmem:[%s1 + $0x6b8] sm:$0xff]
  %v246 = vld [vmem:[%s1 + $0x6c0] sm:$0xff]
  %v247 = vld [vmem:[%s1 + $0x6c8] sm:$0xff]
  %v248 = vld [vmem:[%s1 + $0x6d0] sm:$0xff]
  %v249 = vld [vmem:[%s1 + $0x6d8] sm:$0xff]
  %v250 = vld [vmem:[%s1 + $0x6e0] sm:$0xff]
  %v251 = vld [vmem:[%s1 + $0x6e8] sm:$0xff]
  %v252 = vld [vmem:[%s1 + $0x6f0] sm:$0xff]
  %v253 = vld [vmem:[%s1 + $0x6f8] sm:$0xff]
  %v254 = vld [vmem:[%s1 + $0x700] sm:$0xff]
  %v255 = vld [vmem:[%s1 + $0x708] sm:$0xff]
  %v256 = vld [vmem:[%s1 + $0x710] sm:$0xff]
  %v257 = vld [vmem:[%s1 + $0x718] sm:$0xff]
  %v258 = vld [vmem:[%s1 + $0x720] sm:$0xff]
  %v259 = vld [vmem:[%s1 + $0x728] sm:$0xff]
  %v260 = vld [vmem:[%s1 + $0x730] sm:$0xff]
  %v261 = vld [vmem:[%s1 + $0x738] sm:$0xff]
  %v262 = vld [vmem:[%s1 + $0x740] sm:$0xff]
  %v263 = vld [vmem:[%s1 + $0x748] sm:$0xff]
  %v264 = vld [vmem:[%s1 + $0x750] sm:$0xff]
  %v265 = vld [vmem:[%s1 + $0x758] sm:$0xff]
  %v266 = vld [vmem:[%s1 + $0x760] sm:$0xff]
  %v267 = vld [vmem:[%s1 + $0x768] sm:$0xff]
  %v268 = vld [vmem:[%s1 + $0x770] sm:$0xff]
  %v269 = vld [vmem:[%s1 + $0x778] sm:$0xff]
  %v270 = vld [vmem:[%s1 + $0x780] sm:$0xff]
  %v271 = vld [vmem:[%s1 + $0x788] sm:$0xff]
  %v272 = vld [vmem:[%s1 + $0x790] sm:$0xff]
  %v273 = vld [vmem:[%s1 + $0x798] sm:$0xff]
  %v274 = vld [vmem:[%s1 + $0x7a0] sm:$0xff]
  %v275 = vld [vmem:[%s1 + $0x7a8] sm:$0xff]
  %v276 = vld [vmem:[%s1 + $0x7b0] sm:$0xff]
  %v277 = vld [vmem:[%s1 + $0x7b8] sm:$0xff]
  %v278 = vld [vmem:[%s1 + $0x7c0] sm:$0xff]
  %v279 = vld [vmem:[%s1 + $0x7c8] sm:$0xff]
  %v280 = vld [vmem:[%s1 + $0x7d0] sm:$0xff]
  %v281 = vld [vmem:[%s1 + $0x7d8] sm:$0xff]
  %v282 = vld [vmem:[%s1 + $0x7e0] sm:$0xff]
  %v283 = vld [vmem:[%s1 + $0x7e8] sm:$0xff]
  %v284 = vld [vmem:[%s1 + $0x7f0] sm:$0xff]
  %v285 = vld [vmem:[%s1 + $0x7f8] sm:$0xff]
  %v302 = vunpack.c.l.b16 %v14
  %v303 = vunpack.c.h.b16 %v14
  %v304 = vunpack.c.l.b16 %v15
  %v305 = vunpack.c.h.b16 %v15
  %v306 = vunpack.c.l.b16 %v16
  %v307 = vunpack.c.h.b16 %v16
  %v308 = vunpack.c.l.b16 %v17
  %v309 = vunpack.c.h.b16 %v17
  %v310 = vunpack.c.l.b16 %v18
  %v311 = vunpack.c.h.b16 %v18
  %v312 = vunpack.c.l.b16 %v19
  %v313 = vunpack.c.h.b16 %v19
  %v314 = vunpack.c.l.b16 %v20
  %v315 = vunpack.c.h.b16 %v20
  %v316 = vunpack.c.l.b16 %v21
  %v317 = vunpack.c.h.b16 %v21
  %v318 = vunpack.c.l.b16 %v22
  %v319 = vunpack.c.h.b16 %v22
  %v320 = vunpack.c.l.b16 %v23
  %v321 = vunpack.c.h.b16 %v23
  %v322 = vunpack.c.l.b16 %v24
  %v323 = vunpack.c.h.b16 %v24
  %v324 = vunpack.c.l.b16 %v25
  %v325 = vunpack.c.h.b16 %v25
  %v326 = vunpack.c.l.b16 %v26
  %v327 = vunpack.c.h.b16 %v26
  %v328 = vunpack.c.l.b16 %v27
  %v329 = vunpack.c.h.b16 %v27
  %v330 = vunpack.c.l.b16 %v28
  %v331 = vunpack.c.h.b16 %v28
  %v332 = vunpack.c.l.b16 %v29
  %v333 = vunpack.c.h.b16 %v29
  %v334 = vpack.c.b16 %v318, %v302
  %v335 = vpack.c.b16 %v319, %v303
  %v336 = vpack.c.b16 %v320, %v304
  %v337 = vpack.c.b16 %v321, %v305
  %v338 = vpack.c.b16 %v322, %v306
  %v339 = vpack.c.b16 %v323, %v307
  %v340 = vpack.c.b16 %v324, %v308
  %v341 = vpack.c.b16 %v325, %v309
  %v342 = vpack.c.b16 %v326, %v310
  %v343 = vpack.c.b16 %v327, %v311
  %v344 = vpack.c.b16 %v328, %v312
  %v345 = vpack.c.b16 %v329, %v313
  %v346 = vpack.c.b16 %v330, %v314
  %v347 = vpack.c.b16 %v331, %v315
  %v348 = vpack.c.b16 %v332, %v316
  %v349 = vpack.c.b16 %v333, %v317
  %v622 = vunpack.c.l.b16 %v30
  %v623 = vunpack.c.h.b16 %v30
  %v624 = vunpack.c.l.b16 %v31
  %v625 = vunpack.c.h.b16 %v31
  %v626 = vunpack.c.l.b16 %v32
  %v627 = vunpack.c.h.b16 %v32
  %v628 = vunpack.c.l.b16 %v33
  %v629 = vunpack.c.h.b16 %v33
  %v630 = vunpack.c.l.b16 %v34
  %v631 = vunpack.c.h.b16 %v34
  %v632 = vunpack.c.l.b16 %v35
  %v633 = vunpack.c.h.b16 %v35
  %v634 = vunpack.c.l.b16 %v36
  %v635 = vunpack.c.h.b16 %v36
  %v636 = vunpack.c.l.b16 %v37
  %v637 = vunpack.c.h.b16 %v37
  %v638 = vunpack.c.l.b16 %v38
  %v639 = vunpack.c.h.b16 %v38
  %v640 = vunpack.c.l.b16 %v39
  %v641 = vunpack.c.h.b16 %v39
  %v642 = vunpack.c.l.b16 %v40
  %v643 = vunpack.c.h.b16 %v40
  %v644 = vunpack.c.l.b16 %v41
  %v645 = vunpack.c.h.b16 %v41
  %v646 = vunpack.c.l.b16 %v42
  %v647 = vunpack.c.h.b16 %v42
  %v648 = vunpack.c.l.b16 %v43
  %v649 = vunpack.c.h.b16 %v43
  %v650 = vunpack.c.l.b16 %v44
  %v651 = vunpack.c.h.b16 %v44
  %v652 = vunpack.c.l.b16 %v45
  %v653 = vunpack.c.h.b16 %v45
  %v654 = vunpack.c.l.b16 %v46
  %v655 = vunpack.c.h.b16 %v46
  %v656 = vunpack.c.l.b16 %v47
  %v657 = vunpack.c.h.b16 %v47
  %v658 = vunpack.c.l.b16 %v48
  %v659 = vunpack.c.h.b16 %v48
  %v660 = vunpack.c.l.b16 %v49
  %v661 = vunpack.c.h.b16 %v49
  %v662 = vunpack.c.l.b16 %v50
  %v663 = vunpack.c.h.b16 %v50
  %v664 = vunpack.c.l.b16 %v51
  %v665 = vunpack.c.h.b16 %v51
  %v666 = vunpack.c.l.b16 %v52
  %v667 = vunpack.c.h.b16 %v52
  %v668 = vunpack.c.l.b16 %v53
  %v669 = vunpack.c.h.b16 %v53
  %v670 = vunpack.c.l.b16 %v54
  %v671 = vunpack.c.h.b16 %v54
  %v672 = vunpack.c.l.b16 %v55
  %v673 = vunpack.c.h.b16 %v55
  %v674 = vunpack.c.l.b16 %v56
  %v675 = vunpack.c.h.b16 %v56
  %v676 = vunpack.c.l.b16 %v57
  %v677 = vunpack.c.h.b16 %v57
  %v678 = vunpack.c.l.b16 %v58
  %v679 = vunpack.c.h.b16 %v58
  %v680 = vunpack.c.l.b16 %v59
  %v681 = vunpack.c.h.b16 %v59
  %v682 = vunpack.c.l.b16 %v60
  %v683 = vunpack.c.h.b16 %v60
  %v684 = vunpack.c.l.b16 %v61
  %v685 = vunpack.c.h.b16 %v61
  %v686 = vunpack.c.l.b16 %v62
  %v687 = vunpack.c.h.b16 %v62
  %v688 = vunpack.c.l.b16 %v63
  %v689 = vunpack.c.h.b16 %v63
  %v690 = vunpack.c.l.b16 %v64
  %v691 = vunpack.c.h.b16 %v64
  %v692 = vunpack.c.l.b16 %v65
  %v693 = vunpack.c.h.b16 %v65
  %v694 = vunpack.c.l.b16 %v66
  %v695 = vunpack.c.h.b16 %v66
  %v696 = vunpack.c.l.b16 %v67
  %v697 = vunpack.c.h.b16 %v67
  %v698 = vunpack.c.l.b16 %v68
  %v699 = vunpack.c.h.b16 %v68
  %v700 = vunpack.c.l.b16 %v69
  %v701 = vunpack.c.h.b16 %v69
  %v702 = vunpack.c.l.b16 %v70
  %v703 = vunpack.c.h.b16 %v70
  %v704 = vunpack.c.l.b16 %v71
  %v705 = vunpack.c.h.b16 %v71
  %v706 = vunpack.c.l.b16 %v72
  %v707 = vunpack.c.h.b16 %v72
  %v708 = vunpack.c.l.b16 %v73
  %v709 = vunpack.c.h.b16 %v73
  %v710 = vunpack.c.l.b16 %v74
  %v711 = vunpack.c.h.b16 %v74
  %v712 = vunpack.c.l.b16 %v75
  %v713 = vunpack.c.h.b16 %v75
  %v714 = vunpack.c.l.b16 %v76
  %v715 = vunpack.c.h.b16 %v76
  %v716 = vunpack.c.l.b16 %v77
  %v717 = vunpack.c.h.b16 %v77
  %v718 = vunpack.c.l.b16 %v78
  %v719 = vunpack.c.h.b16 %v78
  %v720 = vunpack.c.l.b16 %v79
  %v721 = vunpack.c.h.b16 %v79
  %v722 = vunpack.c.l.b16 %v80
  %v723 = vunpack.c.h.b16 %v80
  %v724 = vunpack.c.l.b16 %v81
  %v725 = vunpack.c.h.b16 %v81
  %v726 = vunpack.c.l.b16 %v82
  %v727 = vunpack.c.h.b16 %v82
  %v728 = vunpack.c.l.b16 %v83
  %v729 = vunpack.c.h.b16 %v83
  %v730 = vunpack.c.l.b16 %v84
  %v731 = vunpack.c.h.b16 %v84
  %v732 = vunpack.c.l.b16 %v85
  %v733 = vunpack.c.h.b16 %v85
  %v734 = vunpack.c.l.b16 %v86
  %v735 = vunpack.c.h.b16 %v86
  %v736 = vunpack.c.l.b16 %v87
  %v737 = vunpack.c.h.b16 %v87
  %v738 = vunpack.c.l.b16 %v88
  %v739 = vunpack.c.h.b16 %v88
  %v740 = vunpack.c.l.b16 %v89
  %v741 = vunpack.c.h.b16 %v89
  %v742 = vunpack.c.l.b16 %v90
  %v743 = vunpack.c.h.b16 %v90
  %v744 = vunpack.c.l.b16 %v91
  %v745 = vunpack.c.h.b16 %v91
  %v746 = vunpack.c.l.b16 %v92
  %v747 = vunpack.c.h.b16 %v92
  %v748 = vunpack.c.l.b16 %v93
  %v749 = vunpack.c.h.b16 %v93
  %v750 = vunpack.c.l.b16 %v94
  %v751 = vunpack.c.h.b16 %v94
  %v752 = vunpack.c.l.b16 %v95
  %v753 = vunpack.c.h.b16 %v95
  %v754 = vunpack.c.l.b16 %v96
  %v755 = vunpack.c.h.b16 %v96
  %v756 = vunpack.c.l.b16 %v97
  %v757 = vunpack.c.h.b16 %v97
  %v758 = vunpack.c.l.b16 %v98
  %v759 = vunpack.c.h.b16 %v98
  %v760 = vunpack.c.l.b16 %v99
  %v761 = vunpack.c.h.b16 %v99
  %v762 = vunpack.c.l.b16 %v100
  %v763 = vunpack.c.h.b16 %v100
  %v764 = vunpack.c.l.b16 %v101
  %v765 = vunpack.c.h.b16 %v101
  %v766 = vunpack.c.l.b16 %v102
  %v767 = vunpack.c.h.b16 %v102
  %v768 = vunpack.c.l.b16 %v103
  %v769 = vunpack.c.h.b16 %v103
  %v770 = vunpack.c.l.b16 %v104
  %v771 = vunpack.c.h.b16 %v104
  %v772 = vunpack.c.l.b16 %v105
  %v773 = vunpack.c.h.b16 %v105
  %v774 = vunpack.c.l.b16 %v106
  %v775 = vunpack.c.h.b16 %v106
  %v776 = vunpack.c.l.b16 %v107
  %v777 = vunpack.c.h.b16 %v107
  %v778 = vunpack.c.l.b16 %v108
  %v779 = vunpack.c.h.b16 %v108
  %v780 = vunpack.c.l.b16 %v109
  %v781 = vunpack.c.h.b16 %v109
  %v782 = vunpack.c.l.b16 %v110
  %v783 = vunpack.c.h.b16 %v110
  %v784 = vunpack.c.l.b16 %v111
  %v785 = vunpack.c.h.b16 %v111
  %v786 = vunpack.c.l.b16 %v112
  %v787 = vunpack.c.h.b16 %v112
  %v788 = vunpack.c.l.b16 %v113
  %v789 = vunpack.c.h.b16 %v113
  %v790 = vunpack.c.l.b16 %v114
  %v791 = vunpack.c.h.b16 %v114
  %v792 = vunpack.c.l.b16 %v115
  %v793 = vunpack.c.h.b16 %v115
  %v794 = vunpack.c.l.b16 %v116
  %v795 = vunpack.c.h.b16 %v116
  %v796 = vunpack.c.l.b16 %v117
  %v797 = vunpack.c.h.b16 %v117
  %v798 = vunpack.c.l.b16 %v118
  %v799 = vunpack.c.h.b16 %v118
  %v800 = vunpack.c.l.b16 %v119
  %v801 = vunpack.c.h.b16 %v119
  %v802 = vunpack.c.l.b16 %v120
  %v803 = vunpack.c.h.b16 %v120
  %v804 = vunpack.c.l.b16 %v121
  %v805 = vunpack.c.h.b16 %v121
  %v806 = vunpack.c.l.b16 %v122
  %v807 = vunpack.c.h.b16 %v122
  %v808 = vunpack.c.l.b16 %v123
  %v809 = vunpack.c.h.b16 %v123
  %v810 = vunpack.c.l.b16 %v124
  %v811 = vunpack.c.h.b16 %v124
  %v812 = vunpack.c.l.b16 %v125
  %v813 = vunpack.c.h.b16 %v125
  %v814 = vunpack.c.l.b16 %v126
  %v815 = vunpack.c.h.b16 %v126
  %v816 = vunpack.c.l.b16 %v127
  %v817 = vunpack.c.h.b16 %v127
  %v818 = vunpack.c.l.b16 %v128
  %v819 = vunpack.c.h.b16 %v128
  %v820 = vunpack.c.l.b16 %v129
  %v821 = vunpack.c.h.b16 %v129
  %v822 = vunpack.c.l.b16 %v130
  %v823 = vunpack.c.h.b16 %v130
  %v824 = vunpack.c.l.b16 %v131
  %v825 = vunpack.c.h.b16 %v131
  %v826 = vunpack.c.l.b16 %v132
  %v827 = vunpack.c.h.b16 %v132
  %v828 = vunpack.c.l.b16 %v133
  %v829 = vunpack.c.h.b16 %v133
  %v830 = vunpack.c.l.b16 %v134
  %v831 = vunpack.c.h.b16 %v134
  %v832 = vunpack.c.l.b16 %v135
  %v833 = vunpack.c.h.b16 %v135
  %v834 = vunpack.c.l.b16 %v136
  %v835 = vunpack.c.h.b16 %v136
  %v836 = vunpack.c.l.b16 %v137
  %v837 = vunpack.c.h.b16 %v137
  %v838 = vunpack.c.l.b16 %v138
  %v839 = vunpack.c.h.b16 %v138
  %v840 = vunpack.c.l.b16 %v139
  %v841 = vunpack.c.h.b16 %v139
  %v842 = vunpack.c.l.b16 %v140
  %v843 = vunpack.c.h.b16 %v140
  %v844 = vunpack.c.l.b16 %v141
  %v845 = vunpack.c.h.b16 %v141
  %v846 = vunpack.c.l.b16 %v142
  %v847 = vunpack.c.h.b16 %v142
  %v848 = vunpack.c.l.b16 %v143
  %v849 = vunpack.c.h.b16 %v143
  %v850 = vunpack.c.l.b16 %v144
  %v851 = vunpack.c.h.b16 %v144
  %v852 = vunpack.c.l.b16 %v145
  %v853 = vunpack.c.h.b16 %v145
  %v854 = vunpack.c.l.b16 %v146
  %v855 = vunpack.c.h.b16 %v146
  %v856 = vunpack.c.l.b16 %v147
  %v857 = vunpack.c.h.b16 %v147
  %v858 = vunpack.c.l.b16 %v148
  %v859 = vunpack.c.h.b16 %v148
  %v860 = vunpack.c.l.b16 %v149
  %v861 = vunpack.c.h.b16 %v149
  %v862 = vunpack.c.l.b16 %v150
  %v863 = vunpack.c.h.b16 %v150
  %v864 = vunpack.c.l.b16 %v151
  %v865 = vunpack.c.h.b16 %v151
  %v866 = vunpack.c.l.b16 %v152
  %v867 = vunpack.c.h.b16 %v152
  %v868 = vunpack.c.l.b16 %v153
  %v869 = vunpack.c.h.b16 %v153
  %v870 = vunpack.c.l.b16 %v154
  %v871 = vunpack.c.h.b16 %v154
  %v872 = vunpack.c.l.b16 %v155
  %v873 = vunpack.c.h.b16 %v155
  %v874 = vunpack.c.l.b16 %v156
  %v875 = vunpack.c.h.b16 %v156
  %v876 = vunpack.c.l.b16 %v157
  %v877 = vunpack.c.h.b16 %v157
  %v878 = vunpack.c.l.b16 %v158
  %v879 = vunpack.c.h.b16 %v158
  %v880 = vunpack.c.l.b16 %v159
  %v881 = vunpack.c.h.b16 %v159
  %v882 = vunpack.c.l.b16 %v160
  %v883 = vunpack.c.h.b16 %v160
  %v884 = vunpack.c.l.b16 %v161
  %v885 = vunpack.c.h.b16 %v161
  %v886 = vunpack.c.l.b16 %v162
  %v887 = vunpack.c.h.b16 %v162
  %v888 = vunpack.c.l.b16 %v163
  %v889 = vunpack.c.h.b16 %v163
  %v890 = vunpack.c.l.b16 %v164
  %v891 = vunpack.c.h.b16 %v164
  %v892 = vunpack.c.l.b16 %v165
  %v893 = vunpack.c.h.b16 %v165
  %v894 = vunpack.c.l.b16 %v166
  %v895 = vunpack.c.h.b16 %v166
  %v896 = vunpack.c.l.b16 %v167
  %v897 = vunpack.c.h.b16 %v167
  %v898 = vunpack.c.l.b16 %v168
  %v899 = vunpack.c.h.b16 %v168
  %v900 = vunpack.c.l.b16 %v169
  %v901 = vunpack.c.h.b16 %v169
  %v902 = vunpack.c.l.b16 %v170
  %v903 = vunpack.c.h.b16 %v170
  %v904 = vunpack.c.l.b16 %v171
  %v905 = vunpack.c.h.b16 %v171
  %v906 = vunpack.c.l.b16 %v172
  %v907 = vunpack.c.h.b16 %v172
  %v908 = vunpack.c.l.b16 %v173
  %v909 = vunpack.c.h.b16 %v173
  %v910 = vunpack.c.l.b16 %v174
  %v911 = vunpack.c.h.b16 %v174
  %v912 = vunpack.c.l.b16 %v175
  %v913 = vunpack.c.h.b16 %v175
  %v914 = vunpack.c.l.b16 %v176
  %v915 = vunpack.c.h.b16 %v176
  %v916 = vunpack.c.l.b16 %v177
  %v917 = vunpack.c.h.b16 %v177
  %v918 = vunpack.c.l.b16 %v178
  %v919 = vunpack.c.h.b16 %v178
  %v920 = vunpack.c.l.b16 %v179
  %v921 = vunpack.c.h.b16 %v179
  %v922 = vunpack.c.l.b16 %v180
  %v923 = vunpack.c.h.b16 %v180
  %v924 = vunpack.c.l.b16 %v181
  %v925 = vunpack.c.h.b16 %v181
  %v926 = vunpack.c.l.b16 %v182
  %v927 = vunpack.c.h.b16 %v182
  %v928 = vunpack.c.l.b16 %v183
  %v929 = vunpack.c.h.b16 %v183
  %v930 = vunpack.c.l.b16 %v184
  %v931 = vunpack.c.h.b16 %v184
  %v932 = vunpack.c.l.b16 %v185
  %v933 = vunpack.c.h.b16 %v185
  %v934 = vunpack.c.l.b16 %v186
  %v935 = vunpack.c.h.b16 %v186
  %v936 = vunpack.c.l.b16 %v187
  %v937 = vunpack.c.h.b16 %v187
  %v938 = vunpack.c.l.b16 %v188
  %v939 = vunpack.c.h.b16 %v188
  %v940 = vunpack.c.l.b16 %v189
  %v941 = vunpack.c.h.b16 %v189
  %v942 = vunpack.c.l.b16 %v190
  %v943 = vunpack.c.h.b16 %v190
  %v944 = vunpack.c.l.b16 %v191
  %v945 = vunpack.c.h.b16 %v191
  %v946 = vunpack.c.l.b16 %v192
  %v947 = vunpack.c.h.b16 %v192
  %v948 = vunpack.c.l.b16 %v193
  %v949 = vunpack.c.h.b16 %v193
  %v950 = vunpack.c.l.b16 %v194
  %v951 = vunpack.c.h.b16 %v194
  %v952 = vunpack.c.l.b16 %v195
  %v953 = vunpack.c.h.b16 %v195
  %v954 = vunpack.c.l.b16 %v196
  %v955 = vunpack.c.h.b16 %v196
  %v956 = vunpack.c.l.b16 %v197
  %v957 = vunpack.c.h.b16 %v197
  %v958 = vunpack.c.l.b16 %v198
  %v959 = vunpack.c.h.b16 %v198
  %v960 = vunpack.c.l.b16 %v199
  %v961 = vunpack.c.h.b16 %v199
  %v962 = vunpack.c.l.b16 %v200
  %v963 = vunpack.c.h.b16 %v200
  %v964 = vunpack.c.l.b16 %v201
  %v965 = vunpack.c.h.b16 %v201
  %v966 = vunpack.c.l.b16 %v202
  %v967 = vunpack.c.h.b16 %v202
  %v968 = vunpack.c.l.b16 %v203
  %v969 = vunpack.c.h.b16 %v203
  %v970 = vunpack.c.l.b16 %v204
  %v971 = vunpack.c.h.b16 %v204
  %v972 = vunpack.c.l.b16 %v205
  %v973 = vunpack.c.h.b16 %v205
  %v974 = vunpack.c.l.b16 %v206
  %v975 = vunpack.c.h.b16 %v206
  %v976 = vunpack.c.l.b16 %v207
  %v977 = vunpack.c.h.b16 %v207
  %v978 = vunpack.c.l.b16 %v208
  %v979 = vunpack.c.h.b16 %v208
  %v980 = vunpack.c.l.b16 %v209
  %v981 = vunpack.c.h.b16 %v209
  %v982 = vunpack.c.l.b16 %v210
  %v983 = vunpack.c.h.b16 %v210
  %v984 = vunpack.c.l.b16 %v211
  %v985 = vunpack.c.h.b16 %v211
  %v986 = vunpack.c.l.b16 %v212
  %v987 = vunpack.c.h.b16 %v212
  %v988 = vunpack.c.l.b16 %v213
  %v989 = vunpack.c.h.b16 %v213
  %v990 = vunpack.c.l.b16 %v214
  %v991 = vunpack.c.h.b16 %v214
  %v992 = vunpack.c.l.b16 %v215
  %v993 = vunpack.c.h.b16 %v215
  %v994 = vunpack.c.l.b16 %v216
  %v995 = vunpack.c.h.b16 %v216
  %v996 = vunpack.c.l.b16 %v217
  %v997 = vunpack.c.h.b16 %v217
  %v998 = vunpack.c.l.b16 %v218
  %v999 = vunpack.c.h.b16 %v218
  %v1000 = vunpack.c.l.b16 %v219
  %v1001 = vunpack.c.h.b16 %v219
  %v1002 = vunpack.c.l.b16 %v220
  %v1003 = vunpack.c.h.b16 %v220
  %v1004 = vunpack.c.l.b16 %v221
  %v1005 = vunpack.c.h.b16 %v221
  %v1006 = vunpack.c.l.b16 %v222
  %v1007 = vunpack.c.h.b16 %v222
  %v1008 = vunpack.c.l.b16 %v223
  %v1009 = vunpack.c.h.b16 %v223
  %v1010 = vunpack.c.l.b16 %v224
  %v1011 = vunpack.c.h.b16 %v224
  %v1012 = vunpack.c.l.b16 %v225
  %v1013 = vunpack.c.h.b16 %v225
  %v1014 = vunpack.c.l.b16 %v226
  %v1015 = vunpack.c.h.b16 %v226
  %v1016 = vunpack.c.l.b16 %v227
  %v1017 = vunpack.c.h.b16 %v227
  %v1018 = vunpack.c.l.b16 %v228
  %v1019 = vunpack.c.h.b16 %v228
  %v1020 = vunpack.c.l.b16 %v229
  %v1021 = vunpack.c.h.b16 %v229
  %v1022 = vunpack.c.l.b16 %v230
  %v1023 = vunpack.c.h.b16 %v230
  %v1024 = vunpack.c.l.b16 %v231
  %v1025 = vunpack.c.h.b16 %v231
  %v1026 = vunpack.c.l.b16 %v232
  %v1027 = vunpack.c.h.b16 %v232
  %v1028 = vunpack.c.l.b16 %v233
  %v1029 = vunpack.c.h.b16 %v233
  %v1030 = vunpack.c.l.b16 %v234
  %v1031 = vunpack.c.h.b16 %v234
  %v1032 = vunpack.c.l.b16 %v235
  %v1033 = vunpack.c.h.b16 %v235
  %v1034 = vunpack.c.l.b16 %v236
  %v1035 = vunpack.c.h.b16 %v236
  %v1036 = vunpack.c.l.b16 %v237
  %v1037 = vunpack.c.h.b16 %v237
  %v1038 = vunpack.c.l.b16 %v238
  %v1039 = vunpack.c.h.b16 %v238
  %v1040 = vunpack.c.l.b16 %v239
  %v1041 = vunpack.c.h.b16 %v239
  %v1042 = vunpack.c.l.b16 %v240
  %v1043 = vunpack.c.h.b16 %v240
  %v1044 = vunpack.c.l.b16 %v241
  %v1045 = vunpack.c.h.b16 %v241
  %v1046 = vunpack.c.l.b16 %v242
  %v1047 = vunpack.c.h.b16 %v242
  %v1048 = vunpack.c.l.b16 %v243
  %v1049 = vunpack.c.h.b16 %v243
  %v1050 = vunpack.c.l.b16 %v244
  %v1051 = vunpack.c.h.b16 %v244
  %v1052 = vunpack.c.l.b16 %v245
  %v1053 = vunpack.c.h.b16 %v245
  %v1054 = vunpack.c.l.b16 %v246
  %v1055 = vunpack.c.h.b16 %v246
  %v1056 = vunpack.c.l.b16 %v247
  %v1057 = vunpack.c.h.b16 %v247
  %v1058 = vunpack.c.l.b16 %v248
  %v1059 = vunpack.c.h.b16 %v248
  %v1060 = vunpack.c.l.b16 %v249
  %v1061 = vunpack.c.h.b16 %v249
  %v1062 = vunpack.c.l.b16 %v250
  %v1063 = vunpack.c.h.b16 %v250
  %v1064 = vunpack.c.l.b16 %v251
  %v1065 = vunpack.c.h.b16 %v251
  %v1066 = vunpack.c.l.b16 %v252
  %v1067 = vunpack.c.h.b16 %v252
  %v1068 = vunpack.c.l.b16 %v253
  %v1069 = vunpack.c.h.b16 %v253
  %v1070 = vunpack.c.l.b16 %v254
  %v1071 = vunpack.c.h.b16 %v254
  %v1072 = vunpack.c.l.b16 %v255
  %v1073 = vunpack.c.h.b16 %v255
  %v1074 = vunpack.c.l.b16 %v256
  %v1075 = vunpack.c.h.b16 %v256
  %v1076 = vunpack.c.l.b16 %v257
  %v1077 = vunpack.c.h.b16 %v257
  %v1078 = vunpack.c.l.b16 %v258
  %v1079 = vunpack.c.h.b16 %v258
  %v1080 = vunpack.c.l.b16 %v259
  %v1081 = vunpack.c.h.b16 %v259
  %v1082 = vunpack.c.l.b16 %v260
  %v1083 = vunpack.c.h.b16 %v260
  %v1084 = vunpack.c.l.b16 %v261
  %v1085 = vunpack.c.h.b16 %v261
  %v1086 = vunpack.c.l.b16 %v262
  %v1087 = vunpack.c.h.b16 %v262
  %v1088 = vunpack.c.l.b16 %v263
  %v1089 = vunpack.c.h.b16 %v263
  %v1090 = vunpack.c.l.b16 %v264
  %v1091 = vunpack.c.h.b16 %v264
  %v1092 = vunpack.c.l.b16 %v265
  %v1093 = vunpack.c.h.b16 %v265
  %v1094 = vunpack.c.l.b16 %v266
  %v1095 = vunpack.c.h.b16 %v266
  %v1096 = vunpack.c.l.b16 %v267
  %v1097 = vunpack.c.h.b16 %v267
  %v1098 = vunpack.c.l.b16 %v268
  %v1099 = vunpack.c.h.b16 %v268
  %v1100 = vunpack.c.l.b16 %v269
  %v1101 = vunpack.c.h.b16 %v269
  %v1102 = vunpack.c.l.b16 %v270
  %v1103 = vunpack.c.h.b16 %v270
  %v1104 = vunpack.c.l.b16 %v271
  %v1105 = vunpack.c.h.b16 %v271
  %v1106 = vunpack.c.l.b16 %v272
  %v1107 = vunpack.c.h.b16 %v272
  %v1108 = vunpack.c.l.b16 %v273
  %v1109 = vunpack.c.h.b16 %v273
  %v1110 = vunpack.c.l.b16 %v274
  %v1111 = vunpack.c.h.b16 %v274
  %v1112 = vunpack.c.l.b16 %v275
  %v1113 = vunpack.c.h.b16 %v275
  %v1114 = vunpack.c.l.b16 %v276
  %v1115 = vunpack.c.h.b16 %v276
  %v1116 = vunpack.c.l.b16 %v277
  %v1117 = vunpack.c.h.b16 %v277
  %v1118 = vunpack.c.l.b16 %v278
  %v1119 = vunpack.c.h.b16 %v278
  %v1120 = vunpack.c.l.b16 %v279
  %v1121 = vunpack.c.h.b16 %v279
  %v1122 = vunpack.c.l.b16 %v280
  %v1123 = vunpack.c.h.b16 %v280
  %v1124 = vunpack.c.l.b16 %v281
  %v1125 = vunpack.c.h.b16 %v281
  %v1126 = vunpack.c.l.b16 %v282
  %v1127 = vunpack.c.h.b16 %v282
  %v1128 = vunpack.c.l.b16 %v283
  %v1129 = vunpack.c.h.b16 %v283
  %v1130 = vunpack.c.l.b16 %v284
  %v1131 = vunpack.c.h.b16 %v284
  %v1132 = vunpack.c.l.b16 %v285
  %v1133 = vunpack.c.h.b16 %v285
  %v1134 = vpack.c.b16 %v624, %v622
  %v1135 = vpack.c.b16 %v625, %v623
  %v1136 = vpack.c.b16 %v628, %v626
  %v1137 = vpack.c.b16 %v629, %v627
  %v1138 = vpack.c.b16 %v632, %v630
  %v1139 = vpack.c.b16 %v633, %v631
  %v1140 = vpack.c.b16 %v636, %v634
  %v1141 = vpack.c.b16 %v637, %v635
  %v1142 = vpack.c.b16 %v640, %v638
  %v1143 = vpack.c.b16 %v641, %v639
  %v1144 = vpack.c.b16 %v644, %v642
  %v1145 = vpack.c.b16 %v645, %v643
  %v1146 = vpack.c.b16 %v648, %v646
  %v1147 = vpack.c.b16 %v649, %v647
  %v1148 = vpack.c.b16 %v652, %v650
  %v1149 = vpack.c.b16 %v653, %v651
  %v1150 = vpack.c.b16 %v656, %v654
  %v1151 = vpack.c.b16 %v657, %v655
  %v1152 = vpack.c.b16 %v660, %v658
  %v1153 = vpack.c.b16 %v661, %v659
  %v1154 = vpack.c.b16 %v664, %v662
  %v1155 = vpack.c.b16 %v665, %v663
  %v1156 = vpack.c.b16 %v668, %v666
  %v1157 = vpack.c.b16 %v669, %v667
  %v1158 = vpack.c.b16 %v672, %v670
  %v1159 = vpack.c.b16 %v673, %v671
  %v1160 = vpack.c.b16 %v676, %v674
  %v1161 = vpack.c.b16 %v677, %v675
  %v1162 = vpack.c.b16 %v680, %v678
  %v1163 = vpack.c.b16 %v681, %v679
  %v1164 = vpack.c.b16 %v684, %v682
  %v1165 = vpack.c.b16 %v685, %v683
  %v1166 = vpack.c.b16 %v688, %v686
  %v1167 = vpack.c.b16 %v689, %v687
  %v1168 = vpack.c.b16 %v692, %v690
  %v1169 = vpack.c.b16 %v693, %v691
  %v1170 = vpack.c.b16 %v696, %v694
  %v1171 = vpack.c.b16 %v697, %v695
  %v1172 = vpack.c.b16 %v700, %v698
  %v1173 = vpack.c.b16 %v701, %v699
  %v1174 = vpack.c.b16 %v704, %v702
  %v1175 = vpack.c.b16 %v705, %v703
  %v1176 = vpack.c.b16 %v708, %v706
  %v1177 = vpack.c.b16 %v709, %v707
  %v1178 = vpack.c.b16 %v712, %v710
  %v1179 = vpack.c.b16 %v713, %v711
  %v1180 = vpack.c.b16 %v716, %v714
  %v1181 = vpack.c.b16 %v717, %v715
  %v1182 = vpack.c.b16 %v720, %v718
  %v1183 = vpack.c.b16 %v721, %v719
  %v1184 = vpack.c.b16 %v724, %v722
  %v1185 = vpack.c.b16 %v725, %v723
  %v1186 = vpack.c.b16 %v728, %v726
  %v1187 = vpack.c.b16 %v729, %v727
  %v1188 = vpack.c.b16 %v732, %v730
  %v1189 = vpack.c.b16 %v733, %v731
  %v1190 = vpack.c.b16 %v736, %v734
  %v1191 = vpack.c.b16 %v737, %v735
  %v1192 = vpack.c.b16 %v740, %v738
  %v1193 = vpack.c.b16 %v741, %v739
  %v1194 = vpack.c.b16 %v744, %v742
  %v1195 = vpack.c.b16 %v745, %v743
  %v1196 = vpack.c.b16 %v748, %v746
  %v1197 = vpack.c.b16 %v749, %v747
  %v1198 = vpack.c.b16 %v752, %v750
  %v1199 = vpack.c.b16 %v753, %v751
  %v1200 = vpack.c.b16 %v756, %v754
  %v1201 = vpack.c.b16 %v757, %v755
  %v1202 = vpack.c.b16 %v760, %v758
  %v1203 = vpack.c.b16 %v761, %v759
  %v1204 = vpack.c.b16 %v764, %v762
  %v1205 = vpack.c.b16 %v765, %v763
  %v1206 = vpack.c.b16 %v768, %v766
  %v1207 = vpack.c.b16 %v769, %v767
  %v1208 = vpack.c.b16 %v772, %v770
  %v1209 = vpack.c.b16 %v773, %v771
  %v1210 = vpack.c.b16 %v776, %v774
  %v1211 = vpack.c.b16 %v777, %v775
  %v1212 = vpack.c.b16 %v780, %v778
  %v1213 = vpack.c.b16 %v781, %v779
  %v1214 = vpack.c.b16 %v784, %v782
  %v1215 = vpack.c.b16 %v785, %v783
  %v1216 = vpack.c.b16 %v788, %v786
  %v1217 = vpack.c.b16 %v789, %v787
  %v1218 = vpack.c.b16 %v792, %v790
  %v1219 = vpack.c.b16 %v793, %v791
  %v1220 = vpack.c.b16 %v796, %v794
  %v1221 = vpack.c.b16 %v797, %v795
  %v1222 = vpack.c.b16 %v800, %v798
  %v1223 = vpack.c.b16 %v801, %v799
  %v1224 = vpack.c.b16 %v804, %v802
  %v1225 = vpack.c.b16 %v805, %v803
  %v1226 = vpack.c.b16 %v808, %v806
  %v1227 = vpack.c.b16 %v809, %v807
  %v1228 = vpack.c.b16 %v812, %v810
  %v1229 = vpack.c.b16 %v813, %v811
  %v1230 = vpack.c.b16 %v816, %v814
  %v1231 = vpack.c.b16 %v817, %v815
  %v1232 = vpack.c.b16 %v820, %v818
  %v1233 = vpack.c.b16 %v821, %v819
  %v1234 = vpack.c.b16 %v824, %v822
  %v1235 = vpack.c.b16 %v825, %v823
  %v1236 = vpack.c.b16 %v828, %v826
  %v1237 = vpack.c.b16 %v829, %v827
  %v1238 = vpack.c.b16 %v832, %v830
  %v1239 = vpack.c.b16 %v833, %v831
  %v1240 = vpack.c.b16 %v836, %v834
  %v1241 = vpack.c.b16 %v837, %v835
  %v1242 = vpack.c.b16 %v840, %v838
  %v1243 = vpack.c.b16 %v841, %v839
  %v1244 = vpack.c.b16 %v844, %v842
  %v1245 = vpack.c.b16 %v845, %v843
  %v1246 = vpack.c.b16 %v848, %v846
  %v1247 = vpack.c.b16 %v849, %v847
  %v1248 = vpack.c.b16 %v852, %v850
  %v1249 = vpack.c.b16 %v853, %v851
  %v1250 = vpack.c.b16 %v856, %v854
  %v1251 = vpack.c.b16 %v857, %v855
  %v1252 = vpack.c.b16 %v860, %v858
  %v1253 = vpack.c.b16 %v861, %v859
  %v1254 = vpack.c.b16 %v864, %v862
  %v1255 = vpack.c.b16 %v865, %v863
  %v1256 = vpack.c.b16 %v868, %v866
  %v1257 = vpack.c.b16 %v869, %v867
  %v1258 = vpack.c.b16 %v872, %v870
  %v1259 = vpack.c.b16 %v873, %v871
  %v1260 = vpack.c.b16 %v876, %v874
  %v1261 = vpack.c.b16 %v877, %v875
  %v1262 = vpack.c.b16 %v880, %v878
  %v1263 = vpack.c.b16 %v881, %v879
  %v1264 = vpack.c.b16 %v884, %v882
  %v1265 = vpack.c.b16 %v885, %v883
  %v1266 = vpack.c.b16 %v888, %v886
  %v1267 = vpack.c.b16 %v889, %v887
  %v1268 = vpack.c.b16 %v892, %v890
  %v1269 = vpack.c.b16 %v893, %v891
  %v1270 = vpack.c.b16 %v896, %v894
  %v1271 = vpack.c.b16 %v897, %v895
  %v1272 = vpack.c.b16 %v900, %v898
  %v1273 = vpack.c.b16 %v901, %v899
  %v1274 = vpack.c.b16 %v904, %v902
  %v1275 = vpack.c.b16 %v905, %v903
  %v1276 = vpack.c.b16 %v908, %v906
  %v1277 = vpack.c.b16 %v909, %v907
  %v1278 = vpack.c.b16 %v912, %v910
  %v1279 = vpack.c.b16 %v913, %v911
  %v1280 = vpack.c.b16 %v916, %v914
  %v1281 = vpack.c.b16 %v917, %v915
  %v1282 = vpack.c.b16 %v920, %v918
  %v1283 = vpack.c.b16 %v921, %v919
  %v1284 = vpack.c.b16 %v924, %v922
  %v1285 = vpack.c.b16 %v925, %v923
  %v1286 = vpack.c.b16 %v928, %v926
  %v1287 = vpack.c.b16 %v929, %v927
  %v1288 = vpack.c.b16 %v932, %v930
  %v1289 = vpack.c.b16 %v933, %v931
  %v1290 = vpack.c.b16 %v936, %v934
  %v1291 = vpack.c.b16 %v937, %v935
  %v1292 = vpack.c.b16 %v940, %v938
  %v1293 = vpack.c.b16 %v941, %v939
  %v1294 = vpack.c.b16 %v944, %v942
  %v1295 = vpack.c.b16 %v945, %v943
  %v1296 = vpack.c.b16 %v948, %v946
  %v1297 = vpack.c.b16 %v949, %v947
  %v1298 = vpack.c.b16 %v952, %v950
  %v1299 = vpack.c.b16 %v953, %v951
  %v1300 = vpack.c.b16 %v956, %v954
  %v1301 = vpack.c.b16 %v957, %v955
  %v1302 = vpack.c.b16 %v960, %v958
  %v1303 = vpack.c.b16 %v961, %v959
  %v1304 = vpack.c.b16 %v964, %v962
  %v1305 = vpack.c.b16 %v965, %v963
  %v1306 = vpack.c.b16 %v968, %v966
  %v1307 = vpack.c.b16 %v969, %v967
  %v1308 = vpack.c.b16 %v972, %v970
  %v1309 = vpack.c.b16 %v973, %v971
  %v1310 = vpack.c.b16 %v976, %v974
  %v1311 = vpack.c.b16 %v977, %v975
  %v1312 = vpack.c.b16 %v980, %v978
  %v1313 = vpack.c.b16 %v981, %v979
  %v1314 = vpack.c.b16 %v984, %v982
  %v1315 = vpack.c.b16 %v985, %v983
  %v1316 = vpack.c.b16 %v988, %v986
  %v1317 = vpack.c.b16 %v989, %v987
  %v1318 = vpack.c.b16 %v992, %v990
  %v1319 = vpack.c.b16 %v993, %v991
  %v1320 = vpack.c.b16 %v996, %v994
  %v1321 = vpack.c.b16 %v997, %v995
  %v1322 = vpack.c.b16 %v1000, %v998
  %v1323 = vpack.c.b16 %v1001, %v999
  %v1324 = vpack.c.b16 %v1004, %v1002
  %v1325 = vpack.c.b16 %v1005, %v1003
  %v1326 = vpack.c.b16 %v1008, %v1006
  %v1327 = vpack.c.b16 %v1009, %v1007
  %v1328 = vpack.c.b16 %v1012, %v1010
  %v1329 = vpack.c.b16 %v1013, %v1011
  %v1330 = vpack.c.b16 %v1016, %v1014
  %v1331 = vpack.c.b16 %v1017, %v1015
  %v1332 = vpack.c.b16 %v1020, %v1018
  %v1333 = vpack.c.b16 %v1021, %v1019
  %v1334 = vpack.c.b16 %v1024, %v1022
  %v1335 = vpack.c.b16 %v1025, %v1023
  %v1336 = vpack.c.b16 %v1028, %v1026
  %v1337 = vpack.c.b16 %v1029, %v1027
  %v1338 = vpack.c.b16 %v1032, %v1030
  %v1339 = vpack.c.b16 %v1033, %v1031
  %v1340 = vpack.c.b16 %v1036, %v1034
  %v1341 = vpack.c.b16 %v1037, %v1035
  %v1342 = vpack.c.b16 %v1040, %v1038
  %v1343 = vpack.c.b16 %v1041, %v1039
  %v1344 = vpack.c.b16 %v1044, %v1042
  %v1345 = vpack.c.b16 %v1045, %v1043
  %v1346 = vpack.c.b16 %v1048, %v1046
  %v1347 = vpack.c.b16 %v1049, %v1047
  %v1348 = vpack.c.b16 %v1052, %v1050
  %v1349 = vpack.c.b16 %v1053, %v1051
  %v1350 = vpack.c.b16 %v1056, %v1054
  %v1351 = vpack.c.b16 %v1057, %v1055
  %v1352 = vpack.c.b16 %v1060, %v1058
  %v1353 = vpack.c.b16 %v1061, %v1059
  %v1354 = vpack.c.b16 %v1064, %v1062
  %v1355 = vpack.c.b16 %v1065, %v1063
  %v1356 = vpack.c.b16 %v1068, %v1066
  %v1357 = vpack.c.b16 %v1069, %v1067
  %v1358 = vpack.c.b16 %v1072, %v1070
  %v1359 = vpack.c.b16 %v1073, %v1071
  %v1360 = vpack.c.b16 %v1076, %v1074
  %v1361 = vpack.c.b16 %v1077, %v1075
  %v1362 = vpack.c.b16 %v1080, %v1078
  %v1363 = vpack.c.b16 %v1081, %v1079
  %v1364 = vpack.c.b16 %v1084, %v1082
  %v1365 = vpack.c.b16 %v1085, %v1083
  %v1366 = vpack.c.b16 %v1088, %v1086
  %v1367 = vpack.c.b16 %v1089, %v1087
  %v1368 = vpack.c.b16 %v1092, %v1090
  %v1369 = vpack.c.b16 %v1093, %v1091
  %v1370 = vpack.c.b16 %v1096, %v1094
  %v1371 = vpack.c.b16 %v1097, %v1095
  %v1372 = vpack.c.b16 %v1100, %v1098
  %v1373 = vpack.c.b16 %v1101, %v1099
  %v1374 = vpack.c.b16 %v1104, %v1102
  %v1375 = vpack.c.b16 %v1105, %v1103
  %v1376 = vpack.c.b16 %v1108, %v1106
  %v1377 = vpack.c.b16 %v1109, %v1107
  %v1378 = vpack.c.b16 %v1112, %v1110
  %v1379 = vpack.c.b16 %v1113, %v1111
  %v1380 = vpack.c.b16 %v1116, %v1114
  %v1381 = vpack.c.b16 %v1117, %v1115
  %v1382 = vpack.c.b16 %v1120, %v1118
  %v1383 = vpack.c.b16 %v1121, %v1119
  %v1384 = vpack.c.b16 %v1124, %v1122
  %v1385 = vpack.c.b16 %v1125, %v1123
  %v1386 = vpack.c.b16 %v1128, %v1126
  %v1387 = vpack.c.b16 %v1129, %v1127
  %v1388 = vpack.c.b16 %v1132, %v1130
  %v1389 = vpack.c.b16 %v1133, %v1131
  %1646 = vmatpush.bf16.msra.mxu0 %v1148
  %1647 = vmatpush.bf16.msra.mxu0 %v1146
  %1648 = vmatpush.bf16.msra.mxu0 %v1144
  %1649 = vmatpush.bf16.msra.mxu0 %v1142
  %1650 = vmatpush.bf16.msra.mxu0 %v1140
  %1651 = vmatpush.bf16.msra.mxu0 %v1138
  %1652 = vmatpush.bf16.msra.mxu0 %v1136
  %1653 = vmatpush.bf16.msra.mxu0 %v1134
  %1654 = vmatmul.bf16.gmra.mxu0 %v334
  %v1655 = vpop.f32.mrf.mxu0
  %v1656 = vadd.f32 0.0, %v1655
  %v1657 = vpop.f32.mrf.mxu0
  %v1658 = vadd.f32 0.0, %v1657
  %1659 = vdwg.mxu0
  %1660 = vmatpush.bf16.msra.mxu0 %v1164
  %1661 = vmatpush.bf16.msra.mxu0 %v1162
  %1662 = vmatpush.bf16.msra.mxu0 %v1160
  %1663 = vmatpush.bf16.msra.mxu0 %v1158
  %1664 = vmatpush.bf16.msra.mxu0 %v1156
  %1665 = vmatpush.bf16.msra.mxu0 %v1154
  %1666 = vmatpush.bf16.msra.mxu0 %v1152
  %1667 = vmatpush.bf16.msra.mxu0 %v1150
  %1668 = vmatmul.bf16.gmra.mxu0 %v335
  %v1669 = vpop.f32.mrf.mxu0
  %v1670 = vadd.f32 %v1656, %v1669
  %v1671 = vpop.f32.mrf.mxu0
  %v1672 = vadd.f32 %v1658, %v1671
  %1673 = vdwg.mxu0
  %1674 = vmatpush.bf16.msra.mxu0 %v1180
  %1675 = vmatpush.bf16.msra.mxu0 %v1178
  %1676 = vmatpush.bf16.msra.mxu0 %v1176
  %1677 = vmatpush.bf16.msra.mxu0 %v1174
  %1678 = vmatpush.bf16.msra.mxu0 %v1172
  %1679 = vmatpush.bf16.msra.mxu0 %v1170
  %1680 = vmatpush.bf16.msra.mxu0 %v1168
  %1681 = vmatpush.bf16.msra.mxu0 %v1166
  %1682 = vmatmul.bf16.gmra.mxu0 %v336
  %v1683 = vpop.f32.mrf.mxu0
  %v1684 = vadd.f32 %v1670, %v1683
  %v1685 = vpop.f32.mrf.mxu0
  %v1686 = vadd.f32 %v1672, %v1685
  %1687 = vdwg.mxu0
  %1688 = vmatpush.bf16.msra.mxu0 %v1196
  %1689 = vmatpush.bf16.msra.mxu0 %v1194
  %1690 = vmatpush.bf16.msra.mxu0 %v1192
  %1691 = vmatpush.bf16.msra.mxu0 %v1190
  %1692 = vmatpush.bf16.msra.mxu0 %v1188
  %1693 = vmatpush.bf16.msra.mxu0 %v1186
  %1694 = vmatpush.bf16.msra.mxu0 %v1184
  %1695 = vmatpush.bf16.msra.mxu0 %v1182
  %1696 = vmatmul.bf16.gmra.mxu0 %v337
  %v1697 = vpop.f32.mrf.mxu0
  %v1698 = vadd.f32 %v1684, %v1697
  %v1699 = vpop.f32.mrf.mxu0
  %v1700 = vadd.f32 %v1686, %v1699
  %1701 = vdwg.mxu0
  %1702 = vmatpush.bf16.msra.mxu0 %v1212
  %1703 = vmatpush.bf16.msra.mxu0 %v1210
  %1704 = vmatpush.bf16.msra.mxu0 %v1208
  %1705 = vmatpush.bf16.msra.mxu0 %v1206
  %1706 = vmatpush.bf16.msra.mxu0 %v1204
  %1707 = vmatpush.bf16.msra.mxu0 %v1202
  %1708 = vmatpush.bf16.msra.mxu0 %v1200
  %1709 = vmatpush.bf16.msra.mxu0 %v1198
  %1710 = vmatmul.bf16.gmra.mxu0 %v338
  %v1711 = vpop.f32.mrf.mxu0
  %v1712 = vadd.f32 %v1698, %v1711
  %v1713 = vpop.f32.mrf.mxu0
  %v1714 = vadd.f32 %v1700, %v1713
  %1715 = vdwg.mxu0
  %1716 = vmatpush.bf16.msra.mxu0 %v1228
  %1717 = vmatpush.bf16.msra.mxu0 %v1226
  %1718 = vmatpush.bf16.msra.mxu0 %v1224
  %1719 = vmatpush.bf16.msra.mxu0 %v1222
  %1720 = vmatpush.bf16.msra.mxu0 %v1220
  %1721 = vmatpush.bf16.msra.mxu0 %v1218
  %1722 = vmatpush.bf16.msra.mxu0 %v1216
  %1723 = vmatpush.bf16.msra.mxu0 %v1214
  %1724 = vmatmul.bf16.gmra.mxu0 %v339
  %v1725 = vpop.f32.mrf.mxu0
  %v1726 = vadd.f32 %v1712, %v1725
  %v1727 = vpop.f32.mrf.mxu0
  %v1728 = vadd.f32 %v1714, %v1727
  %1729 = vdwg.mxu0
  %1730 = vmatpush.bf16.msra.mxu0 %v1244
  %1731 = vmatpush.bf16.msra.mxu0 %v1242
  %1732 = vmatpush.bf16.msra.mxu0 %v1240
  %1733 = vmatpush.bf16.msra.mxu0 %v1238
  %1734 = vmatpush.bf16.msra.mxu0 %v1236
  %1735 = vmatpush.bf16.msra.mxu0 %v1234
  %1736 = vmatpush.bf16.msra.mxu0 %v1232
  %1737 = vmatpush.bf16.msra.mxu0 %v1230
  %1738 = vmatmul.bf16.gmra.mxu0 %v340
  %v1739 = vpop.f32.mrf.mxu0
  %v1740 = vadd.f32 %v1726, %v1739
  %v1741 = vpop.f32.mrf.mxu0
  %v1742 = vadd.f32 %v1728, %v1741
  %1743 = vdwg.mxu0
  %1744 = vmatpush.bf16.msra.mxu0 %v1260
  %1745 = vmatpush.bf16.msra.mxu0 %v1258
  %1746 = vmatpush.bf16.msra.mxu0 %v1256
  %1747 = vmatpush.bf16.msra.mxu0 %v1254
  %1748 = vmatpush.bf16.msra.mxu0 %v1252
  %1749 = vmatpush.bf16.msra.mxu0 %v1250
  %1750 = vmatpush.bf16.msra.mxu0 %v1248
  %1751 = vmatpush.bf16.msra.mxu0 %v1246
  %1752 = vmatmul.bf16.gmra.mxu0 %v341
  %v1753 = vpop.f32.mrf.mxu0
  %v1754 = vadd.f32 %v1740, %v1753
  %v1755 = vpop.f32.mrf.mxu0
  %v1756 = vadd.f32 %v1742, %v1755
  %1757 = vdwg.mxu0
  %1758 = vmatpush.bf16.msra.mxu0 %v1276
  %1759 = vmatpush.bf16.msra.mxu0 %v1274
  %1760 = vmatpush.bf16.msra.mxu0 %v1272
  %1761 = vmatpush.bf16.msra.mxu0 %v1270
  %1762 = vmatpush.bf16.msra.mxu0 %v1268
  %1763 = vmatpush.bf16.msra.mxu0 %v1266
  %1764 = vmatpush.bf16.msra.mxu0 %v1264
  %1765 = vmatpush.bf16.msra.mxu0 %v1262
  %1766 = vmatmul.bf16.gmra.mxu0 %v342
  %v1767 = vpop.f32.mrf.mxu0
  %v1768 = vadd.f32 %v1754, %v1767
  %v1769 = vpop.f32.mrf.mxu0
  %v1770 = vadd.f32 %v1756, %v1769
  %1771 = vdwg.mxu0
  %1772 = vmatpush.bf16.msra.mxu0 %v1292
  %1773 = vmatpush.bf16.msra.mxu0 %v1290
  %1774 = vmatpush.bf16.msra.mxu0 %v1288
  %1775 = vmatpush.bf16.msra.mxu0 %v1286
  %1776 = vmatpush.bf16.msra.mxu0 %v1284
  %1777 = vmatpush.bf16.msra.mxu0 %v1282
  %1778 = vmatpush.bf16.msra.mxu0 %v1280
  %1779 = vmatpush.bf16.msra.mxu0 %v1278
  %1780 = vmatmul.bf16.gmra.mxu0 %v343
  %v1781 = vpop.f32.mrf.mxu0
  %v1782 = vadd.f32 %v1768, %v1781
  %v1783 = vpop.f32.mrf.mxu0
  %v1784 = vadd.f32 %v1770, %v1783
  %1785 = vdwg.mxu0
  %1786 = vmatpush.bf16.msra.mxu0 %v1308
  %1787 = vmatpush.bf16.msra.mxu0 %v1306
  %1788 = vmatpush.bf16.msra.mxu0 %v1304
  %1789 = vmatpush.bf16.msra.mxu0 %v1302
  %1790 = vmatpush.bf16.msra.mxu0 %v1300
  %1791 = vmatpush.bf16.msra.mxu0 %v1298
  %1792 = vmatpush.bf16.msra.mxu0 %v1296
  %1793 = vmatpush.bf16.msra.mxu0 %v1294
  %1794 = vmatmul.bf16.gmra.mxu0 %v344
  %v1795 = vpop.f32.mrf.mxu0
  %v1796 = vadd.f32 %v1782, %v1795
  %v1797 = vpop.f32.mrf.mxu0
  %v1798 = vadd.f32 %v1784, %v1797
  %1799 = vdwg.mxu0
  %1800 = vmatpush.bf16.msra.mxu0 %v1324
  %1801 = vmatpush.bf16.msra.mxu0 %v1322
  %1802 = vmatpush.bf16.msra.mxu0 %v1320
  %1803 = vmatpush.bf16.msra.mxu0 %v1318
  %1804 = vmatpush.bf16.msra.mxu0 %v1316
  %1805 = vmatpush.bf16.msra.mxu0 %v1314
  %1806 = vmatpush.bf16.msra.mxu0 %v1312
  %1807 = vmatpush.bf16.msra.mxu0 %v1310
  %1808 = vmatmul.bf16.gmra.mxu0 %v345
  %v1809 = vpop.f32.mrf.mxu0
  %v1810 = vadd.f32 %v1796, %v1809
  %v1811 = vpop.f32.mrf.mxu0
  %v1812 = vadd.f32 %v1798, %v1811
  %1813 = vdwg.mxu0
  %1814 = vmatpush.bf16.msra.mxu0 %v1340
  %1815 = vmatpush.bf16.msra.mxu0 %v1338
  %1816 = vmatpush.bf16.msra.mxu0 %v1336
  %1817 = vmatpush.bf16.msra.mxu0 %v1334
  %1818 = vmatpush.bf16.msra.mxu0 %v1332
  %1819 = vmatpush.bf16.msra.mxu0 %v1330
  %1820 = vmatpush.bf16.msra.mxu0 %v1328
  %1821 = vmatpush.bf16.msra.mxu0 %v1326
  %1822 = vmatmul.bf16.gmra.mxu0 %v346
  %v1823 = vpop.f32.mrf.mxu0
  %v1824 = vadd.f32 %v1810, %v1823
  %v1825 = vpop.f32.mrf.mxu0
  %v1826 = vadd.f32 %v1812, %v1825
  %1827 = vdwg.mxu0
  %1828 = vmatpush.bf16.msra.mxu0 %v1356
  %1829 = vmatpush.bf16.msra.mxu0 %v1354
  %1830 = vmatpush.bf16.msra.mxu0 %v1352
  %1831 = vmatpush.bf16.msra.mxu0 %v1350
  %1832 = vmatpush.bf16.msra.mxu0 %v1348
  %1833 = vmatpush.bf16.msra.mxu0 %v1346
  %1834 = vmatpush.bf16.msra.mxu0 %v1344
  %1835 = vmatpush.bf16.msra.mxu0 %v1342
  %1836 = vmatmul.bf16.gmra.mxu0 %v347
  %v1837 = vpop.f32.mrf.mxu0
  %v1838 = vadd.f32 %v1824, %v1837
  %v1839 = vpop.f32.mrf.mxu0
  %v1840 = vadd.f32 %v1826, %v1839
  %1841 = vdwg.mxu0
  %1842 = vmatpush.bf16.msra.mxu0 %v1372
  %1843 = vmatpush.bf16.msra.mxu0 %v1370
  %1844 = vmatpush.bf16.msra.mxu0 %v1368
  %1845 = vmatpush.bf16.msra.mxu0 %v1366
  %1846 = vmatpush.bf16.msra.mxu0 %v1364
  %1847 = vmatpush.bf16.msra.mxu0 %v1362
  %1848 = vmatpush.bf16.msra.mxu0 %v1360
  %1849 = vmatpush.bf16.msra.mxu0 %v1358
  %1850 = vmatmul.bf16.gmra.mxu0 %v348
  %v1851 = vpop.f32.mrf.mxu0
  %v1852 = vadd.f32 %v1838, %v1851
  %v1853 = vpop.f32.mrf.mxu0
  %v1854 = vadd.f32 %v1840, %v1853
  %1855 = vdwg.mxu0
  %1856 = vmatpush.bf16.msra.mxu0 %v1388
  %1857 = vmatpush.bf16.msra.mxu0 %v1386
  %1858 = vmatpush.bf16.msra.mxu0 %v1384
  %1859 = vmatpush.bf16.msra.mxu0 %v1382
  %1860 = vmatpush.bf16.msra.mxu0 %v1380
  %1861 = vmatpush.bf16.msra.mxu0 %v1378
  %1862 = vmatpush.bf16.msra.mxu0 %v1376
  %1863 = vmatpush.bf16.msra.mxu0 %v1374
  %1864 = vmatmul.bf16.gmra.mxu0 %v349
  %v1865 = vpop.f32.mrf.mxu0
  %v1866 = vadd.f32 %v1852, %v1865
  %v1867 = vpop.f32.mrf.mxu0
  %v1868 = vadd.f32 %v1854, %v1867
  %1869 = vdwg.mxu0
  %1870 = vmatpush.bf16.msra.mxu0 %v1149
  %1871 = vmatpush.bf16.msra.mxu0 %v1147
  %1872 = vmatpush.bf16.msra.mxu0 %v1145
  %1873 = vmatpush.bf16.msra.mxu0 %v1143
  %1874 = vmatpush.bf16.msra.mxu0 %v1141
  %1875 = vmatpush.bf16.msra.mxu0 %v1139
  %1876 = vmatpush.bf16.msra.mxu0 %v1137
  %1877 = vmatpush.bf16.msra.mxu0 %v1135
  %1878 = vmatmul.bf16.gmra.mxu0 %v334
  %v1879 = vpop.f32.mrf.mxu0
  %v1880 = vadd.f32 0.0, %v1879
  %v1881 = vpop.f32.mrf.mxu0
  %v1882 = vadd.f32 0.0, %v1881
  %1883 = vdwg.mxu0
  %1884 = vmatpush.bf16.msra.mxu0 %v1165
  %1885 = vmatpush.bf16.msra.mxu0 %v1163
  %1886 = vmatpush.bf16.msra.mxu0 %v1161
  %1887 = vmatpush.bf16.msra.mxu0 %v1159
  %1888 = vmatpush.bf16.msra.mxu0 %v1157
  %1889 = vmatpush.bf16.msra.mxu0 %v1155
  %1890 = vmatpush.bf16.msra.mxu0 %v1153
  %1891 = vmatpush.bf16.msra.mxu0 %v1151
  %1892 = vmatmul.bf16.gmra.mxu0 %v335
  %v1893 = vpop.f32.mrf.mxu0
  %v1894 = vadd.f32 %v1880, %v1893
  %v1895 = vpop.f32.mrf.mxu0
  %v1896 = vadd.f32 %v1882, %v1895
  %1897 = vdwg.mxu0
  %1898 = vmatpush.bf16.msra.mxu0 %v1181
  %1899 = vmatpush.bf16.msra.mxu0 %v1179
  %1900 = vmatpush.bf16.msra.mxu0 %v1177
  %1901 = vmatpush.bf16.msra.mxu0 %v1175
  %1902 = vmatpush.bf16.msra.mxu0 %v1173
  %1903 = vmatpush.bf16.msra.mxu0 %v1171
  %1904 = vmatpush.bf16.msra.mxu0 %v1169
  %1905 = vmatpush.bf16.msra.mxu0 %v1167
  %1906 = vmatmul.bf16.gmra.mxu0 %v336
  %v1907 = vpop.f32.mrf.mxu0
  %v1908 = vadd.f32 %v1894, %v1907
  %v1909 = vpop.f32.mrf.mxu0
  %v1910 = vadd.f32 %v1896, %v1909
  %1911 = vdwg.mxu0
  %1912 = vmatpush.bf16.msra.mxu0 %v1197
  %1913 = vmatpush.bf16.msra.mxu0 %v1195
  %1914 = vmatpush.bf16.msra.mxu0 %v1193
  %1915 = vmatpush.bf16.msra.mxu0 %v1191
  %1916 = vmatpush.bf16.msra.mxu0 %v1189
  %1917 = vmatpush.bf16.msra.mxu0 %v1187
  %1918 = vmatpush.bf16.msra.mxu0 %v1185
  %1919 = vmatpush.bf16.msra.mxu0 %v1183
  %1920 = vmatmul.bf16.gmra.mxu0 %v337
  %v1921 = vpop.f32.mrf.mxu0
  %v1922 = vadd.f32 %v1908, %v1921
  %v1923 = vpop.f32.mrf.mxu0
  %v1924 = vadd.f32 %v1910, %v1923
  %1925 = vdwg.mxu0
  %1926 = vmatpush.bf16.msra.mxu0 %v1213
  %1927 = vmatpush.bf16.msra.mxu0 %v1211
  %1928 = vmatpush.bf16.msra.mxu0 %v1209
  %1929 = vmatpush.bf16.msra.mxu0 %v1207
  %1930 = vmatpush.bf16.msra.mxu0 %v1205
  %1931 = vmatpush.bf16.msra.mxu0 %v1203
  %1932 = vmatpush.bf16.msra.mxu0 %v1201
  %1933 = vmatpush.bf16.msra.mxu0 %v1199
  %1934 = vmatmul.bf16.gmra.mxu0 %v338
  %v1935 = vpop.f32.mrf.mxu0
  %v1936 = vadd.f32 %v1922, %v1935
  %v1937 = vpop.f32.mrf.mxu0
  %v1938 = vadd.f32 %v1924, %v1937
  %1939 = vdwg.mxu0
  %1940 = vmatpush.bf16.msra.mxu0 %v1229
  %1941 = vmatpush.bf16.msra.mxu0 %v1227
  %1942 = vmatpush.bf16.msra.mxu0 %v1225
  %1943 = vmatpush.bf16.msra.mxu0 %v1223
  %1944 = vmatpush.bf16.msra.mxu0 %v1221
  %1945 = vmatpush.bf16.msra.mxu0 %v1219
  %1946 = vmatpush.bf16.msra.mxu0 %v1217
  %1947 = vmatpush.bf16.msra.mxu0 %v1215
  %1948 = vmatmul.bf16.gmra.mxu0 %v339
  %v1949 = vpop.f32.mrf.mxu0
  %v1950 = vadd.f32 %v1936, %v1949
  %v1951 = vpop.f32.mrf.mxu0
  %v1952 = vadd.f32 %v1938, %v1951
  %1953 = vdwg.mxu0
  %1954 = vmatpush.bf16.msra.mxu0 %v1245
  %1955 = vmatpush.bf16.msra.mxu0 %v1243
  %1956 = vmatpush.bf16.msra.mxu0 %v1241
  %1957 = vmatpush.bf16.msra.mxu0 %v1239
  %1958 = vmatpush.bf16.msra.mxu0 %v1237
  %1959 = vmatpush.bf16.msra.mxu0 %v1235
  %1960 = vmatpush.bf16.msra.mxu0 %v1233
  %1961 = vmatpush.bf16.msra.mxu0 %v1231
  %1962 = vmatmul.bf16.gmra.mxu0 %v340
  %v1963 = vpop.f32.mrf.mxu0
  %v1964 = vadd.f32 %v1950, %v1963
  %v1965 = vpop.f32.mrf.mxu0
  %v1966 = vadd.f32 %v1952, %v1965
  %1967 = vdwg.mxu0
  %1968 = vmatpush.bf16.msra.mxu0 %v1261
  %1969 = vmatpush.bf16.msra.mxu0 %v1259
  %1970 = vmatpush.bf16.msra.mxu0 %v1257
  %1971 = vmatpush.bf16.msra.mxu0 %v1255
  %1972 = vmatpush.bf16.msra.mxu0 %v1253
  %1973 = vmatpush.bf16.msra.mxu0 %v1251
  %1974 = vmatpush.bf16.msra.mxu0 %v1249
  %1975 = vmatpush.bf16.msra.mxu0 %v1247
  %1976 = vmatmul.bf16.gmra.mxu0 %v341
  %v1977 = vpop.f32.mrf.mxu0
  %v1978 = vadd.f32 %v1964, %v1977
  %v1979 = vpop.f32.mrf.mxu0
  %v1980 = vadd.f32 %v1966, %v1979
  %1981 = vdwg.mxu0
  %1982 = vmatpush.bf16.msra.mxu0 %v1277
  %1983 = vmatpush.bf16.msra.mxu0 %v1275
  %1984 = vmatpush.bf16.msra.mxu0 %v1273
  %1985 = vmatpush.bf16.msra.mxu0 %v1271
  %1986 = vmatpush.bf16.msra.mxu0 %v1269
  %1987 = vmatpush.bf16.msra.mxu0 %v1267
  %1988 = vmatpush.bf16.msra.mxu0 %v1265
  %1989 = vmatpush.bf16.msra.mxu0 %v1263
  %1990 = vmatmul.bf16.gmra.mxu0 %v342
  %v1991 = vpop.f32.mrf.mxu0
  %v1992 = vadd.f32 %v1978, %v1991
  %v1993 = vpop.f32.mrf.mxu0
  %v1994 = vadd.f32 %v1980, %v1993
  %1995 = vdwg.mxu0
  %1996 = vmatpush.bf16.msra.mxu0 %v1293
  %1997 = vmatpush.bf16.msra.mxu0 %v1291
  %1998 = vmatpush.bf16.msra.mxu0 %v1289
  %1999 = vmatpush.bf16.msra.mxu0 %v1287
  %2000 = vmatpush.bf16.msra.mxu0 %v1285
  %2001 = vmatpush.bf16.msra.mxu0 %v1283
  %2002 = vmatpush.bf16.msra.mxu0 %v1281
  %2003 = vmatpush.bf16.msra.mxu0 %v1279
  %2004 = vmatmul.bf16.gmra.mxu0 %v343
  %v2005 = vpop.f32.mrf.mxu0
  %v2006 = vadd.f32 %v1992, %v2005
  %v2007 = vpop.f32.mrf.mxu0
  %v2008 = vadd.f32 %v1994, %v2007
  %2009 = vdwg.mxu0
  %2010 = vmatpush.bf16.msra.mxu0 %v1309
  %2011 = vmatpush.bf16.msra.mxu0 %v1307
  %2012 = vmatpush.bf16.msra.mxu0 %v1305
  %2013 = vmatpush.bf16.msra.mxu0 %v1303
  %2014 = vmatpush.bf16.msra.mxu0 %v1301
  %2015 = vmatpush.bf16.msra.mxu0 %v1299
  %2016 = vmatpush.bf16.msra.mxu0 %v1297
  %2017 = vmatpush.bf16.msra.mxu0 %v1295
  %2018 = vmatmul.bf16.gmra.mxu0 %v344
  %v2019 = vpop.f32.mrf.mxu0
  %v2020 = vadd.f32 %v2006, %v2019
  %v2021 = vpop.f32.mrf.mxu0
  %v2022 = vadd.f32 %v2008, %v2021
  %2023 = vdwg.mxu0
  %2024 = vmatpush.bf16.msra.mxu0 %v1325
  %2025 = vmatpush.bf16.msra.mxu0 %v1323
  %2026 = vmatpush.bf16.msra.mxu0 %v1321
  %2027 = vmatpush.bf16.msra.mxu0 %v1319
  %2028 = vmatpush.bf16.msra.mxu0 %v1317
  %2029 = vmatpush.bf16.msra.mxu0 %v1315
  %2030 = vmatpush.bf16.msra.mxu0 %v1313
  %2031 = vmatpush.bf16.msra.mxu0 %v1311
  %2032 = vmatmul.bf16.gmra.mxu0 %v345
  %v2033 = vpop.f32.mrf.mxu0
  %v2034 = vadd.f32 %v2020, %v2033
  %v2035 = vpop.f32.mrf.mxu0
  %v2036 = vadd.f32 %v2022, %v2035
  %2037 = vdwg.mxu0
  %2038 = vmatpush.bf16.msra.mxu0 %v1341
  %2039 = vmatpush.bf16.msra.mxu0 %v1339
  %2040 = vmatpush.bf16.msra.mxu0 %v1337
  %2041 = vmatpush.bf16.msra.mxu0 %v1335
  %2042 = vmatpush.bf16.msra.mxu0 %v1333
  %2043 = vmatpush.bf16.msra.mxu0 %v1331
  %2044 = vmatpush.bf16.msra.mxu0 %v1329
  %2045 = vmatpush.bf16.msra.mxu0 %v1327
  %2046 = vmatmul.bf16.gmra.mxu0 %v346
  %v2047 = vpop.f32.mrf.mxu0
  %v2048 = vadd.f32 %v2034, %v2047
  %v2049 = vpop.f32.mrf.mxu0
  %v2050 = vadd.f32 %v2036, %v2049
  %2051 = vdwg.mxu0
  %2052 = vmatpush.bf16.msra.mxu0 %v1357
  %2053 = vmatpush.bf16.msra.mxu0 %v1355
  %2054 = vmatpush.bf16.msra.mxu0 %v1353
  %2055 = vmatpush.bf16.msra.mxu0 %v1351
  %2056 = vmatpush.bf16.msra.mxu0 %v1349
  %2057 = vmatpush.bf16.msra.mxu0 %v1347
  %2058 = vmatpush.bf16.msra.mxu0 %v1345
  %2059 = vmatpush.bf16.msra.mxu0 %v1343
  %2060 = vmatmul.bf16.gmra.mxu0 %v347
  %v2061 = vpop.f32.mrf.mxu0
  %v2062 = vadd.f32 %v2048, %v2061
  %v2063 = vpop.f32.mrf.mxu0
  %v2064 = vadd.f32 %v2050, %v2063
  %2065 = vdwg.mxu0
  %2066 = vmatpush.bf16.msra.mxu0 %v1373
  %2067 = vmatpush.bf16.msra.mxu0 %v1371
  %2068 = vmatpush.bf16.msra.mxu0 %v1369
  %2069 = vmatpush.bf16.msra.mxu0 %v1367
  %2070 = vmatpush.bf16.msra.mxu0 %v1365
  %2071 = vmatpush.bf16.msra.mxu0 %v1363
  %2072 = vmatpush.bf16.msra.mxu0 %v1361
  %2073 = vmatpush.bf16.msra.mxu0 %v1359
  %2074 = vmatmul.bf16.gmra.mxu0 %v348
  %v2075 = vpop.f32.mrf.mxu0
  %v2076 = vadd.f32 %v2062, %v2075
  %v2077 = vpop.f32.mrf.mxu0
  %v2078 = vadd.f32 %v2064, %v2077
  %2079 = vdwg.mxu0
  %2080 = vmatpush.bf16.msra.mxu0 %v1389
  %2081 = vmatpush.bf16.msra.mxu0 %v1387
  %2082 = vmatpush.bf16.msra.mxu0 %v1385
  %2083 = vmatpush.bf16.msra.mxu0 %v1383
  %2084 = vmatpush.bf16.msra.mxu0 %v1381
  %2085 = vmatpush.bf16.msra.mxu0 %v1379
  %2086 = vmatpush.bf16.msra.mxu0 %v1377
  %2087 = vmatpush.bf16.msra.mxu0 %v1375
  %2088 = vmatmul.bf16.gmra.mxu0 %v349
  %v2089 = vpop.f32.mrf.mxu0
  %v2090 = vadd.f32 %v2076, %v2089
  %v2091 = vpop.f32.mrf.mxu0
  %v2092 = vadd.f32 %v2078, %v2091
  %2093 = vdwg.mxu0
  %v2094 = vpack.c.bf16 %v2090, %v1866
  %v2095 = vpack.c.bf16 %v2092, %v1868
  %2096 = vst [vmem:[%s2] sm:$0xff] %v2094
  %2097 = vst [vmem:[%s2 + $0x8] sm:$0xff] %v2095
  %v2098 = vadd.f32 %v1866, %v1868
  %v2099 = vrot.slane %v2098, 4
  %v2100 = vadd.f32 %v2098, %v2099
  %v2101 = vrot.slane %v2100, 2
  %v2102 = vadd.f32 %v2100, %v2101
  %v2103 = vrot.slane %v2102, 1
  %v2104 = vadd.f32 %v2102, %v2103
  %v2105 = vadd.f32 %v2090, %v2092
  %v2106 = vrot.slane %v2105, 4
  %v2107 = vadd.f32 %v2105, %v2106
  %v2108 = vrot.slane %v2107, 2
  %v2109 = vadd.f32 %v2107, %v2108
  %v2110 = vrot.slane %v2109, 1
  %v2111 = vadd.f32 %v2109, %v2110
  %2112 = vst [vmem:[%s3] sm:$0xff] %v2104
  %2113 = vst [vmem:[%s3 + $0x8] sm:$0xff] %v2111
  %v2114 = vmul.f32 %v1866, %v1866
  %v2115 = vmul.f32 %v2090, %v2090
  %v2116 = vmul.f32 %v1868, %v1868
  %v2117 = vmul.f32 %v2092, %v2092
  %v2118 = vadd.f32 %v2114, %v2116
  %v2119 = vrot.slane %v2118, 4
  %v2120 = vadd.f32 %v2118, %v2119
  %v2121 = vrot.slane %v2120, 2
  %v2122 = vadd.f32 %v2120, %v2121
  %v2123 = vrot.slane %v2122, 1
  %v2124 = vadd.f32 %v2122, %v2123
  %v2125 = vadd.f32 %v2115, %v2117
  %v2126 = vrot.slane %v2125, 4
  %v2127 = vadd.f32 %v2125, %v2126
  %v2128 = vrot.slane %v2127, 2
  %v2129 = vadd.f32 %v2127, %v2128
  %v2130 = vrot.slane %v2129, 1
  %v2131 = vadd.f32 %v2129, %v2130
  %2132 = vst [vmem:[%s4] sm:$0xff] %v2124
  %2133 = vst [vmem:[%s4 + $0x8] sm:$0xff] %v2131
  // Predicated region
  $region10: #{generator_forward.18} parent=0 // pred_check
    _
  $region11: #{generator_forward.18} parent=0 // pred_check_branch
    %2135 = sbr.rel (0) target = $region13
  $region12: #{generator_forward.18} parent=0 // pred_region
    _
  $region13: #{generator_forward.18} parent=0 // pred_fallthru
    _
  // Predicated region
  $region14: #{generator_forward.18} parent=0 // pred_check
    _
  $region15: #{generator_forward.18} parent=0 // pred_check_branch
    %2137 = sbr.rel (0) target = $region17
  $region16: #{generator_forward.18} parent=0 // pred_region
    _
  $region17: #{generator_forward.18} parent=0 // pred_fallthru
    _
  // Predicated region
  $region18: #{generator_forward.18} parent=0 // pred_check
    _
  $region19: #{generator_forward.18} parent=0 // pred_check_branch
    %2139 = sbr.rel (0) target = $region21
  $region20: #{generator_forward.18} parent=0 // pred_region
    _
  $region21: #{generator_forward.18} parent=0 // pred_fallthru
    _
  // Predicated region
  $region22: #{generator_forward.18} parent=0 // pred_check
    _
  $region23: #{generator_forward.18} parent=0 // pred_check_branch
    %2141 = sbr.rel (0) target = $region25
  $region24: #{generator_forward.18} parent=0 // pred_region
    _
  $region25: #{generator_forward.18} parent=0 // pred_fallthru
    _
  // Predicated region
  $region26: #{generator_forward.18} parent=0 // pred_check
    _
  $region27: #{generator_forward.18} parent=0 // pred_check_branch
    %2143 = sbr.rel (0) target = $region29
  $region28: #{generator_forward.18} parent=0 // pred_region
    _
  $region29: #{generator_forward.18} parent=0 // pred_fallthru
    _
  // Predicated region
  $region30: #{generator_forward.18} parent=0 // pred_check
    _
  $region31: #{generator_forward.18} parent=0 // pred_check_branch
    %2145 = sbr.rel (0) target = $region33
  $region32: #{generator_forward.18} parent=0 // pred_region
    _
  $region33: #{generator_forward.18} parent=0 // pred_fallthru
    _

// kernel: generator_forward.20
$region0: #{generator_forward.20}
  #allocation0 [shape = 'u32[]', space=smem, size = 0x4, offset = 0x4, fixed_abs, tag = 'smem constant byte address 0x4 - core index']
  #allocation1 [shape = 'u32[72,128]{1,0:T(1,128)}', space=vmem, size = 0x9000, scoped, tag = 'internal scratch']
  %s0 = inlined_call_operand.vmem [shape: bf16[16,256], index: 0, kind: input, shape index: {}]
  %s1 = inlined_call_operand.vmem [shape: bf16[256,1024], index: 1, kind: input, shape index: {}]
  %s2 = inlined_call_operand.vmem [shape: f32[1,1024], index: 2, kind: input, shape index: {}]
  %s3 = inlined_call_operand.vmem [shape: bf16[1024,256], index: 3, kind: input, shape index: {}]
  %s4 = inlined_call_operand.vmem [shape: bf16[16,256], index: 4, kind: output, shape index: {0}]
  %s5 = inlined_call_operand.vmem [shape: f32[8,256], index: 5, kind: output, shape index: {1}]
  %s6 = inlined_call_operand.vmem [shape: f32[8,256], index: 6, kind: output, shape index: {2}]
  %7 = xla_tuple %s4, %s5, %s6
  %s8 = sld [smem:[#allocation0]]
  $region42: #{generator_forward.20} parent=0
    _
  %s10 = ssub.s32 1, %s8
  %s11 = scalar_select 0, %s10, %s8
  // Predicated region
  $region2: #{generator_forward.20} parent=0 // pred_check
    _
  $region3: #{generator_forward.20} parent=0 // pred_check_branch
    %13 = sbr.rel (0) target = $region5
  $region4: #{generator_forward.20} parent=0 // pred_region
    _
  $region5: #{generator_forward.20} parent=0 // pred_fallthru
    _
  // Predicated region
  $region6: #{generator_forward.20} parent=0 // pred_check
    _
  $region7: #{generator_forward.20} parent=0 // pred_check_branch
    %15 = sbr.rel (0) target = $region9
  $region8: #{generator_forward.20} parent=0 // pred_region
    _
  $region9: #{generator_forward.20} parent=0 // pred_fallthru
    _
  // Predicated region
  $region10: #{generator_forward.20} parent=0 // pred_check
    _
  $region11: #{generator_forward.20} parent=0 // pred_check_branch
    %17 = sbr.rel (0) target = $region13
  $region12: #{generator_forward.20} parent=0 // pred_region
    _
  $region13: #{generator_forward.20} parent=0 // pred_fallthru
    _
  // Predicated region
  $region14: #{generator_forward.20} parent=0 // pred_check
    _
  $region15: #{generator_forward.20} parent=0 // pred_check_branch
    %19 = sbr.rel (0) target = $region17
  $region16: #{generator_forward.20} parent=0 // pred_region
    _
  $region17: #{generator_forward.20} parent=0 // pred_fallthru
    _
  %v20 = vld [vmem:[%s0] sm:$0xff]
  %v21 = vld [vmem:[%s0 + $0x8] sm:$0xff]
  %v22 = vld [vmem:[%s1] sm:$0xff]
  %v23 = vld [vmem:[%s1 + $0x8] sm:$0xff]
  %v24 = vld [vmem:[%s1 + $0x10] sm:$0xff]
  %v25 = vld [vmem:[%s1 + $0x18] sm:$0xff]
  %v26 = vld [vmem:[%s1 + $0x20] sm:$0xff]
  %v27 = vld [vmem:[%s1 + $0x28] sm:$0xff]
  %v28 = vld [vmem:[%s1 + $0x30] sm:$0xff]
  %v29 = vld [vmem:[%s1 + $0x38] sm:$0xff]
  %v30 = vld [vmem:[%s1 + $0x40] sm:$0xff]
  %v31 = vld [vmem:[%s1 + $0x48] sm:$0xff]
  %v32 = vld [vmem:[%s1 + $0x50] sm:$0xff]
  %v33 = vld [vmem:[%s1 + $0x58] sm:$0xff]
  %v34 = vld [vmem:[%s1 + $0x60] sm:$0xff]
  %v35 = vld [vmem:[%s1 + $0x68] sm:$0xff]
  %v36 = vld [vmem:[%s1 + $0x70] sm:$0xff]
  %v37 = vld [vmem:[%s1 + $0x78] sm:$0xff]
  %v38 = vld [vmem:[%s1 + $0x80] sm:$0xff]
  %v39 = vld [vmem:[%s1 + $0x88] sm:$0xff]
  %v40 = vld [vmem:[%s1 + $0x90] sm:$0xff]
  %v41 = vld [vmem:[%s1 + $0x98] sm:$0xff]
  %v42 = vld [vmem:[%s1 + $0xa0] sm:$0xff]
  %v43 = vld [vmem:[%s1 + $0xa8] sm:$0xff]
  %v44 = vld [vmem:[%s1 + $0xb0] sm:$0xff]
  %v45 = vld [vmem:[%s1 + $0xb8] sm:$0xff]
  %v46 = vld [vmem:[%s1 + $0xc0] sm:$0xff]
  %v47 = vld [vmem:[%s1 + $0xc8] sm:$0xff]
  %v48 = vld [vmem:[%s1 + $0xd0] sm:$0xff]
  %v49 = vld [vmem:[%s1 + $0xd8] sm:$0xff]
  %v50 = vld [vmem:[%s1 + $0xe0] sm:$0xff]
  %v51 = vld [vmem:[%s1 + $0xe8] sm:$0xff]
  %v52 = vld [vmem:[%s1 + $0xf0] sm:$0xff]
  %v53 = vld [vmem:[%s1 + $0xf8] sm:$0xff]
  %v54 = vld [vmem:[%s1 + $0x100] sm:$0xff]
  %v55 = vld [vmem:[%s1 + $0x108] sm:$0xff]
  %v56 = vld [vmem:[%s1 + $0x110] sm:$0xff]
  %v57 = vld [vmem:[%s1 + $0x118] sm:$0xff]
  %v58 = vld [vmem:[%s1 + $0x120] sm:$0xff]
  %v59 = vld [vmem:[%s1 + $0x128] sm:$0xff]
  %v60 = vld [vmem:[%s1 + $0x130] sm:$0xff]
  %v61 = vld [vmem:[%s1 + $0x138] sm:$0xff]
  %v62 = vld [vmem:[%s1 + $0x140] sm:$0xff]
  %v63 = vld [vmem:[%s1 + $0x148] sm:$0xff]
  %v64 = vld [vmem:[%s1 + $0x150] sm:$0xff]
  %v65 = vld [vmem:[%s1 + $0x158] sm:$0xff]
  %v66 = vld [vmem:[%s1 + $0x160] sm:$0xff]
  %v67 = vld [vmem:[%s1 + $0x168] sm:$0xff]
  %v68 = vld [vmem:[%s1 + $0x170] sm:$0xff]
  %v69 = vld [vmem:[%s1 + $0x178] sm:$0xff]
  %v70 = vld [vmem:[%s1 + $0x180] sm:$0xff]
  %v71 = vld [vmem:[%s1 + $0x188] sm:$0xff]
  %v72 = vld [vmem:[%s1 + $0x190] sm:$0xff]
  %v73 = vld [vmem:[%s1 + $0x198] sm:$0xff]
  %v74 = vld [vmem:[%s1 + $0x1a0] sm:$0xff]
  %v75 = vld [vmem:[%s1 + $0x1a8] sm:$0xff]
  %v76 = vld [vmem:[%s1 + $0x1b0] sm:$0xff]
  %v77 = vld [vmem:[%s1 + $0x1b8] sm:$0xff]
  %v78 = vld [vmem:[%s1 + $0x1c0] sm:$0xff]
  %v79 = vld [vmem:[%s1 + $0x1c8] sm:$0xff]
  %v80 = vld [vmem:[%s1 + $0x1d0] sm:$0xff]
  %v81 = vld [vmem:[%s1 + $0x1d8] sm:$0xff]
  %v82 = vld [vmem:[%s1 + $0x1e0] sm:$0xff]
  %v83 = vld [vmem:[%s1 + $0x1e8] sm:$0xff]
  %v84 = vld [vmem:[%s1 + $0x1f0] sm:$0xff]
  %v85 = vld [vmem:[%s1 + $0x1f8] sm:$0xff]
  %v86 = vld [vmem:[%s1 + $0x200] sm:$0xff]
  %v87 = vld [vmem:[%s1 + $0x208] sm:$0xff]
  %v88 = vld [vmem:[%s1 + $0x210] sm:$0xff]
  %v89 = vld [vmem:[%s1 + $0x218] sm:$0xff]
  %v90 = vld [vmem:[%s1 + $0x220] sm:$0xff]
  %v91 = vld [vmem:[%s1 + $0x228] sm:$0xff]
  %v92 = vld [vmem:[%s1 + $0x230] sm:$0xff]
  %v93 = vld [vmem:[%s1 + $0x238] sm:$0xff]
  %v94 = vld [vmem:[%s1 + $0x240] sm:$0xff]
  %v95 = vld [vmem:[%s1 + $0x248] sm:$0xff]
  %v96 = vld [vmem:[%s1 + $0x250] sm:$0xff]
  %v97 = vld [vmem:[%s1 + $0x258] sm:$0xff]
  %v98 = vld [vmem:[%s1 + $0x260] sm:$0xff]
  %v99 = vld [vmem:[%s1 + $0x268] sm:$0xff]
  %v100 = vld [vmem:[%s1 + $0x270] sm:$0xff]
  %v101 = vld [vmem:[%s1 + $0x278] sm:$0xff]
  %v102 = vld [vmem:[%s1 + $0x280] sm:$0xff]
  %v103 = vld [vmem:[%s1 + $0x288] sm:$0xff]
  %v104 = vld [vmem:[%s1 + $0x290] sm:$0xff]
  %v105 = vld [vmem:[%s1 + $0x298] sm:$0xff]
  %v106 = vld [vmem:[%s1 + $0x2a0] sm:$0xff]
  %v107 = vld [vmem:[%s1 + $0x2a8] sm:$0xff]
  %v108 = vld [vmem:[%s1 + $0x2b0] sm:$0xff]
  %v109 = vld [vmem:[%s1 + $0x2b8] sm:$0xff]
  %v110 = vld [vmem:[%s1 + $0x2c0] sm:$0xff]
  %v111 = vld [vmem:[%s1 + $0x2c8] sm:$0xff]
  %v112 = vld [vmem:[%s1 + $0x2d0] sm:$0xff]
  %v113 = vld [vmem:[%s1 + $0x2d8] sm:$0xff]
  %v114 = vld [vmem:[%s1 + $0x2e0] sm:$0xff]
  %v115 = vld [vmem:[%s1 + $0x2e8] sm:$0xff]
  %v116 = vld [vmem:[%s1 + $0x2f0] sm:$0xff]
  %v117 = vld [vmem:[%s1 + $0x2f8] sm:$0xff]
  %v118 = vld [vmem:[%s1 + $0x300] sm:$0xff]
  %v119 = vld [vmem:[%s1 + $0x308] sm:$0xff]
  %v120 = vld [vmem:[%s1 + $0x310] sm:$0xff]
  %v121 = vld [vmem:[%s1 + $0x318] sm:$0xff]
  %v122 = vld [vmem:[%s1 + $0x320] sm:$0xff]
  %v123 = vld [vmem:[%s1 + $0x328] sm:$0xff]
  %v124 = vld [vmem:[%s1 + $0x330] sm:$0xff]
  %v125 = vld [vmem:[%s1 + $0x338] sm:$0xff]
  %v126 = vld [vmem:[%s1 + $0x340] sm:$0xff]
  %v127 = vld [vmem:[%s1 + $0x348] sm:$0xff]
  %v128 = vld [vmem:[%s1 + $0x350] sm:$0xff]
  %v129 = vld [vmem:[%s1 + $0x358] sm:$0xff]
  %v130 = vld [vmem:[%s1 + $0x360] sm:$0xff]
  %v131 = vld [vmem:[%s1 + $0x368] sm:$0xff]
  %v132 = vld [vmem:[%s1 + $0x370] sm:$0xff]
  %v133 = vld [vmem:[%s1 + $0x378] sm:$0xff]
  %v134 = vld [vmem:[%s1 + $0x380] sm:$0xff]
  %v135 = vld [vmem:[%s1 + $0x388] sm:$0xff]
  %v136 = vld [vmem:[%s1 + $0x390] sm:$0xff]
  %v137 = vld [vmem:[%s1 + $0x398] sm:$0xff]
  %v138 = vld [vmem:[%s1 + $0x3a0] sm:$0xff]
  %v139 = vld [vmem:[%s1 + $0x3a8] sm:$0xff]
  %v140 = vld [vmem:[%s1 + $0x3b0] sm:$0xff]
  %v141 = vld [vmem:[%s1 + $0x3b8] sm:$0xff]
  %v142 = vld [vmem:[%s1 + $0x3c0] sm:$0xff]
  %v143 = vld [vmem:[%s1 + $0x3c8] sm:$0xff]
  %v144 = vld [vmem:[%s1 + $0x3d0] sm:$0xff]
  %v145 = vld [vmem:[%s1 + $0x3d8] sm:$0xff]
  %v146 = vld [vmem:[%s1 + $0x3e0] sm:$0xff]
  %v147 = vld [vmem:[%s1 + $0x3e8] sm:$0xff]
  %v148 = vld [vmem:[%s1 + $0x3f0] sm:$0xff]
  %v149 = vld [vmem:[%s1 + $0x3f8] sm:$0xff]
  %v150 = vld [vmem:[%s2] sm:$0xff]
  %v152 = vperm.slane %v150, 0
  %v153 = vperm.slane %v150, 1
  %v154 = vperm.slane %v150, 2
  %v155 = vperm.slane %v150, 3
  %v156 = vperm.slane %v150, 4
  %v157 = vperm.slane %v150, 5
  %v158 = vperm.slane %v150, 6
  %v159 = vperm.slane %v150, 7
  %v170 = vunpack.c.l.b16 %v20
  %v171 = vunpack.c.h.b16 %v20
  %v172 = vunpack.c.l.b16 %v21
  %v173 = vunpack.c.h.b16 %v21
  %v174 = vpack.c.b16 %v172, %v170
  %v175 = vpack.c.b16 %v173, %v171
  %v306 = vunpack.c.l.b16 %v22
  %v307 = vunpack.c.h.b16 %v22
  %v308 = vunpack.c.l.b16 %v23
  %v309 = vunpack.c.h.b16 %v23
  %v310 = vunpack.c.l.b16 %v24
  %v311 = vunpack.c.h.b16 %v24
  %v312 = vunpack.c.l.b16 %v25
  %v313 = vunpack.c.h.b16 %v25
  %v314 = vunpack.c.l.b16 %v26
  %v315 = vunpack.c.h.b16 %v26
  %v316 = vunpack.c.l.b16 %v27
  %v317 = vunpack.c.h.b16 %v27
  %v318 = vunpack.c.l.b16 %v28
  %v319 = vunpack.c.h.b16 %v28
  %v320 = vunpack.c.l.b16 %v29
  %v321 = vunpack.c.h.b16 %v29
  %v322 = vunpack.c.l.b16 %v30
  %v323 = vunpack.c.h.b16 %v30
  %v324 = vunpack.c.l.b16 %v31
  %v325 = vunpack.c.h.b16 %v31
  %v326 = vunpack.c.l.b16 %v32
  %v327 = vunpack.c.h.b16 %v32
  %v328 = vunpack.c.l.b16 %v33
  %v329 = vunpack.c.h.b16 %v33
  %v330 = vunpack.c.l.b16 %v34
  %v331 = vunpack.c.h.b16 %v34
  %v332 = vunpack.c.l.b16 %v35
  %v333 = vunpack.c.h.b16 %v35
  %v334 = vunpack.c.l.b16 %v36
  %v335 = vunpack.c.h.b16 %v36
  %v336 = vunpack.c.l.b16 %v37
  %v337 = vunpack.c.h.b16 %v37
  %v338 = vunpack.c.l.b16 %v38
  %v339 = vunpack.c.h.b16 %v38
  %v340 = vunpack.c.l.b16 %v39
  %v341 = vunpack.c.h.b16 %v39
  %v342 = vunpack.c.l.b16 %v40
  %v343 = vunpack.c.h.b16 %v40
  %v344 = vunpack.c.l.b16 %v41
  %v345 = vunpack.c.h.b16 %v41
  %v346 = vunpack.c.l.b16 %v42
  %v347 = vunpack.c.h.b16 %v42
  %v348 = vunpack.c.l.b16 %v43
  %v349 = vunpack.c.h.b16 %v43
  %v350 = vunpack.c.l.b16 %v44
  %v351 = vunpack.c.h.b16 %v44
  %v352 = vunpack.c.l.b16 %v45
  %v353 = vunpack.c.h.b16 %v45
  %v354 = vunpack.c.l.b16 %v46
  %v355 = vunpack.c.h.b16 %v46
  %v356 = vunpack.c.l.b16 %v47
  %v357 = vunpack.c.h.b16 %v47
  %v358 = vunpack.c.l.b16 %v48
  %v359 = vunpack.c.h.b16 %v48
  %v360 = vunpack.c.l.b16 %v49
  %v361 = vunpack.c.h.b16 %v49
  %v362 = vunpack.c.l.b16 %v50
  %v363 = vunpack.c.h.b16 %v50
  %v364 = vunpack.c.l.b16 %v51
  %v365 = vunpack.c.h.b16 %v51
  %v366 = vunpack.c.l.b16 %v52
  %v367 = vunpack.c.h.b16 %v52
  %v368 = vunpack.c.l.b16 %v53
  %v369 = vunpack.c.h.b16 %v53
  %v370 = vunpack.c.l.b16 %v54
  %v371 = vunpack.c.h.b16 %v54
  %v372 = vunpack.c.l.b16 %v55
  %v373 = vunpack.c.h.b16 %v55
  %v374 = vunpack.c.l.b16 %v56
  %v375 = vunpack.c.h.b16 %v56
  %v376 = vunpack.c.l.b16 %v57
  %v377 = vunpack.c.h.b16 %v57
  %v378 = vunpack.c.l.b16 %v58
  %v379 = vunpack.c.h.b16 %v58
  %v380 = vunpack.c.l.b16 %v59
  %v381 = vunpack.c.h.b16 %v59
  %v382 = vunpack.c.l.b16 %v60
  %v383 = vunpack.c.h.b16 %v60
  %v384 = vunpack.c.l.b16 %v61
  %v385 = vunpack.c.h.b16 %v61
  %v386 = vunpack.c.l.b16 %v62
  %v387 = vunpack.c.h.b16 %v62
  %v388 = vunpack.c.l.b16 %v63
  %v389 = vunpack.c.h.b16 %v63
  %v390 = vunpack.c.l.b16 %v64
  %v391 = vunpack.c.h.b16 %v64
  %v392 = vunpack.c.l.b16 %v65
  %v393 = vunpack.c.h.b16 %v65
  %v394 = vunpack.c.l.b16 %v66
  %v395 = vunpack.c.h.b16 %v66
  %v396 = vunpack.c.l.b16 %v67
  %v397 = vunpack.c.h.b16 %v67
  %v398 = vunpack.c.l.b16 %v68
  %v399 = vunpack.c.h.b16 %v68
  %v400 = vunpack.c.l.b16 %v69
  %v401 = vunpack.c.h.b16 %v69
  %v402 = vunpack.c.l.b16 %v70
  %v403 = vunpack.c.h.b16 %v70
  %v404 = vunpack.c.l.b16 %v71
  %v405 = vunpack.c.h.b16 %v71
  %v406 = vunpack.c.l.b16 %v72
  %v407 = vunpack.c.h.b16 %v72
  %v408 = vunpack.c.l.b16 %v73
  %v409 = vunpack.c.h.b16 %v73
  %v410 = vunpack.c.l.b16 %v74
  %v411 = vunpack.c.h.b16 %v74
  %v412 = vunpack.c.l.b16 %v75
  %v413 = vunpack.c.h.b16 %v75
  %v414 = vunpack.c.l.b16 %v76
  %v415 = vunpack.c.h.b16 %v76
  %v416 = vunpack.c.l.b16 %v77
  %v417 = vunpack.c.h.b16 %v77
  %v418 = vunpack.c.l.b16 %v78
  %v419 = vunpack.c.h.b16 %v78
  %v420 = vunpack.c.l.b16 %v79
  %v421 = vunpack.c.h.b16 %v79
  %v422 = vunpack.c.l.b16 %v80
  %v423 = vunpack.c.h.b16 %v80
  %v424 = vunpack.c.l.b16 %v81
  %v425 = vunpack.c.h.b16 %v81
  %v426 = vunpack.c.l.b16 %v82
  %v427 = vunpack.c.h.b16 %v82
  %v428 = vunpack.c.l.b16 %v83
  %v429 = vunpack.c.h.b16 %v83
  %v430 = vunpack.c.l.b16 %v84
  %v431 = vunpack.c.h.b16 %v84
  %v432 = vunpack.c.l.b16 %v85
  %v433 = vunpack.c.h.b16 %v85
  %v434 = vunpack.c.l.b16 %v86
  %v435 = vunpack.c.h.b16 %v86
  %v436 = vunpack.c.l.b16 %v87
  %v437 = vunpack.c.h.b16 %v87
  %v438 = vunpack.c.l.b16 %v88
  %v439 = vunpack.c.h.b16 %v88
  %v440 = vunpack.c.l.b16 %v89
  %v441 = vunpack.c.h.b16 %v89
  %v442 = vunpack.c.l.b16 %v90
  %v443 = vunpack.c.h.b16 %v90
  %v444 = vunpack.c.l.b16 %v91
  %v445 = vunpack.c.h.b16 %v91
  %v446 = vunpack.c.l.b16 %v92
  %v447 = vunpack.c.h.b16 %v92
  %v448 = vunpack.c.l.b16 %v93
  %v449 = vunpack.c.h.b16 %v93
  %v450 = vunpack.c.l.b16 %v94
  %v451 = vunpack.c.h.b16 %v94
  %v452 = vunpack.c.l.b16 %v95
  %v453 = vunpack.c.h.b16 %v95
  %v454 = vunpack.c.l.b16 %v96
  %v455 = vunpack.c.h.b16 %v96
  %v456 = vunpack.c.l.b16 %v97
  %v457 = vunpack.c.h.b16 %v97
  %v458 = vunpack.c.l.b16 %v98
  %v459 = vunpack.c.h.b16 %v98
  %v460 = vunpack.c.l.b16 %v99
  %v461 = vunpack.c.h.b16 %v99
  %v462 = vunpack.c.l.b16 %v100
  %v463 = vunpack.c.h.b16 %v100
  %v464 = vunpack.c.l.b16 %v101
  %v465 = vunpack.c.h.b16 %v101
  %v466 = vunpack.c.l.b16 %v102
  %v467 = vunpack.c.h.b16 %v102
  %v468 = vunpack.c.l.b16 %v103
  %v469 = vunpack.c.h.b16 %v103
  %v470 = vunpack.c.l.b16 %v104
  %v471 = vunpack.c.h.b16 %v104
  %v472 = vunpack.c.l.b16 %v105
  %v473 = vunpack.c.h.b16 %v105
  %v474 = vunpack.c.l.b16 %v106
  %v475 = vunpack.c.h.b16 %v106
  %v476 = vunpack.c.l.b16 %v107
  %v477 = vunpack.c.h.b16 %v107
  %v478 = vunpack.c.l.b16 %v108
  %v479 = vunpack.c.h.b16 %v108
  %v480 = vunpack.c.l.b16 %v109
  %v481 = vunpack.c.h.b16 %v109
  %v482 = vunpack.c.l.b16 %v110
  %v483 = vunpack.c.h.b16 %v110
  %v484 = vunpack.c.l.b16 %v111
  %v485 = vunpack.c.h.b16 %v111
  %v486 = vunpack.c.l.b16 %v112
  %v487 = vunpack.c.h.b16 %v112
  %v488 = vunpack.c.l.b16 %v113
  %v489 = vunpack.c.h.b16 %v113
  %v490 = vunpack.c.l.b16 %v114
  %v491 = vunpack.c.h.b16 %v114
  %v492 = vunpack.c.l.b16 %v115
  %v493 = vunpack.c.h.b16 %v115
  %v494 = vunpack.c.l.b16 %v116
  %v495 = vunpack.c.h.b16 %v116
  %v496 = vunpack.c.l.b16 %v117
  %v497 = vunpack.c.h.b16 %v117
  %v498 = vunpack.c.l.b16 %v118
  %v499 = vunpack.c.h.b16 %v118
  %v500 = vunpack.c.l.b16 %v119
  %v501 = vunpack.c.h.b16 %v119
  %v502 = vunpack.c.l.b16 %v120
  %v503 = vunpack.c.h.b16 %v120
  %v504 = vunpack.c.l.b16 %v121
  %v505 = vunpack.c.h.b16 %v121
  %v506 = vunpack.c.l.b16 %v122
  %v507 = vunpack.c.h.b16 %v122
  %v508 = vunpack.c.l.b16 %v123
  %v509 = vunpack.c.h.b16 %v123
  %v510 = vunpack.c.l.b16 %v124
  %v511 = vunpack.c.h.b16 %v124
  %v512 = vunpack.c.l.b16 %v125
  %v513 = vunpack.c.h.b16 %v125
  %v514 = vunpack.c.l.b16 %v126
  %v515 = vunpack.c.h.b16 %v126
  %v516 = vunpack.c.l.b16 %v127
  %v517 = vunpack.c.h.b16 %v127
  %v518 = vunpack.c.l.b16 %v128
  %v519 = vunpack.c.h.b16 %v128
  %v520 = vunpack.c.l.b16 %v129
  %v521 = vunpack.c.h.b16 %v129
  %v522 = vunpack.c.l.b16 %v130
  %v523 = vunpack.c.h.b16 %v130
  %v524 = vunpack.c.l.b16 %v131
  %v525 = vunpack.c.h.b16 %v131
  %v526 = vunpack.c.l.b16 %v132
  %v527 = vunpack.c.h.b16 %v132
  %v528 = vunpack.c.l.b16 %v133
  %v529 = vunpack.c.h.b16 %v133
  %v530 = vunpack.c.l.b16 %v134
  %v531 = vunpack.c.h.b16 %v134
  %v532 = vunpack.c.l.b16 %v135
  %v533 = vunpack.c.h.b16 %v135
  %v534 = vunpack.c.l.b16 %v136
  %v535 = vunpack.c.h.b16 %v136
  %v536 = vunpack.c.l.b16 %v137
  %v537 = vunpack.c.h.b16 %v137
  %v538 = vunpack.c.l.b16 %v138
  %v539 = vunpack.c.h.b16 %v138
  %v540 = vunpack.c.l.b16 %v139
  %v541 = vunpack.c.h.b16 %v139
  %v542 = vunpack.c.l.b16 %v140
  %v543 = vunpack.c.h.b16 %v140
  %v544 = vunpack.c.l.b16 %v141
  %v545 = vunpack.c.h.b16 %v141
  %v546 = vunpack.c.l.b16 %v142
  %v547 = vunpack.c.h.b16 %v142
  %v548 = vunpack.c.l.b16 %v143
  %v549 = vunpack.c.h.b16 %v143
  %v550 = vunpack.c.l.b16 %v144
  %v551 = vunpack.c.h.b16 %v144
  %v552 = vunpack.c.l.b16 %v145
  %v553 = vunpack.c.h.b16 %v145
  %v554 = vunpack.c.l.b16 %v146
  %v555 = vunpack.c.h.b16 %v146
  %v556 = vunpack.c.l.b16 %v147
  %v557 = vunpack.c.h.b16 %v147
  %v558 = vunpack.c.l.b16 %v148
  %v559 = vunpack.c.h.b16 %v148
  %v560 = vunpack.c.l.b16 %v149
  %v561 = vunpack.c.h.b16 %v149
  %v562 = vpack.c.b16 %v314, %v306
  %v563 = vpack.c.b16 %v315, %v307
  %v564 = vpack.c.b16 %v316, %v308
  %v565 = vpack.c.b16 %v317, %v309
  %v566 = vpack.c.b16 %v318, %v310
  %v567 = vpack.c.b16 %v319, %v311
  %v568 = vpack.c.b16 %v320, %v312
  %v569 = vpack.c.b16 %v321, %v313
  %v570 = vpack.c.b16 %v330, %v322
  %v571 = vpack.c.b16 %v331, %v323
  %v572 = vpack.c.b16 %v332, %v324
  %v573 = vpack.c.b16 %v333, %v325
  %v574 = vpack.c.b16 %v334, %v326
  %v575 = vpack.c.b16 %v335, %v327
  %v576 = vpack.c.b16 %v336, %v328
  %v577 = vpack.c.b16 %v337, %v329
  %v578 = vpack.c.b16 %v346, %v338
  %v579 = vpack.c.b16 %v347, %v339
  %v580 = vpack.c.b16 %v348, %v340
  %v581 = vpack.c.b16 %v349, %v341
  %v582 = vpack.c.b16 %v350, %v342
  %v583 = vpack.c.b16 %v351, %v343
  %v584 = vpack.c.b16 %v352, %v344
  %v585 = vpack.c.b16 %v353, %v345
  %v586 = vpack.c.b16 %v362, %v354
  %v587 = vpack.c.b16 %v363, %v355
  %v588 = vpack.c.b16 %v364, %v356
  %v589 = vpack.c.b16 %v365, %v357
  %v590 = vpack.c.b16 %v366, %v358
  %v591 = vpack.c.b16 %v367, %v359
  %v592 = vpack.c.b16 %v368, %v360
  %v593 = vpack.c.b16 %v369, %v361
  %v594 = vpack.c.b16 %v378, %v370
  %v595 = vpack.c.b16 %v379, %v371
  %v596 = vpack.c.b16 %v380, %v372
  %v597 = vpack.c.b16 %v381, %v373
  %v598 = vpack.c.b16 %v382, %v374
  %v599 = vpack.c.b16 %v383, %v375
  %v600 = vpack.c.b16 %v384, %v376
  %v601 = vpack.c.b16 %v385, %v377
  %v602 = vpack.c.b16 %v394, %v386
  %v603 = vpack.c.b16 %v395, %v387
  %v604 = vpack.c.b16 %v396, %v388
  %v605 = vpack.c.b16 %v397, %v389
  %v606 = vpack.c.b16 %v398, %v390
  %v607 = vpack.c.b16 %v399, %v391
  %v608 = vpack.c.b16 %v400, %v392
  %v609 = vpack.c.b16 %v401, %v393
  %v610 = vpack.c.b16 %v410, %v402
  %v611 = vpack.c.b16 %v411, %v403
  %v612 = vpack.c.b16 %v412, %v404
  %v613 = vpack.c.b16 %v413, %v405
  %v614 = vpack.c.b16 %v414, %v406
  %v615 = vpack.c.b16 %v415, %v407
  %v616 = vpack.c.b16 %v416, %v408
  %v617 = vpack.c.b16 %v417, %v409
  %v618 = vpack.c.b16 %v426, %v418
  %v619 = vpack.c.b16 %v427, %v419
  %v620 = vpack.c.b16 %v428, %v420
  %v621 = vpack.c.b16 %v429, %v421
  %v622 = vpack.c.b16 %v430, %v422
  %v623 = vpack.c.b16 %v431, %v423
  %v624 = vpack.c.b16 %v432, %v424
  %v625 = vpack.c.b16 %v433, %v425
  %v626 = vpack.c.b16 %v442, %v434
  %v627 = vpack.c.b16 %v443, %v435
  %v628 = vpack.c.b16 %v444, %v436
  %v629 = vpack.c.b16 %v445, %v437
  %v630 = vpack.c.b16 %v446, %v438
  %v631 = vpack.c.b16 %v447, %v439
  %v632 = vpack.c.b16 %v448, %v440
  %v633 = vpack.c.b16 %v449, %v441
  %v634 = vpack.c.b16 %v458, %v450
  %v635 = vpack.c.b16 %v459, %v451
  %v636 = vpack.c.b16 %v460, %v452
  %v637 = vpack.c.b16 %v461, %v453
  %v638 = vpack.c.b16 %v462, %v454
  %v639 = vpack.c.b16 %v463, %v455
  %v640 = vpack.c.b16 %v464, %v456
  %v641 = vpack.c.b16 %v465, %v457
  %v642 = vpack.c.b16 %v474, %v466
  %v643 = vpack.c.b16 %v475, %v467
  %v644 = vpack.c.b16 %v476, %v468
  %v645 = vpack.c.b16 %v477, %v469
  %v646 = vpack.c.b16 %v478, %v470
  %v647 = vpack.c.b16 %v479, %v471
  %v648 = vpack.c.b16 %v480, %v472
  %v649 = vpack.c.b16 %v481, %v473
  %v650 = vpack.c.b16 %v490, %v482
  %v651 = vpack.c.b16 %v491, %v483
  %v652 = vpack.c.b16 %v492, %v484
  %v653 = vpack.c.b16 %v493, %v485
  %v654 = vpack.c.b16 %v494, %v486
  %v655 = vpack.c.b16 %v495, %v487
  %v656 = vpack.c.b16 %v496, %v488
  %v657 = vpack.c.b16 %v497, %v489
  %v658 = vpack.c.b16 %v506, %v498
  %v659 = vpack.c.b16 %v507, %v499
  %v660 = vpack.c.b16 %v508, %v500
  %v661 = vpack.c.b16 %v509, %v501
  %v662 = vpack.c.b16 %v510, %v502
  %v663 = vpack.c.b16 %v511, %v503
  %v664 = vpack.c.b16 %v512, %v504
  %v665 = vpack.c.b16 %v513, %v505
  %v666 = vpack.c.b16 %v522, %v514
  %v667 = vpack.c.b16 %v523, %v515
  %v668 = vpack.c.b16 %v524, %v516
  %v669 = vpack.c.b16 %v525, %v517
  %v670 = vpack.c.b16 %v526, %v518
  %v671 = vpack.c.b16 %v527, %v519
  %v672 = vpack.c.b16 %v528, %v520
  %v673 = vpack.c.b16 %v529, %v521
  %v674 = vpack.c.b16 %v538, %v530
  %v675 = vpack.c.b16 %v539, %v531
  %v676 = vpack.c.b16 %v540, %v532
  %v677 = vpack.c.b16 %v541, %v533
  %v678 = vpack.c.b16 %v542, %v534
  %v679 = vpack.c.b16 %v543, %v535
  %v680 = vpack.c.b16 %v544, %v536
  %v681 = vpack.c.b16 %v545, %v537
  %v682 = vpack.c.b16 %v554, %v546
  %v683 = vpack.c.b16 %v555, %v547
  %v684 = vpack.c.b16 %v556, %v548
  %v685 = vpack.c.b16 %v557, %v549
  %v686 = vpack.c.b16 %v558, %v550
  %v687 = vpack.c.b16 %v559, %v551
  %v688 = vpack.c.b16 %v560, %v552
  %v689 = vpack.c.b16 %v561, %v553
  %818 = vmatpush.bf16.msra.mxu0 %v618
  %819 = vmatpush.bf16.msra.mxu0 %v610
  %820 = vmatpush.bf16.msra.mxu0 %v602
  %821 = vmatpush.bf16.msra.mxu0 %v594
  %822 = vmatpush.bf16.msra.mxu0 %v586
  %823 = vmatpush.bf16.msra.mxu0 %v578
  %824 = vmatpush.bf16.msra.mxu0 %v570
  %825 = vmatpush.bf16.msra.mxu0 %v562
  %826 = vmatmul.bf16.gmra.mxu0 %v174
  %v827 = vpop.f32.mrf.mxu0
  %v828 = vadd.f32 %v152, %v827
  %v829 = vpop.f32.mrf.mxu0
  %v830 = vadd.f32 %v152, %v829
  %831 = vdwg.mxu0
  %832 = vmatpush.bf16.msra.mxu0 %v682
  %833 = vmatpush.bf16.msra.mxu0 %v674
  %834 = vmatpush.bf16.msra.mxu0 %v666
  %835 = vmatpush.bf16.msra.mxu0 %v658
  %836 = vmatpush.bf16.msra.mxu0 %v650
  %837 = vmatpush.bf16.msra.mxu0 %v642
  %838 = vmatpush.bf16.msra.mxu0 %v634
  %839 = vmatpush.bf16.msra.mxu0 %v626
  %840 = vmatmul.bf16.gmra.mxu0 %v175
  %v841 = vpop.f32.mrf.mxu0
  %v842 = vadd.f32 %v828, %v841
  %v843 = vpop.f32.mrf.mxu0
  %v844 = vadd.f32 %v830, %v843
  %845 = vdwg.mxu0
  %846 = vmatpush.bf16.msra.mxu0 %v619
  %847 = vmatpush.bf16.msra.mxu0 %v611
  %848 = vmatpush.bf16.msra.mxu0 %v603
  %849 = vmatpush.bf16.msra.mxu0 %v595
  %850 = vmatpush.bf16.msra.mxu0 %v587
  %851 = vmatpush.bf16.msra.mxu0 %v579
  %852 = vmatpush.bf16.msra.mxu0 %v571
  %853 = vmatpush.bf16.msra.mxu0 %v563
  %854 = vmatmul.bf16.gmra.mxu0 %v174
  %v855 = vpop.f32.mrf.mxu0
  %v856 = vadd.f32 %v153, %v855
  %v857 = vpop.f32.mrf.mxu0
  %v858 = vadd.f32 %v153, %v857
  %859 = vdwg.mxu0
  %860 = vmatpush.bf16.msra.mxu0 %v683
  %861 = vmatpush.bf16.msra.mxu0 %v675
  %862 = vmatpush.bf16.msra.mxu0 %v667
  %863 = vmatpush.bf16.msra.mxu0 %v659
  %864 = vmatpush.bf16.msra.mxu0 %v651
  %865 = vmatpush.bf16.msra.mxu0 %v643
  %866 = vmatpush.bf16.msra.mxu0 %v635
  %867 = vmatpush.bf16.msra.mxu0 %v627
  %868 = vmatmul.bf16.gmra.mxu0 %v175
  %v869 = vpop.f32.mrf.mxu0
  %v870 = vadd.f32 %v856, %v869
  %v871 = vpop.f32.mrf.mxu0
  %v872 = vadd.f32 %v858, %v871
  %873 = vdwg.mxu0
  %874 = vmatpush.bf16.msra.mxu0 %v620
  %875 = vmatpush.bf16.msra.mxu0 %v612
  %876 = vmatpush.bf16.msra.mxu0 %v604
  %877 = vmatpush.bf16.msra.mxu0 %v596
  %878 = vmatpush.bf16.msra.mxu0 %v588
  %879 = vmatpush.bf16.msra.mxu0 %v580
  %880 = vmatpush.bf16.msra.mxu0 %v572
  %881 = vmatpush.bf16.msra.mxu0 %v564
  %882 = vmatmul.bf16.gmra.mxu0 %v174
  %v883 = vpop.f32.mrf.mxu0
  %v884 = vadd.f32 %v154, %v883
  %v885 = vpop.f32.mrf.mxu0
  %v886 = vadd.f32 %v154, %v885
  %887 = vdwg.mxu0
  %888 = vmatpush.bf16.msra.mxu0 %v684
  %889 = vmatpush.bf16.msra.mxu0 %v676
  %890 = vmatpush.bf16.msra.mxu0 %v668
  %891 = vmatpush.bf16.msra.mxu0 %v660
  %892 = vmatpush.bf16.msra.mxu0 %v652
  %893 = vmatpush.bf16.msra.mxu0 %v644
  %894 = vmatpush.bf16.msra.mxu0 %v636
  %895 = vmatpush.bf16.msra.mxu0 %v628
  %896 = vmatmul.bf16.gmra.mxu0 %v175
  %v897 = vpop.f32.mrf.mxu0
  %v898 = vadd.f32 %v884, %v897
  %v899 = vpop.f32.mrf.mxu0
  %v900 = vadd.f32 %v886, %v899
  %901 = vdwg.mxu0
  %902 = vmatpush.bf16.msra.mxu0 %v621
  %903 = vmatpush.bf16.msra.mxu0 %v613
  %904 = vmatpush.bf16.msra.mxu0 %v605
  %905 = vmatpush.bf16.msra.mxu0 %v597
  %906 = vmatpush.bf16.msra.mxu0 %v589
  %907 = vmatpush.bf16.msra.mxu0 %v581
  %908 = vmatpush.bf16.msra.mxu0 %v573
  %909 = vmatpush.bf16.msra.mxu0 %v565
  %910 = vmatmul.bf16.gmra.mxu0 %v174
  %v911 = vpop.f32.mrf.mxu0
  %v912 = vadd.f32 %v155, %v911
  %v913 = vpop.f32.mrf.mxu0
  %v914 = vadd.f32 %v155, %v913
  %915 = vdwg.mxu0
  %916 = vmatpush.bf16.msra.mxu0 %v685
  %917 = vmatpush.bf16.msra.mxu0 %v677
  %918 = vmatpush.bf16.msra.mxu0 %v669
  %919 = vmatpush.bf16.msra.mxu0 %v661
  %920 = vmatpush.bf16.msra.mxu0 %v653
  %921 = vmatpush.bf16.msra.mxu0 %v645
  %922 = vmatpush.bf16.msra.mxu0 %v637
  %923 = vmatpush.bf16.msra.mxu0 %v629
  %924 = vmatmul.bf16.gmra.mxu0 %v175
  %v925 = vpop.f32.mrf.mxu0
  %v926 = vadd.f32 %v912, %v925
  %v927 = vpop.f32.mrf.mxu0
  %v928 = vadd.f32 %v914, %v927
  %929 = vdwg.mxu0
  %930 = vmatpush.bf16.msra.mxu0 %v622
  %931 = vmatpush.bf16.msra.mxu0 %v614
  %932 = vmatpush.bf16.msra.mxu0 %v606
  %933 = vmatpush.bf16.msra.mxu0 %v598
  %934 = vmatpush.bf16.msra.mxu0 %v590
  %935 = vmatpush.bf16.msra.mxu0 %v582
  %936 = vmatpush.bf16.msra.mxu0 %v574
  %937 = vmatpush.bf16.msra.mxu0 %v566
  %938 = vmatmul.bf16.gmra.mxu0 %v174
  %v939 = vpop.f32.mrf.mxu0
  %v940 = vadd.f32 %v156, %v939
  %v941 = vpop.f32.mrf.mxu0
  %v942 = vadd.f32 %v156, %v941
  %943 = vdwg.mxu0
  %944 = vmatpush.bf16.msra.mxu0 %v686
  %945 = vmatpush.bf16.msra.mxu0 %v678
  %946 = vmatpush.bf16.msra.mxu0 %v670
  %947 = vmatpush.bf16.msra.mxu0 %v662
  %948 = vmatpush.bf16.msra.mxu0 %v654
  %949 = vmatpush.bf16.msra.mxu0 %v646
  %950 = vmatpush.bf16.msra.mxu0 %v638
  %951 = vmatpush.bf16.msra.mxu0 %v630
  %952 = vmatmul.bf16.gmra.mxu0 %v175
  %v953 = vpop.f32.mrf.mxu0
  %v954 = vadd.f32 %v940, %v953
  %v955 = vpop.f32.mrf.mxu0
  %v956 = vadd.f32 %v942, %v955
  %957 = vdwg.mxu0
  %958 = vmatpush.bf16.msra.mxu0 %v623
  %959 = vmatpush.bf16.msra.mxu0 %v615
  %960 = vmatpush.bf16.msra.mxu0 %v607
  %961 = vmatpush.bf16.msra.mxu0 %v599
  %962 = vmatpush.bf16.msra.mxu0 %v591
  %963 = vmatpush.bf16.msra.mxu0 %v583
  %964 = vmatpush.bf16.msra.mxu0 %v575
  %965 = vmatpush.bf16.msra.mxu0 %v567
  %966 = vmatmul.bf16.gmra.mxu0 %v174
  %v967 = vpop.f32.mrf.mxu0
  %v968 = vadd.f32 %v157, %v967
  %v969 = vpop.f32.mrf.mxu0
  %v970 = vadd.f32 %v157, %v969
  %971 = vdwg.mxu0
  %972 = vmatpush.bf16.msra.mxu0 %v687
  %973 = vmatpush.bf16.msra.mxu0 %v679
  %974 = vmatpush.bf16.msra.mxu0 %v671
  %975 = vmatpush.bf16.msra.mxu0 %v663
  %976 = vmatpush.bf16.msra.mxu0 %v655
  %977 = vmatpush.bf16.msra.mxu0 %v647
  %978 = vmatpush.bf16.msra.mxu0 %v639
  %979 = vmatpush.bf16.msra.mxu0 %v631
  %980 = vmatmul.bf16.gmra.mxu0 %v175
  %v981 = vpop.f32.mrf.mxu0
  %v982 = vadd.f32 %v968, %v981
  %v983 = vpop.f32.mrf.mxu0
  %v984 = vadd.f32 %v970, %v983
  %985 = vdwg.mxu0
  %986 = vmatpush.bf16.msra.mxu0 %v624
  %987 = vmatpush.bf16.msra.mxu0 %v616
  %988 = vmatpush.bf16.msra.mxu0 %v608
  %989 = vmatpush.bf16.msra.mxu0 %v600
  %990 = vmatpush.bf16.msra.mxu0 %v592
  %991 = vmatpush.bf16.msra.mxu0 %v584
  %992 = vmatpush.bf16.msra.mxu0 %v576
  %993 = vmatpush.bf16.msra.mxu0 %v568
  %994 = vmatmul.bf16.gmra.mxu0 %v174
  %v995 = vpop.f32.mrf.mxu0
  %v996 = vadd.f32 %v158, %v995
  %v997 = vpop.f32.mrf.mxu0
  %v998 = vadd.f32 %v158, %v997
  %999 = vdwg.mxu0
  %1000 = vmatpush.bf16.msra.mxu0 %v688
  %1001 = vmatpush.bf16.msra.mxu0 %v680
  %1002 = vmatpush.bf16.msra.mxu0 %v672
  %1003 = vmatpush.bf16.msra.mxu0 %v664
  %1004 = vmatpush.bf16.msra.mxu0 %v656
  %1005 = vmatpush.bf16.msra.mxu0 %v648
  %1006 = vmatpush.bf16.msra.mxu0 %v640
  %1007 = vmatpush.bf16.msra.mxu0 %v632
  %1008 = vmatmul.bf16.gmra.mxu0 %v175
  %v1009 = vpop.f32.mrf.mxu0
  %v1010 = vadd.f32 %v996, %v1009
  %v1011 = vpop.f32.mrf.mxu0
  %v1012 = vadd.f32 %v998, %v1011
  %1013 = vdwg.mxu0
  %1014 = vmatpush.bf16.msra.mxu0 %v625
  %1015 = vmatpush.bf16.msra.mxu0 %v617
  %1016 = vmatpush.bf16.msra.mxu0 %v609
  %1017 = vmatpush.bf16.msra.mxu0 %v601
  %1018 = vmatpush.bf16.msra.mxu0 %v593
  %1019 = vmatpush.bf16.msra.mxu0 %v585
  %1020 = vmatpush.bf16.msra.mxu0 %v577
  %1021 = vmatpush.bf16.msra.mxu0 %v569
  %1022 = vmatmul.bf16.gmra.mxu0 %v174
  %v1023 = vpop.f32.mrf.mxu0
  %v1024 = vadd.f32 %v159, %v1023
  %v1025 = vpop.f32.mrf.mxu0
  %v1026 = vadd.f32 %v159, %v1025
  %1027 = vdwg.mxu0
  %1028 = vmatpush.bf16.msra.mxu0 %v689
  %1029 = vmatpush.bf16.msra.mxu0 %v681
  %1030 = vmatpush.bf16.msra.mxu0 %v673
  %1031 = vmatpush.bf16.msra.mxu0 %v665
  %1032 = vmatpush.bf16.msra.mxu0 %v657
  %1033 = vmatpush.bf16.msra.mxu0 %v649
  %1034 = vmatpush.bf16.msra.mxu0 %v641
  %1035 = vmatpush.bf16.msra.mxu0 %v633
  %1036 = vmatmul.bf16.gmra.mxu0 %v175
  %v1037 = vpop.f32.mrf.mxu0
  %v1038 = vadd.f32 %v1024, %v1037
  %v1039 = vpop.f32.mrf.mxu0
  %v1040 = vadd.f32 %v1026, %v1039
  %1041 = vdwg.mxu0
  %s1042 = smul.u32 0, 16
  %v1043 = vlaneseq
  %v1044 = vshrl.u32 %v1043, 7
  %v1045 = vadd.s32 %v1044, 8
  %v1046 = vstv %s1042
  %v1047 = vadd.s32 %v1046, %v1044
  %v1048 = vadd.s32 %v1046, %v1045
  %vm1049 = vcmp.lt.s32.totalorder %v1047, 8
  %vm1050 = vcmp.lt.s32.totalorder %v1048, 8
  %v1051 = vsel %vm1049, %v842, 0.0
  %v1052 = vsel %vm1049, %v870, 0.0
  %v1053 = vsel %vm1049, %v898, 0.0
  %v1054 = vsel %vm1049, %v926, 0.0
  %v1055 = vsel %vm1049, %v954, 0.0
  %v1056 = vsel %vm1049, %v982, 0.0
  %v1057 = vsel %vm1049, %v1010, 0.0
  %v1058 = vsel %vm1049, %v1038, 0.0
  %v1059 = vsel %vm1050, %v844, 0.0
  %v1060 = vsel %vm1050, %v872, 0.0
  %v1061 = vsel %vm1050, %v900, 0.0
  %v1062 = vsel %vm1050, %v928, 0.0
  %v1063 = vsel %vm1050, %v956, 0.0
  %v1064 = vsel %vm1050, %v984, 0.0
  %v1065 = vsel %vm1050, %v1012, 0.0
  %v1066 = vsel %vm1050, %v1040, 0.0
  %v1067 = vpack.c.bf16 %v1059, %v1051
  %v1068 = vpack.c.bf16 %v1060, %v1052
  %v1069 = vpack.c.bf16 %v1061, %v1053
  %v1070 = vpack.c.bf16 %v1062, %v1054
  %v1071 = vpack.c.bf16 %v1063, %v1055
  %v1072 = vpack.c.bf16 %v1064, %v1056
  %v1073 = vpack.c.bf16 %v1065, %v1057
  %v1074 = vpack.c.bf16 %v1066, %v1058
  %v1075 = vld [vmem:[%s3] sm:$0xff]
  %v1076 = vld [vmem:[%s3 + $0x8] sm:$0xff]
  %v1077 = vld [vmem:[%s3 + $0x10] sm:$0xff]
  %v1078 = vld [vmem:[%s3 + $0x18] sm:$0xff]
  %v1079 = vld [vmem:[%s3 + $0x20] sm:$0xff]
  %v1080 = vld [vmem:[%s3 + $0x28] sm:$0xff]
  %v1081 = vld [vmem:[%s3 + $0x30] sm:$0xff]
  %v1082 = vld [vmem:[%s3 + $0x38] sm:$0xff]
  %v1083 = vld [vmem:[%s3 + $0x40] sm:$0xff]
  %v1084 = vld [vmem:[%s3 + $0x48] sm:$0xff]
  %v1085 = vld [vmem:[%s3 + $0x50] sm:$0xff]
  %v1086 = vld [vmem:[%s3 + $0x58] sm:$0xff]
  %v1087 = vld [vmem:[%s3 + $0x60] sm:$0xff]
  %v1088 = vld [vmem:[%s3 + $0x68] sm:$0xff]
  %v1089 = vld [vmem:[%s3 + $0x70] sm:$0xff]
  %v1090 = vld [vmem:[%s3 + $0x78] sm:$0xff]
  %v1091 = vld [vmem:[%s3 + $0x80] sm:$0xff]
  %v1092 = vld [vmem:[%s3 + $0x88] sm:$0xff]
  %v1093 = vld [vmem:[%s3 + $0x90] sm:$0xff]
  %v1094 = vld [vmem:[%s3 + $0x98] sm:$0xff]
  %v1095 = vld [vmem:[%s3 + $0xa0] sm:$0xff]
  %v1096 = vld [vmem:[%s3 + $0xa8] sm:$0xff]
  %v1097 = vld [vmem:[%s3 + $0xb0] sm:$0xff]
  %v1098 = vld [vmem:[%s3 + $0xb8] sm:$0xff]
  %v1099 = vld [vmem:[%s3 + $0xc0] sm:$0xff]
  %v1100 = vld [vmem:[%s3 + $0xc8] sm:$0xff]
  %v1101 = vld [vmem:[%s3 + $0xd0] sm:$0xff]
  %v1102 = vld [vmem:[%s3 + $0xd8] sm:$0xff]
  %v1103 = vld [vmem:[%s3 + $0xe0] sm:$0xff]
  %v1104 = vld [vmem:[%s3 + $0xe8] sm:$0xff]
  %v1105 = vld [vmem:[%s3 + $0xf0] sm:$0xff]
  %v1106 = vld [vmem:[%s3 + $0xf8] sm:$0xff]
  %v1107 = vld [vmem:[%s3 + $0x100] sm:$0xff]
  %v1108 = vld [vmem:[%s3 + $0x108] sm:$0xff]
  %v1109 = vld [vmem:[%s3 + $0x110] sm:$0xff]
  %v1110 = vld [vmem:[%s3 + $0x118] sm:$0xff]
  %v1111 = vld [vmem:[%s3 + $0x120] sm:$0xff]
  %v1112 = vld [vmem:[%s3 + $0x128] sm:$0xff]
  %v1113 = vld [vmem:[%s3 + $0x130] sm:$0xff]
  %v1114 = vld [vmem:[%s3 + $0x138] sm:$0xff]
  %v1115 = vld [vmem:[%s3 + $0x140] sm:$0xff]
  %v1116 = vld [vmem:[%s3 + $0x148] sm:$0xff]
  %v1117 = vld [vmem:[%s3 + $0x150] sm:$0xff]
  %v1118 = vld [vmem:[%s3 + $0x158] sm:$0xff]
  %v1119 = vld [vmem:[%s3 + $0x160] sm:$0xff]
  %v1120 = vld [vmem:[%s3 + $0x168] sm:$0xff]
  %v1121 = vld [vmem:[%s3 + $0x170] sm:$0xff]
  %v1122 = vld [vmem:[%s3 + $0x178] sm:$0xff]
  %v1123 = vld [vmem:[%s3 + $0x180] sm:$0xff]
  %v1124 = vld [vmem:[%s3 + $0x188] sm:$0xff]
  %v1125 = vld [vmem:[%s3 + $0x190] sm:$0xff]
  %v1126 = vld [vmem:[%s3 + $0x198] sm:$0xff]
  %v1127 = vld [vmem:[%s3 + $0x1a0] sm:$0xff]
  %v1128 = vld [vmem:[%s3 + $0x1a8] sm:$0xff]
  %v1129 = vld [vmem:[%s3 + $0x1b0] sm:$0xff]
  %v1130 = vld [vmem:[%s3 + $0x1b8] sm:$0xff]
  %v1131 = vld [vmem:[%s3 + $0x1c0] sm:$0xff]
  %v1132 = vld [vmem:[%s3 + $0x1c8] sm:$0xff]
  %v1133 = vld [vmem:[%s3 + $0x1d0] sm:$0xff]
  %v1134 = vld [vmem:[%s3 + $0x1d8] sm:$0xff]
  %v1135 = vld [vmem:[%s3 + $0x1e0] sm:$0xff]
  %v1136 = vld [vmem:[%s3 + $0x1e8] sm:$0xff]
  %v1137 = vld [vmem:[%s3 + $0x1f0] sm:$0xff]
  %v1138 = vld [vmem:[%s3 + $0x1f8] sm:$0xff]
  %v1139 = vld [vmem:[%s3 + $0x200] sm:$0xff]
  %v1140 = vld [vmem:[%s3 + $0x208] sm:$0xff]
  %v1141 = vld [vmem:[%s3 + $0x210] sm:$0xff]
  %v1142 = vld [vmem:[%s3 + $0x218] sm:$0xff]
  %v1143 = vld [vmem:[%s3 + $0x220] sm:$0xff]
  %v1144 = vld [vmem:[%s3 + $0x228] sm:$0xff]
  %v1145 = vld [vmem:[%s3 + $0x230] sm:$0xff]
  %v1146 = vld [vmem:[%s3 + $0x238] sm:$0xff]
  %v1147 = vld [vmem:[%s3 + $0x240] sm:$0xff]
  %v1148 = vld [vmem:[%s3 + $0x248] sm:$0xff]
  %v1149 = vld [vmem:[%s3 + $0x250] sm:$0xff]
  %v1150 = vld [vmem:[%s3 + $0x258] sm:$0xff]
  %v1151 = vld [vmem:[%s3 + $0x260] sm:$0xff]
  %v1152 = vld [vmem:[%s3 + $0x268] sm:$0xff]
  %v1153 = vld [vmem:[%s3 + $0x270] sm:$0xff]
  %v1154 = vld [vmem:[%s3 + $0x278] sm:$0xff]
  %v1155 = vld [vmem:[%s3 + $0x280] sm:$0xff]
  %v1156 = vld [vmem:[%s3 + $0x288] sm:$0xff]
  %v1157 = vld [vmem:[%s3 + $0x290] sm:$0xff]
  %v1158 = vld [vmem:[%s3 + $0x298] sm:$0xff]
  %v1159 = vld [vmem:[%s3 + $0x2a0] sm:$0xff]
  %v1160 = vld [vmem:[%s3 + $0x2a8] sm:$0xff]
  %v1161 = vld [vmem:[%s3 + $0x2b0] sm:$0xff]
  %v1162 = vld [vmem:[%s3 + $0x2b8] sm:$0xff]
  %v1163 = vld [vmem:[%s3 + $0x2c0] sm:$0xff]
  %v1164 = vld [vmem:[%s3 + $0x2c8] sm:$0xff]
  %v1165 = vld [vmem:[%s3 + $0x2d0] sm:$0xff]
  %v1166 = vld [vmem:[%s3 + $0x2d8] sm:$0xff]
  %v1167 = vld [vmem:[%s3 + $0x2e0] sm:$0xff]
  %v1168 = vld [vmem:[%s3 + $0x2e8] sm:$0xff]
  %v1169 = vld [vmem:[%s3 + $0x2f0] sm:$0xff]
  %v1170 = vld [vmem:[%s3 + $0x2f8] sm:$0xff]
  %v1171 = vld [vmem:[%s3 + $0x300] sm:$0xff]
  %v1172 = vld [vmem:[%s3 + $0x308] sm:$0xff]
  %v1173 = vld [vmem:[%s3 + $0x310] sm:$0xff]
  %v1174 = vld [vmem:[%s3 + $0x318] sm:$0xff]
  %v1175 = vld [vmem:[%s3 + $0x320] sm:$0xff]
  %v1176 = vld [vmem:[%s3 + $0x328] sm:$0xff]
  %v1177 = vld [vmem:[%s3 + $0x330] sm:$0xff]
  %v1178 = vld [vmem:[%s3 + $0x338] sm:$0xff]
  %v1179 = vld [vmem:[%s3 + $0x340] sm:$0xff]
  %v1180 = vld [vmem:[%s3 + $0x348] sm:$0xff]
  %v1181 = vld [vmem:[%s3 + $0x350] sm:$0xff]
  %v1182 = vld [vmem:[%s3 + $0x358] sm:$0xff]
  %v1183 = vld [vmem:[%s3 + $0x360] sm:$0xff]
  %v1184 = vld [vmem:[%s3 + $0x368] sm:$0xff]
  %v1185 = vld [vmem:[%s3 + $0x370] sm:$0xff]
  %v1186 = vld [vmem:[%s3 + $0x378] sm:$0xff]
  %v1187 = vld [vmem:[%s3 + $0x380] sm:$0xff]
  %v1188 = vld [vmem:[%s3 + $0x388] sm:$0xff]
  %v1189 = vld [vmem:[%s3 + $0x390] sm:$0xff]
  %v1190 = vld [vmem:[%s3 + $0x398] sm:$0xff]
  %v1191 = vld [vmem:[%s3 + $0x3a0] sm:$0xff]
  %v1192 = vld [vmem:[%s3 + $0x3a8] sm:$0xff]
  %v1193 = vld [vmem:[%s3 + $0x3b0] sm:$0xff]
  %v1194 = vld [vmem:[%s3 + $0x3b8] sm:$0xff]
  %v1195 = vld [vmem:[%s3 + $0x3c0] sm:$0xff]
  %v1196 = vld [vmem:[%s3 + $0x3c8] sm:$0xff]
  %v1197 = vld [vmem:[%s3 + $0x3d0] sm:$0xff]
  %v1198 = vld [vmem:[%s3 + $0x3d8] sm:$0xff]
  %v1199 = vld [vmem:[%s3 + $0x3e0] sm:$0xff]
  %v1200 = vld [vmem:[%s3 + $0x3e8] sm:$0xff]
  %v1201 = vld [vmem:[%s3 + $0x3f0] sm:$0xff]
  %v1202 = vld [vmem:[%s3 + $0x3f8] sm:$0xff]
  %v1331 = vunpack.c.l.b16 %v1075
  %v1332 = vunpack.c.h.b16 %v1075
  %v1333 = vunpack.c.l.b16 %v1076
  %v1334 = vunpack.c.h.b16 %v1076
  %v1335 = vunpack.c.l.b16 %v1077
  %v1336 = vunpack.c.h.b16 %v1077
  %v1337 = vunpack.c.l.b16 %v1078
  %v1338 = vunpack.c.h.b16 %v1078
  %v1339 = vunpack.c.l.b16 %v1079
  %v1340 = vunpack.c.h.b16 %v1079
  %v1341 = vunpack.c.l.b16 %v1080
  %v1342 = vunpack.c.h.b16 %v1080
  %v1343 = vunpack.c.l.b16 %v1081
  %v1344 = vunpack.c.h.b16 %v1081
  %v1345 = vunpack.c.l.b16 %v1082
  %v1346 = vunpack.c.h.b16 %v1082
  %v1347 = vunpack.c.l.b16 %v1083
  %v1348 = vunpack.c.h.b16 %v1083
  %v1349 = vunpack.c.l.b16 %v1084
  %v1350 = vunpack.c.h.b16 %v1084
  %v1351 = vunpack.c.l.b16 %v1085
  %v1352 = vunpack.c.h.b16 %v1085
  %v1353 = vunpack.c.l.b16 %v1086
  %v1354 = vunpack.c.h.b16 %v1086
  %v1355 = vunpack.c.l.b16 %v1087
  %v1356 = vunpack.c.h.b16 %v1087
  %v1357 = vunpack.c.l.b16 %v1088
  %v1358 = vunpack.c.h.b16 %v1088
  %v1359 = vunpack.c.l.b16 %v1089
  %v1360 = vunpack.c.h.b16 %v1089
  %v1361 = vunpack.c.l.b16 %v1090
  %v1362 = vunpack.c.h.b16 %v1090
  %v1363 = vunpack.c.l.b16 %v1091
  %v1364 = vunpack.c.h.b16 %v1091
  %v1365 = vunpack.c.l.b16 %v1092
  %v1366 = vunpack.c.h.b16 %v1092
  %v1367 = vunpack.c.l.b16 %v1093
  %v1368 = vunpack.c.h.b16 %v1093
  %v1369 = vunpack.c.l.b16 %v1094
  %v1370 = vunpack.c.h.b16 %v1094
  %v1371 = vunpack.c.l.b16 %v1095
  %v1372 = vunpack.c.h.b16 %v1095
  %v1373 = vunpack.c.l.b16 %v1096
  %v1374 = vunpack.c.h.b16 %v1096
  %v1375 = vunpack.c.l.b16 %v1097
  %v1376 = vunpack.c.h.b16 %v1097
  %v1377 = vunpack.c.l.b16 %v1098
  %v1378 = vunpack.c.h.b16 %v1098
  %v1379 = vunpack.c.l.b16 %v1099
  %v1380 = vunpack.c.h.b16 %v1099
  %v1381 = vunpack.c.l.b16 %v1100
  %v1382 = vunpack.c.h.b16 %v1100
  %v1383 = vunpack.c.l.b16 %v1101
  %v1384 = vunpack.c.h.b16 %v1101
  %v1385 = vunpack.c.l.b16 %v1102
  %v1386 = vunpack.c.h.b16 %v1102
  %v1387 = vunpack.c.l.b16 %v1103
  %v1388 = vunpack.c.h.b16 %v1103
  %v1389 = vunpack.c.l.b16 %v1104
  %v1390 = vunpack.c.h.b16 %v1104
  %v1391 = vunpack.c.l.b16 %v1105
  %v1392 = vunpack.c.h.b16 %v1105
  %v1393 = vunpack.c.l.b16 %v1106
  %v1394 = vunpack.c.h.b16 %v1106
  %v1395 = vunpack.c.l.b16 %v1107
  %v1396 = vunpack.c.h.b16 %v1107
  %v1397 = vunpack.c.l.b16 %v1108
  %v1398 = vunpack.c.h.b16 %v1108
  %v1399 = vunpack.c.l.b16 %v1109
  %v1400 = vunpack.c.h.b16 %v1109
  %v1401 = vunpack.c.l.b16 %v1110
  %v1402 = vunpack.c.h.b16 %v1110
  %v1403 = vunpack.c.l.b16 %v1111
  %v1404 = vunpack.c.h.b16 %v1111
  %v1405 = vunpack.c.l.b16 %v1112
  %v1406 = vunpack.c.h.b16 %v1112
  %v1407 = vunpack.c.l.b16 %v1113
  %v1408 = vunpack.c.h.b16 %v1113
  %v1409 = vunpack.c.l.b16 %v1114
  %v1410 = vunpack.c.h.b16 %v1114
  %v1411 = vunpack.c.l.b16 %v1115
  %v1412 = vunpack.c.h.b16 %v1115
  %v1413 = vunpack.c.l.b16 %v1116
  %v1414 = vunpack.c.h.b16 %v1116
  %v1415 = vunpack.c.l.b16 %v1117
  %v1416 = vunpack.c.h.b16 %v1117
  %v1417 = vunpack.c.l.b16 %v1118
  %v1418 = vunpack.c.h.b16 %v1118
  %v1419 = vunpack.c.l.b16 %v1119
  %v1420 = vunpack.c.h.b16 %v1119
  %v1421 = vunpack.c.l.b16 %v1120
  %v1422 = vunpack.c.h.b16 %v1120
  %v1423 = vunpack.c.l.b16 %v1121
  %v1424 = vunpack.c.h.b16 %v1121
  %v1425 = vunpack.c.l.b16 %v1122
  %v1426 = vunpack.c.h.b16 %v1122
  %v1427 = vunpack.c.l.b16 %v1123
  %v1428 = vunpack.c.h.b16 %v1123
  %v1429 = vunpack.c.l.b16 %v1124
  %v1430 = vunpack.c.h.b16 %v1124
  %v1431 = vunpack.c.l.b16 %v1125
  %v1432 = vunpack.c.h.b16 %v1125
  %v1433 = vunpack.c.l.b16 %v1126
  %v1434 = vunpack.c.h.b16 %v1126
  %v1435 = vunpack.c.l.b16 %v1127
  %v1436 = vunpack.c.h.b16 %v1127
  %v1437 = vunpack.c.l.b16 %v1128
  %v1438 = vunpack.c.h.b16 %v1128
  %v1439 = vunpack.c.l.b16 %v1129
  %v1440 = vunpack.c.h.b16 %v1129
  %v1441 = vunpack.c.l.b16 %v1130
  %v1442 = vunpack.c.h.b16 %v1130
  %v1443 = vunpack.c.l.b16 %v1131
  %v1444 = vunpack.c.h.b16 %v1131
  %v1445 = vunpack.c.l.b16 %v1132
  %v1446 = vunpack.c.h.b16 %v1132
  %v1447 = vunpack.c.l.b16 %v1133
  %v1448 = vunpack.c.h.b16 %v1133
  %v1449 = vunpack.c.l.b16 %v1134
  %v1450 = vunpack.c.h.b16 %v1134
  %v1451 = vunpack.c.l.b16 %v1135
  %v1452 = vunpack.c.h.b16 %v1135
  %v1453 = vunpack.c.l.b16 %v1136
  %v1454 = vunpack.c.h.b16 %v1136
  %v1455 = vunpack.c.l.b16 %v1137
  %v1456 = vunpack.c.h.b16 %v1137
  %v1457 = vunpack.c.l.b16 %v1138
  %v1458 = vunpack.c.h.b16 %v1138
  %v1459 = vunpack.c.l.b16 %v1139
  %v1460 = vunpack.c.h.b16 %v1139
  %v1461 = vunpack.c.l.b16 %v1140
  %v1462 = vunpack.c.h.b16 %v1140
  %v1463 = vunpack.c.l.b16 %v1141
  %v1464 = vunpack.c.h.b16 %v1141
  %v1465 = vunpack.c.l.b16 %v1142
  %v1466 = vunpack.c.h.b16 %v1142
  %v1467 = vunpack.c.l.b16 %v1143
  %v1468 = vunpack.c.h.b16 %v1143
  %v1469 = vunpack.c.l.b16 %v1144
  %v1470 = vunpack.c.h.b16 %v1144
  %v1471 = vunpack.c.l.b16 %v1145
  %v1472 = vunpack.c.h.b16 %v1145
  %v1473 = vunpack.c.l.b16 %v1146
  %v1474 = vunpack.c.h.b16 %v1146
  %v1475 = vunpack.c.l.b16 %v1147
  %v1476 = vunpack.c.h.b16 %v1147
  %v1477 = vunpack.c.l.b16 %v1148
  %v1478 = vunpack.c.h.b16 %v1148
  %v1479 = vunpack.c.l.b16 %v1149
  %v1480 = vunpack.c.h.b16 %v1149
  %v1481 = vunpack.c.l.b16 %v1150
  %v1482 = vunpack.c.h.b16 %v1150
  %v1483 = vunpack.c.l.b16 %v1151
  %v1484 = vunpack.c.h.b16 %v1151
  %v1485 = vunpack.c.l.b16 %v1152
  %v1486 = vunpack.c.h.b16 %v1152
  %v1487 = vunpack.c.l.b16 %v1153
  %v1488 = vunpack.c.h.b16 %v1153
  %v1489 = vunpack.c.l.b16 %v1154
  %v1490 = vunpack.c.h.b16 %v1154
  %v1491 = vunpack.c.l.b16 %v1155
  %v1492 = vunpack.c.h.b16 %v1155
  %v1493 = vunpack.c.l.b16 %v1156
  %v1494 = vunpack.c.h.b16 %v1156
  %v1495 = vunpack.c.l.b16 %v1157
  %v1496 = vunpack.c.h.b16 %v1157
  %v1497 = vunpack.c.l.b16 %v1158
  %v1498 = vunpack.c.h.b16 %v1158
  %v1499 = vunpack.c.l.b16 %v1159
  %v1500 = vunpack.c.h.b16 %v1159
  %v1501 = vunpack.c.l.b16 %v1160
  %v1502 = vunpack.c.h.b16 %v1160
  %v1503 = vunpack.c.l.b16 %v1161
  %v1504 = vunpack.c.h.b16 %v1161
  %v1505 = vunpack.c.l.b16 %v1162
  %v1506 = vunpack.c.h.b16 %v1162
  %v1507 = vunpack.c.l.b16 %v1163
  %v1508 = vunpack.c.h.b16 %v1163
  %v1509 = vunpack.c.l.b16 %v1164
  %v1510 = vunpack.c.h.b16 %v1164
  %v1511 = vunpack.c.l.b16 %v1165
  %v1512 = vunpack.c.h.b16 %v1165
  %v1513 = vunpack.c.l.b16 %v1166
  %v1514 = vunpack.c.h.b16 %v1166
  %v1515 = vunpack.c.l.b16 %v1167
  %v1516 = vunpack.c.h.b16 %v1167
  %v1517 = vunpack.c.l.b16 %v1168
  %v1518 = vunpack.c.h.b16 %v1168
  %v1519 = vunpack.c.l.b16 %v1169
  %v1520 = vunpack.c.h.b16 %v1169
  %v1521 = vunpack.c.l.b16 %v1170
  %v1522 = vunpack.c.h.b16 %v1170
  %v1523 = vunpack.c.l.b16 %v1171
  %v1524 = vunpack.c.h.b16 %v1171
  %v1525 = vunpack.c.l.b16 %v1172
  %v1526 = vunpack.c.h.b16 %v1172
  %v1527 = vunpack.c.l.b16 %v1173
  %v1528 = vunpack.c.h.b16 %v1173
  %v1529 = vunpack.c.l.b16 %v1174
  %v1530 = vunpack.c.h.b16 %v1174
  %v1531 = vunpack.c.l.b16 %v1175
  %v1532 = vunpack.c.h.b16 %v1175
  %v1533 = vunpack.c.l.b16 %v1176
  %v1534 = vunpack.c.h.b16 %v1176
  %v1535 = vunpack.c.l.b16 %v1177
  %v1536 = vunpack.c.h.b16 %v1177
  %v1537 = vunpack.c.l.b16 %v1178
  %v1538 = vunpack.c.h.b16 %v1178
  %v1539 = vunpack.c.l.b16 %v1179
  %v1540 = vunpack.c.h.b16 %v1179
  %v1541 = vunpack.c.l.b16 %v1180
  %v1542 = vunpack.c.h.b16 %v1180
  %v1543 = vunpack.c.l.b16 %v1181
  %v1544 = vunpack.c.h.b16 %v1181
  %v1545 = vunpack.c.l.b16 %v1182
  %v1546 = vunpack.c.h.b16 %v1182
  %v1547 = vunpack.c.l.b16 %v1183
  %v1548 = vunpack.c.h.b16 %v1183
  %v1549 = vunpack.c.l.b16 %v1184
  %v1550 = vunpack.c.h.b16 %v1184
  %v1551 = vunpack.c.l.b16 %v1185
  %v1552 = vunpack.c.h.b16 %v1185
  %v1553 = vunpack.c.l.b16 %v1186
  %v1554 = vunpack.c.h.b16 %v1186
  %v1555 = vunpack.c.l.b16 %v1187
  %v1556 = vunpack.c.h.b16 %v1187
  %v1557 = vunpack.c.l.b16 %v1188
  %v1558 = vunpack.c.h.b16 %v1188
  %v1559 = vunpack.c.l.b16 %v1189
  %v1560 = vunpack.c.h.b16 %v1189
  %v1561 = vunpack.c.l.b16 %v1190
  %v1562 = vunpack.c.h.b16 %v1190
  %v1563 = vunpack.c.l.b16 %v1191
  %v1564 = vunpack.c.h.b16 %v1191
  %v1565 = vunpack.c.l.b16 %v1192
  %v1566 = vunpack.c.h.b16 %v1192
  %v1567 = vunpack.c.l.b16 %v1193
  %v1568 = vunpack.c.h.b16 %v1193
  %v1569 = vunpack.c.l.b16 %v1194
  %v1570 = vunpack.c.h.b16 %v1194
  %v1571 = vunpack.c.l.b16 %v1195
  %v1572 = vunpack.c.h.b16 %v1195
  %v1573 = vunpack.c.l.b16 %v1196
  %v1574 = vunpack.c.h.b16 %v1196
  %v1575 = vunpack.c.l.b16 %v1197
  %v1576 = vunpack.c.h.b16 %v1197
  %v1577 = vunpack.c.l.b16 %v1198
  %v1578 = vunpack.c.h.b16 %v1198
  %v1579 = vunpack.c.l.b16 %v1199
  %v1580 = vunpack.c.h.b16 %v1199
  %v1581 = vunpack.c.l.b16 %v1200
  %v1582 = vunpack.c.h.b16 %v1200
  %v1583 = vunpack.c.l.b16 %v1201
  %v1584 = vunpack.c.h.b16 %v1201
  %v1585 = vunpack.c.l.b16 %v1202
  %v1586 = vunpack.c.h.b16 %v1202
  %v1587 = vpack.c.b16 %v1333, %v1331
  %v1588 = vpack.c.b16 %v1334, %v1332
  %v1589 = vpack.c.b16 %v1337, %v1335
  %v1590 = vpack.c.b16 %v1338, %v1336
  %v1591 = vpack.c.b16 %v1341, %v1339
  %v1592 = vpack.c.b16 %v1342, %v1340
  %v1593 = vpack.c.b16 %v1345, %v1343
  %v1594 = vpack.c.b16 %v1346, %v1344
  %v1595 = vpack.c.b16 %v1349, %v1347
  %v1596 = vpack.c.b16 %v1350, %v1348
  %v1597 = vpack.c.b16 %v1353, %v1351
  %v1598 = vpack.c.b16 %v1354, %v1352
  %v1599 = vpack.c.b16 %v1357, %v1355
  %v1600 = vpack.c.b16 %v1358, %v1356
  %v1601 = vpack.c.b16 %v1361, %v1359
  %v1602 = vpack.c.b16 %v1362, %v1360
  %v1603 = vpack.c.b16 %v1365, %v1363
  %v1604 = vpack.c.b16 %v1366, %v1364
  %v1605 = vpack.c.b16 %v1369, %v1367
  %v1606 = vpack.c.b16 %v1370, %v1368
  %v1607 = vpack.c.b16 %v1373, %v1371
  %v1608 = vpack.c.b16 %v1374, %v1372
  %v1609 = vpack.c.b16 %v1377, %v1375
  %v1610 = vpack.c.b16 %v1378, %v1376
  %v1611 = vpack.c.b16 %v1381, %v1379
  %v1612 = vpack.c.b16 %v1382, %v1380
  %v1613 = vpack.c.b16 %v1385, %v1383
  %v1614 = vpack.c.b16 %v1386, %v1384
  %v1615 = vpack.c.b16 %v1389, %v1387
  %v1616 = vpack.c.b16 %v1390, %v1388
  %v1617 = vpack.c.b16 %v1393, %v1391
  %v1618 = vpack.c.b16 %v1394, %v1392
  %v1619 = vpack.c.b16 %v1397, %v1395
  %v1620 = vpack.c.b16 %v1398, %v1396
  %v1621 = vpack.c.b16 %v1401, %v1399
  %v1622 = vpack.c.b16 %v1402, %v1400
  %v1623 = vpack.c.b16 %v1405, %v1403
  %v1624 = vpack.c.b16 %v1406, %v1404
  %v1625 = vpack.c.b16 %v1409, %v1407
  %v1626 = vpack.c.b16 %v1410, %v1408
  %v1627 = vpack.c.b16 %v1413, %v1411
  %v1628 = vpack.c.b16 %v1414, %v1412
  %v1629 = vpack.c.b16 %v1417, %v1415
  %v1630 = vpack.c.b16 %v1418, %v1416
  %v1631 = vpack.c.b16 %v1421, %v1419
  %v1632 = vpack.c.b16 %v1422, %v1420
  %v1633 = vpack.c.b16 %v1425, %v1423
  %v1634 = vpack.c.b16 %v1426, %v1424
  %v1635 = vpack.c.b16 %v1429, %v1427
  %v1636 = vpack.c.b16 %v1430, %v1428
  %v1637 = vpack.c.b16 %v1433, %v1431
  %v1638 = vpack.c.b16 %v1434, %v1432
  %v1639 = vpack.c.b16 %v1437, %v1435
  %v1640 = vpack.c.b16 %v1438, %v1436
  %v1641 = vpack.c.b16 %v1441, %v1439
  %v1642 = vpack.c.b16 %v1442, %v1440
  %v1643 = vpack.c.b16 %v1445, %v1443
  %v1644 = vpack.c.b16 %v1446, %v1444
  %v1645 = vpack.c.b16 %v1449, %v1447
  %v1646 = vpack.c.b16 %v1450, %v1448
  %v1647 = vpack.c.b16 %v1453, %v1451
  %v1648 = vpack.c.b16 %v1454, %v1452
  %v1649 = vpack.c.b16 %v1457, %v1455
  %v1650 = vpack.c.b16 %v1458, %v1456
  %v1651 = vpack.c.b16 %v1461, %v1459
  %v1652 = vpack.c.b16 %v1462, %v1460
  %v1653 = vpack.c.b16 %v1465, %v1463
  %v1654 = vpack.c.b16 %v1466, %v1464
  %v1655 = vpack.c.b16 %v1469, %v1467
  %v1656 = vpack.c.b16 %v1470, %v1468
  %v1657 = vpack.c.b16 %v1473, %v1471
  %v1658 = vpack.c.b16 %v1474, %v1472
  %v1659 = vpack.c.b16 %v1477, %v1475
  %v1660 = vpack.c.b16 %v1478, %v1476
  %v1661 = vpack.c.b16 %v1481, %v1479
  %v1662 = vpack.c.b16 %v1482, %v1480
  %v1663 = vpack.c.b16 %v1485, %v1483
  %v1664 = vpack.c.b16 %v1486, %v1484
  %v1665 = vpack.c.b16 %v1489, %v1487
  %v1666 = vpack.c.b16 %v1490, %v1488
  %v1667 = vpack.c.b16 %v1493, %v1491
  %v1668 = vpack.c.b16 %v1494, %v1492
  %v1669 = vpack.c.b16 %v1497, %v1495
  %v1670 = vpack.c.b16 %v1498, %v1496
  %v1671 = vpack.c.b16 %v1501, %v1499
  %v1672 = vpack.c.b16 %v1502, %v1500
  %v1673 = vpack.c.b16 %v1505, %v1503
  %v1674 = vpack.c.b16 %v1506, %v1504
  %v1675 = vpack.c.b16 %v1509, %v1507
  %v1676 = vpack.c.b16 %v1510, %v1508
  %v1677 = vpack.c.b16 %v1513, %v1511
  %v1678 = vpack.c.b16 %v1514, %v1512
  %v1679 = vpack.c.b16 %v1517, %v1515
  %v1680 = vpack.c.b16 %v1518, %v1516
  %v1681 = vpack.c.b16 %v1521, %v1519
  %v1682 = vpack.c.b16 %v1522, %v1520
  %v1683 = vpack.c.b16 %v1525, %v1523
  %v1684 = vpack.c.b16 %v1526, %v1524
  %v1685 = vpack.c.b16 %v1529, %v1527
  %v1686 = vpack.c.b16 %v1530, %v1528
  %v1687 = vpack.c.b16 %v1533, %v1531
  %v1688 = vpack.c.b16 %v1534, %v1532
  %v1689 = vpack.c.b16 %v1537, %v1535
  %v1690 = vpack.c.b16 %v1538, %v1536
  %v1691 = vpack.c.b16 %v1541, %v1539
  %v1692 = vpack.c.b16 %v1542, %v1540
  %v1693 = vpack.c.b16 %v1545, %v1543
  %v1694 = vpack.c.b16 %v1546, %v1544
  %v1695 = vpack.c.b16 %v1549, %v1547
  %v1696 = vpack.c.b16 %v1550, %v1548
  %v1697 = vpack.c.b16 %v1553, %v1551
  %v1698 = vpack.c.b16 %v1554, %v1552
  %v1699 = vpack.c.b16 %v1557, %v1555
  %v1700 = vpack.c.b16 %v1558, %v1556
  %v1701 = vpack.c.b16 %v1561, %v1559
  %v1702 = vpack.c.b16 %v1562, %v1560
  %v1703 = vpack.c.b16 %v1565, %v1563
  %v1704 = vpack.c.b16 %v1566, %v1564
  %v1705 = vpack.c.b16 %v1569, %v1567
  %v1706 = vpack.c.b16 %v1570, %v1568
  %v1707 = vpack.c.b16 %v1573, %v1571
  %v1708 = vpack.c.b16 %v1574, %v1572
  %v1709 = vpack.c.b16 %v1577, %v1575
  %v1710 = vpack.c.b16 %v1578, %v1576
  %v1711 = vpack.c.b16 %v1581, %v1579
  %v1712 = vpack.c.b16 %v1582, %v1580
  %v1713 = vpack.c.b16 %v1585, %v1583
  %v1714 = vpack.c.b16 %v1586, %v1584
  %1843 = vmatpush.bf16.msra.mxu0 %v1601
  %1844 = vmatpush.bf16.msra.mxu0 %v1599
  %1845 = vmatpush.bf16.msra.mxu0 %v1597
  %1846 = vmatpush.bf16.msra.mxu0 %v1595
  %1847 = vmatpush.bf16.msra.mxu0 %v1593
  %1848 = vmatpush.bf16.msra.mxu0 %v1591
  %1849 = vmatpush.bf16.msra.mxu0 %v1589
  %1850 = vmatpush.bf16.msra.mxu0 %v1587
  %1851 = vmatmul.bf16.gmra.mxu0 %v1067
  %v1852 = vpop.f32.mrf.mxu0
  %v1853 = vadd.f32 0.0, %v1852
  %v1854 = vpop.f32.mrf.mxu0
  %v1855 = vadd.f32 0.0, %v1854
  %1856 = vdwg.mxu0
  %1857 = vmatpush.bf16.msra.mxu0 %v1617
  %1858 = vmatpush.bf16.msra.mxu0 %v1615
  %1859 = vmatpush.bf16.msra.mxu0 %v1613
  %1860 = vmatpush.bf16.msra.mxu0 %v1611
  %1861 = vmatpush.bf16.msra.mxu0 %v1609
  %1862 = vmatpush.bf16.msra.mxu0 %v1607
  %1863 = vmatpush.bf16.msra.mxu0 %v1605
  %1864 = vmatpush.bf16.msra.mxu0 %v1603
  %1865 = vmatmul.bf16.gmra.mxu0 %v1068
  %v1866 = vpop.f32.mrf.mxu0
  %v1867 = vadd.f32 %v1853, %v1866
  %v1868 = vpop.f32.mrf.mxu0
  %v1869 = vadd.f32 %v1855, %v1868
  %1870 = vdwg.mxu0
  %1871 = vmatpush.bf16.msra.mxu0 %v1633
  %1872 = vmatpush.bf16.msra.mxu0 %v1631
  %1873 = vmatpush.bf16.msra.mxu0 %v1629
  %1874 = vmatpush.bf16.msra.mxu0 %v1627
  %1875 = vmatpush.bf16.msra.mxu0 %v1625
  %1876 = vmatpush.bf16.msra.mxu0 %v1623
  %1877 = vmatpush.bf16.msra.mxu0 %v1621
  %1878 = vmatpush.bf16.msra.mxu0 %v1619
  %1879 = vmatmul.bf16.gmra.mxu0 %v1069
  %v1880 = vpop.f32.mrf.mxu0
  %v1881 = vadd.f32 %v1867, %v1880
  %v1882 = vpop.f32.mrf.mxu0
  %v1883 = vadd.f32 %v1869, %v1882
  %1884 = vdwg.mxu0
  %1885 = vmatpush.bf16.msra.mxu0 %v1649
  %1886 = vmatpush.bf16.msra.mxu0 %v1647
  %1887 = vmatpush.bf16.msra.mxu0 %v1645
  %1888 = vmatpush.bf16.msra.mxu0 %v1643
  %1889 = vmatpush.bf16.msra.mxu0 %v1641
  %1890 = vmatpush.bf16.msra.mxu0 %v1639
  %1891 = vmatpush.bf16.msra.mxu0 %v1637
  %1892 = vmatpush.bf16.msra.mxu0 %v1635
  %1893 = vmatmul.bf16.gmra.mxu0 %v1070
  %v1894 = vpop.f32.mrf.mxu0
  %v1895 = vadd.f32 %v1881, %v1894
  %v1896 = vpop.f32.mrf.mxu0
  %v1897 = vadd.f32 %v1883, %v1896
  %1898 = vdwg.mxu0
  %1899 = vmatpush.bf16.msra.mxu0 %v1665
  %1900 = vmatpush.bf16.msra.mxu0 %v1663
  %1901 = vmatpush.bf16.msra.mxu0 %v1661
  %1902 = vmatpush.bf16.msra.mxu0 %v1659
  %1903 = vmatpush.bf16.msra.mxu0 %v1657
  %1904 = vmatpush.bf16.msra.mxu0 %v1655
  %1905 = vmatpush.bf16.msra.mxu0 %v1653
  %1906 = vmatpush.bf16.msra.mxu0 %v1651
  %1907 = vmatmul.bf16.gmra.mxu0 %v1071
  %v1908 = vpop.f32.mrf.mxu0
  %v1909 = vadd.f32 %v1895, %v1908
  %v1910 = vpop.f32.mrf.mxu0
  %v1911 = vadd.f32 %v1897, %v1910
  %1912 = vdwg.mxu0
  %1913 = vmatpush.bf16.msra.mxu0 %v1681
  %1914 = vmatpush.bf16.msra.mxu0 %v1679
  %1915 = vmatpush.bf16.msra.mxu0 %v1677
  %1916 = vmatpush.bf16.msra.mxu0 %v1675
  %1917 = vmatpush.bf16.msra.mxu0 %v1673
  %1918 = vmatpush.bf16.msra.mxu0 %v1671
  %1919 = vmatpush.bf16.msra.mxu0 %v1669
  %1920 = vmatpush.bf16.msra.mxu0 %v1667
  %1921 = vmatmul.bf16.gmra.mxu0 %v1072
  %v1922 = vpop.f32.mrf.mxu0
  %v1923 = vadd.f32 %v1909, %v1922
  %v1924 = vpop.f32.mrf.mxu0
  %v1925 = vadd.f32 %v1911, %v1924
  %1926 = vdwg.mxu0
  %1927 = vmatpush.bf16.msra.mxu0 %v1697
  %1928 = vmatpush.bf16.msra.mxu0 %v1695
  %1929 = vmatpush.bf16.msra.mxu0 %v1693
  %1930 = vmatpush.bf16.msra.mxu0 %v1691
  %1931 = vmatpush.bf16.msra.mxu0 %v1689
  %1932 = vmatpush.bf16.msra.mxu0 %v1687
  %1933 = vmatpush.bf16.msra.mxu0 %v1685
  %1934 = vmatpush.bf16.msra.mxu0 %v1683
  %1935 = vmatmul.bf16.gmra.mxu0 %v1073
  %v1936 = vpop.f32.mrf.mxu0
  %v1937 = vadd.f32 %v1923, %v1936
  %v1938 = vpop.f32.mrf.mxu0
  %v1939 = vadd.f32 %v1925, %v1938
  %1940 = vdwg.mxu0
  %1941 = vmatpush.bf16.msra.mxu0 %v1713
  %1942 = vmatpush.bf16.msra.mxu0 %v1711
  %1943 = vmatpush.bf16.msra.mxu0 %v1709
  %1944 = vmatpush.bf16.msra.mxu0 %v1707
  %1945 = vmatpush.bf16.msra.mxu0 %v1705
  %1946 = vmatpush.bf16.msra.mxu0 %v1703
  %1947 = vmatpush.bf16.msra.mxu0 %v1701
  %1948 = vmatpush.bf16.msra.mxu0 %v1699
  %1949 = vmatmul.bf16.gmra.mxu0 %v1074
  %v1950 = vpop.f32.mrf.mxu0
  %v1951 = vadd.f32 %v1937, %v1950
  %v1952 = vpop.f32.mrf.mxu0
  %v1953 = vadd.f32 %v1939, %v1952
  %1954 = vdwg.mxu0
  %1955 = vmatpush.bf16.msra.mxu0 %v1602
  %1956 = vmatpush.bf16.msra.mxu0 %v1600
  %1957 = vmatpush.bf16.msra.mxu0 %v1598
  %1958 = vmatpush.bf16.msra.mxu0 %v1596
  %1959 = vmatpush.bf16.msra.mxu0 %v1594
  %1960 = vmatpush.bf16.msra.mxu0 %v1592
  %1961 = vmatpush.bf16.msra.mxu0 %v1590
  %1962 = vmatpush.bf16.msra.mxu0 %v1588
  %1963 = vmatmul.bf16.gmra.mxu0 %v1067
  %v1964 = vpop.f32.mrf.mxu0
  %v1965 = vadd.f32 0.0, %v1964
  %v1966 = vpop.f32.mrf.mxu0
  %v1967 = vadd.f32 0.0, %v1966
  %1968 = vdwg.mxu0
  %1969 = vmatpush.bf16.msra.mxu0 %v1618
  %1970 = vmatpush.bf16.msra.mxu0 %v1616
  %1971 = vmatpush.bf16.msra.mxu0 %v1614
  %1972 = vmatpush.bf16.msra.mxu0 %v1612
  %1973 = vmatpush.bf16.msra.mxu0 %v1610
  %1974 = vmatpush.bf16.msra.mxu0 %v1608
  %1975 = vmatpush.bf16.msra.mxu0 %v1606
  %1976 = vmatpush.bf16.msra.mxu0 %v1604
  %1977 = vmatmul.bf16.gmra.mxu0 %v1068
  %v1978 = vpop.f32.mrf.mxu0
  %v1979 = vadd.f32 %v1965, %v1978
  %v1980 = vpop.f32.mrf.mxu0
  %v1981 = vadd.f32 %v1967, %v1980
  %1982 = vdwg.mxu0
  %1983 = vmatpush.bf16.msra.mxu0 %v1634
  %1984 = vmatpush.bf16.msra.mxu0 %v1632
  %1985 = vmatpush.bf16.msra.mxu0 %v1630
  %1986 = vmatpush.bf16.msra.mxu0 %v1628
  %1987 = vmatpush.bf16.msra.mxu0 %v1626
  %1988 = vmatpush.bf16.msra.mxu0 %v1624
  %1989 = vmatpush.bf16.msra.mxu0 %v1622
  %1990 = vmatpush.bf16.msra.mxu0 %v1620
  %1991 = vmatmul.bf16.gmra.mxu0 %v1069
  %v1992 = vpop.f32.mrf.mxu0
  %v1993 = vadd.f32 %v1979, %v1992
  %v1994 = vpop.f32.mrf.mxu0
  %v1995 = vadd.f32 %v1981, %v1994
  %1996 = vdwg.mxu0
  %1997 = vmatpush.bf16.msra.mxu0 %v1650
  %1998 = vmatpush.bf16.msra.mxu0 %v1648
  %1999 = vmatpush.bf16.msra.mxu0 %v1646
  %2000 = vmatpush.bf16.msra.mxu0 %v1644
  %2001 = vmatpush.bf16.msra.mxu0 %v1642
  %2002 = vmatpush.bf16.msra.mxu0 %v1640
  %2003 = vmatpush.bf16.msra.mxu0 %v1638
  %2004 = vmatpush.bf16.msra.mxu0 %v1636
  %2005 = vmatmul.bf16.gmra.mxu0 %v1070
  %v2006 = vpop.f32.mrf.mxu0
  %v2007 = vadd.f32 %v1993, %v2006
  %v2008 = vpop.f32.mrf.mxu0
  %v2009 = vadd.f32 %v1995, %v2008
  %2010 = vdwg.mxu0
  %2011 = vmatpush.bf16.msra.mxu0 %v1666
  %2012 = vmatpush.bf16.msra.mxu0 %v1664
  %2013 = vmatpush.bf16.msra.mxu0 %v1662
  %2014 = vmatpush.bf16.msra.mxu0 %v1660
  %2015 = vmatpush.bf16.msra.mxu0 %v1658
  %2016 = vmatpush.bf16.msra.mxu0 %v1656
  %2017 = vmatpush.bf16.msra.mxu0 %v1654
  %2018 = vmatpush.bf16.msra.mxu0 %v1652
  %2019 = vmatmul.bf16.gmra.mxu0 %v1071
  %v2020 = vpop.f32.mrf.mxu0
  %v2021 = vadd.f32 %v2007, %v2020
  %v2022 = vpop.f32.mrf.mxu0
  %v2023 = vadd.f32 %v2009, %v2022
  %2024 = vdwg.mxu0
  %2025 = vmatpush.bf16.msra.mxu0 %v1682
  %2026 = vmatpush.bf16.msra.mxu0 %v1680
  %2027 = vmatpush.bf16.msra.mxu0 %v1678
  %2028 = vmatpush.bf16.msra.mxu0 %v1676
  %2029 = vmatpush.bf16.msra.mxu0 %v1674
  %2030 = vmatpush.bf16.msra.mxu0 %v1672
  %2031 = vmatpush.bf16.msra.mxu0 %v1670
  %2032 = vmatpush.bf16.msra.mxu0 %v1668
  %2033 = vmatmul.bf16.gmra.mxu0 %v1072
  %v2034 = vpop.f32.mrf.mxu0
  %v2035 = vadd.f32 %v2021, %v2034
  %v2036 = vpop.f32.mrf.mxu0
  %v2037 = vadd.f32 %v2023, %v2036
  %2038 = vdwg.mxu0
  %2039 = vmatpush.bf16.msra.mxu0 %v1698
  %2040 = vmatpush.bf16.msra.mxu0 %v1696
  %2041 = vmatpush.bf16.msra.mxu0 %v1694
  %2042 = vmatpush.bf16.msra.mxu0 %v1692
  %2043 = vmatpush.bf16.msra.mxu0 %v1690
  %2044 = vmatpush.bf16.msra.mxu0 %v1688
  %2045 = vmatpush.bf16.msra.mxu0 %v1686
  %2046 = vmatpush.bf16.msra.mxu0 %v1684
  %2047 = vmatmul.bf16.gmra.mxu0 %v1073
  %v2048 = vpop.f32.mrf.mxu0
  %v2049 = vadd.f32 %v2035, %v2048
  %v2050 = vpop.f32.mrf.mxu0
  %v2051 = vadd.f32 %v2037, %v2050
  %2052 = vdwg.mxu0
  %2053 = vmatpush.bf16.msra.mxu0 %v1714
  %2054 = vmatpush.bf16.msra.mxu0 %v1712
  %2055 = vmatpush.bf16.msra.mxu0 %v1710
  %2056 = vmatpush.bf16.msra.mxu0 %v1708
  %2057 = vmatpush.bf16.msra.mxu0 %v1706
  %2058 = vmatpush.bf16.msra.mxu0 %v1704
  %2059 = vmatpush.bf16.msra.mxu0 %v1702
  %2060 = vmatpush.bf16.msra.mxu0 %v1700
  %2061 = vmatmul.bf16.gmra.mxu0 %v1074
  %v2062 = vpop.f32.mrf.mxu0
  %v2063 = vadd.f32 %v2049, %v2062
  %v2064 = vpop.f32.mrf.mxu0
  %v2065 = vadd.f32 %v2051, %v2064
  %2066 = vdwg.mxu0
  %v2067 = vpack.c.bf16 %v2063, %v1951
  %v2068 = vpack.c.bf16 %v2065, %v1953
  %2069 = vst [vmem:[%s4] sm:$0xff] %v2067
  %2070 = vst [vmem:[%s4 + $0x8] sm:$0xff] %v2068
  %v2071 = vadd.f32 %v1951, %v1953
  %v2072 = vrot.slane %v2071, 4
  %v2073 = vadd.f32 %v2071, %v2072
  %v2074 = vrot.slane %v2073, 2
  %v2075 = vadd.f32 %v2073, %v2074
  %v2076 = vrot.slane %v2075, 1
  %v2077 = vadd.f32 %v2075, %v2076
  %v2078 = vadd.f32 %v2063, %v2065
  %v2079 = vrot.slane %v2078, 4
  %v2080 = vadd.f32 %v2078, %v2079
  %v2081 = vrot.slane %v2080, 2
  %v2082 = vadd.f32 %v2080, %v2081
  %v2083 = vrot.slane %v2082, 1
  %v2084 = vadd.f32 %v2082, %v2083
  %2085 = vst [vmem:[%s5] sm:$0xff] %v2077
  %2086 = vst [vmem:[%s5 + $0x8] sm:$0xff] %v2084
  %v2087 = vmul.f32 %v1951, %v1951
  %v2088 = vmul.f32 %v2063, %v2063
  %v2089 = vmul.f32 %v1953, %v1953
  %v2090 = vmul.f32 %v2065, %v2065
  %v2091 = vadd.f32 %v2087, %v2089
  %v2092 = vrot.slane %v2091, 4
  %v2093 = vadd.f32 %v2091, %v2092
  %v2094 = vrot.slane %v2093, 2
  %v2095 = vadd.f32 %v2093, %v2094
  %v2096 = vrot.slane %v2095, 1
  %v2097 = vadd.f32 %v2095, %v2096
  %v2098 = vadd.f32 %v2088, %v2090
  %v2099 = vrot.slane %v2098, 4
  %v2100 = vadd.f32 %v2098, %v2099
  %v2101 = vrot.slane %v2100, 2
  %v2102 = vadd.f32 %v2100, %v2101
  %v2103 = vrot.slane %v2102, 1
  %v2104 = vadd.f32 %v2102, %v2103
  %2105 = vst [vmem:[%s6] sm:$0xff] %v2097
  %2106 = vst [vmem:[%s6 + $0x8] sm:$0xff] %v2104
  // Predicated region
  $region18: #{generator_forward.20} parent=0 // pred_check
    _
  $region19: #{generator_forward.20} parent=0 // pred_check_branch
    %2108 = sbr.rel (0) target = $region21
  $region20: #{generator_forward.20} parent=0 // pred_region
    _
  $region21: #{generator_forward.20} parent=0 // pred_fallthru
    _
  // Predicated region
  $region22: #{generator_forward.20} parent=0 // pred_check
    _
  $region23: #{generator_forward.20} parent=0 // pred_check_branch
    %2110 = sbr.rel (0) target = $region25
  $region24: #{generator_forward.20} parent=0 // pred_region
    _
  $region25: #{generator_forward.20} parent=0 // pred_fallthru
    _
  // Predicated region
  $region26: #{generator_forward.20} parent=0 // pred_check
    _
  $region27: #{generator_forward.20} parent=0 // pred_check_branch
    %2112 = sbr.rel (0) target = $region29
  $region28: #{generator_forward.20} parent=0 // pred_region
    _
  $region29: #{generator_forward.20} parent=0 // pred_fallthru
    _
  // Predicated region
  $region30: #{generator_forward.20} parent=0 // pred_check
    _
  $region31: #{generator_forward.20} parent=0 // pred_check_branch
    %2114 = sbr.rel (0) target = $region33
  $region32: #{generator_forward.20} parent=0 // pred_region
    _
  $region33: #{generator_forward.20} parent=0 // pred_fallthru
    _
  // Predicated region
  $region34: #{generator_forward.20} parent=0 // pred_check
    _
  $region35: #{generator_forward.20} parent=0 // pred_check_branch
    %2116 = sbr.rel (0) target = $region37
  $region36: #{generator_forward.20} parent=0 // pred_region
    _
  $region37: #{generator_forward.20} parent=0 // pred_fallthru
    _
  // Predicated region
  $region38: #{generator_forward.20} parent=0 // pred_check
    _
  $region39: #{generator_forward.20} parent=0 // pred_check_branch
    %2118 = sbr.rel (0) target = $region41
  $region40: #{generator_forward.20} parent=0 // pred_region
    _
  $region41: #{generator_forward.20} parent=0 // pred_fallthru
    _

// kernel: tile.33
$region0: #{tile.33}
  #allocation0 [shape = 's32[1]{0}', space=sflag, size = 0x4, scoped, tag = 'scoped memory for tile.33']
  %s0 = inlined_call_operand.vmem [shape: f32[128], index: 0, kind: input, shape index: {}]
  %s1 = inlined_call_operand.vmem [shape: f32[4,128], index: 1, kind: output, shape index: {}]
  // Predicated region
  $region2: #{tile.33} parent=0 // pred_check
    _
  $region3: #{tile.33} parent=0 // pred_check_branch
    %3 = sbr.rel (0) target = $region5
  $region4: #{tile.33} parent=0 // pred_region
    _
  $region5: #{tile.33} parent=0 // pred_fallthru
    _
  %v4 = vld [vmem:[%s0] ss:$0 sm:$0xff]
  %5 = vst [vmem:[%s1] sm:$0xf] %v4

// kernel: generator_forward.23
$region0: #{generator_forward.23}
  #allocation0 [shape = 'u32[]', space=smem, size = 0x4, offset = 0x4, fixed_abs, tag = 'smem constant byte address 0x4 - core index']
  #allocation1 [shape = 'u32[72,128]{1,0:T(1,128)}', space=vmem, size = 0x9000, scoped, tag = 'internal scratch']
  %s0 = inlined_call_operand.vmem [shape: bf16[16,512], index: 0, kind: input, shape index: {}]
  %s1 = inlined_call_operand.vmem [shape: f32[1,512], index: 1, kind: input, shape index: {}]
  %s2 = inlined_call_operand.vmem [shape: f32[1,512], index: 2, kind: input, shape index: {}]
  %s3 = inlined_call_operand.vmem [shape: bf16[16,512], index: 3, kind: output, shape index: {}]
  %s4 = sld [smem:[#allocation0]]
  $region22: #{generator_forward.23} parent=0
    _
  %s6 = ssub.s32 1, %s4
  %s7 = scalar_select 0, %s6, %s4
  // Predicated region
  $region2: #{generator_forward.23} parent=0 // pred_check
    _
  $region3: #{generator_forward.23} parent=0 // pred_check_branch
    %9 = sbr.rel (0) target = $region5
  $region4: #{generator_forward.23} parent=0 // pred_region
    _
  $region5: #{generator_forward.23} parent=0 // pred_fallthru
    _
  // Predicated region
  $region6: #{generator_forward.23} parent=0 // pred_check
    _
  $region7: #{generator_forward.23} parent=0 // pred_check_branch
    %11 = sbr.rel (0) target = $region9
  $region8: #{generator_forward.23} parent=0 // pred_region
    _
  $region9: #{generator_forward.23} parent=0 // pred_fallthru
    _
  // Predicated region
  $region10: #{generator_forward.23} parent=0 // pred_check
    _
  $region11: #{generator_forward.23} parent=0 // pred_check_branch
    %13 = sbr.rel (0) target = $region13
  $region12: #{generator_forward.23} parent=0 // pred_region
    _
  $region13: #{generator_forward.23} parent=0 // pred_fallthru
    _
  %v14 = vld [vmem:[%s0] sm:$0xff]
  %v15 = vld [vmem:[%s0 + $0x8] sm:$0xff]
  %v16 = vld [vmem:[%s0 + $0x10] sm:$0xff]
  %v17 = vld [vmem:[%s0 + $0x18] sm:$0xff]
  %v18 = vunpack.c.l.bf16 %v14
  %v19 = vunpack.c.h.bf16 %v14
  %v20 = vunpack.c.l.bf16 %v15
  %v21 = vunpack.c.h.bf16 %v15
  %v22 = vunpack.c.l.bf16 %v16
  %v23 = vunpack.c.h.bf16 %v16
  %v24 = vunpack.c.l.bf16 %v17
  %v25 = vunpack.c.h.bf16 %v17
  %v26 = vld [vmem:[%s1] sm:$0xf]
  %v28 = vperm.slane %v26, 0
  %v29 = vperm.slane %v26, 1
  %v30 = vperm.slane %v26, 2
  %v31 = vperm.slane %v26, 3
  %v36 = vmul.f32 %v18, %v28
  %v37 = vmul.f32 %v19, %v29
  %v38 = vmul.f32 %v20, %v30
  %v39 = vmul.f32 %v21, %v31
  %v40 = vmul.f32 %v22, %v28
  %v41 = vmul.f32 %v23, %v29
  %v42 = vmul.f32 %v24, %v30
  %v43 = vmul.f32 %v25, %v31
  %v44 = vld [vmem:[%s2] sm:$0xf]
  %v46 = vperm.slane %v44, 0
  %v47 = vperm.slane %v44, 1
  %v48 = vperm.slane %v44, 2
  %v49 = vperm.slane %v44, 3
  %v54 = vadd.f32 %v36, %v46
  %v55 = vadd.f32 %v37, %v47
  %v56 = vadd.f32 %v38, %v48
  %v57 = vadd.f32 %v39, %v49
  %v58 = vadd.f32 %v40, %v46
  %v59 = vadd.f32 %v41, %v47
  %v60 = vadd.f32 %v42, %v48
  %v61 = vadd.f32 %v43, %v49
  %vm62 = vcmp.ge.f32.partialorder %v54, 0.0
  %vm63 = vcmp.ge.f32.partialorder %v55, 0.0
  %vm64 = vcmp.ge.f32.partialorder %v56, 0.0
  %vm65 = vcmp.ge.f32.partialorder %v57, 0.0
  %vm66 = vcmp.ge.f32.partialorder %v58, 0.0
  %vm67 = vcmp.ge.f32.partialorder %v59, 0.0
  %vm68 = vcmp.ge.f32.partialorder %v60, 0.0
  %vm69 = vcmp.ge.f32.partialorder %v61, 0.0
  %v70 = vmul.f32 %v54, 0.2
  %v71 = vmul.f32 %v55, 0.2
  %v72 = vmul.f32 %v56, 0.2
  %v73 = vmul.f32 %v57, 0.2
  %v74 = vmul.f32 %v58, 0.2
  %v75 = vmul.f32 %v59, 0.2
  %v76 = vmul.f32 %v60, 0.2
  %v77 = vmul.f32 %v61, 0.2
  %v78 = vsel %vm62, %v54, %v70
  %v79 = vsel %vm63, %v55, %v71
  %v80 = vsel %vm64, %v56, %v72
  %v81 = vsel %vm65, %v57, %v73
  %v82 = vsel %vm66, %v58, %v74
  %v83 = vsel %vm67, %v59, %v75
  %v84 = vsel %vm68, %v60, %v76
  %v85 = vsel %vm69, %v61, %v77
  %v86 = vpack.c.bf16 %v79, %v78
  %v87 = vpack.c.bf16 %v81, %v80
  %v88 = vpack.c.bf16 %v83, %v82
  %v89 = vpack.c.bf16 %v85, %v84
  %90 = vst [vmem:[%s3] sm:$0xff] %v86
  %91 = vst [vmem:[%s3 + $0x8] sm:$0xff] %v87
  %92 = vst [vmem:[%s3 + $0x10] sm:$0xff] %v88
  %93 = vst [vmem:[%s3 + $0x18] sm:$0xff] %v89
  // Predicated region
  $region14: #{generator_forward.23} parent=0 // pred_check
    _
  $region15: #{generator_forward.23} parent=0 // pred_check_branch
    %95 = sbr.rel (0) target = $region17
  $region16: #{generator_forward.23} parent=0 // pred_region
    _
  $region17: #{generator_forward.23} parent=0 // pred_fallthru
    _
  // Predicated region
  $region18: #{generator_forward.23} parent=0 // pred_check
    _
  $region19: #{generator_forward.23} parent=0 // pred_check_branch
    %97 = sbr.rel (0) target = $region21
  $region20: #{generator_forward.23} parent=0 // pred_region
    _
  $region21: #{generator_forward.23} parent=0 // pred_fallthru
    _

// kernel: generator_forward.22
$region0: #{generator_forward.22}
  #allocation0 [shape = 'u32[]', space=smem, size = 0x4, offset = 0x4, fixed_abs, tag = 'smem constant byte address 0x4 - core index']
  #allocation1 [shape = 'u32[72,128]{1,0:T(1,128)}', space=vmem, size = 0x9000, scoped, tag = 'internal scratch']
  %s0 = inlined_call_operand.vmem [shape: bf16[16,2304], index: 0, kind: input, shape index: {}]
  %s1 = inlined_call_operand.vmem [shape: bf16[2304,512], index: 1, kind: input, shape index: {}]
  %s2 = inlined_call_operand.vmem [shape: bf16[16,512], index: 2, kind: output, shape index: {0}]
  %s3 = inlined_call_operand.vmem [shape: f32[8,512], index: 3, kind: output, shape index: {1}]
  %s4 = inlined_call_operand.vmem [shape: f32[8,512], index: 4, kind: output, shape index: {2}]
  %5 = xla_tuple %s2, %s3, %s4
  %s6 = sld [smem:[#allocation0]]
  $region34: #{generator_forward.22} parent=0
    _
  %s8 = ssub.s32 1, %s6
  %s9 = scalar_select 0, %s8, %s6
  // Predicated region
  $region2: #{generator_forward.22} parent=0 // pred_check
    _
  $region3: #{generator_forward.22} parent=0 // pred_check_branch
    %11 = sbr.rel (0) target = $region5
  $region4: #{generator_forward.22} parent=0 // pred_region
    _
  $region5: #{generator_forward.22} parent=0 // pred_fallthru
    _
  // Predicated region
  $region6: #{generator_forward.22} parent=0 // pred_check
    _
  $region7: #{generator_forward.22} parent=0 // pred_check_branch
    %13 = sbr.rel (0) target = $region9
  $region8: #{generator_forward.22} parent=0 // pred_region
    _
  $region9: #{generator_forward.22} parent=0 // pred_fallthru
    _
  %v14 = vld [vmem:[%s0] sm:$0xff]
  %v15 = vld [vmem:[%s0 + $0x8] sm:$0xff]
  %v16 = vld [vmem:[%s0 + $0x10] sm:$0xff]
  %v17 = vld [vmem:[%s0 + $0x18] sm:$0xff]
  %v18 = vld [vmem:[%s0 + $0x20] sm:$0xff]
  %v19 = vld [vmem:[%s0 + $0x28] sm:$0xff]
  %v20 = vld [vmem:[%s0 + $0x30] sm:$0xff]
  %v21 = vld [vmem:[%s0 + $0x38] sm:$0xff]
  %v22 = vld [vmem:[%s0 + $0x40] sm:$0xff]
  %v23 = vld [vmem:[%s0 + $0x48] sm:$0xff]
  %v24 = vld [vmem:[%s0 + $0x50] sm:$0xff]
  %v25 = vld [vmem:[%s0 + $0x58] sm:$0xff]
  %v26 = vld [vmem:[%s0 + $0x60] sm:$0xff]
  %v27 = vld [vmem:[%s0 + $0x68] sm:$0xff]
  %v28 = vld [vmem:[%s0 + $0x70] sm:$0xff]
  %v29 = vld [vmem:[%s0 + $0x78] sm:$0xff]
  %v30 = vld [vmem:[%s0 + $0x80] sm:$0xff]
  %v31 = vld [vmem:[%s0 + $0x88] sm:$0xff]
  %v32 = vld [vmem:[%s1] sm:$0xff]
  %v33 = vld [vmem:[%s1 + $0x8] sm:$0xff]
  %v34 = vld [vmem:[%s1 + $0x10] sm:$0xff]
  %v35 = vld [vmem:[%s1 + $0x18] sm:$0xff]
  %v36 = vld [vmem:[%s1 + $0x20] sm:$0xff]
  %v37 = vld [vmem:[%s1 + $0x28] sm:$0xff]
  %v38 = vld [vmem:[%s1 + $0x30] sm:$0xff]
  %v39 = vld [vmem:[%s1 + $0x38] sm:$0xff]
  %v40 = vld [vmem:[%s1 + $0x40] sm:$0xff]
  %v41 = vld [vmem:[%s1 + $0x48] sm:$0xff]
  %v42 = vld [vmem:[%s1 + $0x50] sm:$0xff]
  %v43 = vld [vmem:[%s1 + $0x58] sm:$0xff]
  %v44 = vld [vmem:[%s1 + $0x60] sm:$0xff]
  %v45 = vld [vmem:[%s1 + $0x68] sm:$0xff]
  %v46 = vld [vmem:[%s1 + $0x70] sm:$0xff]
  %v47 = vld [vmem:[%s1 + $0x78] sm:$0xff]
  %v48 = vld [vmem:[%s1 + $0x80] sm:$0xff]
  %v49 = vld [vmem:[%s1 + $0x88] sm:$0xff]
  %v50 = vld [vmem:[%s1 + $0x90] sm:$0xff]
  %v51 = vld [vmem:[%s1 + $0x98] sm:$0xff]
  %v52 = vld [vmem:[%s1 + $0xa0] sm:$0xff]
  %v53 = vld [vmem:[%s1 + $0xa8] sm:$0xff]
  %v54 = vld [vmem:[%s1 + $0xb0] sm:$0xff]
  %v55 = vld [vmem:[%s1 + $0xb8] sm:$0xff]
  %v56 = vld [vmem:[%s1 + $0xc0] sm:$0xff]
  %v57 = vld [vmem:[%s1 + $0xc8] sm:$0xff]
  %v58 = vld [vmem:[%s1 + $0xd0] sm:$0xff]
  %v59 = vld [vmem:[%s1 + $0xd8] sm:$0xff]
  %v60 = vld [vmem:[%s1 + $0xe0] sm:$0xff]
  %v61 = vld [vmem:[%s1 + $0xe8] sm:$0xff]
  %v62 = vld [vmem:[%s1 + $0xf0] sm:$0xff]
  %v63 = vld [vmem:[%s1 + $0xf8] sm:$0xff]
  %v64 = vld [vmem:[%s1 + $0x100] sm:$0xff]
  %v65 = vld [vmem:[%s1 + $0x108] sm:$0xff]
  %v66 = vld [vmem:[%s1 + $0x110] sm:$0xff]
  %v67 = vld [vmem:[%s1 + $0x118] sm:$0xff]
  %v68 = vld [vmem:[%s1 + $0x120] sm:$0xff]
  %v69 = vld [vmem:[%s1 + $0x128] sm:$0xff]
  %v70 = vld [vmem:[%s1 + $0x130] sm:$0xff]
  %v71 = vld [vmem:[%s1 + $0x138] sm:$0xff]
  %v72 = vld [vmem:[%s1 + $0x140] sm:$0xff]
  %v73 = vld [vmem:[%s1 + $0x148] sm:$0xff]
  %v74 = vld [vmem:[%s1 + $0x150] sm:$0xff]
  %v75 = vld [vmem:[%s1 + $0x158] sm:$0xff]
  %v76 = vld [vmem:[%s1 + $0x160] sm:$0xff]
  %v77 = vld [vmem:[%s1 + $0x168] sm:$0xff]
  %v78 = vld [vmem:[%s1 + $0x170] sm:$0xff]
  %v79 = vld [vmem:[%s1 + $0x178] sm:$0xff]
  %v80 = vld [vmem:[%s1 + $0x180] sm:$0xff]
  %v81 = vld [vmem:[%s1 + $0x188] sm:$0xff]
  %v82 = vld [vmem:[%s1 + $0x190] sm:$0xff]
  %v83 = vld [vmem:[%s1 + $0x198] sm:$0xff]
  %v84 = vld [vmem:[%s1 + $0x1a0] sm:$0xff]
  %v85 = vld [vmem:[%s1 + $0x1a8] sm:$0xff]
  %v86 = vld [vmem:[%s1 + $0x1b0] sm:$0xff]
  %v87 = vld [vmem:[%s1 + $0x1b8] sm:$0xff]
  %v88 = vld [vmem:[%s1 + $0x1c0] sm:$0xff]
  %v89 = vld [vmem:[%s1 + $0x1c8] sm:$0xff]
  %v90 = vld [vmem:[%s1 + $0x1d0] sm:$0xff]
  %v91 = vld [vmem:[%s1 + $0x1d8] sm:$0xff]
  %v92 = vld [vmem:[%s1 + $0x1e0] sm:$0xff]
  %v93 = vld [vmem:[%s1 + $0x1e8] sm:$0xff]
  %v94 = vld [vmem:[%s1 + $0x1f0] sm:$0xff]
  %v95 = vld [vmem:[%s1 + $0x1f8] sm:$0xff]
  %v96 = vld [vmem:[%s1 + $0x200] sm:$0xff]
  %v97 = vld [vmem:[%s1 + $0x208] sm:$0xff]
  %v98 = vld [vmem:[%s1 + $0x210] sm:$0xff]
  %v99 = vld [vmem:[%s1 + $0x218] sm:$0xff]
  %v100 = vld [vmem:[%s1 + $0x220] sm:$0xff]
  %v101 = vld [vmem:[%s1 + $0x228] sm:$0xff]
  %v102 = vld [vmem:[%s1 + $0x230] sm:$0xff]
  %v103 = vld [vmem:[%s1 + $0x238] sm:$0xff]
  %v104 = vld [vmem:[%s1 + $0x240] sm:$0xff]
  %v105 = vld [vmem:[%s1 + $0x248] sm:$0xff]
  %v106 = vld [vmem:[%s1 + $0x250] sm:$0xff]
  %v107 = vld [vmem:[%s1 + $0x258] sm:$0xff]
  %v108 = vld [vmem:[%s1 + $0x260] sm:$0xff]
  %v109 = vld [vmem:[%s1 + $0x268] sm:$0xff]
  %v110 = vld [vmem:[%s1 + $0x270] sm:$0xff]
  %v111 = vld [vmem:[%s1 + $0x278] sm:$0xff]
  %v112 = vld [vmem:[%s1 + $0x280] sm:$0xff]
  %v113 = vld [vmem:[%s1 + $0x288] sm:$0xff]
  %v114 = vld [vmem:[%s1 + $0x290] sm:$0xff]
  %v115 = vld [vmem:[%s1 + $0x298] sm:$0xff]
  %v116 = vld [vmem:[%s1 + $0x2a0] sm:$0xff]
  %v117 = vld [vmem:[%s1 + $0x2a8] sm:$0xff]
  %v118 = vld [vmem:[%s1 + $0x2b0] sm:$0xff]
  %v119 = vld [vmem:[%s1 + $0x2b8] sm:$0xff]
  %v120 = vld [vmem:[%s1 + $0x2c0] sm:$0xff]
  %v121 = vld [vmem:[%s1 + $0x2c8] sm:$0xff]
  %v122 = vld [vmem:[%s1 + $0x2d0] sm:$0xff]
  %v123 = vld [vmem:[%s1 + $0x2d8] sm:$0xff]
  %v124 = vld [vmem:[%s1 + $0x2e0] sm:$0xff]
  %v125 = vld [vmem:[%s1 + $0x2e8] sm:$0xff]
  %v126 = vld [vmem:[%s1 + $0x2f0] sm:$0xff]
  %v127 = vld [vmem:[%s1 + $0x2f8] sm:$0xff]
  %v128 = vld [vmem:[%s1 + $0x300] sm:$0xff]
  %v129 = vld [vmem:[%s1 + $0x308] sm:$0xff]
  %v130 = vld [vmem:[%s1 + $0x310] sm:$0xff]
  %v131 = vld [vmem:[%s1 + $0x318] sm:$0xff]
  %v132 = vld [vmem:[%s1 + $0x320] sm:$0xff]
  %v133 = vld [vmem:[%s1 + $0x328] sm:$0xff]
  %v134 = vld [vmem:[%s1 + $0x330] sm:$0xff]
  %v135 = vld [vmem:[%s1 + $0x338] sm:$0xff]
  %v136 = vld [vmem:[%s1 + $0x340] sm:$0xff]
  %v137 = vld [vmem:[%s1 + $0x348] sm:$0xff]
  %v138 = vld [vmem:[%s1 + $0x350] sm:$0xff]
  %v139 = vld [vmem:[%s1 + $0x358] sm:$0xff]
  %v140 = vld [vmem:[%s1 + $0x360] sm:$0xff]
  %v141 = vld [vmem:[%s1 + $0x368] sm:$0xff]
  %v142 = vld [vmem:[%s1 + $0x370] sm:$0xff]
  %v143 = vld [vmem:[%s1 + $0x378] sm:$0xff]
  %v144 = vld [vmem:[%s1 + $0x380] sm:$0xff]
  %v145 = vld [vmem:[%s1 + $0x388] sm:$0xff]
  %v146 = vld [vmem:[%s1 + $0x390] sm:$0xff]
  %v147 = vld [vmem:[%s1 + $0x398] sm:$0xff]
  %v148 = vld [vmem:[%s1 + $0x3a0] sm:$0xff]
  %v149 = vld [vmem:[%s1 + $0x3a8] sm:$0xff]
  %v150 = vld [vmem:[%s1 + $0x3b0] sm:$0xff]
  %v151 = vld [vmem:[%s1 + $0x3b8] sm:$0xff]
  %v152 = vld [vmem:[%s1 + $0x3c0] sm:$0xff]
  %v153 = vld [vmem:[%s1 + $0x3c8] sm:$0xff]
  %v154 = vld [vmem:[%s1 + $0x3d0] sm:$0xff]
  %v155 = vld [vmem:[%s1 + $0x3d8] sm:$0xff]
  %v156 = vld [vmem:[%s1 + $0x3e0] sm:$0xff]
  %v157 = vld [vmem:[%s1 + $0x3e8] sm:$0xff]
  %v158 = vld [vmem:[%s1 + $0x3f0] sm:$0xff]
  %v159 = vld [vmem:[%s1 + $0x3f8] sm:$0xff]
  %v160 = vld [vmem:[%s1 + $0x400] sm:$0xff]
  %v161 = vld [vmem:[%s1 + $0x408] sm:$0xff]
  %v162 = vld [vmem:[%s1 + $0x410] sm:$0xff]
  %v163 = vld [vmem:[%s1 + $0x418] sm:$0xff]
  %v164 = vld [vmem:[%s1 + $0x420] sm:$0xff]
  %v165 = vld [vmem:[%s1 + $0x428] sm:$0xff]
  %v166 = vld [vmem:[%s1 + $0x430] sm:$0xff]
  %v167 = vld [vmem:[%s1 + $0x438] sm:$0xff]
  %v168 = vld [vmem:[%s1 + $0x440] sm:$0xff]
  %v169 = vld [vmem:[%s1 + $0x448] sm:$0xff]
  %v170 = vld [vmem:[%s1 + $0x450] sm:$0xff]
  %v171 = vld [vmem:[%s1 + $0x458] sm:$0xff]
  %v172 = vld [vmem:[%s1 + $0x460] sm:$0xff]
  %v173 = vld [vmem:[%s1 + $0x468] sm:$0xff]
  %v174 = vld [vmem:[%s1 + $0x470] sm:$0xff]
  %v175 = vld [vmem:[%s1 + $0x478] sm:$0xff]
  %v176 = vld [vmem:[%s1 + $0x480] sm:$0xff]
  %v177 = vld [vmem:[%s1 + $0x488] sm:$0xff]
  %v178 = vld [vmem:[%s1 + $0x490] sm:$0xff]
  %v179 = vld [vmem:[%s1 + $0x498] sm:$0xff]
  %v180 = vld [vmem:[%s1 + $0x4a0] sm:$0xff]
  %v181 = vld [vmem:[%s1 + $0x4a8] sm:$0xff]
  %v182 = vld [vmem:[%s1 + $0x4b0] sm:$0xff]
  %v183 = vld [vmem:[%s1 + $0x4b8] sm:$0xff]
  %v184 = vld [vmem:[%s1 + $0x4c0] sm:$0xff]
  %v185 = vld [vmem:[%s1 + $0x4c8] sm:$0xff]
  %v186 = vld [vmem:[%s1 + $0x4d0] sm:$0xff]
  %v187 = vld [vmem:[%s1 + $0x4d8] sm:$0xff]
  %v188 = vld [vmem:[%s1 + $0x4e0] sm:$0xff]
  %v189 = vld [vmem:[%s1 + $0x4e8] sm:$0xff]
  %v190 = vld [vmem:[%s1 + $0x4f0] sm:$0xff]
  %v191 = vld [vmem:[%s1 + $0x4f8] sm:$0xff]
  %v192 = vld [vmem:[%s1 + $0x500] sm:$0xff]
  %v193 = vld [vmem:[%s1 + $0x508] sm:$0xff]
  %v194 = vld [vmem:[%s1 + $0x510] sm:$0xff]
  %v195 = vld [vmem:[%s1 + $0x518] sm:$0xff]
  %v196 = vld [vmem:[%s1 + $0x520] sm:$0xff]
  %v197 = vld [vmem:[%s1 + $0x528] sm:$0xff]
  %v198 = vld [vmem:[%s1 + $0x530] sm:$0xff]
  %v199 = vld [vmem:[%s1 + $0x538] sm:$0xff]
  %v200 = vld [vmem:[%s1 + $0x540] sm:$0xff]
  %v201 = vld [vmem:[%s1 + $0x548] sm:$0xff]
  %v202 = vld [vmem:[%s1 + $0x550] sm:$0xff]
  %v203 = vld [vmem:[%s1 + $0x558] sm:$0xff]
  %v204 = vld [vmem:[%s1 + $0x560] sm:$0xff]
  %v205 = vld [vmem:[%s1 + $0x568] sm:$0xff]
  %v206 = vld [vmem:[%s1 + $0x570] sm:$0xff]
  %v207 = vld [vmem:[%s1 + $0x578] sm:$0xff]
  %v208 = vld [vmem:[%s1 + $0x580] sm:$0xff]
  %v209 = vld [vmem:[%s1 + $0x588] sm:$0xff]
  %v210 = vld [vmem:[%s1 + $0x590] sm:$0xff]
  %v211 = vld [vmem:[%s1 + $0x598] sm:$0xff]
  %v212 = vld [vmem:[%s1 + $0x5a0] sm:$0xff]
  %v213 = vld [vmem:[%s1 + $0x5a8] sm:$0xff]
  %v214 = vld [vmem:[%s1 + $0x5b0] sm:$0xff]
  %v215 = vld [vmem:[%s1 + $0x5b8] sm:$0xff]
  %v216 = vld [vmem:[%s1 + $0x5c0] sm:$0xff]
  %v217 = vld [vmem:[%s1 + $0x5c8] sm:$0xff]
  %v218 = vld [vmem:[%s1 + $0x5d0] sm:$0xff]
  %v219 = vld [vmem:[%s1 + $0x5d8] sm:$0xff]
  %v220 = vld [vmem:[%s1 + $0x5e0] sm:$0xff]
  %v221 = vld [vmem:[%s1 + $0x5e8] sm:$0xff]
  %v222 = vld [vmem:[%s1 + $0x5f0] sm:$0xff]
  %v223 = vld [vmem:[%s1 + $0x5f8] sm:$0xff]
  %v224 = vld [vmem:[%s1 + $0x600] sm:$0xff]
  %v225 = vld [vmem:[%s1 + $0x608] sm:$0xff]
  %v226 = vld [vmem:[%s1 + $0x610] sm:$0xff]
  %v227 = vld [vmem:[%s1 + $0x618] sm:$0xff]
  %v228 = vld [vmem:[%s1 + $0x620] sm:$0xff]
  %v229 = vld [vmem:[%s1 + $0x628] sm:$0xff]
  %v230 = vld [vmem:[%s1 + $0x630] sm:$0xff]
  %v231 = vld [vmem:[%s1 + $0x638] sm:$0xff]
  %v232 = vld [vmem:[%s1 + $0x640] sm:$0xff]
  %v233 = vld [vmem:[%s1 + $0x648] sm:$0xff]
  %v234 = vld [vmem:[%s1 + $0x650] sm:$0xff]
  %v235 = vld [vmem:[%s1 + $0x658] sm:$0xff]
  %v236 = vld [vmem:[%s1 + $0x660] sm:$0xff]
  %v237 = vld [vmem:[%s1 + $0x668] sm:$0xff]
  %v238 = vld [vmem:[%s1 + $0x670] sm:$0xff]
  %v239 = vld [vmem:[%s1 + $0x678] sm:$0xff]
  %v240 = vld [vmem:[%s1 + $0x680] sm:$0xff]
  %v241 = vld [vmem:[%s1 + $0x688] sm:$0xff]
  %v242 = vld [vmem:[%s1 + $0x690] sm:$0xff]
  %v243 = vld [vmem:[%s1 + $0x698] sm:$0xff]
  %v244 = vld [vmem:[%s1 + $0x6a0] sm:$0xff]
  %v245 = vld [vmem:[%s1 + $0x6a8] sm:$0xff]
  %v246 = vld [vmem:[%s1 + $0x6b0] sm:$0xff]
  %v247 = vld [vmem:[%s1 + $0x6b8] sm:$0xff]
  %v248 = vld [vmem:[%s1 + $0x6c0] sm:$0xff]
  %v249 = vld [vmem:[%s1 + $0x6c8] sm:$0xff]
  %v250 = vld [vmem:[%s1 + $0x6d0] sm:$0xff]
  %v251 = vld [vmem:[%s1 + $0x6d8] sm:$0xff]
  %v252 = vld [vmem:[%s1 + $0x6e0] sm:$0xff]
  %v253 = vld [vmem:[%s1 + $0x6e8] sm:$0xff]
  %v254 = vld [vmem:[%s1 + $0x6f0] sm:$0xff]
  %v255 = vld [vmem:[%s1 + $0x6f8] sm:$0xff]
  %v256 = vld [vmem:[%s1 + $0x700] sm:$0xff]
  %v257 = vld [vmem:[%s1 + $0x708] sm:$0xff]
  %v258 = vld [vmem:[%s1 + $0x710] sm:$0xff]
  %v259 = vld [vmem:[%s1 + $0x718] sm:$0xff]
  %v260 = vld [vmem:[%s1 + $0x720] sm:$0xff]
  %v261 = vld [vmem:[%s1 + $0x728] sm:$0xff]
  %v262 = vld [vmem:[%s1 + $0x730] sm:$0xff]
  %v263 = vld [vmem:[%s1 + $0x738] sm:$0xff]
  %v264 = vld [vmem:[%s1 + $0x740] sm:$0xff]
  %v265 = vld [vmem:[%s1 + $0x748] sm:$0xff]
  %v266 = vld [vmem:[%s1 + $0x750] sm:$0xff]
  %v267 = vld [vmem:[%s1 + $0x758] sm:$0xff]
  %v268 = vld [vmem:[%s1 + $0x760] sm:$0xff]
  %v269 = vld [vmem:[%s1 + $0x768] sm:$0xff]
  %v270 = vld [vmem:[%s1 + $0x770] sm:$0xff]
  %v271 = vld [vmem:[%s1 + $0x778] sm:$0xff]
  %v272 = vld [vmem:[%s1 + $0x780] sm:$0xff]
  %v273 = vld [vmem:[%s1 + $0x788] sm:$0xff]
  %v274 = vld [vmem:[%s1 + $0x790] sm:$0xff]
  %v275 = vld [vmem:[%s1 + $0x798] sm:$0xff]
  %v276 = vld [vmem:[%s1 + $0x7a0] sm:$0xff]
  %v277 = vld [vmem:[%s1 + $0x7a8] sm:$0xff]
  %v278 = vld [vmem:[%s1 + $0x7b0] sm:$0xff]
  %v279 = vld [vmem:[%s1 + $0x7b8] sm:$0xff]
  %v280 = vld [vmem:[%s1 + $0x7c0] sm:$0xff]
  %v281 = vld [vmem:[%s1 + $0x7c8] sm:$0xff]
  %v282 = vld [vmem:[%s1 + $0x7d0] sm:$0xff]
  %v283 = vld [vmem:[%s1 + $0x7d8] sm:$0xff]
  %v284 = vld [vmem:[%s1 + $0x7e0] sm:$0xff]
  %v285 = vld [vmem:[%s1 + $0x7e8] sm:$0xff]
  %v286 = vld [vmem:[%s1 + $0x7f0] sm:$0xff]
  %v287 = vld [vmem:[%s1 + $0x7f8] sm:$0xff]
  %v288 = vld [vmem:[%s1 + $0x800] sm:$0xff]
  %v289 = vld [vmem:[%s1 + $0x808] sm:$0xff]
  %v290 = vld [vmem:[%s1 + $0x810] sm:$0xff]
  %v291 = vld [vmem:[%s1 + $0x818] sm:$0xff]
  %v292 = vld [vmem:[%s1 + $0x820] sm:$0xff]
  %v293 = vld [vmem:[%s1 + $0x828] sm:$0xff]
  %v294 = vld [vmem:[%s1 + $0x830] sm:$0xff]
  %v295 = vld [vmem:[%s1 + $0x838] sm:$0xff]
  %v296 = vld [vmem:[%s1 + $0x840] sm:$0xff]
  %v297 = vld [vmem:[%s1 + $0x848] sm:$0xff]
  %v298 = vld [vmem:[%s1 + $0x850] sm:$0xff]
  %v299 = vld [vmem:[%s1 + $0x858] sm:$0xff]
  %v300 = vld [vmem:[%s1 + $0x860] sm:$0xff]
  %v301 = vld [vmem:[%s1 + $0x868] sm:$0xff]
  %v302 = vld [vmem:[%s1 + $0x870] sm:$0xff]
  %v303 = vld [vmem:[%s1 + $0x878] sm:$0xff]
  %v304 = vld [vmem:[%s1 + $0x880] sm:$0xff]
  %v305 = vld [vmem:[%s1 + $0x888] sm:$0xff]
  %v306 = vld [vmem:[%s1 + $0x890] sm:$0xff]
  %v307 = vld [vmem:[%s1 + $0x898] sm:$0xff]
  %v308 = vld [vmem:[%s1 + $0x8a0] sm:$0xff]
  %v309 = vld [vmem:[%s1 + $0x8a8] sm:$0xff]
  %v310 = vld [vmem:[%s1 + $0x8b0] sm:$0xff]
  %v311 = vld [vmem:[%s1 + $0x8b8] sm:$0xff]
  %v312 = vld [vmem:[%s1 + $0x8c0] sm:$0xff]
  %v313 = vld [vmem:[%s1 + $0x8c8] sm:$0xff]
  %v314 = vld [vmem:[%s1 + $0x8d0] sm:$0xff]
  %v315 = vld [vmem:[%s1 + $0x8d8] sm:$0xff]
  %v316 = vld [vmem:[%s1 + $0x8e0] sm:$0xff]
  %v317 = vld [vmem:[%s1 + $0x8e8] sm:$0xff]
  %v318 = vld [vmem:[%s1 + $0x8f0] sm:$0xff]
  %v319 = vld [vmem:[%s1 + $0x8f8] sm:$0xff]
  %v320 = vld [vmem:[%s1 + $0x900] sm:$0xff]
  %v321 = vld [vmem:[%s1 + $0x908] sm:$0xff]
  %v322 = vld [vmem:[%s1 + $0x910] sm:$0xff]
  %v323 = vld [vmem:[%s1 + $0x918] sm:$0xff]
  %v324 = vld [vmem:[%s1 + $0x920] sm:$0xff]
  %v325 = vld [vmem:[%s1 + $0x928] sm:$0xff]
  %v326 = vld [vmem:[%s1 + $0x930] sm:$0xff]
  %v327 = vld [vmem:[%s1 + $0x938] sm:$0xff]
  %v328 = vld [vmem:[%s1 + $0x940] sm:$0xff]
  %v329 = vld [vmem:[%s1 + $0x948] sm:$0xff]
  %v330 = vld [vmem:[%s1 + $0x950] sm:$0xff]
  %v331 = vld [vmem:[%s1 + $0x958] sm:$0xff]
  %v332 = vld [vmem:[%s1 + $0x960] sm:$0xff]
  %v333 = vld [vmem:[%s1 + $0x968] sm:$0xff]
  %v334 = vld [vmem:[%s1 + $0x970] sm:$0xff]
  %v335 = vld [vmem:[%s1 + $0x978] sm:$0xff]
  %v336 = vld [vmem:[%s1 + $0x980] sm:$0xff]
  %v337 = vld [vmem:[%s1 + $0x988] sm:$0xff]
  %v338 = vld [vmem:[%s1 + $0x990] sm:$0xff]
  %v339 = vld [vmem:[%s1 + $0x998] sm:$0xff]
  %v340 = vld [vmem:[%s1 + $0x9a0] sm:$0xff]
  %v341 = vld [vmem:[%s1 + $0x9a8] sm:$0xff]
  %v342 = vld [vmem:[%s1 + $0x9b0] sm:$0xff]
  %v343 = vld [vmem:[%s1 + $0x9b8] sm:$0xff]
  %v344 = vld [vmem:[%s1 + $0x9c0] sm:$0xff]
  %v345 = vld [vmem:[%s1 + $0x9c8] sm:$0xff]
  %v346 = vld [vmem:[%s1 + $0x9d0] sm:$0xff]
  %v347 = vld [vmem:[%s1 + $0x9d8] sm:$0xff]
  %v348 = vld [vmem:[%s1 + $0x9e0] sm:$0xff]
  %v349 = vld [vmem:[%s1 + $0x9e8] sm:$0xff]
  %v350 = vld [vmem:[%s1 + $0x9f0] sm:$0xff]
  %v351 = vld [vmem:[%s1 + $0x9f8] sm:$0xff]
  %v352 = vld [vmem:[%s1 + $0xa00] sm:$0xff]
  %v353 = vld [vmem:[%s1 + $0xa08] sm:$0xff]
  %v354 = vld [vmem:[%s1 + $0xa10] sm:$0xff]
  %v355 = vld [vmem:[%s1 + $0xa18] sm:$0xff]
  %v356 = vld [vmem:[%s1 + $0xa20] sm:$0xff]
  %v357 = vld [vmem:[%s1 + $0xa28] sm:$0xff]
  %v358 = vld [vmem:[%s1 + $0xa30] sm:$0xff]
  %v359 = vld [vmem:[%s1 + $0xa38] sm:$0xff]
  %v360 = vld [vmem:[%s1 + $0xa40] sm:$0xff]
  %v361 = vld [vmem:[%s1 + $0xa48] sm:$0xff]
  %v362 = vld [vmem:[%s1 + $0xa50] sm:$0xff]
  %v363 = vld [vmem:[%s1 + $0xa58] sm:$0xff]
  %v364 = vld [vmem:[%s1 + $0xa60] sm:$0xff]
  %v365 = vld [vmem:[%s1 + $0xa68] sm:$0xff]
  %v366 = vld [vmem:[%s1 + $0xa70] sm:$0xff]
  %v367 = vld [vmem:[%s1 + $0xa78] sm:$0xff]
  %v368 = vld [vmem:[%s1 + $0xa80] sm:$0xff]
  %v369 = vld [vmem:[%s1 + $0xa88] sm:$0xff]
  %v370 = vld [vmem:[%s1 + $0xa90] sm:$0xff]
  %v371 = vld [vmem:[%s1 + $0xa98] sm:$0xff]
  %v372 = vld [vmem:[%s1 + $0xaa0] sm:$0xff]
  %v373 = vld [vmem:[%s1 + $0xaa8] sm:$0xff]
  %v374 = vld [vmem:[%s1 + $0xab0] sm:$0xff]
  %v375 = vld [vmem:[%s1 + $0xab8] sm:$0xff]
  %v376 = vld [vmem:[%s1 + $0xac0] sm:$0xff]
  %v377 = vld [vmem:[%s1 + $0xac8] sm:$0xff]
  %v378 = vld [vmem:[%s1 + $0xad0] sm:$0xff]
  %v379 = vld [vmem:[%s1 + $0xad8] sm:$0xff]
  %v380 = vld [vmem:[%s1 + $0xae0] sm:$0xff]
  %v381 = vld [vmem:[%s1 + $0xae8] sm:$0xff]
  %v382 = vld [vmem:[%s1 + $0xaf0] sm:$0xff]
  %v383 = vld [vmem:[%s1 + $0xaf8] sm:$0xff]
  %v384 = vld [vmem:[%s1 + $0xb00] sm:$0xff]
  %v385 = vld [vmem:[%s1 + $0xb08] sm:$0xff]
  %v386 = vld [vmem:[%s1 + $0xb10] sm:$0xff]
  %v387 = vld [vmem:[%s1 + $0xb18] sm:$0xff]
  %v388 = vld [vmem:[%s1 + $0xb20] sm:$0xff]
  %v389 = vld [vmem:[%s1 + $0xb28] sm:$0xff]
  %v390 = vld [vmem:[%s1 + $0xb30] sm:$0xff]
  %v391 = vld [vmem:[%s1 + $0xb38] sm:$0xff]
  %v392 = vld [vmem:[%s1 + $0xb40] sm:$0xff]
  %v393 = vld [vmem:[%s1 + $0xb48] sm:$0xff]
  %v394 = vld [vmem:[%s1 + $0xb50] sm:$0xff]
  %v395 = vld [vmem:[%s1 + $0xb58] sm:$0xff]
  %v396 = vld [vmem:[%s1 + $0xb60] sm:$0xff]
  %v397 = vld [vmem:[%s1 + $0xb68] sm:$0xff]
  %v398 = vld [vmem:[%s1 + $0xb70] sm:$0xff]
  %v399 = vld [vmem:[%s1 + $0xb78] sm:$0xff]
  %v400 = vld [vmem:[%s1 + $0xb80] sm:$0xff]
  %v401 = vld [vmem:[%s1 + $0xb88] sm:$0xff]
  %v402 = vld [vmem:[%s1 + $0xb90] sm:$0xff]
  %v403 = vld [vmem:[%s1 + $0xb98] sm:$0xff]
  %v404 = vld [vmem:[%s1 + $0xba0] sm:$0xff]
  %v405 = vld [vmem:[%s1 + $0xba8] sm:$0xff]
  %v406 = vld [vmem:[%s1 + $0xbb0] sm:$0xff]
  %v407 = vld [vmem:[%s1 + $0xbb8] sm:$0xff]
  %v408 = vld [vmem:[%s1 + $0xbc0] sm:$0xff]
  %v409 = vld [vmem:[%s1 + $0xbc8] sm:$0xff]
  %v410 = vld [vmem:[%s1 + $0xbd0] sm:$0xff]
  %v411 = vld [vmem:[%s1 + $0xbd8] sm:$0xff]
  %v412 = vld [vmem:[%s1 + $0xbe0] sm:$0xff]
  %v413 = vld [vmem:[%s1 + $0xbe8] sm:$0xff]
  %v414 = vld [vmem:[%s1 + $0xbf0] sm:$0xff]
  %v415 = vld [vmem:[%s1 + $0xbf8] sm:$0xff]
  %v416 = vld [vmem:[%s1 + $0xc00] sm:$0xff]
  %v417 = vld [vmem:[%s1 + $0xc08] sm:$0xff]
  %v418 = vld [vmem:[%s1 + $0xc10] sm:$0xff]
  %v419 = vld [vmem:[%s1 + $0xc18] sm:$0xff]
  %v420 = vld [vmem:[%s1 + $0xc20] sm:$0xff]
  %v421 = vld [vmem:[%s1 + $0xc28] sm:$0xff]
  %v422 = vld [vmem:[%s1 + $0xc30] sm:$0xff]
  %v423 = vld [vmem:[%s1 + $0xc38] sm:$0xff]
  %v424 = vld [vmem:[%s1 + $0xc40] sm:$0xff]
  %v425 = vld [vmem:[%s1 + $0xc48] sm:$0xff]
  %v426 = vld [vmem:[%s1 + $0xc50] sm:$0xff]
  %v427 = vld [vmem:[%s1 + $0xc58] sm:$0xff]
  %v428 = vld [vmem:[%s1 + $0xc60] sm:$0xff]
  %v429 = vld [vmem:[%s1 + $0xc68] sm:$0xff]
  %v430 = vld [vmem:[%s1 + $0xc70] sm:$0xff]
  %v431 = vld [vmem:[%s1 + $0xc78] sm:$0xff]
  %v432 = vld [vmem:[%s1 + $0xc80] sm:$0xff]
  %v433 = vld [vmem:[%s1 + $0xc88] sm:$0xff]
  %v434 = vld [vmem:[%s1 + $0xc90] sm:$0xff]
  %v435 = vld [vmem:[%s1 + $0xc98] sm:$0xff]
  %v436 = vld [vmem:[%s1 + $0xca0] sm:$0xff]
  %v437 = vld [vmem:[%s1 + $0xca8] sm:$0xff]
  %v438 = vld [vmem:[%s1 + $0xcb0] sm:$0xff]
  %v439 = vld [vmem:[%s1 + $0xcb8] sm:$0xff]
  %v440 = vld [vmem:[%s1 + $0xcc0] sm:$0xff]
  %v441 = vld [vmem:[%s1 + $0xcc8] sm:$0xff]
  %v442 = vld [vmem:[%s1 + $0xcd0] sm:$0xff]
  %v443 = vld [vmem:[%s1 + $0xcd8] sm:$0xff]
  %v444 = vld [vmem:[%s1 + $0xce0] sm:$0xff]
  %v445 = vld [vmem:[%s1 + $0xce8] sm:$0xff]
  %v446 = vld [vmem:[%s1 + $0xcf0] sm:$0xff]
  %v447 = vld [vmem:[%s1 + $0xcf8] sm:$0xff]
  %v448 = vld [vmem:[%s1 + $0xd00] sm:$0xff]
  %v449 = vld [vmem:[%s1 + $0xd08] sm:$0xff]
  %v450 = vld [vmem:[%s1 + $0xd10] sm:$0xff]
  %v451 = vld [vmem:[%s1 + $0xd18] sm:$0xff]
  %v452 = vld [vmem:[%s1 + $0xd20] sm:$0xff]
  %v453 = vld [vmem:[%s1 + $0xd28] sm:$0xff]
  %v454 = vld [vmem:[%s1 + $0xd30] sm:$0xff]
  %v455 = vld [vmem:[%s1 + $0xd38] sm:$0xff]
  %v456 = vld [vmem:[%s1 + $0xd40] sm:$0xff]
  %v457 = vld [vmem:[%s1 + $0xd48] sm:$0xff]
  %v458 = vld [vmem:[%s1 + $0xd50] sm:$0xff]
  %v459 = vld [vmem:[%s1 + $0xd58] sm:$0xff]
  %v460 = vld [vmem:[%s1 + $0xd60] sm:$0xff]
  %v461 = vld [vmem:[%s1 + $0xd68] sm:$0xff]
  %v462 = vld [vmem:[%s1 + $0xd70] sm:$0xff]
  %v463 = vld [vmem:[%s1 + $0xd78] sm:$0xff]
  %v464 = vld [vmem:[%s1 + $0xd80] sm:$0xff]
  %v465 = vld [vmem:[%s1 + $0xd88] sm:$0xff]
  %v466 = vld [vmem:[%s1 + $0xd90] sm:$0xff]
  %v467 = vld [vmem:[%s1 + $0xd98] sm:$0xff]
  %v468 = vld [vmem:[%s1 + $0xda0] sm:$0xff]
  %v469 = vld [vmem:[%s1 + $0xda8] sm:$0xff]
  %v470 = vld [vmem:[%s1 + $0xdb0] sm:$0xff]
  %v471 = vld [vmem:[%s1 + $0xdb8] sm:$0xff]
  %v472 = vld [vmem:[%s1 + $0xdc0] sm:$0xff]
  %v473 = vld [vmem:[%s1 + $0xdc8] sm:$0xff]
  %v474 = vld [vmem:[%s1 + $0xdd0] sm:$0xff]
  %v475 = vld [vmem:[%s1 + $0xdd8] sm:$0xff]
  %v476 = vld [vmem:[%s1 + $0xde0] sm:$0xff]
  %v477 = vld [vmem:[%s1 + $0xde8] sm:$0xff]
  %v478 = vld [vmem:[%s1 + $0xdf0] sm:$0xff]
  %v479 = vld [vmem:[%s1 + $0xdf8] sm:$0xff]
  %v480 = vld [vmem:[%s1 + $0xe00] sm:$0xff]
  %v481 = vld [vmem:[%s1 + $0xe08] sm:$0xff]
  %v482 = vld [vmem:[%s1 + $0xe10] sm:$0xff]
  %v483 = vld [vmem:[%s1 + $0xe18] sm:$0xff]
  %v484 = vld [vmem:[%s1 + $0xe20] sm:$0xff]
  %v485 = vld [vmem:[%s1 + $0xe28] sm:$0xff]
  %v486 = vld [vmem:[%s1 + $0xe30] sm:$0xff]
  %v487 = vld [vmem:[%s1 + $0xe38] sm:$0xff]
  %v488 = vld [vmem:[%s1 + $0xe40] sm:$0xff]
  %v489 = vld [vmem:[%s1 + $0xe48] sm:$0xff]
  %v490 = vld [vmem:[%s1 + $0xe50] sm:$0xff]
  %v491 = vld [vmem:[%s1 + $0xe58] sm:$0xff]
  %v492 = vld [vmem:[%s1 + $0xe60] sm:$0xff]
  %v493 = vld [vmem:[%s1 + $0xe68] sm:$0xff]
  %v494 = vld [vmem:[%s1 + $0xe70] sm:$0xff]
  %v495 = vld [vmem:[%s1 + $0xe78] sm:$0xff]
  %v496 = vld [vmem:[%s1 + $0xe80] sm:$0xff]
  %v497 = vld [vmem:[%s1 + $0xe88] sm:$0xff]
  %v498 = vld [vmem:[%s1 + $0xe90] sm:$0xff]
  %v499 = vld [vmem:[%s1 + $0xe98] sm:$0xff]
  %v500 = vld [vmem:[%s1 + $0xea0] sm:$0xff]
  %v501 = vld [vmem:[%s1 + $0xea8] sm:$0xff]
  %v502 = vld [vmem:[%s1 + $0xeb0] sm:$0xff]
  %v503 = vld [vmem:[%s1 + $0xeb8] sm:$0xff]
  %v504 = vld [vmem:[%s1 + $0xec0] sm:$0xff]
  %v505 = vld [vmem:[%s1 + $0xec8] sm:$0xff]
  %v506 = vld [vmem:[%s1 + $0xed0] sm:$0xff]
  %v507 = vld [vmem:[%s1 + $0xed8] sm:$0xff]
  %v508 = vld [vmem:[%s1 + $0xee0] sm:$0xff]
  %v509 = vld [vmem:[%s1 + $0xee8] sm:$0xff]
  %v510 = vld [vmem:[%s1 + $0xef0] sm:$0xff]
  %v511 = vld [vmem:[%s1 + $0xef8] sm:$0xff]
  %v512 = vld [vmem:[%s1 + $0xf00] sm:$0xff]
  %v513 = vld [vmem:[%s1 + $0xf08] sm:$0xff]
  %v514 = vld [vmem:[%s1 + $0xf10] sm:$0xff]
  %v515 = vld [vmem:[%s1 + $0xf18] sm:$0xff]
  %v516 = vld [vmem:[%s1 + $0xf20] sm:$0xff]
  %v517 = vld [vmem:[%s1 + $0xf28] sm:$0xff]
  %v518 = vld [vmem:[%s1 + $0xf30] sm:$0xff]
  %v519 = vld [vmem:[%s1 + $0xf38] sm:$0xff]
  %v520 = vld [vmem:[%s1 + $0xf40] sm:$0xff]
  %v521 = vld [vmem:[%s1 + $0xf48] sm:$0xff]
  %v522 = vld [vmem:[%s1 + $0xf50] sm:$0xff]
  %v523 = vld [vmem:[%s1 + $0xf58] sm:$0xff]
  %v524 = vld [vmem:[%s1 + $0xf60] sm:$0xff]
  %v525 = vld [vmem:[%s1 + $0xf68] sm:$0xff]
  %v526 = vld [vmem:[%s1 + $0xf70] sm:$0xff]
  %v527 = vld [vmem:[%s1 + $0xf78] sm:$0xff]
  %v528 = vld [vmem:[%s1 + $0xf80] sm:$0xff]
  %v529 = vld [vmem:[%s1 + $0xf88] sm:$0xff]
  %v530 = vld [vmem:[%s1 + $0xf90] sm:$0xff]
  %v531 = vld [vmem:[%s1 + $0xf98] sm:$0xff]
  %v532 = vld [vmem:[%s1 + $0xfa0] sm:$0xff]
  %v533 = vld [vmem:[%s1 + $0xfa8] sm:$0xff]
  %v534 = vld [vmem:[%s1 + $0xfb0] sm:$0xff]
  %v535 = vld [vmem:[%s1 + $0xfb8] sm:$0xff]
  %v536 = vld [vmem:[%s1 + $0xfc0] sm:$0xff]
  %v537 = vld [vmem:[%s1 + $0xfc8] sm:$0xff]
  %v538 = vld [vmem:[%s1 + $0xfd0] sm:$0xff]
  %v539 = vld [vmem:[%s1 + $0xfd8] sm:$0xff]
  %v540 = vld [vmem:[%s1 + $0xfe0] sm:$0xff]
  %v541 = vld [vmem:[%s1 + $0xfe8] sm:$0xff]
  %v542 = vld [vmem:[%s1 + $0xff0] sm:$0xff]
  %v543 = vld [vmem:[%s1 + $0xff8] sm:$0xff]
  %v544 = vld [vmem:[%s1 + $0x1000] sm:$0xff]
  %v545 = vld [vmem:[%s1 + $0x1008] sm:$0xff]
  %v546 = vld [vmem:[%s1 + $0x1010] sm:$0xff]
  %v547 = vld [vmem:[%s1 + $0x1018] sm:$0xff]
  %v548 = vld [vmem:[%s1 + $0x1020] sm:$0xff]
  %v549 = vld [vmem:[%s1 + $0x1028] sm:$0xff]
  %v550 = vld [vmem:[%s1 + $0x1030] sm:$0xff]
  %v551 = vld [vmem:[%s1 + $0x1038] sm:$0xff]
  %v552 = vld [vmem:[%s1 + $0x1040] sm:$0xff]
  %v553 = vld [vmem:[%s1 + $0x1048] sm:$0xff]
  %v554 = vld [vmem:[%s1 + $0x1050] sm:$0xff]
  %v555 = vld [vmem:[%s1 + $0x1058] sm:$0xff]
  %v556 = vld [vmem:[%s1 + $0x1060] sm:$0xff]
  %v557 = vld [vmem:[%s1 + $0x1068] sm:$0xff]
  %v558 = vld [vmem:[%s1 + $0x1070] sm:$0xff]
  %v559 = vld [vmem:[%s1 + $0x1078] sm:$0xff]
  %v560 = vld [vmem:[%s1 + $0x1080] sm:$0xff]
  %v561 = vld [vmem:[%s1 + $0x1088] sm:$0xff]
  %v562 = vld [vmem:[%s1 + $0x1090] sm:$0xff]
  %v563 = vld [vmem:[%s1 + $0x1098] sm:$0xff]
  %v564 = vld [vmem:[%s1 + $0x10a0] sm:$0xff]
  %v565 = vld [vmem:[%s1 + $0x10a8] sm:$0xff]
  %v566 = vld [vmem:[%s1 + $0x10b0] sm:$0xff]
  %v567 = vld [vmem:[%s1 + $0x10b8] sm:$0xff]
  %v568 = vld [vmem:[%s1 + $0x10c0] sm:$0xff]
  %v569 = vld [vmem:[%s1 + $0x10c8] sm:$0xff]
  %v570 = vld [vmem:[%s1 + $0x10d0] sm:$0xff]
  %v571 = vld [vmem:[%s1 + $0x10d8] sm:$0xff]
  %v572 = vld [vmem:[%s1 + $0x10e0] sm:$0xff]
  %v573 = vld [vmem:[%s1 + $0x10e8] sm:$0xff]
  %v574 = vld [vmem:[%s1 + $0x10f0] sm:$0xff]
  %v575 = vld [vmem:[%s1 + $0x10f8] sm:$0xff]
  %v576 = vld [vmem:[%s1 + $0x1100] sm:$0xff]
  %v577 = vld [vmem:[%s1 + $0x1108] sm:$0xff]
  %v578 = vld [vmem:[%s1 + $0x1110] sm:$0xff]
  %v579 = vld [vmem:[%s1 + $0x1118] sm:$0xff]
  %v580 = vld [vmem:[%s1 + $0x1120] sm:$0xff]
  %v581 = vld [vmem:[%s1 + $0x1128] sm:$0xff]
  %v582 = vld [vmem:[%s1 + $0x1130] sm:$0xff]
  %v583 = vld [vmem:[%s1 + $0x1138] sm:$0xff]
  %v584 = vld [vmem:[%s1 + $0x1140] sm:$0xff]
  %v585 = vld [vmem:[%s1 + $0x1148] sm:$0xff]
  %v586 = vld [vmem:[%s1 + $0x1150] sm:$0xff]
  %v587 = vld [vmem:[%s1 + $0x1158] sm:$0xff]
  %v588 = vld [vmem:[%s1 + $0x1160] sm:$0xff]
  %v589 = vld [vmem:[%s1 + $0x1168] sm:$0xff]
  %v590 = vld [vmem:[%s1 + $0x1170] sm:$0xff]
  %v591 = vld [vmem:[%s1 + $0x1178] sm:$0xff]
  %v592 = vld [vmem:[%s1 + $0x1180] sm:$0xff]
  %v593 = vld [vmem:[%s1 + $0x1188] sm:$0xff]
  %v594 = vld [vmem:[%s1 + $0x1190] sm:$0xff]
  %v595 = vld [vmem:[%s1 + $0x1198] sm:$0xff]
  %v596 = vld [vmem:[%s1 + $0x11a0] sm:$0xff]
  %v597 = vld [vmem:[%s1 + $0x11a8] sm:$0xff]
  %v598 = vld [vmem:[%s1 + $0x11b0] sm:$0xff]
  %v599 = vld [vmem:[%s1 + $0x11b8] sm:$0xff]
  %v600 = vld [vmem:[%s1 + $0x11c0] sm:$0xff]
  %v601 = vld [vmem:[%s1 + $0x11c8] sm:$0xff]
  %v602 = vld [vmem:[%s1 + $0x11d0] sm:$0xff]
  %v603 = vld [vmem:[%s1 + $0x11d8] sm:$0xff]
  %v604 = vld [vmem:[%s1 + $0x11e0] sm:$0xff]
  %v605 = vld [vmem:[%s1 + $0x11e8] sm:$0xff]
  %v606 = vld [vmem:[%s1 + $0x11f0] sm:$0xff]
  %v607 = vld [vmem:[%s1 + $0x11f8] sm:$0xff]
  %v626 = vunpack.c.l.b16 %v14
  %v627 = vunpack.c.h.b16 %v14
  %v628 = vunpack.c.l.b16 %v15
  %v629 = vunpack.c.h.b16 %v15
  %v630 = vunpack.c.l.b16 %v16
  %v631 = vunpack.c.h.b16 %v16
  %v632 = vunpack.c.l.b16 %v17
  %v633 = vunpack.c.h.b16 %v17
  %v634 = vunpack.c.l.b16 %v18
  %v635 = vunpack.c.h.b16 %v18
  %v636 = vunpack.c.l.b16 %v19
  %v637 = vunpack.c.h.b16 %v19
  %v638 = vunpack.c.l.b16 %v20
  %v639 = vunpack.c.h.b16 %v20
  %v640 = vunpack.c.l.b16 %v21
  %v641 = vunpack.c.h.b16 %v21
  %v642 = vunpack.c.l.b16 %v22
  %v643 = vunpack.c.h.b16 %v22
  %v644 = vunpack.c.l.b16 %v23
  %v645 = vunpack.c.h.b16 %v23
  %v646 = vunpack.c.l.b16 %v24
  %v647 = vunpack.c.h.b16 %v24
  %v648 = vunpack.c.l.b16 %v25
  %v649 = vunpack.c.h.b16 %v25
  %v650 = vunpack.c.l.b16 %v26
  %v651 = vunpack.c.h.b16 %v26
  %v652 = vunpack.c.l.b16 %v27
  %v653 = vunpack.c.h.b16 %v27
  %v654 = vunpack.c.l.b16 %v28
  %v655 = vunpack.c.h.b16 %v28
  %v656 = vunpack.c.l.b16 %v29
  %v657 = vunpack.c.h.b16 %v29
  %v658 = vunpack.c.l.b16 %v30
  %v659 = vunpack.c.h.b16 %v30
  %v660 = vunpack.c.l.b16 %v31
  %v661 = vunpack.c.h.b16 %v31
  %v662 = vpack.c.b16 %v644, %v626
  %v663 = vpack.c.b16 %v645, %v627
  %v664 = vpack.c.b16 %v646, %v628
  %v665 = vpack.c.b16 %v647, %v629
  %v666 = vpack.c.b16 %v648, %v630
  %v667 = vpack.c.b16 %v649, %v631
  %v668 = vpack.c.b16 %v650, %v632
  %v669 = vpack.c.b16 %v651, %v633
  %v670 = vpack.c.b16 %v652, %v634
  %v671 = vpack.c.b16 %v653, %v635
  %v672 = vpack.c.b16 %v654, %v636
  %v673 = vpack.c.b16 %v655, %v637
  %v674 = vpack.c.b16 %v656, %v638
  %v675 = vpack.c.b16 %v657, %v639
  %v676 = vpack.c.b16 %v658, %v640
  %v677 = vpack.c.b16 %v659, %v641
  %v678 = vpack.c.b16 %v660, %v642
  %v679 = vpack.c.b16 %v661, %v643
  %v1274 = vunpack.c.l.b16 %v32
  %v1275 = vunpack.c.h.b16 %v32
  %v1276 = vunpack.c.l.b16 %v33
  %v1277 = vunpack.c.h.b16 %v33
  %v1278 = vunpack.c.l.b16 %v34
  %v1279 = vunpack.c.h.b16 %v34
  %v1280 = vunpack.c.l.b16 %v35
  %v1281 = vunpack.c.h.b16 %v35
  %v1282 = vunpack.c.l.b16 %v36
  %v1283 = vunpack.c.h.b16 %v36
  %v1284 = vunpack.c.l.b16 %v37
  %v1285 = vunpack.c.h.b16 %v37
  %v1286 = vunpack.c.l.b16 %v38
  %v1287 = vunpack.c.h.b16 %v38
  %v1288 = vunpack.c.l.b16 %v39
  %v1289 = vunpack.c.h.b16 %v39
  %v1290 = vunpack.c.l.b16 %v40
  %v1291 = vunpack.c.h.b16 %v40
  %v1292 = vunpack.c.l.b16 %v41
  %v1293 = vunpack.c.h.b16 %v41
  %v1294 = vunpack.c.l.b16 %v42
  %v1295 = vunpack.c.h.b16 %v42
  %v1296 = vunpack.c.l.b16 %v43
  %v1297 = vunpack.c.h.b16 %v43
  %v1298 = vunpack.c.l.b16 %v44
  %v1299 = vunpack.c.h.b16 %v44
  %v1300 = vunpack.c.l.b16 %v45
  %v1301 = vunpack.c.h.b16 %v45
  %v1302 = vunpack.c.l.b16 %v46
  %v1303 = vunpack.c.h.b16 %v46
  %v1304 = vunpack.c.l.b16 %v47
  %v1305 = vunpack.c.h.b16 %v47
  %v1306 = vunpack.c.l.b16 %v48
  %v1307 = vunpack.c.h.b16 %v48
  %v1308 = vunpack.c.l.b16 %v49
  %v1309 = vunpack.c.h.b16 %v49
  %v1310 = vunpack.c.l.b16 %v50
  %v1311 = vunpack.c.h.b16 %v50
  %v1312 = vunpack.c.l.b16 %v51
  %v1313 = vunpack.c.h.b16 %v51
  %v1314 = vunpack.c.l.b16 %v52
  %v1315 = vunpack.c.h.b16 %v52
  %v1316 = vunpack.c.l.b16 %v53
  %v1317 = vunpack.c.h.b16 %v53
  %v1318 = vunpack.c.l.b16 %v54
  %v1319 = vunpack.c.h.b16 %v54
  %v1320 = vunpack.c.l.b16 %v55
  %v1321 = vunpack.c.h.b16 %v55
  %v1322 = vunpack.c.l.b16 %v56
  %v1323 = vunpack.c.h.b16 %v56
  %v1324 = vunpack.c.l.b16 %v57
  %v1325 = vunpack.c.h.b16 %v57
  %v1326 = vunpack.c.l.b16 %v58
  %v1327 = vunpack.c.h.b16 %v58
  %v1328 = vunpack.c.l.b16 %v59
  %v1329 = vunpack.c.h.b16 %v59
  %v1330 = vunpack.c.l.b16 %v60
  %v1331 = vunpack.c.h.b16 %v60
  %v1332 = vunpack.c.l.b16 %v61
  %v1333 = vunpack.c.h.b16 %v61
  %v1334 = vunpack.c.l.b16 %v62
  %v1335 = vunpack.c.h.b16 %v62
  %v1336 = vunpack.c.l.b16 %v63
  %v1337 = vunpack.c.h.b16 %v63
  %v1338 = vunpack.c.l.b16 %v64
  %v1339 = vunpack.c.h.b16 %v64
  %v1340 = vunpack.c.l.b16 %v65
  %v1341 = vunpack.c.h.b16 %v65
  %v1342 = vunpack.c.l.b16 %v66
  %v1343 = vunpack.c.h.b16 %v66
  %v1344 = vunpack.c.l.b16 %v67
  %v1345 = vunpack.c.h.b16 %v67
  %v1346 = vunpack.c.l.b16 %v68
  %v1347 = vunpack.c.h.b16 %v68
  %v1348 = vunpack.c.l.b16 %v69
  %v1349 = vunpack.c.h.b16 %v69
  %v1350 = vunpack.c.l.b16 %v70
  %v1351 = vunpack.c.h.b16 %v70
  %v1352 = vunpack.c.l.b16 %v71
  %v1353 = vunpack.c.h.b16 %v71
  %v1354 = vunpack.c.l.b16 %v72
  %v1355 = vunpack.c.h.b16 %v72
  %v1356 = vunpack.c.l.b16 %v73
  %v1357 = vunpack.c.h.b16 %v73
  %v1358 = vunpack.c.l.b16 %v74
  %v1359 = vunpack.c.h.b16 %v74
  %v1360 = vunpack.c.l.b16 %v75
  %v1361 = vunpack.c.h.b16 %v75
  %v1362 = vunpack.c.l.b16 %v76
  %v1363 = vunpack.c.h.b16 %v76
  %v1364 = vunpack.c.l.b16 %v77
  %v1365 = vunpack.c.h.b16 %v77
  %v1366 = vunpack.c.l.b16 %v78
  %v1367 = vunpack.c.h.b16 %v78
  %v1368 = vunpack.c.l.b16 %v79
  %v1369 = vunpack.c.h.b16 %v79
  %v1370 = vunpack.c.l.b16 %v80
  %v1371 = vunpack.c.h.b16 %v80
  %v1372 = vunpack.c.l.b16 %v81
  %v1373 = vunpack.c.h.b16 %v81
  %v1374 = vunpack.c.l.b16 %v82
  %v1375 = vunpack.c.h.b16 %v82
  %v1376 = vunpack.c.l.b16 %v83
  %v1377 = vunpack.c.h.b16 %v83
  %v1378 = vunpack.c.l.b16 %v84
  %v1379 = vunpack.c.h.b16 %v84
  %v1380 = vunpack.c.l.b16 %v85
  %v1381 = vunpack.c.h.b16 %v85
  %v1382 = vunpack.c.l.b16 %v86
  %v1383 = vunpack.c.h.b16 %v86
  %v1384 = vunpack.c.l.b16 %v87
  %v1385 = vunpack.c.h.b16 %v87
  %v1386 = vunpack.c.l.b16 %v88
  %v1387 = vunpack.c.h.b16 %v88
  %v1388 = vunpack.c.l.b16 %v89
  %v1389 = vunpack.c.h.b16 %v89
  %v1390 = vunpack.c.l.b16 %v90
  %v1391 = vunpack.c.h.b16 %v90
  %v1392 = vunpack.c.l.b16 %v91
  %v1393 = vunpack.c.h.b16 %v91
  %v1394 = vunpack.c.l.b16 %v92
  %v1395 = vunpack.c.h.b16 %v92
  %v1396 = vunpack.c.l.b16 %v93
  %v1397 = vunpack.c.h.b16 %v93
  %v1398 = vunpack.c.l.b16 %v94
  %v1399 = vunpack.c.h.b16 %v94
  %v1400 = vunpack.c.l.b16 %v95
  %v1401 = vunpack.c.h.b16 %v95
  %v1402 = vunpack.c.l.b16 %v96
  %v1403 = vunpack.c.h.b16 %v96
  %v1404 = vunpack.c.l.b16 %v97
  %v1405 = vunpack.c.h.b16 %v97
  %v1406 = vunpack.c.l.b16 %v98
  %v1407 = vunpack.c.h.b16 %v98
  %v1408 = vunpack.c.l.b16 %v99
  %v1409 = vunpack.c.h.b16 %v99
  %v1410 = vunpack.c.l.b16 %v100
  %v1411 = vunpack.c.h.b16 %v100
  %v1412 = vunpack.c.l.b16 %v101
  %v1413 = vunpack.c.h.b16 %v101
  %v1414 = vunpack.c.l.b16 %v102
  %v1415 = vunpack.c.h.b16 %v102
  %v1416 = vunpack.c.l.b16 %v103
  %v1417 = vunpack.c.h.b16 %v103
  %v1418 = vunpack.c.l.b16 %v104
  %v1419 = vunpack.c.h.b16 %v104
  %v1420 = vunpack.c.l.b16 %v105
  %v1421 = vunpack.c.h.b16 %v105
  %v1422 = vunpack.c.l.b16 %v106
  %v1423 = vunpack.c.h.b16 %v106
  %v1424 = vunpack.c.l.b16 %v107
  %v1425 = vunpack.c.h.b16 %v107
  %v1426 = vunpack.c.l.b16 %v108
  %v1427 = vunpack.c.h.b16 %v108
  %v1428 = vunpack.c.l.b16 %v109
  %v1429 = vunpack.c.h.b16 %v109
  %v1430 = vunpack.c.l.b16 %v110
  %v1431 = vunpack.c.h.b16 %v110
  %v1432 = vunpack.c.l.b16 %v111
  %v1433 = vunpack.c.h.b16 %v111
  %v1434 = vunpack.c.l.b16 %v112
  %v1435 = vunpack.c.h.b16 %v112
  %v1436 = vunpack.c.l.b16 %v113
  %v1437 = vunpack.c.h.b16 %v113
  %v1438 = vunpack.c.l.b16 %v114
  %v1439 = vunpack.c.h.b16 %v114
  %v1440 = vunpack.c.l.b16 %v115
  %v1441 = vunpack.c.h.b16 %v115
  %v1442 = vunpack.c.l.b16 %v116
  %v1443 = vunpack.c.h.b16 %v116
  %v1444 = vunpack.c.l.b16 %v117
  %v1445 = vunpack.c.h.b16 %v117
  %v1446 = vunpack.c.l.b16 %v118
  %v1447 = vunpack.c.h.b16 %v118
  %v1448 = vunpack.c.l.b16 %v119
  %v1449 = vunpack.c.h.b16 %v119
  %v1450 = vunpack.c.l.b16 %v120
  %v1451 = vunpack.c.h.b16 %v120
  %v1452 = vunpack.c.l.b16 %v121
  %v1453 = vunpack.c.h.b16 %v121
  %v1454 = vunpack.c.l.b16 %v122
  %v1455 = vunpack.c.h.b16 %v122
  %v1456 = vunpack.c.l.b16 %v123
  %v1457 = vunpack.c.h.b16 %v123
  %v1458 = vunpack.c.l.b16 %v124
  %v1459 = vunpack.c.h.b16 %v124
  %v1460 = vunpack.c.l.b16 %v125
  %v1461 = vunpack.c.h.b16 %v125
  %v1462 = vunpack.c.l.b16 %v126
  %v1463 = vunpack.c.h.b16 %v126
  %v1464 = vunpack.c.l.b16 %v127
  %v1465 = vunpack.c.h.b16 %v127
  %v1466 = vunpack.c.l.b16 %v128
  %v1467 = vunpack.c.h.b16 %v128
  %v1468 = vunpack.c.l.b16 %v129
  %v1469 = vunpack.c.h.b16 %v129
  %v1470 = vunpack.c.l.b16 %v130
  %v1471 = vunpack.c.h.b16 %v130
  %v1472 = vunpack.c.l.b16 %v131
  %v1473 = vunpack.c.h.b16 %v131
  %v1474 = vunpack.c.l.b16 %v132
  %v1475 = vunpack.c.h.b16 %v132
  %v1476 = vunpack.c.l.b16 %v133
  %v1477 = vunpack.c.h.b16 %v133
  %v1478 = vunpack.c.l.b16 %v134
  %v1479 = vunpack.c.h.b16 %v134
  %v1480 = vunpack.c.l.b16 %v135
  %v1481 = vunpack.c.h.b16 %v135
  %v1482 = vunpack.c.l.b16 %v136
  %v1483 = vunpack.c.h.b16 %v136
  %v1484 = vunpack.c.l.b16 %v137
  %v1485 = vunpack.c.h.b16 %v137
  %v1486 = vunpack.c.l.b16 %v138
  %v1487 = vunpack.c.h.b16 %v138
  %v1488 = vunpack.c.l.b16 %v139
  %v1489 = vunpack.c.h.b16 %v139
  %v1490 = vunpack.c.l.b16 %v140
  %v1491 = vunpack.c.h.b16 %v140
  %v1492 = vunpack.c.l.b16 %v141
  %v1493 = vunpack.c.h.b16 %v141
  %v1494 = vunpack.c.l.b16 %v142
  %v1495 = vunpack.c.h.b16 %v142
  %v1496 = vunpack.c.l.b16 %v143
  %v1497 = vunpack.c.h.b16 %v143
  %v1498 = vunpack.c.l.b16 %v144
  %v1499 = vunpack.c.h.b16 %v144
  %v1500 = vunpack.c.l.b16 %v145
  %v1501 = vunpack.c.h.b16 %v145
  %v1502 = vunpack.c.l.b16 %v146
  %v1503 = vunpack.c.h.b16 %v146
  %v1504 = vunpack.c.l.b16 %v147
  %v1505 = vunpack.c.h.b16 %v147
  %v1506 = vunpack.c.l.b16 %v148
  %v1507 = vunpack.c.h.b16 %v148
  %v1508 = vunpack.c.l.b16 %v149
  %v1509 = vunpack.c.h.b16 %v149
  %v1510 = vunpack.c.l.b16 %v150
  %v1511 = vunpack.c.h.b16 %v150
  %v1512 = vunpack.c.l.b16 %v151
  %v1513 = vunpack.c.h.b16 %v151
  %v1514 = vunpack.c.l.b16 %v152
  %v1515 = vunpack.c.h.b16 %v152
  %v1516 = vunpack.c.l.b16 %v153
  %v1517 = vunpack.c.h.b16 %v153
  %v1518 = vunpack.c.l.b16 %v154
  %v1519 = vunpack.c.h.b16 %v154
  %v1520 = vunpack.c.l.b16 %v155
  %v1521 = vunpack.c.h.b16 %v155
  %v1522 = vunpack.c.l.b16 %v156
  %v1523 = vunpack.c.h.b16 %v156
  %v1524 = vunpack.c.l.b16 %v157
  %v1525 = vunpack.c.h.b16 %v157
  %v1526 = vunpack.c.l.b16 %v158
  %v1527 = vunpack.c.h.b16 %v158
  %v1528 = vunpack.c.l.b16 %v159
  %v1529 = vunpack.c.h.b16 %v159
  %v1530 = vunpack.c.l.b16 %v160
  %v1531 = vunpack.c.h.b16 %v160
  %v1532 = vunpack.c.l.b16 %v161
  %v1533 = vunpack.c.h.b16 %v161
  %v1534 = vunpack.c.l.b16 %v162
  %v1535 = vunpack.c.h.b16 %v162
  %v1536 = vunpack.c.l.b16 %v163
  %v1537 = vunpack.c.h.b16 %v163
  %v1538 = vunpack.c.l.b16 %v164
  %v1539 = vunpack.c.h.b16 %v164
  %v1540 = vunpack.c.l.b16 %v165
  %v1541 = vunpack.c.h.b16 %v165
  %v1542 = vunpack.c.l.b16 %v166
  %v1543 = vunpack.c.h.b16 %v166
  %v1544 = vunpack.c.l.b16 %v167
  %v1545 = vunpack.c.h.b16 %v167
  %v1546 = vunpack.c.l.b16 %v168
  %v1547 = vunpack.c.h.b16 %v168
  %v1548 = vunpack.c.l.b16 %v169
  %v1549 = vunpack.c.h.b16 %v169
  %v1550 = vunpack.c.l.b16 %v170
  %v1551 = vunpack.c.h.b16 %v170
  %v1552 = vunpack.c.l.b16 %v171
  %v1553 = vunpack.c.h.b16 %v171
  %v1554 = vunpack.c.l.b16 %v172
  %v1555 = vunpack.c.h.b16 %v172
  %v1556 = vunpack.c.l.b16 %v173
  %v1557 = vunpack.c.h.b16 %v173
  %v1558 = vunpack.c.l.b16 %v174
  %v1559 = vunpack.c.h.b16 %v174
  %v1560 = vunpack.c.l.b16 %v175
  %v1561 = vunpack.c.h.b16 %v175
  %v1562 = vunpack.c.l.b16 %v176
  %v1563 = vunpack.c.h.b16 %v176
  %v1564 = vunpack.c.l.b16 %v177
  %v1565 = vunpack.c.h.b16 %v177
  %v1566 = vunpack.c.l.b16 %v178
  %v1567 = vunpack.c.h.b16 %v178
  %v1568 = vunpack.c.l.b16 %v179
  %v1569 = vunpack.c.h.b16 %v179
  %v1570 = vunpack.c.l.b16 %v180
  %v1571 = vunpack.c.h.b16 %v180
  %v1572 = vunpack.c.l.b16 %v181
  %v1573 = vunpack.c.h.b16 %v181
  %v1574 = vunpack.c.l.b16 %v182
  %v1575 = vunpack.c.h.b16 %v182
  %v1576 = vunpack.c.l.b16 %v183
  %v1577 = vunpack.c.h.b16 %v183
  %v1578 = vunpack.c.l.b16 %v184
  %v1579 = vunpack.c.h.b16 %v184
  %v1580 = vunpack.c.l.b16 %v185
  %v1581 = vunpack.c.h.b16 %v185
  %v1582 = vunpack.c.l.b16 %v186
  %v1583 = vunpack.c.h.b16 %v186
  %v1584 = vunpack.c.l.b16 %v187
  %v1585 = vunpack.c.h.b16 %v187
  %v1586 = vunpack.c.l.b16 %v188
  %v1587 = vunpack.c.h.b16 %v188
  %v1588 = vunpack.c.l.b16 %v189
  %v1589 = vunpack.c.h.b16 %v189
  %v1590 = vunpack.c.l.b16 %v190
  %v1591 = vunpack.c.h.b16 %v190
  %v1592 = vunpack.c.l.b16 %v191
  %v1593 = vunpack.c.h.b16 %v191
  %v1594 = vunpack.c.l.b16 %v192
  %v1595 = vunpack.c.h.b16 %v192
  %v1596 = vunpack.c.l.b16 %v193
  %v1597 = vunpack.c.h.b16 %v193
  %v1598 = vunpack.c.l.b16 %v194
  %v1599 = vunpack.c.h.b16 %v194
  %v1600 = vunpack.c.l.b16 %v195
  %v1601 = vunpack.c.h.b16 %v195
  %v1602 = vunpack.c.l.b16 %v196
  %v1603 = vunpack.c.h.b16 %v196
  %v1604 = vunpack.c.l.b16 %v197
  %v1605 = vunpack.c.h.b16 %v197
  %v1606 = vunpack.c.l.b16 %v198
  %v1607 = vunpack.c.h.b16 %v198
  %v1608 = vunpack.c.l.b16 %v199
  %v1609 = vunpack.c.h.b16 %v199
  %v1610 = vunpack.c.l.b16 %v200
  %v1611 = vunpack.c.h.b16 %v200
  %v1612 = vunpack.c.l.b16 %v201
  %v1613 = vunpack.c.h.b16 %v201
  %v1614 = vunpack.c.l.b16 %v202
  %v1615 = vunpack.c.h.b16 %v202
  %v1616 = vunpack.c.l.b16 %v203
  %v1617 = vunpack.c.h.b16 %v203
  %v1618 = vunpack.c.l.b16 %v204
  %v1619 = vunpack.c.h.b16 %v204
  %v1620 = vunpack.c.l.b16 %v205
  %v1621 = vunpack.c.h.b16 %v205
  %v1622 = vunpack.c.l.b16 %v206
  %v1623 = vunpack.c.h.b16 %v206
  %v1624 = vunpack.c.l.b16 %v207
  %v1625 = vunpack.c.h.b16 %v207
  %v1626 = vunpack.c.l.b16 %v208
  %v1627 = vunpack.c.h.b16 %v208
  %v1628 = vunpack.c.l.b16 %v209
  %v1629 = vunpack.c.h.b16 %v209
  %v1630 = vunpack.c.l.b16 %v210
  %v1631 = vunpack.c.h.b16 %v210
  %v1632 = vunpack.c.l.b16 %v211
  %v1633 = vunpack.c.h.b16 %v211
  %v1634 = vunpack.c.l.b16 %v212
  %v1635 = vunpack.c.h.b16 %v212
  %v1636 = vunpack.c.l.b16 %v213
  %v1637 = vunpack.c.h.b16 %v213
  %v1638 = vunpack.c.l.b16 %v214
  %v1639 = vunpack.c.h.b16 %v214
  %v1640 = vunpack.c.l.b16 %v215
  %v1641 = vunpack.c.h.b16 %v215
  %v1642 = vunpack.c.l.b16 %v216
  %v1643 = vunpack.c.h.b16 %v216
  %v1644 = vunpack.c.l.b16 %v217
  %v1645 = vunpack.c.h.b16 %v217
  %v1646 = vunpack.c.l.b16 %v218
  %v1647 = vunpack.c.h.b16 %v218
  %v1648 = vunpack.c.l.b16 %v219
  %v1649 = vunpack.c.h.b16 %v219
  %v1650 = vunpack.c.l.b16 %v220
  %v1651 = vunpack.c.h.b16 %v220
  %v1652 = vunpack.c.l.b16 %v221
  %v1653 = vunpack.c.h.b16 %v221
  %v1654 = vunpack.c.l.b16 %v222
  %v1655 = vunpack.c.h.b16 %v222
  %v1656 = vunpack.c.l.b16 %v223
  %v1657 = vunpack.c.h.b16 %v223
  %v1658 = vunpack.c.l.b16 %v224
  %v1659 = vunpack.c.h.b16 %v224
  %v1660 = vunpack.c.l.b16 %v225
  %v1661 = vunpack.c.h.b16 %v225
  %v1662 = vunpack.c.l.b16 %v226
  %v1663 = vunpack.c.h.b16 %v226
  %v1664 = vunpack.c.l.b16 %v227
  %v1665 = vunpack.c.h.b16 %v227
  %v1666 = vunpack.c.l.b16 %v228
  %v1667 = vunpack.c.h.b16 %v228
  %v1668 = vunpack.c.l.b16 %v229
  %v1669 = vunpack.c.h.b16 %v229
  %v1670 = vunpack.c.l.b16 %v230
  %v1671 = vunpack.c.h.b16 %v230
  %v1672 = vunpack.c.l.b16 %v231
  %v1673 = vunpack.c.h.b16 %v231
  %v1674 = vunpack.c.l.b16 %v232
  %v1675 = vunpack.c.h.b16 %v232
  %v1676 = vunpack.c.l.b16 %v233
  %v1677 = vunpack.c.h.b16 %v233
  %v1678 = vunpack.c.l.b16 %v234
  %v1679 = vunpack.c.h.b16 %v234
  %v1680 = vunpack.c.l.b16 %v235
  %v1681 = vunpack.c.h.b16 %v235
  %v1682 = vunpack.c.l.b16 %v236
  %v1683 = vunpack.c.h.b16 %v236
  %v1684 = vunpack.c.l.b16 %v237
  %v1685 = vunpack.c.h.b16 %v237
  %v1686 = vunpack.c.l.b16 %v238
  %v1687 = vunpack.c.h.b16 %v238
  %v1688 = vunpack.c.l.b16 %v239
  %v1689 = vunpack.c.h.b16 %v239
  %v1690 = vunpack.c.l.b16 %v240
  %v1691 = vunpack.c.h.b16 %v240
  %v1692 = vunpack.c.l.b16 %v241
  %v1693 = vunpack.c.h.b16 %v241
  %v1694 = vunpack.c.l.b16 %v242
  %v1695 = vunpack.c.h.b16 %v242
  %v1696 = vunpack.c.l.b16 %v243
  %v1697 = vunpack.c.h.b16 %v243
  %v1698 = vunpack.c.l.b16 %v244
  %v1699 = vunpack.c.h.b16 %v244
  %v1700 = vunpack.c.l.b16 %v245
  %v1701 = vunpack.c.h.b16 %v245
  %v1702 = vunpack.c.l.b16 %v246
  %v1703 = vunpack.c.h.b16 %v246
  %v1704 = vunpack.c.l.b16 %v247
  %v1705 = vunpack.c.h.b16 %v247
  %v1706 = vunpack.c.l.b16 %v248
  %v1707 = vunpack.c.h.b16 %v248
  %v1708 = vunpack.c.l.b16 %v249
  %v1709 = vunpack.c.h.b16 %v249
  %v1710 = vunpack.c.l.b16 %v250
  %v1711 = vunpack.c.h.b16 %v250
  %v1712 = vunpack.c.l.b16 %v251
  %v1713 = vunpack.c.h.b16 %v251
  %v1714 = vunpack.c.l.b16 %v252
  %v1715 = vunpack.c.h.b16 %v252
  %v1716 = vunpack.c.l.b16 %v253
  %v1717 = vunpack.c.h.b16 %v253
  %v1718 = vunpack.c.l.b16 %v254
  %v1719 = vunpack.c.h.b16 %v254
  %v1720 = vunpack.c.l.b16 %v255
  %v1721 = vunpack.c.h.b16 %v255
  %v1722 = vunpack.c.l.b16 %v256
  %v1723 = vunpack.c.h.b16 %v256
  %v1724 = vunpack.c.l.b16 %v257
  %v1725 = vunpack.c.h.b16 %v257
  %v1726 = vunpack.c.l.b16 %v258
  %v1727 = vunpack.c.h.b16 %v258
  %v1728 = vunpack.c.l.b16 %v259
  %v1729 = vunpack.c.h.b16 %v259
  %v1730 = vunpack.c.l.b16 %v260
  %v1731 = vunpack.c.h.b16 %v260
  %v1732 = vunpack.c.l.b16 %v261
  %v1733 = vunpack.c.h.b16 %v261
  %v1734 = vunpack.c.l.b16 %v262
  %v1735 = vunpack.c.h.b16 %v262
  %v1736 = vunpack.c.l.b16 %v263
  %v1737 = vunpack.c.h.b16 %v263
  %v1738 = vunpack.c.l.b16 %v264
  %v1739 = vunpack.c.h.b16 %v264
  %v1740 = vunpack.c.l.b16 %v265
  %v1741 = vunpack.c.h.b16 %v265
  %v1742 = vunpack.c.l.b16 %v266
  %v1743 = vunpack.c.h.b16 %v266
  %v1744 = vunpack.c.l.b16 %v267
  %v1745 = vunpack.c.h.b16 %v267
  %v1746 = vunpack.c.l.b16 %v268
  %v1747 = vunpack.c.h.b16 %v268
  %v1748 = vunpack.c.l.b16 %v269
  %v1749 = vunpack.c.h.b16 %v269
  %v1750 = vunpack.c.l.b16 %v270
  %v1751 = vunpack.c.h.b16 %v270
  %v1752 = vunpack.c.l.b16 %v271
  %v1753 = vunpack.c.h.b16 %v271
  %v1754 = vunpack.c.l.b16 %v272
  %v1755 = vunpack.c.h.b16 %v272
  %v1756 = vunpack.c.l.b16 %v273
  %v1757 = vunpack.c.h.b16 %v273
  %v1758 = vunpack.c.l.b16 %v274
  %v1759 = vunpack.c.h.b16 %v274
  %v1760 = vunpack.c.l.b16 %v275
  %v1761 = vunpack.c.h.b16 %v275
  %v1762 = vunpack.c.l.b16 %v276
  %v1763 = vunpack.c.h.b16 %v276
  %v1764 = vunpack.c.l.b16 %v277
  %v1765 = vunpack.c.h.b16 %v277
  %v1766 = vunpack.c.l.b16 %v278
  %v1767 = vunpack.c.h.b16 %v278
  %v1768 = vunpack.c.l.b16 %v279
  %v1769 = vunpack.c.h.b16 %v279
  %v1770 = vunpack.c.l.b16 %v280
  %v1771 = vunpack.c.h.b16 %v280
  %v1772 = vunpack.c.l.b16 %v281
  %v1773 = vunpack.c.h.b16 %v281
  %v1774 = vunpack.c.l.b16 %v282
  %v1775 = vunpack.c.h.b16 %v282
  %v1776 = vunpack.c.l.b16 %v283
  %v1777 = vunpack.c.h.b16 %v283
  %v1778 = vunpack.c.l.b16 %v284
  %v1779 = vunpack.c.h.b16 %v284
  %v1780 = vunpack.c.l.b16 %v285
  %v1781 = vunpack.c.h.b16 %v285
  %v1782 = vunpack.c.l.b16 %v286
  %v1783 = vunpack.c.h.b16 %v286
  %v1784 = vunpack.c.l.b16 %v287
  %v1785 = vunpack.c.h.b16 %v287
  %v1786 = vunpack.c.l.b16 %v288
  %v1787 = vunpack.c.h.b16 %v288
  %v1788 = vunpack.c.l.b16 %v289
  %v1789 = vunpack.c.h.b16 %v289
  %v1790 = vunpack.c.l.b16 %v290
  %v1791 = vunpack.c.h.b16 %v290
  %v1792 = vunpack.c.l.b16 %v291
  %v1793 = vunpack.c.h.b16 %v291
  %v1794 = vunpack.c.l.b16 %v292
  %v1795 = vunpack.c.h.b16 %v292
  %v1796 = vunpack.c.l.b16 %v293
  %v1797 = vunpack.c.h.b16 %v293
  %v1798 = vunpack.c.l.b16 %v294
  %v1799 = vunpack.c.h.b16 %v294
  %v1800 = vunpack.c.l.b16 %v295
  %v1801 = vunpack.c.h.b16 %v295
  %v1802 = vunpack.c.l.b16 %v296
  %v1803 = vunpack.c.h.b16 %v296
  %v1804 = vunpack.c.l.b16 %v297
  %v1805 = vunpack.c.h.b16 %v297
  %v1806 = vunpack.c.l.b16 %v298
  %v1807 = vunpack.c.h.b16 %v298
  %v1808 = vunpack.c.l.b16 %v299
  %v1809 = vunpack.c.h.b16 %v299
  %v1810 = vunpack.c.l.b16 %v300
  %v1811 = vunpack.c.h.b16 %v300
  %v1812 = vunpack.c.l.b16 %v301
  %v1813 = vunpack.c.h.b16 %v301
  %v1814 = vunpack.c.l.b16 %v302
  %v1815 = vunpack.c.h.b16 %v302
  %v1816 = vunpack.c.l.b16 %v303
  %v1817 = vunpack.c.h.b16 %v303
  %v1818 = vunpack.c.l.b16 %v304
  %v1819 = vunpack.c.h.b16 %v304
  %v1820 = vunpack.c.l.b16 %v305
  %v1821 = vunpack.c.h.b16 %v305
  %v1822 = vunpack.c.l.b16 %v306
  %v1823 = vunpack.c.h.b16 %v306
  %v1824 = vunpack.c.l.b16 %v307
  %v1825 = vunpack.c.h.b16 %v307
  %v1826 = vunpack.c.l.b16 %v308
  %v1827 = vunpack.c.h.b16 %v308
  %v1828 = vunpack.c.l.b16 %v309
  %v1829 = vunpack.c.h.b16 %v309
  %v1830 = vunpack.c.l.b16 %v310
  %v1831 = vunpack.c.h.b16 %v310
  %v1832 = vunpack.c.l.b16 %v311
  %v1833 = vunpack.c.h.b16 %v311
  %v1834 = vunpack.c.l.b16 %v312
  %v1835 = vunpack.c.h.b16 %v312
  %v1836 = vunpack.c.l.b16 %v313
  %v1837 = vunpack.c.h.b16 %v313
  %v1838 = vunpack.c.l.b16 %v314
  %v1839 = vunpack.c.h.b16 %v314
  %v1840 = vunpack.c.l.b16 %v315
  %v1841 = vunpack.c.h.b16 %v315
  %v1842 = vunpack.c.l.b16 %v316
  %v1843 = vunpack.c.h.b16 %v316
  %v1844 = vunpack.c.l.b16 %v317
  %v1845 = vunpack.c.h.b16 %v317
  %v1846 = vunpack.c.l.b16 %v318
  %v1847 = vunpack.c.h.b16 %v318
  %v1848 = vunpack.c.l.b16 %v319
  %v1849 = vunpack.c.h.b16 %v319
  %v1850 = vunpack.c.l.b16 %v320
  %v1851 = vunpack.c.h.b16 %v320
  %v1852 = vunpack.c.l.b16 %v321
  %v1853 = vunpack.c.h.b16 %v321
  %v1854 = vunpack.c.l.b16 %v322
  %v1855 = vunpack.c.h.b16 %v322
  %v1856 = vunpack.c.l.b16 %v323
  %v1857 = vunpack.c.h.b16 %v323
  %v1858 = vunpack.c.l.b16 %v324
  %v1859 = vunpack.c.h.b16 %v324
  %v1860 = vunpack.c.l.b16 %v325
  %v1861 = vunpack.c.h.b16 %v325
  %v1862 = vunpack.c.l.b16 %v326
  %v1863 = vunpack.c.h.b16 %v326
  %v1864 = vunpack.c.l.b16 %v327
  %v1865 = vunpack.c.h.b16 %v327
  %v1866 = vunpack.c.l.b16 %v328
  %v1867 = vunpack.c.h.b16 %v328
  %v1868 = vunpack.c.l.b16 %v329
  %v1869 = vunpack.c.h.b16 %v329
  %v1870 = vunpack.c.l.b16 %v330
  %v1871 = vunpack.c.h.b16 %v330
  %v1872 = vunpack.c.l.b16 %v331
  %v1873 = vunpack.c.h.b16 %v331
  %v1874 = vunpack.c.l.b16 %v332
  %v1875 = vunpack.c.h.b16 %v332
  %v1876 = vunpack.c.l.b16 %v333
  %v1877 = vunpack.c.h.b16 %v333
  %v1878 = vunpack.c.l.b16 %v334
  %v1879 = vunpack.c.h.b16 %v334
  %v1880 = vunpack.c.l.b16 %v335
  %v1881 = vunpack.c.h.b16 %v335
  %v1882 = vunpack.c.l.b16 %v336
  %v1883 = vunpack.c.h.b16 %v336
  %v1884 = vunpack.c.l.b16 %v337
  %v1885 = vunpack.c.h.b16 %v337
  %v1886 = vunpack.c.l.b16 %v338
  %v1887 = vunpack.c.h.b16 %v338
  %v1888 = vunpack.c.l.b16 %v339
  %v1889 = vunpack.c.h.b16 %v339
  %v1890 = vunpack.c.l.b16 %v340
  %v1891 = vunpack.c.h.b16 %v340
  %v1892 = vunpack.c.l.b16 %v341
  %v1893 = vunpack.c.h.b16 %v341
  %v1894 = vunpack.c.l.b16 %v342
  %v1895 = vunpack.c.h.b16 %v342
  %v1896 = vunpack.c.l.b16 %v343
  %v1897 = vunpack.c.h.b16 %v343
  %v1898 = vunpack.c.l.b16 %v344
  %v1899 = vunpack.c.h.b16 %v344
  %v1900 = vunpack.c.l.b16 %v345
  %v1901 = vunpack.c.h.b16 %v345
  %v1902 = vunpack.c.l.b16 %v346
  %v1903 = vunpack.c.h.b16 %v346
  %v1904 = vunpack.c.l.b16 %v347
  %v1905 = vunpack.c.h.b16 %v347
  %v1906 = vunpack.c.l.b16 %v348
  %v1907 = vunpack.c.h.b16 %v348
  %v1908 = vunpack.c.l.b16 %v349
  %v1909 = vunpack.c.h.b16 %v349
  %v1910 = vunpack.c.l.b16 %v350
  %v1911 = vunpack.c.h.b16 %v350
  %v1912 = vunpack.c.l.b16 %v351
  %v1913 = vunpack.c.h.b16 %v351
  %v1914 = vunpack.c.l.b16 %v352
  %v1915 = vunpack.c.h.b16 %v352
  %v1916 = vunpack.c.l.b16 %v353
  %v1917 = vunpack.c.h.b16 %v353
  %v1918 = vunpack.c.l.b16 %v354
  %v1919 = vunpack.c.h.b16 %v354
  %v1920 = vunpack.c.l.b16 %v355
  %v1921 = vunpack.c.h.b16 %v355
  %v1922 = vunpack.c.l.b16 %v356
  %v1923 = vunpack.c.h.b16 %v356
  %v1924 = vunpack.c.l.b16 %v357
  %v1925 = vunpack.c.h.b16 %v357
  %v1926 = vunpack.c.l.b16 %v358
  %v1927 = vunpack.c.h.b16 %v358
  %v1928 = vunpack.c.l.b16 %v359
  %v1929 = vunpack.c.h.b16 %v359
  %v1930 = vunpack.c.l.b16 %v360
  %v1931 = vunpack.c.h.b16 %v360
  %v1932 = vunpack.c.l.b16 %v361
  %v1933 = vunpack.c.h.b16 %v361
  %v1934 = vunpack.c.l.b16 %v362
  %v1935 = vunpack.c.h.b16 %v362
  %v1936 = vunpack.c.l.b16 %v363
  %v1937 = vunpack.c.h.b16 %v363
  %v1938 = vunpack.c.l.b16 %v364
  %v1939 = vunpack.c.h.b16 %v364
  %v1940 = vunpack.c.l.b16 %v365
  %v1941 = vunpack.c.h.b16 %v365
  %v1942 = vunpack.c.l.b16 %v366
  %v1943 = vunpack.c.h.b16 %v366
  %v1944 = vunpack.c.l.b16 %v367
  %v1945 = vunpack.c.h.b16 %v367
  %v1946 = vunpack.c.l.b16 %v368
  %v1947 = vunpack.c.h.b16 %v368
  %v1948 = vunpack.c.l.b16 %v369
  %v1949 = vunpack.c.h.b16 %v369
  %v1950 = vunpack.c.l.b16 %v370
  %v1951 = vunpack.c.h.b16 %v370
  %v1952 = vunpack.c.l.b16 %v371
  %v1953 = vunpack.c.h.b16 %v371
  %v1954 = vunpack.c.l.b16 %v372
  %v1955 = vunpack.c.h.b16 %v372
  %v1956 = vunpack.c.l.b16 %v373
  %v1957 = vunpack.c.h.b16 %v373
  %v1958 = vunpack.c.l.b16 %v374
  %v1959 = vunpack.c.h.b16 %v374
  %v1960 = vunpack.c.l.b16 %v375
  %v1961 = vunpack.c.h.b16 %v375
  %v1962 = vunpack.c.l.b16 %v376
  %v1963 = vunpack.c.h.b16 %v376
  %v1964 = vunpack.c.l.b16 %v377
  %v1965 = vunpack.c.h.b16 %v377
  %v1966 = vunpack.c.l.b16 %v378
  %v1967 = vunpack.c.h.b16 %v378
  %v1968 = vunpack.c.l.b16 %v379
  %v1969 = vunpack.c.h.b16 %v379
  %v1970 = vunpack.c.l.b16 %v380
  %v1971 = vunpack.c.h.b16 %v380
  %v1972 = vunpack.c.l.b16 %v381
  %v1973 = vunpack.c.h.b16 %v381
  %v1974 = vunpack.c.l.b16 %v382
  %v1975 = vunpack.c.h.b16 %v382
  %v1976 = vunpack.c.l.b16 %v383
  %v1977 = vunpack.c.h.b16 %v383
  %v1978 = vunpack.c.l.b16 %v384
  %v1979 = vunpack.c.h.b16 %v384
  %v1980 = vunpack.c.l.b16 %v385
  %v1981 = vunpack.c.h.b16 %v385
  %v1982 = vunpack.c.l.b16 %v386
  %v1983 = vunpack.c.h.b16 %v386
  %v1984 = vunpack.c.l.b16 %v387
  %v1985 = vunpack.c.h.b16 %v387
  %v1986 = vunpack.c.l.b16 %v388
  %v1987 = vunpack.c.h.b16 %v388
  %v1988 = vunpack.c.l.b16 %v389
  %v1989 = vunpack.c.h.b16 %v389
  %v1990 = vunpack.c.l.b16 %v390
  %v1991 = vunpack.c.h.b16 %v390
  %v1992 = vunpack.c.l.b16 %v391
  %v1993 = vunpack.c.h.b16 %v391
  %v1994 = vunpack.c.l.b16 %v392
  %v1995 = vunpack.c.h.b16 %v392
  %v1996 = vunpack.c.l.b16 %v393
  %v1997 = vunpack.c.h.b16 %v393
  %v1998 = vunpack.c.l.b16 %v394
  %v1999 = vunpack.c.h.b16 %v394
  %v2000 = vunpack.c.l.b16 %v395
  %v2001 = vunpack.c.h.b16 %v395
  %v2002 = vunpack.c.l.b16 %v396
  %v2003 = vunpack.c.h.b16 %v396
  %v2004 = vunpack.c.l.b16 %v397
  %v2005 = vunpack.c.h.b16 %v397
  %v2006 = vunpack.c.l.b16 %v398
  %v2007 = vunpack.c.h.b16 %v398
  %v2008 = vunpack.c.l.b16 %v399
  %v2009 = vunpack.c.h.b16 %v399
  %v2010 = vunpack.c.l.b16 %v400
  %v2011 = vunpack.c.h.b16 %v400
  %v2012 = vunpack.c.l.b16 %v401
  %v2013 = vunpack.c.h.b16 %v401
  %v2014 = vunpack.c.l.b16 %v402
  %v2015 = vunpack.c.h.b16 %v402
  %v2016 = vunpack.c.l.b16 %v403
  %v2017 = vunpack.c.h.b16 %v403
  %v2018 = vunpack.c.l.b16 %v404
  %v2019 = vunpack.c.h.b16 %v404
  %v2020 = vunpack.c.l.b16 %v405
  %v2021 = vunpack.c.h.b16 %v405
  %v2022 = vunpack.c.l.b16 %v406
  %v2023 = vunpack.c.h.b16 %v406
  %v2024 = vunpack.c.l.b16 %v407
  %v2025 = vunpack.c.h.b16 %v407
  %v2026 = vunpack.c.l.b16 %v408
  %v2027 = vunpack.c.h.b16 %v408
  %v2028 = vunpack.c.l.b16 %v409
  %v2029 = vunpack.c.h.b16 %v409
  %v2030 = vunpack.c.l.b16 %v410
  %v2031 = vunpack.c.h.b16 %v410
  %v2032 = vunpack.c.l.b16 %v411
  %v2033 = vunpack.c.h.b16 %v411
  %v2034 = vunpack.c.l.b16 %v412
  %v2035 = vunpack.c.h.b16 %v412
  %v2036 = vunpack.c.l.b16 %v413
  %v2037 = vunpack.c.h.b16 %v413
  %v2038 = vunpack.c.l.b16 %v414
  %v2039 = vunpack.c.h.b16 %v414
  %v2040 = vunpack.c.l.b16 %v415
  %v2041 = vunpack.c.h.b16 %v415
  %v2042 = vunpack.c.l.b16 %v416
  %v2043 = vunpack.c.h.b16 %v416
  %v2044 = vunpack.c.l.b16 %v417
  %v2045 = vunpack.c.h.b16 %v417
  %v2046 = vunpack.c.l.b16 %v418
  %v2047 = vunpack.c.h.b16 %v418
  %v2048 = vunpack.c.l.b16 %v419
  %v2049 = vunpack.c.h.b16 %v419
  %v2050 = vunpack.c.l.b16 %v420
  %v2051 = vunpack.c.h.b16 %v420
  %v2052 = vunpack.c.l.b16 %v421
  %v2053 = vunpack.c.h.b16 %v421
  %v2054 = vunpack.c.l.b16 %v422
  %v2055 = vunpack.c.h.b16 %v422
  %v2056 = vunpack.c.l.b16 %v423
  %v2057 = vunpack.c.h.b16 %v423
  %v2058 = vunpack.c.l.b16 %v424
  %v2059 = vunpack.c.h.b16 %v424
  %v2060 = vunpack.c.l.b16 %v425
  %v2061 = vunpack.c.h.b16 %v425
  %v2062 = vunpack.c.l.b16 %v426
  %v2063 = vunpack.c.h.b16 %v426
  %v2064 = vunpack.c.l.b16 %v427
  %v2065 = vunpack.c.h.b16 %v427
  %v2066 = vunpack.c.l.b16 %v428
  %v2067 = vunpack.c.h.b16 %v428
  %v2068 = vunpack.c.l.b16 %v429
  %v2069 = vunpack.c.h.b16 %v429
  %v2070 = vunpack.c.l.b16 %v430
  %v2071 = vunpack.c.h.b16 %v430
  %v2072 = vunpack.c.l.b16 %v431
  %v2073 = vunpack.c.h.b16 %v431
  %v2074 = vunpack.c.l.b16 %v432
  %v2075 = vunpack.c.h.b16 %v432
  %v2076 = vunpack.c.l.b16 %v433
  %v2077 = vunpack.c.h.b16 %v433
  %v2078 = vunpack.c.l.b16 %v434
  %v2079 = vunpack.c.h.b16 %v434
  %v2080 = vunpack.c.l.b16 %v435
  %v2081 = vunpack.c.h.b16 %v435
  %v2082 = vunpack.c.l.b16 %v436
  %v2083 = vunpack.c.h.b16 %v436
  %v2084 = vunpack.c.l.b16 %v437
  %v2085 = vunpack.c.h.b16 %v437
  %v2086 = vunpack.c.l.b16 %v438
  %v2087 = vunpack.c.h.b16 %v438
  %v2088 = vunpack.c.l.b16 %v439
  %v2089 = vunpack.c.h.b16 %v439
  %v2090 = vunpack.c.l.b16 %v440
  %v2091 = vunpack.c.h.b16 %v440
  %v2092 = vunpack.c.l.b16 %v441
  %v2093 = vunpack.c.h.b16 %v441
  %v2094 = vunpack.c.l.b16 %v442
  %v2095 = vunpack.c.h.b16 %v442
  %v2096 = vunpack.c.l.b16 %v443
  %v2097 = vunpack.c.h.b16 %v443
  %v2098 = vunpack.c.l.b16 %v444
  %v2099 = vunpack.c.h.b16 %v444
  %v2100 = vunpack.c.l.b16 %v445
  %v2101 = vunpack.c.h.b16 %v445
  %v2102 = vunpack.c.l.b16 %v446
  %v2103 = vunpack.c.h.b16 %v446
  %v2104 = vunpack.c.l.b16 %v447
  %v2105 = vunpack.c.h.b16 %v447
  %v2106 = vunpack.c.l.b16 %v448
  %v2107 = vunpack.c.h.b16 %v448
  %v2108 = vunpack.c.l.b16 %v449
  %v2109 = vunpack.c.h.b16 %v449
  %v2110 = vunpack.c.l.b16 %v450
  %v2111 = vunpack.c.h.b16 %v450
  %v2112 = vunpack.c.l.b16 %v451
  %v2113 = vunpack.c.h.b16 %v451
  %v2114 = vunpack.c.l.b16 %v452
  %v2115 = vunpack.c.h.b16 %v452
  %v2116 = vunpack.c.l.b16 %v453
  %v2117 = vunpack.c.h.b16 %v453
  %v2118 = vunpack.c.l.b16 %v454
  %v2119 = vunpack.c.h.b16 %v454
  %v2120 = vunpack.c.l.b16 %v455
  %v2121 = vunpack.c.h.b16 %v455
  %v2122 = vunpack.c.l.b16 %v456
  %v2123 = vunpack.c.h.b16 %v456
  %v2124 = vunpack.c.l.b16 %v457
  %v2125 = vunpack.c.h.b16 %v457
  %v2126 = vunpack.c.l.b16 %v458
  %v2127 = vunpack.c.h.b16 %v458
  %v2128 = vunpack.c.l.b16 %v459
  %v2129 = vunpack.c.h.b16 %v459
  %v2130 = vunpack.c.l.b16 %v460
  %v2131 = vunpack.c.h.b16 %v460
  %v2132 = vunpack.c.l.b16 %v461
  %v2133 = vunpack.c.h.b16 %v461
  %v2134 = vunpack.c.l.b16 %v462
  %v2135 = vunpack.c.h.b16 %v462
  %v2136 = vunpack.c.l.b16 %v463
  %v2137 = vunpack.c.h.b16 %v463
  %v2138 = vunpack.c.l.b16 %v464
  %v2139 = vunpack.c.h.b16 %v464
  %v2140 = vunpack.c.l.b16 %v465
  %v2141 = vunpack.c.h.b16 %v465
  %v2142 = vunpack.c.l.b16 %v466
  %v2143 = vunpack.c.h.b16 %v466
  %v2144 = vunpack.c.l.b16 %v467
  %v2145 = vunpack.c.h.b16 %v467
  %v2146 = vunpack.c.l.b16 %v468
  %v2147 = vunpack.c.h.b16 %v468
  %v2148 = vunpack.c.l.b16 %v469
  %v2149 = vunpack.c.h.b16 %v469
  %v2150 = vunpack.c.l.b16 %v470
  %v2151 = vunpack.c.h.b16 %v470
  %v2152 = vunpack.c.l.b16 %v471
  %v2153 = vunpack.c.h.b16 %v471
  %v2154 = vunpack.c.l.b16 %v472
  %v2155 = vunpack.c.h.b16 %v472
  %v2156 = vunpack.c.l.b16 %v473
  %v2157 = vunpack.c.h.b16 %v473
  %v2158 = vunpack.c.l.b16 %v474
  %v2159 = vunpack.c.h.b16 %v474
  %v2160 = vunpack.c.l.b16 %v475
  %v2161 = vunpack.c.h.b16 %v475
  %v2162 = vunpack.c.l.b16 %v476
  %v2163 = vunpack.c.h.b16 %v476
  %v2164 = vunpack.c.l.b16 %v477
  %v2165 = vunpack.c.h.b16 %v477
  %v2166 = vunpack.c.l.b16 %v478
  %v2167 = vunpack.c.h.b16 %v478
  %v2168 = vunpack.c.l.b16 %v479
  %v2169 = vunpack.c.h.b16 %v479
  %v2170 = vunpack.c.l.b16 %v480
  %v2171 = vunpack.c.h.b16 %v480
  %v2172 = vunpack.c.l.b16 %v481
  %v2173 = vunpack.c.h.b16 %v481
  %v2174 = vunpack.c.l.b16 %v482
  %v2175 = vunpack.c.h.b16 %v482
  %v2176 = vunpack.c.l.b16 %v483
  %v2177 = vunpack.c.h.b16 %v483
  %v2178 = vunpack.c.l.b16 %v484
  %v2179 = vunpack.c.h.b16 %v484
  %v2180 = vunpack.c.l.b16 %v485
  %v2181 = vunpack.c.h.b16 %v485
  %v2182 = vunpack.c.l.b16 %v486
  %v2183 = vunpack.c.h.b16 %v486
  %v2184 = vunpack.c.l.b16 %v487
  %v2185 = vunpack.c.h.b16 %v487
  %v2186 = vunpack.c.l.b16 %v488
  %v2187 = vunpack.c.h.b16 %v488
  %v2188 = vunpack.c.l.b16 %v489
  %v2189 = vunpack.c.h.b16 %v489
  %v2190 = vunpack.c.l.b16 %v490
  %v2191 = vunpack.c.h.b16 %v490
  %v2192 = vunpack.c.l.b16 %v491
  %v2193 = vunpack.c.h.b16 %v491
  %v2194 = vunpack.c.l.b16 %v492
  %v2195 = vunpack.c.h.b16 %v492
  %v2196 = vunpack.c.l.b16 %v493
  %v2197 = vunpack.c.h.b16 %v493
  %v2198 = vunpack.c.l.b16 %v494
  %v2199 = vunpack.c.h.b16 %v494
  %v2200 = vunpack.c.l.b16 %v495
  %v2201 = vunpack.c.h.b16 %v495
  %v2202 = vunpack.c.l.b16 %v496
  %v2203 = vunpack.c.h.b16 %v496
  %v2204 = vunpack.c.l.b16 %v497
  %v2205 = vunpack.c.h.b16 %v497
  %v2206 = vunpack.c.l.b16 %v498
  %v2207 = vunpack.c.h.b16 %v498
  %v2208 = vunpack.c.l.b16 %v499
  %v2209 = vunpack.c.h.b16 %v499
  %v2210 = vunpack.c.l.b16 %v500
  %v2211 = vunpack.c.h.b16 %v500
  %v2212 = vunpack.c.l.b16 %v501
  %v2213 = vunpack.c.h.b16 %v501
  %v2214 = vunpack.c.l.b16 %v502
  %v2215 = vunpack.c.h.b16 %v502
  %v2216 = vunpack.c.l.b16 %v503
  %v2217 = vunpack.c.h.b16 %v503
  %v2218 = vunpack.c.l.b16 %v504
  %v2219 = vunpack.c.h.b16 %v504
  %v2220 = vunpack.c.l.b16 %v505
  %v2221 = vunpack.c.h.b16 %v505
  %v2222 = vunpack.c.l.b16 %v506
  %v2223 = vunpack.c.h.b16 %v506
  %v2224 = vunpack.c.l.b16 %v507
  %v2225 = vunpack.c.h.b16 %v507
  %v2226 = vunpack.c.l.b16 %v508
  %v2227 = vunpack.c.h.b16 %v508
  %v2228 = vunpack.c.l.b16 %v509
  %v2229 = vunpack.c.h.b16 %v509
  %v2230 = vunpack.c.l.b16 %v510
  %v2231 = vunpack.c.h.b16 %v510
  %v2232 = vunpack.c.l.b16 %v511
  %v2233 = vunpack.c.h.b16 %v511
  %v2234 = vunpack.c.l.b16 %v512
  %v2235 = vunpack.c.h.b16 %v512
  %v2236 = vunpack.c.l.b16 %v513
  %v2237 = vunpack.c.h.b16 %v513
  %v2238 = vunpack.c.l.b16 %v514
  %v2239 = vunpack.c.h.b16 %v514
  %v2240 = vunpack.c.l.b16 %v515
  %v2241 = vunpack.c.h.b16 %v515
  %v2242 = vunpack.c.l.b16 %v516
  %v2243 = vunpack.c.h.b16 %v516
  %v2244 = vunpack.c.l.b16 %v517
  %v2245 = vunpack.c.h.b16 %v517
  %v2246 = vunpack.c.l.b16 %v518
  %v2247 = vunpack.c.h.b16 %v518
  %v2248 = vunpack.c.l.b16 %v519
  %v2249 = vunpack.c.h.b16 %v519
  %v2250 = vunpack.c.l.b16 %v520
  %v2251 = vunpack.c.h.b16 %v520
  %v2252 = vunpack.c.l.b16 %v521
  %v2253 = vunpack.c.h.b16 %v521
  %v2254 = vunpack.c.l.b16 %v522
  %v2255 = vunpack.c.h.b16 %v522
  %v2256 = vunpack.c.l.b16 %v523
  %v2257 = vunpack.c.h.b16 %v523
  %v2258 = vunpack.c.l.b16 %v524
  %v2259 = vunpack.c.h.b16 %v524
  %v2260 = vunpack.c.l.b16 %v525
  %v2261 = vunpack.c.h.b16 %v525
  %v2262 = vunpack.c.l.b16 %v526
  %v2263 = vunpack.c.h.b16 %v526
  %v2264 = vunpack.c.l.b16 %v527
  %v2265 = vunpack.c.h.b16 %v527
  %v2266 = vunpack.c.l.b16 %v528
  %v2267 = vunpack.c.h.b16 %v528
  %v2268 = vunpack.c.l.b16 %v529
  %v2269 = vunpack.c.h.b16 %v529
  %v2270 = vunpack.c.l.b16 %v530
  %v2271 = vunpack.c.h.b16 %v530
  %v2272 = vunpack.c.l.b16 %v531
  %v2273 = vunpack.c.h.b16 %v531
  %v2274 = vunpack.c.l.b16 %v532
  %v2275 = vunpack.c.h.b16 %v532
  %v2276 = vunpack.c.l.b16 %v533
  %v2277 = vunpack.c.h.b16 %v533
  %v2278 = vunpack.c.l.b16 %v534
  %v2279 = vunpack.c.h.b16 %v534
  %v2280 = vunpack.c.l.b16 %v535
  %v2281 = vunpack.c.h.b16 %v535
  %v2282 = vunpack.c.l.b16 %v536
  %v2283 = vunpack.c.h.b16 %v536
  %v2284 = vunpack.c.l.b16 %v537
  %v2285 = vunpack.c.h.b16 %v537
  %v2286 = vunpack.c.l.b16 %v538
  %v2287 = vunpack.c.h.b16 %v538
  %v2288 = vunpack.c.l.b16 %v539
  %v2289 = vunpack.c.h.b16 %v539
  %v2290 = vunpack.c.l.b16 %v540
  %v2291 = vunpack.c.h.b16 %v540
  %v2292 = vunpack.c.l.b16 %v541
  %v2293 = vunpack.c.h.b16 %v541
  %v2294 = vunpack.c.l.b16 %v542
  %v2295 = vunpack.c.h.b16 %v542
  %v2296 = vunpack.c.l.b16 %v543
  %v2297 = vunpack.c.h.b16 %v543
  %v2298 = vunpack.c.l.b16 %v544
  %v2299 = vunpack.c.h.b16 %v544
  %v2300 = vunpack.c.l.b16 %v545
  %v2301 = vunpack.c.h.b16 %v545
  %v2302 = vunpack.c.l.b16 %v546
  %v2303 = vunpack.c.h.b16 %v546
  %v2304 = vunpack.c.l.b16 %v547
  %v2305 = vunpack.c.h.b16 %v547
  %v2306 = vunpack.c.l.b16 %v548
  %v2307 = vunpack.c.h.b16 %v548
  %v2308 = vunpack.c.l.b16 %v549
  %v2309 = vunpack.c.h.b16 %v549
  %v2310 = vunpack.c.l.b16 %v550
  %v2311 = vunpack.c.h.b16 %v550
  %v2312 = vunpack.c.l.b16 %v551
  %v2313 = vunpack.c.h.b16 %v551
  %v2314 = vunpack.c.l.b16 %v552
  %v2315 = vunpack.c.h.b16 %v552
  %v2316 = vunpack.c.l.b16 %v553
  %v2317 = vunpack.c.h.b16 %v553
  %v2318 = vunpack.c.l.b16 %v554
  %v2319 = vunpack.c.h.b16 %v554
  %v2320 = vunpack.c.l.b16 %v555
  %v2321 = vunpack.c.h.b16 %v555
  %v2322 = vunpack.c.l.b16 %v556
  %v2323 = vunpack.c.h.b16 %v556
  %v2324 = vunpack.c.l.b16 %v557
  %v2325 = vunpack.c.h.b16 %v557
  %v2326 = vunpack.c.l.b16 %v558
  %v2327 = vunpack.c.h.b16 %v558
  %v2328 = vunpack.c.l.b16 %v559
  %v2329 = vunpack.c.h.b16 %v559
  %v2330 = vunpack.c.l.b16 %v560
  %v2331 = vunpack.c.h.b16 %v560
  %v2332 = vunpack.c.l.b16 %v561
  %v2333 = vunpack.c.h.b16 %v561
  %v2334 = vunpack.c.l.b16 %v562
  %v2335 = vunpack.c.h.b16 %v562
  %v2336 = vunpack.c.l.b16 %v563
  %v2337 = vunpack.c.h.b16 %v563
  %v2338 = vunpack.c.l.b16 %v564
  %v2339 = vunpack.c.h.b16 %v564
  %v2340 = vunpack.c.l.b16 %v565
  %v2341 = vunpack.c.h.b16 %v565
  %v2342 = vunpack.c.l.b16 %v566
  %v2343 = vunpack.c.h.b16 %v566
  %v2344 = vunpack.c.l.b16 %v567
  %v2345 = vunpack.c.h.b16 %v567
  %v2346 = vunpack.c.l.b16 %v568
  %v2347 = vunpack.c.h.b16 %v568
  %v2348 = vunpack.c.l.b16 %v569
  %v2349 = vunpack.c.h.b16 %v569
  %v2350 = vunpack.c.l.b16 %v570
  %v2351 = vunpack.c.h.b16 %v570
  %v2352 = vunpack.c.l.b16 %v571
  %v2353 = vunpack.c.h.b16 %v571
  %v2354 = vunpack.c.l.b16 %v572
  %v2355 = vunpack.c.h.b16 %v572
  %v2356 = vunpack.c.l.b16 %v573
  %v2357 = vunpack.c.h.b16 %v573
  %v2358 = vunpack.c.l.b16 %v574
  %v2359 = vunpack.c.h.b16 %v574
  %v2360 = vunpack.c.l.b16 %v575
  %v2361 = vunpack.c.h.b16 %v575
  %v2362 = vunpack.c.l.b16 %v576
  %v2363 = vunpack.c.h.b16 %v576
  %v2364 = vunpack.c.l.b16 %v577
  %v2365 = vunpack.c.h.b16 %v577
  %v2366 = vunpack.c.l.b16 %v578
  %v2367 = vunpack.c.h.b16 %v578
  %v2368 = vunpack.c.l.b16 %v579
  %v2369 = vunpack.c.h.b16 %v579
  %v2370 = vunpack.c.l.b16 %v580
  %v2371 = vunpack.c.h.b16 %v580
  %v2372 = vunpack.c.l.b16 %v581
  %v2373 = vunpack.c.h.b16 %v581
  %v2374 = vunpack.c.l.b16 %v582
  %v2375 = vunpack.c.h.b16 %v582
  %v2376 = vunpack.c.l.b16 %v583
  %v2377 = vunpack.c.h.b16 %v583
  %v2378 = vunpack.c.l.b16 %v584
  %v2379 = vunpack.c.h.b16 %v584
  %v2380 = vunpack.c.l.b16 %v585
  %v2381 = vunpack.c.h.b16 %v585
  %v2382 = vunpack.c.l.b16 %v586
  %v2383 = vunpack.c.h.b16 %v586
  %v2384 = vunpack.c.l.b16 %v587
  %v2385 = vunpack.c.h.b16 %v587
  %v2386 = vunpack.c.l.b16 %v588
  %v2387 = vunpack.c.h.b16 %v588
  %v2388 = vunpack.c.l.b16 %v589
  %v2389 = vunpack.c.h.b16 %v589
  %v2390 = vunpack.c.l.b16 %v590
  %v2391 = vunpack.c.h.b16 %v590
  %v2392 = vunpack.c.l.b16 %v591
  %v2393 = vunpack.c.h.b16 %v591
  %v2394 = vunpack.c.l.b16 %v592
  %v2395 = vunpack.c.h.b16 %v592
  %v2396 = vunpack.c.l.b16 %v593
  %v2397 = vunpack.c.h.b16 %v593
  %v2398 = vunpack.c.l.b16 %v594
  %v2399 = vunpack.c.h.b16 %v594
  %v2400 = vunpack.c.l.b16 %v595
  %v2401 = vunpack.c.h.b16 %v595
  %v2402 = vunpack.c.l.b16 %v596
  %v2403 = vunpack.c.h.b16 %v596
  %v2404 = vunpack.c.l.b16 %v597
  %v2405 = vunpack.c.h.b16 %v597
  %v2406 = vunpack.c.l.b16 %v598
  %v2407 = vunpack.c.h.b16 %v598
  %v2408 = vunpack.c.l.b16 %v599
  %v2409 = vunpack.c.h.b16 %v599
  %v2410 = vunpack.c.l.b16 %v600
  %v2411 = vunpack.c.h.b16 %v600
  %v2412 = vunpack.c.l.b16 %v601
  %v2413 = vunpack.c.h.b16 %v601
  %v2414 = vunpack.c.l.b16 %v602
  %v2415 = vunpack.c.h.b16 %v602
  %v2416 = vunpack.c.l.b16 %v603
  %v2417 = vunpack.c.h.b16 %v603
  %v2418 = vunpack.c.l.b16 %v604
  %v2419 = vunpack.c.h.b16 %v604
  %v2420 = vunpack.c.l.b16 %v605
  %v2421 = vunpack.c.h.b16 %v605
  %v2422 = vunpack.c.l.b16 %v606
  %v2423 = vunpack.c.h.b16 %v606
  %v2424 = vunpack.c.l.b16 %v607
  %v2425 = vunpack.c.h.b16 %v607
  %v2426 = vpack.c.b16 %v1278, %v1274
  %v2427 = vpack.c.b16 %v1279, %v1275
  %v2428 = vpack.c.b16 %v1280, %v1276
  %v2429 = vpack.c.b16 %v1281, %v1277
  %v2430 = vpack.c.b16 %v1286, %v1282
  %v2431 = vpack.c.b16 %v1287, %v1283
  %v2432 = vpack.c.b16 %v1288, %v1284
  %v2433 = vpack.c.b16 %v1289, %v1285
  %v2434 = vpack.c.b16 %v1294, %v1290
  %v2435 = vpack.c.b16 %v1295, %v1291
  %v2436 = vpack.c.b16 %v1296, %v1292
  %v2437 = vpack.c.b16 %v1297, %v1293
  %v2438 = vpack.c.b16 %v1302, %v1298
  %v2439 = vpack.c.b16 %v1303, %v1299
  %v2440 = vpack.c.b16 %v1304, %v1300
  %v2441 = vpack.c.b16 %v1305, %v1301
  %v2442 = vpack.c.b16 %v1310, %v1306
  %v2443 = vpack.c.b16 %v1311, %v1307
  %v2444 = vpack.c.b16 %v1312, %v1308
  %v2445 = vpack.c.b16 %v1313, %v1309
  %v2446 = vpack.c.b16 %v1318, %v1314
  %v2447 = vpack.c.b16 %v1319, %v1315
  %v2448 = vpack.c.b16 %v1320, %v1316
  %v2449 = vpack.c.b16 %v1321, %v1317
  %v2450 = vpack.c.b16 %v1326, %v1322
  %v2451 = vpack.c.b16 %v1327, %v1323
  %v2452 = vpack.c.b16 %v1328, %v1324
  %v2453 = vpack.c.b16 %v1329, %v1325
  %v2454 = vpack.c.b16 %v1334, %v1330
  %v2455 = vpack.c.b16 %v1335, %v1331
  %v2456 = vpack.c.b16 %v1336, %v1332
  %v2457 = vpack.c.b16 %v1337, %v1333
  %v2458 = vpack.c.b16 %v1342, %v1338
  %v2459 = vpack.c.b16 %v1343, %v1339
  %v2460 = vpack.c.b16 %v1344, %v1340
  %v2461 = vpack.c.b16 %v1345, %v1341
  %v2462 = vpack.c.b16 %v1350, %v1346
  %v2463 = vpack.c.b16 %v1351, %v1347
  %v2464 = vpack.c.b16 %v1352, %v1348
  %v2465 = vpack.c.b16 %v1353, %v1349
  %v2466 = vpack.c.b16 %v1358, %v1354
  %v2467 = vpack.c.b16 %v1359, %v1355
  %v2468 = vpack.c.b16 %v1360, %v1356
  %v2469 = vpack.c.b16 %v1361, %v1357
  %v2470 = vpack.c.b16 %v1366, %v1362
  %v2471 = vpack.c.b16 %v1367, %v1363
  %v2472 = vpack.c.b16 %v1368, %v1364
  %v2473 = vpack.c.b16 %v1369, %v1365
  %v2474 = vpack.c.b16 %v1374, %v1370
  %v2475 = vpack.c.b16 %v1375, %v1371
  %v2476 = vpack.c.b16 %v1376, %v1372
  %v2477 = vpack.c.b16 %v1377, %v1373
  %v2478 = vpack.c.b16 %v1382, %v1378
  %v2479 = vpack.c.b16 %v1383, %v1379
  %v2480 = vpack.c.b16 %v1384, %v1380
  %v2481 = vpack.c.b16 %v1385, %v1381
  %v2482 = vpack.c.b16 %v1390, %v1386
  %v2483 = vpack.c.b16 %v1391, %v1387
  %v2484 = vpack.c.b16 %v1392, %v1388
  %v2485 = vpack.c.b16 %v1393, %v1389
  %v2486 = vpack.c.b16 %v1398, %v1394
  %v2487 = vpack.c.b16 %v1399, %v1395
  %v2488 = vpack.c.b16 %v1400, %v1396
  %v2489 = vpack.c.b16 %v1401, %v1397
  %v2490 = vpack.c.b16 %v1406, %v1402
  %v2491 = vpack.c.b16 %v1407, %v1403
  %v2492 = vpack.c.b16 %v1408, %v1404
  %v2493 = vpack.c.b16 %v1409, %v1405
  %v2494 = vpack.c.b16 %v1414, %v1410
  %v2495 = vpack.c.b16 %v1415, %v1411
  %v2496 = vpack.c.b16 %v1416, %v1412
  %v2497 = vpack.c.b16 %v1417, %v1413
  %v2498 = vpack.c.b16 %v1422, %v1418
  %v2499 = vpack.c.b16 %v1423, %v1419
  %v2500 = vpack.c.b16 %v1424, %v1420
  %v2501 = vpack.c.b16 %v1425, %v1421
  %v2502 = vpack.c.b16 %v1430, %v1426
  %v2503 = vpack.c.b16 %v1431, %v1427
  %v2504 = vpack.c.b16 %v1432, %v1428
  %v2505 = vpack.c.b16 %v1433, %v1429
  %v2506 = vpack.c.b16 %v1438, %v1434
  %v2507 = vpack.c.b16 %v1439, %v1435
  %v2508 = vpack.c.b16 %v1440, %v1436
  %v2509 = vpack.c.b16 %v1441, %v1437
  %v2510 = vpack.c.b16 %v1446, %v1442
  %v2511 = vpack.c.b16 %v1447, %v1443
  %v2512 = vpack.c.b16 %v1448, %v1444
  %v2513 = vpack.c.b16 %v1449, %v1445
  %v2514 = vpack.c.b16 %v1454, %v1450
  %v2515 = vpack.c.b16 %v1455, %v1451
  %v2516 = vpack.c.b16 %v1456, %v1452
  %v2517 = vpack.c.b16 %v1457, %v1453
  %v2518 = vpack.c.b16 %v1462, %v1458
  %v2519 = vpack.c.b16 %v1463, %v1459
  %v2520 = vpack.c.b16 %v1464, %v1460
  %v2521 = vpack.c.b16 %v1465, %v1461
  %v2522 = vpack.c.b16 %v1470, %v1466
  %v2523 = vpack.c.b16 %v1471, %v1467
  %v2524 = vpack.c.b16 %v1472, %v1468
  %v2525 = vpack.c.b16 %v1473, %v1469
  %v2526 = vpack.c.b16 %v1478, %v1474
  %v2527 = vpack.c.b16 %v1479, %v1475
  %v2528 = vpack.c.b16 %v1480, %v1476
  %v2529 = vpack.c.b16 %v1481, %v1477
  %v2530 = vpack.c.b16 %v1486, %v1482
  %v2531 = vpack.c.b16 %v1487, %v1483
  %v2532 = vpack.c.b16 %v1488, %v1484
  %v2533 = vpack.c.b16 %v1489, %v1485
  %v2534 = vpack.c.b16 %v1494, %v1490
  %v2535 = vpack.c.b16 %v1495, %v1491
  %v2536 = vpack.c.b16 %v1496, %v1492
  %v2537 = vpack.c.b16 %v1497, %v1493
  %v2538 = vpack.c.b16 %v1502, %v1498
  %v2539 = vpack.c.b16 %v1503, %v1499
  %v2540 = vpack.c.b16 %v1504, %v1500
  %v2541 = vpack.c.b16 %v1505, %v1501
  %v2542 = vpack.c.b16 %v1510, %v1506
  %v2543 = vpack.c.b16 %v1511, %v1507
  %v2544 = vpack.c.b16 %v1512, %v1508
  %v2545 = vpack.c.b16 %v1513, %v1509
  %v2546 = vpack.c.b16 %v1518, %v1514
  %v2547 = vpack.c.b16 %v1519, %v1515
  %v2548 = vpack.c.b16 %v1520, %v1516
  %v2549 = vpack.c.b16 %v1521, %v1517
  %v2550 = vpack.c.b16 %v1526, %v1522
  %v2551 = vpack.c.b16 %v1527, %v1523
  %v2552 = vpack.c.b16 %v1528, %v1524
  %v2553 = vpack.c.b16 %v1529, %v1525
  %v2554 = vpack.c.b16 %v1534, %v1530
  %v2555 = vpack.c.b16 %v1535, %v1531
  %v2556 = vpack.c.b16 %v1536, %v1532
  %v2557 = vpack.c.b16 %v1537, %v1533
  %v2558 = vpack.c.b16 %v1542, %v1538
  %v2559 = vpack.c.b16 %v1543, %v1539
  %v2560 = vpack.c.b16 %v1544, %v1540
  %v2561 = vpack.c.b16 %v1545, %v1541
  %v2562 = vpack.c.b16 %v1550, %v1546
  %v2563 = vpack.c.b16 %v1551, %v1547
  %v2564 = vpack.c.b16 %v1552, %v1548
  %v2565 = vpack.c.b16 %v1553, %v1549
  %v2566 = vpack.c.b16 %v1558, %v1554
  %v2567 = vpack.c.b16 %v1559, %v1555
  %v2568 = vpack.c.b16 %v1560, %v1556
  %v2569 = vpack.c.b16 %v1561, %v1557
  %v2570 = vpack.c.b16 %v1566, %v1562
  %v2571 = vpack.c.b16 %v1567, %v1563
  %v2572 = vpack.c.b16 %v1568, %v1564
  %v2573 = vpack.c.b16 %v1569, %v1565
  %v2574 = vpack.c.b16 %v1574, %v1570
  %v2575 = vpack.c.b16 %v1575, %v1571
  %v2576 = vpack.c.b16 %v1576, %v1572
  %v2577 = vpack.c.b16 %v1577, %v1573
  %v2578 = vpack.c.b16 %v1582, %v1578
  %v2579 = vpack.c.b16 %v1583, %v1579
  %v2580 = vpack.c.b16 %v1584, %v1580
  %v2581 = vpack.c.b16 %v1585, %v1581
  %v2582 = vpack.c.b16 %v1590, %v1586
  %v2583 = vpack.c.b16 %v1591, %v1587
  %v2584 = vpack.c.b16 %v1592, %v1588
  %v2585 = vpack.c.b16 %v1593, %v1589
  %v2586 = vpack.c.b16 %v1598, %v1594
  %v2587 = vpack.c.b16 %v1599, %v1595
  %v2588 = vpack.c.b16 %v1600, %v1596
  %v2589 = vpack.c.b16 %v1601, %v1597
  %v2590 = vpack.c.b16 %v1606, %v1602
  %v2591 = vpack.c.b16 %v1607, %v1603
  %v2592 = vpack.c.b16 %v1608, %v1604
  %v2593 = vpack.c.b16 %v1609, %v1605
  %v2594 = vpack.c.b16 %v1614, %v1610
  %v2595 = vpack.c.b16 %v1615, %v1611
  %v2596 = vpack.c.b16 %v1616, %v1612
  %v2597 = vpack.c.b16 %v1617, %v1613
  %v2598 = vpack.c.b16 %v1622, %v1618
  %v2599 = vpack.c.b16 %v1623, %v1619
  %v2600 = vpack.c.b16 %v1624, %v1620
  %v2601 = vpack.c.b16 %v1625, %v1621
  %v2602 = vpack.c.b16 %v1630, %v1626
  %v2603 = vpack.c.b16 %v1631, %v1627
  %v2604 = vpack.c.b16 %v1632, %v1628
  %v2605 = vpack.c.b16 %v1633, %v1629
  %v2606 = vpack.c.b16 %v1638, %v1634
  %v2607 = vpack.c.b16 %v1639, %v1635
  %v2608 = vpack.c.b16 %v1640, %v1636
  %v2609 = vpack.c.b16 %v1641, %v1637
  %v2610 = vpack.c.b16 %v1646, %v1642
  %v2611 = vpack.c.b16 %v1647, %v1643
  %v2612 = vpack.c.b16 %v1648, %v1644
  %v2613 = vpack.c.b16 %v1649, %v1645
  %v2614 = vpack.c.b16 %v1654, %v1650
  %v2615 = vpack.c.b16 %v1655, %v1651
  %v2616 = vpack.c.b16 %v1656, %v1652
  %v2617 = vpack.c.b16 %v1657, %v1653
  %v2618 = vpack.c.b16 %v1662, %v1658
  %v2619 = vpack.c.b16 %v1663, %v1659
  %v2620 = vpack.c.b16 %v1664, %v1660
  %v2621 = vpack.c.b16 %v1665, %v1661
  %v2622 = vpack.c.b16 %v1670, %v1666
  %v2623 = vpack.c.b16 %v1671, %v1667
  %v2624 = vpack.c.b16 %v1672, %v1668
  %v2625 = vpack.c.b16 %v1673, %v1669
  %v2626 = vpack.c.b16 %v1678, %v1674
  %v2627 = vpack.c.b16 %v1679, %v1675
  %v2628 = vpack.c.b16 %v1680, %v1676
  %v2629 = vpack.c.b16 %v1681, %v1677
  %v2630 = vpack.c.b16 %v1686, %v1682
  %v2631 = vpack.c.b16 %v1687, %v1683
  %v2632 = vpack.c.b16 %v1688, %v1684
  %v2633 = vpack.c.b16 %v1689, %v1685
  %v2634 = vpack.c.b16 %v1694, %v1690
  %v2635 = vpack.c.b16 %v1695, %v1691
  %v2636 = vpack.c.b16 %v1696, %v1692
  %v2637 = vpack.c.b16 %v1697, %v1693
  %v2638 = vpack.c.b16 %v1702, %v1698
  %v2639 = vpack.c.b16 %v1703, %v1699
  %v2640 = vpack.c.b16 %v1704, %v1700
  %v2641 = vpack.c.b16 %v1705, %v1701
  %v2642 = vpack.c.b16 %v1710, %v1706
  %v2643 = vpack.c.b16 %v1711, %v1707
  %v2644 = vpack.c.b16 %v1712, %v1708
  %v2645 = vpack.c.b16 %v1713, %v1709
  %v2646 = vpack.c.b16 %v1718, %v1714
  %v2647 = vpack.c.b16 %v1719, %v1715
  %v2648 = vpack.c.b16 %v1720, %v1716
  %v2649 = vpack.c.b16 %v1721, %v1717
  %v2650 = vpack.c.b16 %v1726, %v1722
  %v2651 = vpack.c.b16 %v1727, %v1723
  %v2652 = vpack.c.b16 %v1728, %v1724
  %v2653 = vpack.c.b16 %v1729, %v1725
  %v2654 = vpack.c.b16 %v1734, %v1730
  %v2655 = vpack.c.b16 %v1735, %v1731
  %v2656 = vpack.c.b16 %v1736, %v1732
  %v2657 = vpack.c.b16 %v1737, %v1733
  %v2658 = vpack.c.b16 %v1742, %v1738
  %v2659 = vpack.c.b16 %v1743, %v1739
  %v2660 = vpack.c.b16 %v1744, %v1740
  %v2661 = vpack.c.b16 %v1745, %v1741
  %v2662 = vpack.c.b16 %v1750, %v1746
  %v2663 = vpack.c.b16 %v1751, %v1747
  %v2664 = vpack.c.b16 %v1752, %v1748
  %v2665 = vpack.c.b16 %v1753, %v1749
  %v2666 = vpack.c.b16 %v1758, %v1754
  %v2667 = vpack.c.b16 %v1759, %v1755
  %v2668 = vpack.c.b16 %v1760, %v1756
  %v2669 = vpack.c.b16 %v1761, %v1757
  %v2670 = vpack.c.b16 %v1766, %v1762
  %v2671 = vpack.c.b16 %v1767, %v1763
  %v2672 = vpack.c.b16 %v1768, %v1764
  %v2673 = vpack.c.b16 %v1769, %v1765
  %v2674 = vpack.c.b16 %v1774, %v1770
  %v2675 = vpack.c.b16 %v1775, %v1771
  %v2676 = vpack.c.b16 %v1776, %v1772
  %v2677 = vpack.c.b16 %v1777, %v1773
  %v2678 = vpack.c.b16 %v1782, %v1778
  %v2679 = vpack.c.b16 %v1783, %v1779
  %v2680 = vpack.c.b16 %v1784, %v1780
  %v2681 = vpack.c.b16 %v1785, %v1781
  %v2682 = vpack.c.b16 %v1790, %v1786
  %v2683 = vpack.c.b16 %v1791, %v1787
  %v2684 = vpack.c.b16 %v1792, %v1788
  %v2685 = vpack.c.b16 %v1793, %v1789
  %v2686 = vpack.c.b16 %v1798, %v1794
  %v2687 = vpack.c.b16 %v1799, %v1795
  %v2688 = vpack.c.b16 %v1800, %v1796
  %v2689 = vpack.c.b16 %v1801, %v1797
  %v2690 = vpack.c.b16 %v1806, %v1802
  %v2691 = vpack.c.b16 %v1807, %v1803
  %v2692 = vpack.c.b16 %v1808, %v1804
  %v2693 = vpack.c.b16 %v1809, %v1805
  %v2694 = vpack.c.b16 %v1814, %v1810
  %v2695 = vpack.c.b16 %v1815, %v1811
  %v2696 = vpack.c.b16 %v1816, %v1812
  %v2697 = vpack.c.b16 %v1817, %v1813
  %v2698 = vpack.c.b16 %v1822, %v1818
  %v2699 = vpack.c.b16 %v1823, %v1819
  %v2700 = vpack.c.b16 %v1824, %v1820
  %v2701 = vpack.c.b16 %v1825, %v1821
  %v2702 = vpack.c.b16 %v1830, %v1826
  %v2703 = vpack.c.b16 %v1831, %v1827
  %v2704 = vpack.c.b16 %v1832, %v1828
  %v2705 = vpack.c.b16 %v1833, %v1829
  %v2706 = vpack.c.b16 %v1838, %v1834
  %v2707 = vpack.c.b16 %v1839, %v1835
  %v2708 = vpack.c.b16 %v1840, %v1836
  %v2709 = vpack.c.b16 %v1841, %v1837
  %v2710 = vpack.c.b16 %v1846, %v1842
  %v2711 = vpack.c.b16 %v1847, %v1843
  %v2712 = vpack.c.b16 %v1848, %v1844
  %v2713 = vpack.c.b16 %v1849, %v1845
  %v2714 = vpack.c.b16 %v1854, %v1850
  %v2715 = vpack.c.b16 %v1855, %v1851
  %v2716 = vpack.c.b16 %v1856, %v1852
  %v2717 = vpack.c.b16 %v1857, %v1853
  %v2718 = vpack.c.b16 %v1862, %v1858
  %v2719 = vpack.c.b16 %v1863, %v1859
  %v2720 = vpack.c.b16 %v1864, %v1860
  %v2721 = vpack.c.b16 %v1865, %v1861
  %v2722 = vpack.c.b16 %v1870, %v1866
  %v2723 = vpack.c.b16 %v1871, %v1867
  %v2724 = vpack.c.b16 %v1872, %v1868
  %v2725 = vpack.c.b16 %v1873, %v1869
  %v2726 = vpack.c.b16 %v1878, %v1874
  %v2727 = vpack.c.b16 %v1879, %v1875
  %v2728 = vpack.c.b16 %v1880, %v1876
  %v2729 = vpack.c.b16 %v1881, %v1877
  %v2730 = vpack.c.b16 %v1886, %v1882
  %v2731 = vpack.c.b16 %v1887, %v1883
  %v2732 = vpack.c.b16 %v1888, %v1884
  %v2733 = vpack.c.b16 %v1889, %v1885
  %v2734 = vpack.c.b16 %v1894, %v1890
  %v2735 = vpack.c.b16 %v1895, %v1891
  %v2736 = vpack.c.b16 %v1896, %v1892
  %v2737 = vpack.c.b16 %v1897, %v1893
  %v2738 = vpack.c.b16 %v1902, %v1898
  %v2739 = vpack.c.b16 %v1903, %v1899
  %v2740 = vpack.c.b16 %v1904, %v1900
  %v2741 = vpack.c.b16 %v1905, %v1901
  %v2742 = vpack.c.b16 %v1910, %v1906
  %v2743 = vpack.c.b16 %v1911, %v1907
  %v2744 = vpack.c.b16 %v1912, %v1908
  %v2745 = vpack.c.b16 %v1913, %v1909
  %v2746 = vpack.c.b16 %v1918, %v1914
  %v2747 = vpack.c.b16 %v1919, %v1915
  %v2748 = vpack.c.b16 %v1920, %v1916
  %v2749 = vpack.c.b16 %v1921, %v1917
  %v2750 = vpack.c.b16 %v1926, %v1922
  %v2751 = vpack.c.b16 %v1927, %v1923
  %v2752 = vpack.c.b16 %v1928, %v1924
  %v2753 = vpack.c.b16 %v1929, %v1925
  %v2754 = vpack.c.b16 %v1934, %v1930
  %v2755 = vpack.c.b16 %v1935, %v1931
  %v2756 = vpack.c.b16 %v1936, %v1932
  %v2757 = vpack.c.b16 %v1937, %v1933
  %v2758 = vpack.c.b16 %v1942, %v1938
  %v2759 = vpack.c.b16 %v1943, %v1939
  %v2760 = vpack.c.b16 %v1944, %v1940
  %v2761 = vpack.c.b16 %v1945, %v1941
  %v2762 = vpack.c.b16 %v1950, %v1946
  %v2763 = vpack.c.b16 %v1951, %v1947
  %v2764 = vpack.c.b16 %v1952, %v1948
  %v2765 = vpack.c.b16 %v1953, %v1949
  %v2766 = vpack.c.b16 %v1958, %v1954
  %v2767 = vpack.c.b16 %v1959, %v1955
  %v2768 = vpack.c.b16 %v1960, %v1956
  %v2769 = vpack.c.b16 %v1961, %v1957
  %v2770 = vpack.c.b16 %v1966, %v1962
  %v2771 = vpack.c.b16 %v1967, %v1963
  %v2772 = vpack.c.b16 %v1968, %v1964
  %v2773 = vpack.c.b16 %v1969, %v1965
  %v2774 = vpack.c.b16 %v1974, %v1970
  %v2775 = vpack.c.b16 %v1975, %v1971
  %v2776 = vpack.c.b16 %v1976, %v1972
  %v2777 = vpack.c.b16 %v1977, %v1973
  %v2778 = vpack.c.b16 %v1982, %v1978
  %v2779 = vpack.c.b16 %v1983, %v1979
  %v2780 = vpack.c.b16 %v1984, %v1980
  %v2781 = vpack.c.b16 %v1985, %v1981
  %v2782 = vpack.c.b16 %v1990, %v1986
  %v2783 = vpack.c.b16 %v1991, %v1987
  %v2784 = vpack.c.b16 %v1992, %v1988
  %v2785 = vpack.c.b16 %v1993, %v1989
  %v2786 = vpack.c.b16 %v1998, %v1994
  %v2787 = vpack.c.b16 %v1999, %v1995
  %v2788 = vpack.c.b16 %v2000, %v1996
  %v2789 = vpack.c.b16 %v2001, %v1997
  %v2790 = vpack.c.b16 %v2006, %v2002
  %v2791 = vpack.c.b16 %v2007, %v2003
  %v2792 = vpack.c.b16 %v2008, %v2004
  %v2793 = vpack.c.b16 %v2009, %v2005
  %v2794 = vpack.c.b16 %v2014, %v2010
  %v2795 = vpack.c.b16 %v2015, %v2011
  %v2796 = vpack.c.b16 %v2016, %v2012
  %v2797 = vpack.c.b16 %v2017, %v2013
  %v2798 = vpack.c.b16 %v2022, %v2018
  %v2799 = vpack.c.b16 %v2023, %v2019
  %v2800 = vpack.c.b16 %v2024, %v2020
  %v2801 = vpack.c.b16 %v2025, %v2021
  %v2802 = vpack.c.b16 %v2030, %v2026
  %v2803 = vpack.c.b16 %v2031, %v2027
  %v2804 = vpack.c.b16 %v2032, %v2028
  %v2805 = vpack.c.b16 %v2033, %v2029
  %v2806 = vpack.c.b16 %v2038, %v2034
  %v2807 = vpack.c.b16 %v2039, %v2035
  %v2808 = vpack.c.b16 %v2040, %v2036
  %v2809 = vpack.c.b16 %v2041, %v2037
  %v2810 = vpack.c.b16 %v2046, %v2042
  %v2811 = vpack.c.b16 %v2047, %v2043
  %v2812 = vpack.c.b16 %v2048, %v2044
  %v2813 = vpack.c.b16 %v2049, %v2045
  %v2814 = vpack.c.b16 %v2054, %v2050
  %v2815 = vpack.c.b16 %v2055, %v2051
  %v2816 = vpack.c.b16 %v2056, %v2052
  %v2817 = vpack.c.b16 %v2057, %v2053
  %v2818 = vpack.c.b16 %v2062, %v2058
  %v2819 = vpack.c.b16 %v2063, %v2059
  %v2820 = vpack.c.b16 %v2064, %v2060
  %v2821 = vpack.c.b16 %v2065, %v2061
  %v2822 = vpack.c.b16 %v2070, %v2066
  %v2823 = vpack.c.b16 %v2071, %v2067
  %v2824 = vpack.c.b16 %v2072, %v2068
  %v2825 = vpack.c.b16 %v2073, %v2069
  %v2826 = vpack.c.b16 %v2078, %v2074
  %v2827 = vpack.c.b16 %v2079, %v2075
  %v2828 = vpack.c.b16 %v2080, %v2076
  %v2829 = vpack.c.b16 %v2081, %v2077
  %v2830 = vpack.c.b16 %v2086, %v2082
  %v2831 = vpack.c.b16 %v2087, %v2083
  %v2832 = vpack.c.b16 %v2088, %v2084
  %v2833 = vpack.c.b16 %v2089, %v2085
  %v2834 = vpack.c.b16 %v2094, %v2090
  %v2835 = vpack.c.b16 %v2095, %v2091
  %v2836 = vpack.c.b16 %v2096, %v2092
  %v2837 = vpack.c.b16 %v2097, %v2093
  %v2838 = vpack.c.b16 %v2102, %v2098
  %v2839 = vpack.c.b16 %v2103, %v2099
  %v2840 = vpack.c.b16 %v2104, %v2100
  %v2841 = vpack.c.b16 %v2105, %v2101
  %v2842 = vpack.c.b16 %v2110, %v2106
  %v2843 = vpack.c.b16 %v2111, %v2107
  %v2844 = vpack.c.b16 %v2112, %v2108
  %v2845 = vpack.c.b16 %v2113, %v2109
  %v2846 = vpack.c.b16 %v2118, %v2114
  %v2847 = vpack.c.b16 %v2119, %v2115
  %v2848 = vpack.c.b16 %v2120, %v2116
  %v2849 = vpack.c.b16 %v2121, %v2117
  %v2850 = vpack.c.b16 %v2126, %v2122
  %v2851 = vpack.c.b16 %v2127, %v2123
  %v2852 = vpack.c.b16 %v2128, %v2124
  %v2853 = vpack.c.b16 %v2129, %v2125
  %v2854 = vpack.c.b16 %v2134, %v2130
  %v2855 = vpack.c.b16 %v2135, %v2131
  %v2856 = vpack.c.b16 %v2136, %v2132
  %v2857 = vpack.c.b16 %v2137, %v2133
  %v2858 = vpack.c.b16 %v2142, %v2138
  %v2859 = vpack.c.b16 %v2143, %v2139
  %v2860 = vpack.c.b16 %v2144, %v2140
  %v2861 = vpack.c.b16 %v2145, %v2141
  %v2862 = vpack.c.b16 %v2150, %v2146
  %v2863 = vpack.c.b16 %v2151, %v2147
  %v2864 = vpack.c.b16 %v2152, %v2148
  %v2865 = vpack.c.b16 %v2153, %v2149
  %v2866 = vpack.c.b16 %v2158, %v2154
  %v2867 = vpack.c.b16 %v2159, %v2155
  %v2868 = vpack.c.b16 %v2160, %v2156
  %v2869 = vpack.c.b16 %v2161, %v2157
  %v2870 = vpack.c.b16 %v2166, %v2162
  %v2871 = vpack.c.b16 %v2167, %v2163
  %v2872 = vpack.c.b16 %v2168, %v2164
  %v2873 = vpack.c.b16 %v2169, %v2165
  %v2874 = vpack.c.b16 %v2174, %v2170
  %v2875 = vpack.c.b16 %v2175, %v2171
  %v2876 = vpack.c.b16 %v2176, %v2172
  %v2877 = vpack.c.b16 %v2177, %v2173
  %v2878 = vpack.c.b16 %v2182, %v2178
  %v2879 = vpack.c.b16 %v2183, %v2179
  %v2880 = vpack.c.b16 %v2184, %v2180
  %v2881 = vpack.c.b16 %v2185, %v2181
  %v2882 = vpack.c.b16 %v2190, %v2186
  %v2883 = vpack.c.b16 %v2191, %v2187
  %v2884 = vpack.c.b16 %v2192, %v2188
  %v2885 = vpack.c.b16 %v2193, %v2189
  %v2886 = vpack.c.b16 %v2198, %v2194
  %v2887 = vpack.c.b16 %v2199, %v2195
  %v2888 = vpack.c.b16 %v2200, %v2196
  %v2889 = vpack.c.b16 %v2201, %v2197
  %v2890 = vpack.c.b16 %v2206, %v2202
  %v2891 = vpack.c.b16 %v2207, %v2203
  %v2892 = vpack.c.b16 %v2208, %v2204
  %v2893 = vpack.c.b16 %v2209, %v2205
  %v2894 = vpack.c.b16 %v2214, %v2210
  %v2895 = vpack.c.b16 %v2215, %v2211
  %v2896 = vpack.c.b16 %v2216, %v2212
  %v2897 = vpack.c.b16 %v2217, %v2213
  %v2898 = vpack.c.b16 %v2222, %v2218
  %v2899 = vpack.c.b16 %v2223, %v2219
  %v2900 = vpack.c.b16 %v2224, %v2220
  %v2901 = vpack.c.b16 %v2225, %v2221
  %v2902 = vpack.c.b16 %v2230, %v2226
  %v2903 = vpack.c.b16 %v2231, %v2227
  %v2904 = vpack.c.b16 %v2232, %v2228
  %v2905 = vpack.c.b16 %v2233, %v2229
  %v2906 = vpack.c.b16 %v2238, %v2234
  %v2907 = vpack.c.b16 %v2239, %v2235
  %v2908 = vpack.c.b16 %v2240, %v2236
  %v2909 = vpack.c.b16 %v2241, %v2237
  %v2910 = vpack.c.b16 %v2246, %v2242
  %v2911 = vpack.c.b16 %v2247, %v2243
  %v2912 = vpack.c.b16 %v2248, %v2244
  %v2913 = vpack.c.b16 %v2249, %v2245
  %v2914 = vpack.c.b16 %v2254, %v2250
  %v2915 = vpack.c.b16 %v2255, %v2251
  %v2916 = vpack.c.b16 %v2256, %v2252
  %v2917 = vpack.c.b16 %v2257, %v2253
  %v2918 = vpack.c.b16 %v2262, %v2258
  %v2919 = vpack.c.b16 %v2263, %v2259
  %v2920 = vpack.c.b16 %v2264, %v2260
  %v2921 = vpack.c.b16 %v2265, %v2261
  %v2922 = vpack.c.b16 %v2270, %v2266
  %v2923 = vpack.c.b16 %v2271, %v2267
  %v2924 = vpack.c.b16 %v2272, %v2268
  %v2925 = vpack.c.b16 %v2273, %v2269
  %v2926 = vpack.c.b16 %v2278, %v2274
  %v2927 = vpack.c.b16 %v2279, %v2275
  %v2928 = vpack.c.b16 %v2280, %v2276
  %v2929 = vpack.c.b16 %v2281, %v2277
  %v2930 = vpack.c.b16 %v2286, %v2282
  %v2931 = vpack.c.b16 %v2287, %v2283
  %v2932 = vpack.c.b16 %v2288, %v2284
  %v2933 = vpack.c.b16 %v2289, %v2285
  %v2934 = vpack.c.b16 %v2294, %v2290
  %v2935 = vpack.c.b16 %v2295, %v2291
  %v2936 = vpack.c.b16 %v2296, %v2292
  %v2937 = vpack.c.b16 %v2297, %v2293
  %v2938 = vpack.c.b16 %v2302, %v2298
  %v2939 = vpack.c.b16 %v2303, %v2299
  %v2940 = vpack.c.b16 %v2304, %v2300
  %v2941 = vpack.c.b16 %v2305, %v2301
  %v2942 = vpack.c.b16 %v2310, %v2306
  %v2943 = vpack.c.b16 %v2311, %v2307
  %v2944 = vpack.c.b16 %v2312, %v2308
  %v2945 = vpack.c.b16 %v2313, %v2309
  %v2946 = vpack.c.b16 %v2318, %v2314
  %v2947 = vpack.c.b16 %v2319, %v2315
  %v2948 = vpack.c.b16 %v2320, %v2316
  %v2949 = vpack.c.b16 %v2321, %v2317
  %v2950 = vpack.c.b16 %v2326, %v2322
  %v2951 = vpack.c.b16 %v2327, %v2323
  %v2952 = vpack.c.b16 %v2328, %v2324
  %v2953 = vpack.c.b16 %v2329, %v2325
  %v2954 = vpack.c.b16 %v2334, %v2330
  %v2955 = vpack.c.b16 %v2335, %v2331
  %v2956 = vpack.c.b16 %v2336, %v2332
  %v2957 = vpack.c.b16 %v2337, %v2333
  %v2958 = vpack.c.b16 %v2342, %v2338
  %v2959 = vpack.c.b16 %v2343, %v2339
  %v2960 = vpack.c.b16 %v2344, %v2340
  %v2961 = vpack.c.b16 %v2345, %v2341
  %v2962 = vpack.c.b16 %v2350, %v2346
  %v2963 = vpack.c.b16 %v2351, %v2347
  %v2964 = vpack.c.b16 %v2352, %v2348
  %v2965 = vpack.c.b16 %v2353, %v2349
  %v2966 = vpack.c.b16 %v2358, %v2354
  %v2967 = vpack.c.b16 %v2359, %v2355
  %v2968 = vpack.c.b16 %v2360, %v2356
  %v2969 = vpack.c.b16 %v2361, %v2357
  %v2970 = vpack.c.b16 %v2366, %v2362
  %v2971 = vpack.c.b16 %v2367, %v2363
  %v2972 = vpack.c.b16 %v2368, %v2364
  %v2973 = vpack.c.b16 %v2369, %v2365
  %v2974 = vpack.c.b16 %v2374, %v2370
  %v2975 = vpack.c.b16 %v2375, %v2371
  %v2976 = vpack.c.b16 %v2376, %v2372
  %v2977 = vpack.c.b16 %v2377, %v2373
  %v2978 = vpack.c.b16 %v2382, %v2378
  %v2979 = vpack.c.b16 %v2383, %v2379
  %v2980 = vpack.c.b16 %v2384, %v2380
  %v2981 = vpack.c.b16 %v2385, %v2381
  %v2982 = vpack.c.b16 %v2390, %v2386
  %v2983 = vpack.c.b16 %v2391, %v2387
  %v2984 = vpack.c.b16 %v2392, %v2388
  %v2985 = vpack.c.b16 %v2393, %v2389
  %v2986 = vpack.c.b16 %v2398, %v2394
  %v2987 = vpack.c.b16 %v2399, %v2395
  %v2988 = vpack.c.b16 %v2400, %v2396
  %v2989 = vpack.c.b16 %v2401, %v2397
  %v2990 = vpack.c.b16 %v2406, %v2402
  %v2991 = vpack.c.b16 %v2407, %v2403
  %v2992 = vpack.c.b16 %v2408, %v2404
  %v2993 = vpack.c.b16 %v2409, %v2405
  %v2994 = vpack.c.b16 %v2414, %v2410
  %v2995 = vpack.c.b16 %v2415, %v2411
  %v2996 = vpack.c.b16 %v2416, %v2412
  %v2997 = vpack.c.b16 %v2417, %v2413
  %v2998 = vpack.c.b16 %v2422, %v2418
  %v2999 = vpack.c.b16 %v2423, %v2419
  %v3000 = vpack.c.b16 %v2424, %v2420
  %v3001 = vpack.c.b16 %v2425, %v2421
  %3578 = vmatpush.bf16.msra.mxu0 %v2454
  %3579 = vmatpush.bf16.msra.mxu0 %v2450
  %3580 = vmatpush.bf16.msra.mxu0 %v2446
  %3581 = vmatpush.bf16.msra.mxu0 %v2442
  %3582 = vmatpush.bf16.msra.mxu0 %v2438
  %3583 = vmatpush.bf16.msra.mxu0 %v2434
  %3584 = vmatpush.bf16.msra.mxu0 %v2430
  %3585 = vmatpush.bf16.msra.mxu0 %v2426
  %3586 = vmatmul.bf16.gmra.mxu0 %v662
  %v3587 = vpop.f32.mrf.mxu0
  %v3588 = vadd.f32 0.0, %v3587
  %v3589 = vpop.f32.mrf.mxu0
  %v3590 = vadd.f32 0.0, %v3589
  %3591 = vdwg.mxu0
  %3592 = vmatpush.bf16.msra.mxu0 %v2486
  %3593 = vmatpush.bf16.msra.mxu0 %v2482
  %3594 = vmatpush.bf16.msra.mxu0 %v2478
  %3595 = vmatpush.bf16.msra.mxu0 %v2474
  %3596 = vmatpush.bf16.msra.mxu0 %v2470
  %3597 = vmatpush.bf16.msra.mxu0 %v2466
  %3598 = vmatpush.bf16.msra.mxu0 %v2462
  %3599 = vmatpush.bf16.msra.mxu0 %v2458
  %3600 = vmatmul.bf16.gmra.mxu0 %v663
  %v3601 = vpop.f32.mrf.mxu0
  %v3602 = vadd.f32 %v3588, %v3601
  %v3603 = vpop.f32.mrf.mxu0
  %v3604 = vadd.f32 %v3590, %v3603
  %3605 = vdwg.mxu0
  %3606 = vmatpush.bf16.msra.mxu0 %v2518
  %3607 = vmatpush.bf16.msra.mxu0 %v2514
  %3608 = vmatpush.bf16.msra.mxu0 %v2510
  %3609 = vmatpush.bf16.msra.mxu0 %v2506
  %3610 = vmatpush.bf16.msra.mxu0 %v2502
  %3611 = vmatpush.bf16.msra.mxu0 %v2498
  %3612 = vmatpush.bf16.msra.mxu0 %v2494
  %3613 = vmatpush.bf16.msra.mxu0 %v2490
  %3614 = vmatmul.bf16.gmra.mxu0 %v664
  %v3615 = vpop.f32.mrf.mxu0
  %v3616 = vadd.f32 %v3602, %v3615
  %v3617 = vpop.f32.mrf.mxu0
  %v3618 = vadd.f32 %v3604, %v3617
  %3619 = vdwg.mxu0
  %3620 = vmatpush.bf16.msra.mxu0 %v2550
  %3621 = vmatpush.bf16.msra.mxu0 %v2546
  %3622 = vmatpush.bf16.msra.mxu0 %v2542
  %3623 = vmatpush.bf16.msra.mxu0 %v2538
  %3624 = vmatpush.bf16.msra.mxu0 %v2534
  %3625 = vmatpush.bf16.msra.mxu0 %v2530
  %3626 = vmatpush.bf16.msra.mxu0 %v2526
  %3627 = vmatpush.bf16.msra.mxu0 %v2522
  %3628 = vmatmul.bf16.gmra.mxu0 %v665
  %v3629 = vpop.f32.mrf.mxu0
  %v3630 = vadd.f32 %v3616, %v3629
  %v3631 = vpop.f32.mrf.mxu0
  %v3632 = vadd.f32 %v3618, %v3631
  %3633 = vdwg.mxu0
  %3634 = vmatpush.bf16.msra.mxu0 %v2582
  %3635 = vmatpush.bf16.msra.mxu0 %v2578
  %3636 = vmatpush.bf16.msra.mxu0 %v2574
  %3637 = vmatpush.bf16.msra.mxu0 %v2570
  %3638 = vmatpush.bf16.msra.mxu0 %v2566
  %3639 = vmatpush.bf16.msra.mxu0 %v2562
  %3640 = vmatpush.bf16.msra.mxu0 %v2558
  %3641 = vmatpush.bf16.msra.mxu0 %v2554
  %3642 = vmatmul.bf16.gmra.mxu0 %v666
  %v3643 = vpop.f32.mrf.mxu0
  %v3644 = vadd.f32 %v3630, %v3643
  %v3645 = vpop.f32.mrf.mxu0
  %v3646 = vadd.f32 %v3632, %v3645
  %3647 = vdwg.mxu0
  %3648 = vmatpush.bf16.msra.mxu0 %v2614
  %3649 = vmatpush.bf16.msra.mxu0 %v2610
  %3650 = vmatpush.bf16.msra.mxu0 %v2606
  %3651 = vmatpush.bf16.msra.mxu0 %v2602
  %3652 = vmatpush.bf16.msra.mxu0 %v2598
  %3653 = vmatpush.bf16.msra.mxu0 %v2594
  %3654 = vmatpush.bf16.msra.mxu0 %v2590
  %3655 = vmatpush.bf16.msra.mxu0 %v2586
  %3656 = vmatmul.bf16.gmra.mxu0 %v667
  %v3657 = vpop.f32.mrf.mxu0
  %v3658 = vadd.f32 %v3644, %v3657
  %v3659 = vpop.f32.mrf.mxu0
  %v3660 = vadd.f32 %v3646, %v3659
  %3661 = vdwg.mxu0
  %3662 = vmatpush.bf16.msra.mxu0 %v2646
  %3663 = vmatpush.bf16.msra.mxu0 %v2642
  %3664 = vmatpush.bf16.msra.mxu0 %v2638
  %3665 = vmatpush.bf16.msra.mxu0 %v2634
  %3666 = vmatpush.bf16.msra.mxu0 %v2630
  %3667 = vmatpush.bf16.msra.mxu0 %v2626
  %3668 = vmatpush.bf16.msra.mxu0 %v2622
  %3669 = vmatpush.bf16.msra.mxu0 %v2618
  %3670 = vmatmul.bf16.gmra.mxu0 %v668
  %v3671 = vpop.f32.mrf.mxu0
  %v3672 = vadd.f32 %v3658, %v3671
  %v3673 = vpop.f32.mrf.mxu0
  %v3674 = vadd.f32 %v3660, %v3673
  %3675 = vdwg.mxu0
  %3676 = vmatpush.bf16.msra.mxu0 %v2678
  %3677 = vmatpush.bf16.msra.mxu0 %v2674
  %3678 = vmatpush.bf16.msra.mxu0 %v2670
  %3679 = vmatpush.bf16.msra.mxu0 %v2666
  %3680 = vmatpush.bf16.msra.mxu0 %v2662
  %3681 = vmatpush.bf16.msra.mxu0 %v2658
  %3682 = vmatpush.bf16.msra.mxu0 %v2654
  %3683 = vmatpush.bf16.msra.mxu0 %v2650
  %3684 = vmatmul.bf16.gmra.mxu0 %v669
  %v3685 = vpop.f32.mrf.mxu0
  %v3686 = vadd.f32 %v3672, %v3685
  %v3687 = vpop.f32.mrf.mxu0
  %v3688 = vadd.f32 %v3674, %v3687
  %3689 = vdwg.mxu0
  %3690 = vmatpush.bf16.msra.mxu0 %v2710
  %3691 = vmatpush.bf16.msra.mxu0 %v2706
  %3692 = vmatpush.bf16.msra.mxu0 %v2702
  %3693 = vmatpush.bf16.msra.mxu0 %v2698
  %3694 = vmatpush.bf16.msra.mxu0 %v2694
  %3695 = vmatpush.bf16.msra.mxu0 %v2690
  %3696 = vmatpush.bf16.msra.mxu0 %v2686
  %3697 = vmatpush.bf16.msra.mxu0 %v2682
  %3698 = vmatmul.bf16.gmra.mxu0 %v670
  %v3699 = vpop.f32.mrf.mxu0
  %v3700 = vadd.f32 %v3686, %v3699
  %v3701 = vpop.f32.mrf.mxu0
  %v3702 = vadd.f32 %v3688, %v3701
  %3703 = vdwg.mxu0
  %3704 = vmatpush.bf16.msra.mxu0 %v2742
  %3705 = vmatpush.bf16.msra.mxu0 %v2738
  %3706 = vmatpush.bf16.msra.mxu0 %v2734
  %3707 = vmatpush.bf16.msra.mxu0 %v2730
  %3708 = vmatpush.bf16.msra.mxu0 %v2726
  %3709 = vmatpush.bf16.msra.mxu0 %v2722
  %3710 = vmatpush.bf16.msra.mxu0 %v2718
  %3711 = vmatpush.bf16.msra.mxu0 %v2714
  %3712 = vmatmul.bf16.gmra.mxu0 %v671
  %v3713 = vpop.f32.mrf.mxu0
  %v3714 = vadd.f32 %v3700, %v3713
  %v3715 = vpop.f32.mrf.mxu0
  %v3716 = vadd.f32 %v3702, %v3715
  %3717 = vdwg.mxu0
  %3718 = vmatpush.bf16.msra.mxu0 %v2774
  %3719 = vmatpush.bf16.msra.mxu0 %v2770
  %3720 = vmatpush.bf16.msra.mxu0 %v2766
  %3721 = vmatpush.bf16.msra.mxu0 %v2762
  %3722 = vmatpush.bf16.msra.mxu0 %v2758
  %3723 = vmatpush.bf16.msra.mxu0 %v2754
  %3724 = vmatpush.bf16.msra.mxu0 %v2750
  %3725 = vmatpush.bf16.msra.mxu0 %v2746
  %3726 = vmatmul.bf16.gmra.mxu0 %v672
  %v3727 = vpop.f32.mrf.mxu0
  %v3728 = vadd.f32 %v3714, %v3727
  %v3729 = vpop.f32.mrf.mxu0
  %v3730 = vadd.f32 %v3716, %v3729
  %3731 = vdwg.mxu0
  %3732 = vmatpush.bf16.msra.mxu0 %v2806
  %3733 = vmatpush.bf16.msra.mxu0 %v2802
  %3734 = vmatpush.bf16.msra.mxu0 %v2798
  %3735 = vmatpush.bf16.msra.mxu0 %v2794
  %3736 = vmatpush.bf16.msra.mxu0 %v2790
  %3737 = vmatpush.bf16.msra.mxu0 %v2786
  %3738 = vmatpush.bf16.msra.mxu0 %v2782
  %3739 = vmatpush.bf16.msra.mxu0 %v2778
  %3740 = vmatmul.bf16.gmra.mxu0 %v673
  %v3741 = vpop.f32.mrf.mxu0
  %v3742 = vadd.f32 %v3728, %v3741
  %v3743 = vpop.f32.mrf.mxu0
  %v3744 = vadd.f32 %v3730, %v3743
  %3745 = vdwg.mxu0
  %3746 = vmatpush.bf16.msra.mxu0 %v2838
  %3747 = vmatpush.bf16.msra.mxu0 %v2834
  %3748 = vmatpush.bf16.msra.mxu0 %v2830
  %3749 = vmatpush.bf16.msra.mxu0 %v2826
  %3750 = vmatpush.bf16.msra.mxu0 %v2822
  %3751 = vmatpush.bf16.msra.mxu0 %v2818
  %3752 = vmatpush.bf16.msra.mxu0 %v2814
  %3753 = vmatpush.bf16.msra.mxu0 %v2810
  %3754 = vmatmul.bf16.gmra.mxu0 %v674
  %v3755 = vpop.f32.mrf.mxu0
  %v3756 = vadd.f32 %v3742, %v3755
  %v3757 = vpop.f32.mrf.mxu0
  %v3758 = vadd.f32 %v3744, %v3757
  %3759 = vdwg.mxu0
  %3760 = vmatpush.bf16.msra.mxu0 %v2870
  %3761 = vmatpush.bf16.msra.mxu0 %v2866
  %3762 = vmatpush.bf16.msra.mxu0 %v2862
  %3763 = vmatpush.bf16.msra.mxu0 %v2858
  %3764 = vmatpush.bf16.msra.mxu0 %v2854
  %3765 = vmatpush.bf16.msra.mxu0 %v2850
  %3766 = vmatpush.bf16.msra.mxu0 %v2846
  %3767 = vmatpush.bf16.msra.mxu0 %v2842
  %3768 = vmatmul.bf16.gmra.mxu0 %v675
  %v3769 = vpop.f32.mrf.mxu0
  %v3770 = vadd.f32 %v3756, %v3769
  %v3771 = vpop.f32.mrf.mxu0
  %v3772 = vadd.f32 %v3758, %v3771
  %3773 = vdwg.mxu0
  %3774 = vmatpush.bf16.msra.mxu0 %v2902
  %3775 = vmatpush.bf16.msra.mxu0 %v2898
  %3776 = vmatpush.bf16.msra.mxu0 %v2894
  %3777 = vmatpush.bf16.msra.mxu0 %v2890
  %3778 = vmatpush.bf16.msra.mxu0 %v2886
  %3779 = vmatpush.bf16.msra.mxu0 %v2882
  %3780 = vmatpush.bf16.msra.mxu0 %v2878
  %3781 = vmatpush.bf16.msra.mxu0 %v2874
  %3782 = vmatmul.bf16.gmra.mxu0 %v676
  %v3783 = vpop.f32.mrf.mxu0
  %v3784 = vadd.f32 %v3770, %v3783
  %v3785 = vpop.f32.mrf.mxu0
  %v3786 = vadd.f32 %v3772, %v3785
  %3787 = vdwg.mxu0
  %3788 = vmatpush.bf16.msra.mxu0 %v2934
  %3789 = vmatpush.bf16.msra.mxu0 %v2930
  %3790 = vmatpush.bf16.msra.mxu0 %v2926
  %3791 = vmatpush.bf16.msra.mxu0 %v2922
  %3792 = vmatpush.bf16.msra.mxu0 %v2918
  %3793 = vmatpush.bf16.msra.mxu0 %v2914
  %3794 = vmatpush.bf16.msra.mxu0 %v2910
  %3795 = vmatpush.bf16.msra.mxu0 %v2906
  %3796 = vmatmul.bf16.gmra.mxu0 %v677
  %v3797 = vpop.f32.mrf.mxu0
  %v3798 = vadd.f32 %v3784, %v3797
  %v3799 = vpop.f32.mrf.mxu0
  %v3800 = vadd.f32 %v3786, %v3799
  %3801 = vdwg.mxu0
  %3802 = vmatpush.bf16.msra.mxu0 %v2966
  %3803 = vmatpush.bf16.msra.mxu0 %v2962
  %3804 = vmatpush.bf16.msra.mxu0 %v2958
  %3805 = vmatpush.bf16.msra.mxu0 %v2954
  %3806 = vmatpush.bf16.msra.mxu0 %v2950
  %3807 = vmatpush.bf16.msra.mxu0 %v2946
  %3808 = vmatpush.bf16.msra.mxu0 %v2942
  %3809 = vmatpush.bf16.msra.mxu0 %v2938
  %3810 = vmatmul.bf16.gmra.mxu0 %v678
  %v3811 = vpop.f32.mrf.mxu0
  %v3812 = vadd.f32 %v3798, %v3811
  %v3813 = vpop.f32.mrf.mxu0
  %v3814 = vadd.f32 %v3800, %v3813
  %3815 = vdwg.mxu0
  %3816 = vmatpush.bf16.msra.mxu0 %v2998
  %3817 = vmatpush.bf16.msra.mxu0 %v2994
  %3818 = vmatpush.bf16.msra.mxu0 %v2990
  %3819 = vmatpush.bf16.msra.mxu0 %v2986
  %3820 = vmatpush.bf16.msra.mxu0 %v2982
  %3821 = vmatpush.bf16.msra.mxu0 %v2978
  %3822 = vmatpush.bf16.msra.mxu0 %v2974
  %3823 = vmatpush.bf16.msra.mxu0 %v2970
  %3824 = vmatmul.bf16.gmra.mxu0 %v679
  %v3825 = vpop.f32.mrf.mxu0
  %v3826 = vadd.f32 %v3812, %v3825
  %v3827 = vpop.f32.mrf.mxu0
  %v3828 = vadd.f32 %v3814, %v3827
  %3829 = vdwg.mxu0
  %3830 = vmatpush.bf16.msra.mxu0 %v2455
  %3831 = vmatpush.bf16.msra.mxu0 %v2451
  %3832 = vmatpush.bf16.msra.mxu0 %v2447
  %3833 = vmatpush.bf16.msra.mxu0 %v2443
  %3834 = vmatpush.bf16.msra.mxu0 %v2439
  %3835 = vmatpush.bf16.msra.mxu0 %v2435
  %3836 = vmatpush.bf16.msra.mxu0 %v2431
  %3837 = vmatpush.bf16.msra.mxu0 %v2427
  %3838 = vmatmul.bf16.gmra.mxu0 %v662
  %v3839 = vpop.f32.mrf.mxu0
  %v3840 = vadd.f32 0.0, %v3839
  %v3841 = vpop.f32.mrf.mxu0
  %v3842 = vadd.f32 0.0, %v3841
  %3843 = vdwg.mxu0
  %3844 = vmatpush.bf16.msra.mxu0 %v2487
  %3845 = vmatpush.bf16.msra.mxu0 %v2483
  %3846 = vmatpush.bf16.msra.mxu0 %v2479
  %3847 = vmatpush.bf16.msra.mxu0 %v2475
  %3848 = vmatpush.bf16.msra.mxu0 %v2471
  %3849 = vmatpush.bf16.msra.mxu0 %v2467
  %3850 = vmatpush.bf16.msra.mxu0 %v2463
  %3851 = vmatpush.bf16.msra.mxu0 %v2459
  %3852 = vmatmul.bf16.gmra.mxu0 %v663
  %v3853 = vpop.f32.mrf.mxu0
  %v3854 = vadd.f32 %v3840, %v3853
  %v3855 = vpop.f32.mrf.mxu0
  %v3856 = vadd.f32 %v3842, %v3855
  %3857 = vdwg.mxu0
  %3858 = vmatpush.bf16.msra.mxu0 %v2519
  %3859 = vmatpush.bf16.msra.mxu0 %v2515
  %3860 = vmatpush.bf16.msra.mxu0 %v2511
  %3861 = vmatpush.bf16.msra.mxu0 %v2507
  %3862 = vmatpush.bf16.msra.mxu0 %v2503
  %3863 = vmatpush.bf16.msra.mxu0 %v2499
  %3864 = vmatpush.bf16.msra.mxu0 %v2495
  %3865 = vmatpush.bf16.msra.mxu0 %v2491
  %3866 = vmatmul.bf16.gmra.mxu0 %v664
  %v3867 = vpop.f32.mrf.mxu0
  %v3868 = vadd.f32 %v3854, %v3867
  %v3869 = vpop.f32.mrf.mxu0
  %v3870 = vadd.f32 %v3856, %v3869
  %3871 = vdwg.mxu0
  %3872 = vmatpush.bf16.msra.mxu0 %v2551
  %3873 = vmatpush.bf16.msra.mxu0 %v2547
  %3874 = vmatpush.bf16.msra.mxu0 %v2543
  %3875 = vmatpush.bf16.msra.mxu0 %v2539
  %3876 = vmatpush.bf16.msra.mxu0 %v2535
  %3877 = vmatpush.bf16.msra.mxu0 %v2531
  %3878 = vmatpush.bf16.msra.mxu0 %v2527
  %3879 = vmatpush.bf16.msra.mxu0 %v2523
  %3880 = vmatmul.bf16.gmra.mxu0 %v665
  %v3881 = vpop.f32.mrf.mxu0
  %v3882 = vadd.f32 %v3868, %v3881
  %v3883 = vpop.f32.mrf.mxu0
  %v3884 = vadd.f32 %v3870, %v3883
  %3885 = vdwg.mxu0
  %3886 = vmatpush.bf16.msra.mxu0 %v2583
  %3887 = vmatpush.bf16.msra.mxu0 %v2579
  %3888 = vmatpush.bf16.msra.mxu0 %v2575
  %3889 = vmatpush.bf16.msra.mxu0 %v2571
  %3890 = vmatpush.bf16.msra.mxu0 %v2567
  %3891 = vmatpush.bf16.msra.mxu0 %v2563
  %3892 = vmatpush.bf16.msra.mxu0 %v2559
  %3893 = vmatpush.bf16.msra.mxu0 %v2555
  %3894 = vmatmul.bf16.gmra.mxu0 %v666
  %v3895 = vpop.f32.mrf.mxu0
  %v3896 = vadd.f32 %v3882, %v3895
  %v3897 = vpop.f32.mrf.mxu0
  %v3898 = vadd.f32 %v3884, %v3897
  %3899 = vdwg.mxu0
  %3900 = vmatpush.bf16.msra.mxu0 %v2615
  %3901 = vmatpush.bf16.msra.mxu0 %v2611
  %3902 = vmatpush.bf16.msra.mxu0 %v2607
  %3903 = vmatpush.bf16.msra.mxu0 %v2603
  %3904 = vmatpush.bf16.msra.mxu0 %v2599
  %3905 = vmatpush.bf16.msra.mxu0 %v2595
  %3906 = vmatpush.bf16.msra.mxu0 %v2591
  %3907 = vmatpush.bf16.msra.mxu0 %v2587
  %3908 = vmatmul.bf16.gmra.mxu0 %v667
  %v3909 = vpop.f32.mrf.mxu0
  %v3910 = vadd.f32 %v3896, %v3909
  %v3911 = vpop.f32.mrf.mxu0
  %v3912 = vadd.f32 %v3898, %v3911
  %3913 = vdwg.mxu0
  %3914 = vmatpush.bf16.msra.mxu0 %v2647
  %3915 = vmatpush.bf16.msra.mxu0 %v2643
  %3916 = vmatpush.bf16.msra.mxu0 %v2639
  %3917 = vmatpush.bf16.msra.mxu0 %v2635
  %3918 = vmatpush.bf16.msra.mxu0 %v2631
  %3919 = vmatpush.bf16.msra.mxu0 %v2627
  %3920 = vmatpush.bf16.msra.mxu0 %v2623
  %3921 = vmatpush.bf16.msra.mxu0 %v2619
  %3922 = vmatmul.bf16.gmra.mxu0 %v668
  %v3923 = vpop.f32.mrf.mxu0
  %v3924 = vadd.f32 %v3910, %v3923
  %v3925 = vpop.f32.mrf.mxu0
  %v3926 = vadd.f32 %v3912, %v3925
  %3927 = vdwg.mxu0
  %3928 = vmatpush.bf16.msra.mxu0 %v2679
  %3929 = vmatpush.bf16.msra.mxu0 %v2675
  %3930 = vmatpush.bf16.msra.mxu0 %v2671
  %3931 = vmatpush.bf16.msra.mxu0 %v2667
  %3932 = vmatpush.bf16.msra.mxu0 %v2663
  %3933 = vmatpush.bf16.msra.mxu0 %v2659
  %3934 = vmatpush.bf16.msra.mxu0 %v2655
  %3935 = vmatpush.bf16.msra.mxu0 %v2651
  %3936 = vmatmul.bf16.gmra.mxu0 %v669
  %v3937 = vpop.f32.mrf.mxu0
  %v3938 = vadd.f32 %v3924, %v3937
  %v3939 = vpop.f32.mrf.mxu0
  %v3940 = vadd.f32 %v3926, %v3939
  %3941 = vdwg.mxu0
  %3942 = vmatpush.bf16.msra.mxu0 %v2711
  %3943 = vmatpush.bf16.msra.mxu0 %v2707
  %3944 = vmatpush.bf16.msra.mxu0 %v2703
  %3945 = vmatpush.bf16.msra.mxu0 %v2699
  %3946 = vmatpush.bf16.msra.mxu0 %v2695
  %3947 = vmatpush.bf16.msra.mxu0 %v2691
  %3948 = vmatpush.bf16.msra.mxu0 %v2687
  %3949 = vmatpush.bf16.msra.mxu0 %v2683
  %3950 = vmatmul.bf16.gmra.mxu0 %v670
  %v3951 = vpop.f32.mrf.mxu0
  %v3952 = vadd.f32 %v3938, %v3951
  %v3953 = vpop.f32.mrf.mxu0
  %v3954 = vadd.f32 %v3940, %v3953
  %3955 = vdwg.mxu0
  %3956 = vmatpush.bf16.msra.mxu0 %v2743
  %3957 = vmatpush.bf16.msra.mxu0 %v2739
  %3958 = vmatpush.bf16.msra.mxu0 %v2735
  %3959 = vmatpush.bf16.msra.mxu0 %v2731
  %3960 = vmatpush.bf16.msra.mxu0 %v2727
  %3961 = vmatpush.bf16.msra.mxu0 %v2723
  %3962 = vmatpush.bf16.msra.mxu0 %v2719
  %3963 = vmatpush.bf16.msra.mxu0 %v2715
  %3964 = vmatmul.bf16.gmra.mxu0 %v671
  %v3965 = vpop.f32.mrf.mxu0
  %v3966 = vadd.f32 %v3952, %v3965
  %v3967 = vpop.f32.mrf.mxu0
  %v3968 = vadd.f32 %v3954, %v3967
  %3969 = vdwg.mxu0
  %3970 = vmatpush.bf16.msra.mxu0 %v2775
  %3971 = vmatpush.bf16.msra.mxu0 %v2771
  %3972 = vmatpush.bf16.msra.mxu0 %v2767
  %3973 = vmatpush.bf16.msra.mxu0 %v2763
  %3974 = vmatpush.bf16.msra.mxu0 %v2759
  %3975 = vmatpush.bf16.msra.mxu0 %v2755
  %3976 = vmatpush.bf16.msra.mxu0 %v2751
  %3977 = vmatpush.bf16.msra.mxu0 %v2747
  %3978 = vmatmul.bf16.gmra.mxu0 %v672
  %v3979 = vpop.f32.mrf.mxu0
  %v3980 = vadd.f32 %v3966, %v3979
  %v3981 = vpop.f32.mrf.mxu0
  %v3982 = vadd.f32 %v3968, %v3981
  %3983 = vdwg.mxu0
  %3984 = vmatpush.bf16.msra.mxu0 %v2807
  %3985 = vmatpush.bf16.msra.mxu0 %v2803
  %3986 = vmatpush.bf16.msra.mxu0 %v2799
  %3987 = vmatpush.bf16.msra.mxu0 %v2795
  %3988 = vmatpush.bf16.msra.mxu0 %v2791
  %3989 = vmatpush.bf16.msra.mxu0 %v2787
  %3990 = vmatpush.bf16.msra.mxu0 %v2783
  %3991 = vmatpush.bf16.msra.mxu0 %v2779
  %3992 = vmatmul.bf16.gmra.mxu0 %v673
  %v3993 = vpop.f32.mrf.mxu0
  %v3994 = vadd.f32 %v3980, %v3993
  %v3995 = vpop.f32.mrf.mxu0
  %v3996 = vadd.f32 %v3982, %v3995
  %3997 = vdwg.mxu0
  %3998 = vmatpush.bf16.msra.mxu0 %v2839
  %3999 = vmatpush.bf16.msra.mxu0 %v2835
  %4000 = vmatpush.bf16.msra.mxu0 %v2831
  %4001 = vmatpush.bf16.msra.mxu0 %v2827
  %4002 = vmatpush.bf16.msra.mxu0 %v2823
  %4003 = vmatpush.bf16.msra.mxu0 %v2819
  %4004 = vmatpush.bf16.msra.mxu0 %v2815
  %4005 = vmatpush.bf16.msra.mxu0 %v2811
  %4006 = vmatmul.bf16.gmra.mxu0 %v674
  %v4007 = vpop.f32.mrf.mxu0
  %v4008 = vadd.f32 %v3994, %v4007
  %v4009 = vpop.f32.mrf.mxu0
  %v4010 = vadd.f32 %v3996, %v4009
  %4011 = vdwg.mxu0
  %4012 = vmatpush.bf16.msra.mxu0 %v2871
  %4013 = vmatpush.bf16.msra.mxu0 %v2867
  %4014 = vmatpush.bf16.msra.mxu0 %v2863
  %4015 = vmatpush.bf16.msra.mxu0 %v2859
  %4016 = vmatpush.bf16.msra.mxu0 %v2855
  %4017 = vmatpush.bf16.msra.mxu0 %v2851
  %4018 = vmatpush.bf16.msra.mxu0 %v2847
  %4019 = vmatpush.bf16.msra.mxu0 %v2843
  %4020 = vmatmul.bf16.gmra.mxu0 %v675
  %v4021 = vpop.f32.mrf.mxu0
  %v4022 = vadd.f32 %v4008, %v4021
  %v4023 = vpop.f32.mrf.mxu0
  %v4024 = vadd.f32 %v4010, %v4023
  %4025 = vdwg.mxu0
  %4026 = vmatpush.bf16.msra.mxu0 %v2903
  %4027 = vmatpush.bf16.msra.mxu0 %v2899
  %4028 = vmatpush.bf16.msra.mxu0 %v2895
  %4029 = vmatpush.bf16.msra.mxu0 %v2891
  %4030 = vmatpush.bf16.msra.mxu0 %v2887
  %4031 = vmatpush.bf16.msra.mxu0 %v2883
  %4032 = vmatpush.bf16.msra.mxu0 %v2879
  %4033 = vmatpush.bf16.msra.mxu0 %v2875
  %4034 = vmatmul.bf16.gmra.mxu0 %v676
  %v4035 = vpop.f32.mrf.mxu0
  %v4036 = vadd.f32 %v4022, %v4035
  %v4037 = vpop.f32.mrf.mxu0
  %v4038 = vadd.f32 %v4024, %v4037
  %4039 = vdwg.mxu0
  %4040 = vmatpush.bf16.msra.mxu0 %v2935
  %4041 = vmatpush.bf16.msra.mxu0 %v2931
  %4042 = vmatpush.bf16.msra.mxu0 %v2927
  %4043 = vmatpush.bf16.msra.mxu0 %v2923
  %4044 = vmatpush.bf16.msra.mxu0 %v2919
  %4045 = vmatpush.bf16.msra.mxu0 %v2915
  %4046 = vmatpush.bf16.msra.mxu0 %v2911
  %4047 = vmatpush.bf16.msra.mxu0 %v2907
  %4048 = vmatmul.bf16.gmra.mxu0 %v677
  %v4049 = vpop.f32.mrf.mxu0
  %v4050 = vadd.f32 %v4036, %v4049
  %v4051 = vpop.f32.mrf.mxu0
  %v4052 = vadd.f32 %v4038, %v4051
  %4053 = vdwg.mxu0
  %4054 = vmatpush.bf16.msra.mxu0 %v2967
  %4055 = vmatpush.bf16.msra.mxu0 %v2963
  %4056 = vmatpush.bf16.msra.mxu0 %v2959
  %4057 = vmatpush.bf16.msra.mxu0 %v2955
  %4058 = vmatpush.bf16.msra.mxu0 %v2951
  %4059 = vmatpush.bf16.msra.mxu0 %v2947
  %4060 = vmatpush.bf16.msra.mxu0 %v2943
  %4061 = vmatpush.bf16.msra.mxu0 %v2939
  %4062 = vmatmul.bf16.gmra.mxu0 %v678
  %v4063 = vpop.f32.mrf.mxu0
  %v4064 = vadd.f32 %v4050, %v4063
  %v4065 = vpop.f32.mrf.mxu0
  %v4066 = vadd.f32 %v4052, %v4065
  %4067 = vdwg.mxu0
  %4068 = vmatpush.bf16.msra.mxu0 %v2999
  %4069 = vmatpush.bf16.msra.mxu0 %v2995
  %4070 = vmatpush.bf16.msra.mxu0 %v2991
  %4071 = vmatpush.bf16.msra.mxu0 %v2987
  %4072 = vmatpush.bf16.msra.mxu0 %v2983
  %4073 = vmatpush.bf16.msra.mxu0 %v2979
  %4074 = vmatpush.bf16.msra.mxu0 %v2975
  %4075 = vmatpush.bf16.msra.mxu0 %v2971
  %4076 = vmatmul.bf16.gmra.mxu0 %v679
  %v4077 = vpop.f32.mrf.mxu0
  %v4078 = vadd.f32 %v4064, %v4077
  %v4079 = vpop.f32.mrf.mxu0
  %v4080 = vadd.f32 %v4066, %v4079
  %4081 = vdwg.mxu0
  %4082 = vmatpush.bf16.msra.mxu0 %v2456
  %4083 = vmatpush.bf16.msra.mxu0 %v2452
  %4084 = vmatpush.bf16.msra.mxu0 %v2448
  %4085 = vmatpush.bf16.msra.mxu0 %v2444
  %4086 = vmatpush.bf16.msra.mxu0 %v2440
  %4087 = vmatpush.bf16.msra.mxu0 %v2436
  %4088 = vmatpush.bf16.msra.mxu0 %v2432
  %4089 = vmatpush.bf16.msra.mxu0 %v2428
  %4090 = vmatmul.bf16.gmra.mxu0 %v662
  %v4091 = vpop.f32.mrf.mxu0
  %v4092 = vadd.f32 0.0, %v4091
  %v4093 = vpop.f32.mrf.mxu0
  %v4094 = vadd.f32 0.0, %v4093
  %4095 = vdwg.mxu0
  %4096 = vmatpush.bf16.msra.mxu0 %v2488
  %4097 = vmatpush.bf16.msra.mxu0 %v2484
  %4098 = vmatpush.bf16.msra.mxu0 %v2480
  %4099 = vmatpush.bf16.msra.mxu0 %v2476
  %4100 = vmatpush.bf16.msra.mxu0 %v2472
  %4101 = vmatpush.bf16.msra.mxu0 %v2468
  %4102 = vmatpush.bf16.msra.mxu0 %v2464
  %4103 = vmatpush.bf16.msra.mxu0 %v2460
  %4104 = vmatmul.bf16.gmra.mxu0 %v663
  %v4105 = vpop.f32.mrf.mxu0
  %v4106 = vadd.f32 %v4092, %v4105
  %v4107 = vpop.f32.mrf.mxu0
  %v4108 = vadd.f32 %v4094, %v4107
  %4109 = vdwg.mxu0
  %4110 = vmatpush.bf16.msra.mxu0 %v2520
  %4111 = vmatpush.bf16.msra.mxu0 %v2516
  %4112 = vmatpush.bf16.msra.mxu0 %v2512
  %4113 = vmatpush.bf16.msra.mxu0 %v2508
  %4114 = vmatpush.bf16.msra.mxu0 %v2504
  %4115 = vmatpush.bf16.msra.mxu0 %v2500
  %4116 = vmatpush.bf16.msra.mxu0 %v2496
  %4117 = vmatpush.bf16.msra.mxu0 %v2492
  %4118 = vmatmul.bf16.gmra.mxu0 %v664
  %v4119 = vpop.f32.mrf.mxu0
  %v4120 = vadd.f32 %v4106, %v4119
  %v4121 = vpop.f32.mrf.mxu0
  %v4122 = vadd.f32 %v4108, %v4121
  %4123 = vdwg.mxu0
  %4124 = vmatpush.bf16.msra.mxu0 %v2552
  %4125 = vmatpush.bf16.msra.mxu0 %v2548
  %4126 = vmatpush.bf16.msra.mxu0 %v2544
  %4127 = vmatpush.bf16.msra.mxu0 %v2540
  %4128 = vmatpush.bf16.msra.mxu0 %v2536
  %4129 = vmatpush.bf16.msra.mxu0 %v2532
  %4130 = vmatpush.bf16.msra.mxu0 %v2528
  %4131 = vmatpush.bf16.msra.mxu0 %v2524
  %4132 = vmatmul.bf16.gmra.mxu0 %v665
  %v4133 = vpop.f32.mrf.mxu0
  %v4134 = vadd.f32 %v4120, %v4133
  %v4135 = vpop.f32.mrf.mxu0
  %v4136 = vadd.f32 %v4122, %v4135
  %4137 = vdwg.mxu0
  %4138 = vmatpush.bf16.msra.mxu0 %v2584
  %4139 = vmatpush.bf16.msra.mxu0 %v2580
  %4140 = vmatpush.bf16.msra.mxu0 %v2576
  %4141 = vmatpush.bf16.msra.mxu0 %v2572
  %4142 = vmatpush.bf16.msra.mxu0 %v2568
  %4143 = vmatpush.bf16.msra.mxu0 %v2564
  %4144 = vmatpush.bf16.msra.mxu0 %v2560
  %4145 = vmatpush.bf16.msra.mxu0 %v2556
  %4146 = vmatmul.bf16.gmra.mxu0 %v666
  %v4147 = vpop.f32.mrf.mxu0
  %v4148 = vadd.f32 %v4134, %v4147
  %v4149 = vpop.f32.mrf.mxu0
  %v4150 = vadd.f32 %v4136, %v4149
  %4151 = vdwg.mxu0
  %4152 = vmatpush.bf16.msra.mxu0 %v2616
  %4153 = vmatpush.bf16.msra.mxu0 %v2612
  %4154 = vmatpush.bf16.msra.mxu0 %v2608
  %4155 = vmatpush.bf16.msra.mxu0 %v2604
  %4156 = vmatpush.bf16.msra.mxu0 %v2600
  %4157 = vmatpush.bf16.msra.mxu0 %v2596
  %4158 = vmatpush.bf16.msra.mxu0 %v2592
  %4159 = vmatpush.bf16.msra.mxu0 %v2588
  %4160 = vmatmul.bf16.gmra.mxu0 %v667
  %v4161 = vpop.f32.mrf.mxu0
  %v4162 = vadd.f32 %v4148, %v4161
  %v4163 = vpop.f32.mrf.mxu0
  %v4164 = vadd.f32 %v4150, %v4163
  %4165 = vdwg.mxu0
  %4166 = vmatpush.bf16.msra.mxu0 %v2648
  %4167 = vmatpush.bf16.msra.mxu0 %v2644
  %4168 = vmatpush.bf16.msra.mxu0 %v2640
  %4169 = vmatpush.bf16.msra.mxu0 %v2636
  %4170 = vmatpush.bf16.msra.mxu0 %v2632
  %4171 = vmatpush.bf16.msra.mxu0 %v2628
  %4172 = vmatpush.bf16.msra.mxu0 %v2624
  %4173 = vmatpush.bf16.msra.mxu0 %v2620
  %4174 = vmatmul.bf16.gmra.mxu0 %v668
  %v4175 = vpop.f32.mrf.mxu0
  %v4176 = vadd.f32 %v4162, %v4175
  %v4177 = vpop.f32.mrf.mxu0
  %v4178 = vadd.f32 %v4164, %v4177
  %4179 = vdwg.mxu0
  %4180 = vmatpush.bf16.msra.mxu0 %v2680
  %4181 = vmatpush.bf16.msra.mxu0 %v2676
  %4182 = vmatpush.bf16.msra.mxu0 %v2672
  %4183 = vmatpush.bf16.msra.mxu0 %v2668
  %4184 = vmatpush.bf16.msra.mxu0 %v2664
  %4185 = vmatpush.bf16.msra.mxu0 %v2660
  %4186 = vmatpush.bf16.msra.mxu0 %v2656
  %4187 = vmatpush.bf16.msra.mxu0 %v2652
  %4188 = vmatmul.bf16.gmra.mxu0 %v669
  %v4189 = vpop.f32.mrf.mxu0
  %v4190 = vadd.f32 %v4176, %v4189
  %v4191 = vpop.f32.mrf.mxu0
  %v4192 = vadd.f32 %v4178, %v4191
  %4193 = vdwg.mxu0
  %4194 = vmatpush.bf16.msra.mxu0 %v2712
  %4195 = vmatpush.bf16.msra.mxu0 %v2708
  %4196 = vmatpush.bf16.msra.mxu0 %v2704
  %4197 = vmatpush.bf16.msra.mxu0 %v2700
  %4198 = vmatpush.bf16.msra.mxu0 %v2696
  %4199 = vmatpush.bf16.msra.mxu0 %v2692
  %4200 = vmatpush.bf16.msra.mxu0 %v2688
  %4201 = vmatpush.bf16.msra.mxu0 %v2684
  %4202 = vmatmul.bf16.gmra.mxu0 %v670
  %v4203 = vpop.f32.mrf.mxu0
  %v4204 = vadd.f32 %v4190, %v4203
  %v4205 = vpop.f32.mrf.mxu0
  %v4206 = vadd.f32 %v4192, %v4205
  %4207 = vdwg.mxu0
  %4208 = vmatpush.bf16.msra.mxu0 %v2744
  %4209 = vmatpush.bf16.msra.mxu0 %v2740
  %4210 = vmatpush.bf16.msra.mxu0 %v2736
  %4211 = vmatpush.bf16.msra.mxu0 %v2732
  %4212 = vmatpush.bf16.msra.mxu0 %v2728
  %4213 = vmatpush.bf16.msra.mxu0 %v2724
  %4214 = vmatpush.bf16.msra.mxu0 %v2720
  %4215 = vmatpush.bf16.msra.mxu0 %v2716
  %4216 = vmatmul.bf16.gmra.mxu0 %v671
  %v4217 = vpop.f32.mrf.mxu0
  %v4218 = vadd.f32 %v4204, %v4217
  %v4219 = vpop.f32.mrf.mxu0
  %v4220 = vadd.f32 %v4206, %v4219
  %4221 = vdwg.mxu0
  %4222 = vmatpush.bf16.msra.mxu0 %v2776
  %4223 = vmatpush.bf16.msra.mxu0 %v2772
  %4224 = vmatpush.bf16.msra.mxu0 %v2768
  %4225 = vmatpush.bf16.msra.mxu0 %v2764
  %4226 = vmatpush.bf16.msra.mxu0 %v2760
  %4227 = vmatpush.bf16.msra.mxu0 %v2756
  %4228 = vmatpush.bf16.msra.mxu0 %v2752
  %4229 = vmatpush.bf16.msra.mxu0 %v2748
  %4230 = vmatmul.bf16.gmra.mxu0 %v672
  %v4231 = vpop.f32.mrf.mxu0
  %v4232 = vadd.f32 %v4218, %v4231
  %v4233 = vpop.f32.mrf.mxu0
  %v4234 = vadd.f32 %v4220, %v4233
  %4235 = vdwg.mxu0
  %4236 = vmatpush.bf16.msra.mxu0 %v2808
  %4237 = vmatpush.bf16.msra.mxu0 %v2804
  %4238 = vmatpush.bf16.msra.mxu0 %v2800
  %4239 = vmatpush.bf16.msra.mxu0 %v2796
  %4240 = vmatpush.bf16.msra.mxu0 %v2792
  %4241 = vmatpush.bf16.msra.mxu0 %v2788
  %4242 = vmatpush.bf16.msra.mxu0 %v2784
  %4243 = vmatpush.bf16.msra.mxu0 %v2780
  %4244 = vmatmul.bf16.gmra.mxu0 %v673
  %v4245 = vpop.f32.mrf.mxu0
  %v4246 = vadd.f32 %v4232, %v4245
  %v4247 = vpop.f32.mrf.mxu0
  %v4248 = vadd.f32 %v4234, %v4247
  %4249 = vdwg.mxu0
  %4250 = vmatpush.bf16.msra.mxu0 %v2840
  %4251 = vmatpush.bf16.msra.mxu0 %v2836
  %4252 = vmatpush.bf16.msra.mxu0 %v2832
  %4253 = vmatpush.bf16.msra.mxu0 %v2828
  %4254 = vmatpush.bf16.msra.mxu0 %v2824
  %4255 = vmatpush.bf16.msra.mxu0 %v2820
  %4256 = vmatpush.bf16.msra.mxu0 %v2816
  %4257 = vmatpush.bf16.msra.mxu0 %v2812
  %4258 = vmatmul.bf16.gmra.mxu0 %v674
  %v4259 = vpop.f32.mrf.mxu0
  %v4260 = vadd.f32 %v4246, %v4259
  %v4261 = vpop.f32.mrf.mxu0
  %v4262 = vadd.f32 %v4248, %v4261
  %4263 = vdwg.mxu0
  %4264 = vmatpush.bf16.msra.mxu0 %v2872
  %4265 = vmatpush.bf16.msra.mxu0 %v2868
  %4266 = vmatpush.bf16.msra.mxu0 %v2864
  %4267 = vmatpush.bf16.msra.mxu0 %v2860
  %4268 = vmatpush.bf16.msra.mxu0 %v2856
  %4269 = vmatpush.bf16.msra.mxu0 %v2852
  %4270 = vmatpush.bf16.msra.mxu0 %v2848
  %4271 = vmatpush.bf16.msra.mxu0 %v2844
  %4272 = vmatmul.bf16.gmra.mxu0 %v675
  %v4273 = vpop.f32.mrf.mxu0
  %v4274 = vadd.f32 %v4260, %v4273
  %v4275 = vpop.f32.mrf.mxu0
  %v4276 = vadd.f32 %v4262, %v4275
  %4277 = vdwg.mxu0
  %4278 = vmatpush.bf16.msra.mxu0 %v2904
  %4279 = vmatpush.bf16.msra.mxu0 %v2900
  %4280 = vmatpush.bf16.msra.mxu0 %v2896
  %4281 = vmatpush.bf16.msra.mxu0 %v2892
  %4282 = vmatpush.bf16.msra.mxu0 %v2888
  %4283 = vmatpush.bf16.msra.mxu0 %v2884
  %4284 = vmatpush.bf16.msra.mxu0 %v2880
  %4285 = vmatpush.bf16.msra.mxu0 %v2876
  %4286 = vmatmul.bf16.gmra.mxu0 %v676
  %v4287 = vpop.f32.mrf.mxu0
  %v4288 = vadd.f32 %v4274, %v4287
  %v4289 = vpop.f32.mrf.mxu0
  %v4290 = vadd.f32 %v4276, %v4289
  %4291 = vdwg.mxu0
  %4292 = vmatpush.bf16.msra.mxu0 %v2936
  %4293 = vmatpush.bf16.msra.mxu0 %v2932
  %4294 = vmatpush.bf16.msra.mxu0 %v2928
  %4295 = vmatpush.bf16.msra.mxu0 %v2924
  %4296 = vmatpush.bf16.msra.mxu0 %v2920
  %4297 = vmatpush.bf16.msra.mxu0 %v2916
  %4298 = vmatpush.bf16.msra.mxu0 %v2912
  %4299 = vmatpush.bf16.msra.mxu0 %v2908
  %4300 = vmatmul.bf16.gmra.mxu0 %v677
  %v4301 = vpop.f32.mrf.mxu0
  %v4302 = vadd.f32 %v4288, %v4301
  %v4303 = vpop.f32.mrf.mxu0
  %v4304 = vadd.f32 %v4290, %v4303
  %4305 = vdwg.mxu0
  %4306 = vmatpush.bf16.msra.mxu0 %v2968
  %4307 = vmatpush.bf16.msra.mxu0 %v2964
  %4308 = vmatpush.bf16.msra.mxu0 %v2960
  %4309 = vmatpush.bf16.msra.mxu0 %v2956
  %4310 = vmatpush.bf16.msra.mxu0 %v2952
  %4311 = vmatpush.bf16.msra.mxu0 %v2948
  %4312 = vmatpush.bf16.msra.mxu0 %v2944
  %4313 = vmatpush.bf16.msra.mxu0 %v2940
  %4314 = vmatmul.bf16.gmra.mxu0 %v678
  %v4315 = vpop.f32.mrf.mxu0
  %v4316 = vadd.f32 %v4302, %v4315
  %v4317 = vpop.f32.mrf.mxu0
  %v4318 = vadd.f32 %v4304, %v4317
  %4319 = vdwg.mxu0
  %4320 = vmatpush.bf16.msra.mxu0 %v3000
  %4321 = vmatpush.bf16.msra.mxu0 %v2996
  %4322 = vmatpush.bf16.msra.mxu0 %v2992
  %4323 = vmatpush.bf16.msra.mxu0 %v2988
  %4324 = vmatpush.bf16.msra.mxu0 %v2984
  %4325 = vmatpush.bf16.msra.mxu0 %v2980
  %4326 = vmatpush.bf16.msra.mxu0 %v2976
  %4327 = vmatpush.bf16.msra.mxu0 %v2972
  %4328 = vmatmul.bf16.gmra.mxu0 %v679
  %v4329 = vpop.f32.mrf.mxu0
  %v4330 = vadd.f32 %v4316, %v4329
  %v4331 = vpop.f32.mrf.mxu0
  %v4332 = vadd.f32 %v4318, %v4331
  %4333 = vdwg.mxu0
  %4334 = vmatpush.bf16.msra.mxu0 %v2457
  %4335 = vmatpush.bf16.msra.mxu0 %v2453
  %4336 = vmatpush.bf16.msra.mxu0 %v2449
  %4337 = vmatpush.bf16.msra.mxu0 %v2445
  %4338 = vmatpush.bf16.msra.mxu0 %v2441
  %4339 = vmatpush.bf16.msra.mxu0 %v2437
  %4340 = vmatpush.bf16.msra.mxu0 %v2433
  %4341 = vmatpush.bf16.msra.mxu0 %v2429
  %4342 = vmatmul.bf16.gmra.mxu0 %v662
  %v4343 = vpop.f32.mrf.mxu0
  %v4344 = vadd.f32 0.0, %v4343
  %v4345 = vpop.f32.mrf.mxu0
  %v4346 = vadd.f32 0.0, %v4345
  %4347 = vdwg.mxu0
  %4348 = vmatpush.bf16.msra.mxu0 %v2489
  %4349 = vmatpush.bf16.msra.mxu0 %v2485
  %4350 = vmatpush.bf16.msra.mxu0 %v2481
  %4351 = vmatpush.bf16.msra.mxu0 %v2477
  %4352 = vmatpush.bf16.msra.mxu0 %v2473
  %4353 = vmatpush.bf16.msra.mxu0 %v2469
  %4354 = vmatpush.bf16.msra.mxu0 %v2465
  %4355 = vmatpush.bf16.msra.mxu0 %v2461
  %4356 = vmatmul.bf16.gmra.mxu0 %v663
  %v4357 = vpop.f32.mrf.mxu0
  %v4358 = vadd.f32 %v4344, %v4357
  %v4359 = vpop.f32.mrf.mxu0
  %v4360 = vadd.f32 %v4346, %v4359
  %4361 = vdwg.mxu0
  %4362 = vmatpush.bf16.msra.mxu0 %v2521
  %4363 = vmatpush.bf16.msra.mxu0 %v2517
  %4364 = vmatpush.bf16.msra.mxu0 %v2513
  %4365 = vmatpush.bf16.msra.mxu0 %v2509
  %4366 = vmatpush.bf16.msra.mxu0 %v2505
  %4367 = vmatpush.bf16.msra.mxu0 %v2501
  %4368 = vmatpush.bf16.msra.mxu0 %v2497
  %4369 = vmatpush.bf16.msra.mxu0 %v2493
  %4370 = vmatmul.bf16.gmra.mxu0 %v664
  %v4371 = vpop.f32.mrf.mxu0
  %v4372 = vadd.f32 %v4358, %v4371
  %v4373 = vpop.f32.mrf.mxu0
  %v4374 = vadd.f32 %v4360, %v4373
  %4375 = vdwg.mxu0
  %4376 = vmatpush.bf16.msra.mxu0 %v2553
  %4377 = vmatpush.bf16.msra.mxu0 %v2549
  %4378 = vmatpush.bf16.msra.mxu0 %v2545
  %4379 = vmatpush.bf16.msra.mxu0 %v2541
  %4380 = vmatpush.bf16.msra.mxu0 %v2537
  %4381 = vmatpush.bf16.msra.mxu0 %v2533
  %4382 = vmatpush.bf16.msra.mxu0 %v2529
  %4383 = vmatpush.bf16.msra.mxu0 %v2525
  %4384 = vmatmul.bf16.gmra.mxu0 %v665
  %v4385 = vpop.f32.mrf.mxu0
  %v4386 = vadd.f32 %v4372, %v4385
  %v4387 = vpop.f32.mrf.mxu0
  %v4388 = vadd.f32 %v4374, %v4387
  %4389 = vdwg.mxu0
  %4390 = vmatpush.bf16.msra.mxu0 %v2585
  %4391 = vmatpush.bf16.msra.mxu0 %v2581
  %4392 = vmatpush.bf16.msra.mxu0 %v2577
  %4393 = vmatpush.bf16.msra.mxu0 %v2573
  %4394 = vmatpush.bf16.msra.mxu0 %v2569
  %4395 = vmatpush.bf16.msra.mxu0 %v2565
  %4396 = vmatpush.bf16.msra.mxu0 %v2561
  %4397 = vmatpush.bf16.msra.mxu0 %v2557
  %4398 = vmatmul.bf16.gmra.mxu0 %v666
  %v4399 = vpop.f32.mrf.mxu0
  %v4400 = vadd.f32 %v4386, %v4399
  %v4401 = vpop.f32.mrf.mxu0
  %v4402 = vadd.f32 %v4388, %v4401
  %4403 = vdwg.mxu0
  %4404 = vmatpush.bf16.msra.mxu0 %v2617
  %4405 = vmatpush.bf16.msra.mxu0 %v2613
  %4406 = vmatpush.bf16.msra.mxu0 %v2609
  %4407 = vmatpush.bf16.msra.mxu0 %v2605
  %4408 = vmatpush.bf16.msra.mxu0 %v2601
  %4409 = vmatpush.bf16.msra.mxu0 %v2597
  %4410 = vmatpush.bf16.msra.mxu0 %v2593
  %4411 = vmatpush.bf16.msra.mxu0 %v2589
  %4412 = vmatmul.bf16.gmra.mxu0 %v667
  %v4413 = vpop.f32.mrf.mxu0
  %v4414 = vadd.f32 %v4400, %v4413
  %v4415 = vpop.f32.mrf.mxu0
  %v4416 = vadd.f32 %v4402, %v4415
  %4417 = vdwg.mxu0
  %4418 = vmatpush.bf16.msra.mxu0 %v2649
  %4419 = vmatpush.bf16.msra.mxu0 %v2645
  %4420 = vmatpush.bf16.msra.mxu0 %v2641
  %4421 = vmatpush.bf16.msra.mxu0 %v2637
  %4422 = vmatpush.bf16.msra.mxu0 %v2633
  %4423 = vmatpush.bf16.msra.mxu0 %v2629
  %4424 = vmatpush.bf16.msra.mxu0 %v2625
  %4425 = vmatpush.bf16.msra.mxu0 %v2621
  %4426 = vmatmul.bf16.gmra.mxu0 %v668
  %v4427 = vpop.f32.mrf.mxu0
  %v4428 = vadd.f32 %v4414, %v4427
  %v4429 = vpop.f32.mrf.mxu0
  %v4430 = vadd.f32 %v4416, %v4429
  %4431 = vdwg.mxu0
  %4432 = vmatpush.bf16.msra.mxu0 %v2681
  %4433 = vmatpush.bf16.msra.mxu0 %v2677
  %4434 = vmatpush.bf16.msra.mxu0 %v2673
  %4435 = vmatpush.bf16.msra.mxu0 %v2669
  %4436 = vmatpush.bf16.msra.mxu0 %v2665
  %4437 = vmatpush.bf16.msra.mxu0 %v2661
  %4438 = vmatpush.bf16.msra.mxu0 %v2657
  %4439 = vmatpush.bf16.msra.mxu0 %v2653
  %4440 = vmatmul.bf16.gmra.mxu0 %v669
  %v4441 = vpop.f32.mrf.mxu0
  %v4442 = vadd.f32 %v4428, %v4441
  %v4443 = vpop.f32.mrf.mxu0
  %v4444 = vadd.f32 %v4430, %v4443
  %4445 = vdwg.mxu0
  %4446 = vmatpush.bf16.msra.mxu0 %v2713
  %4447 = vmatpush.bf16.msra.mxu0 %v2709
  %4448 = vmatpush.bf16.msra.mxu0 %v2705
  %4449 = vmatpush.bf16.msra.mxu0 %v2701
  %4450 = vmatpush.bf16.msra.mxu0 %v2697
  %4451 = vmatpush.bf16.msra.mxu0 %v2693
  %4452 = vmatpush.bf16.msra.mxu0 %v2689
  %4453 = vmatpush.bf16.msra.mxu0 %v2685
  %4454 = vmatmul.bf16.gmra.mxu0 %v670
  %v4455 = vpop.f32.mrf.mxu0
  %v4456 = vadd.f32 %v4442, %v4455
  %v4457 = vpop.f32.mrf.mxu0
  %v4458 = vadd.f32 %v4444, %v4457
  %4459 = vdwg.mxu0
  %4460 = vmatpush.bf16.msra.mxu0 %v2745
  %4461 = vmatpush.bf16.msra.mxu0 %v2741
  %4462 = vmatpush.bf16.msra.mxu0 %v2737
  %4463 = vmatpush.bf16.msra.mxu0 %v2733
  %4464 = vmatpush.bf16.msra.mxu0 %v2729
  %4465 = vmatpush.bf16.msra.mxu0 %v2725
  %4466 = vmatpush.bf16.msra.mxu0 %v2721
  %4467 = vmatpush.bf16.msra.mxu0 %v2717
  %4468 = vmatmul.bf16.gmra.mxu0 %v671
  %v4469 = vpop.f32.mrf.mxu0
  %v4470 = vadd.f32 %v4456, %v4469
  %v4471 = vpop.f32.mrf.mxu0
  %v4472 = vadd.f32 %v4458, %v4471
  %4473 = vdwg.mxu0
  %4474 = vmatpush.bf16.msra.mxu0 %v2777
  %4475 = vmatpush.bf16.msra.mxu0 %v2773
  %4476 = vmatpush.bf16.msra.mxu0 %v2769
  %4477 = vmatpush.bf16.msra.mxu0 %v2765
  %4478 = vmatpush.bf16.msra.mxu0 %v2761
  %4479 = vmatpush.bf16.msra.mxu0 %v2757
  %4480 = vmatpush.bf16.msra.mxu0 %v2753
  %4481 = vmatpush.bf16.msra.mxu0 %v2749
  %4482 = vmatmul.bf16.gmra.mxu0 %v672
  %v4483 = vpop.f32.mrf.mxu0
  %v4484 = vadd.f32 %v4470, %v4483
  %v4485 = vpop.f32.mrf.mxu0
  %v4486 = vadd.f32 %v4472, %v4485
  %4487 = vdwg.mxu0
  %4488 = vmatpush.bf16.msra.mxu0 %v2809
  %4489 = vmatpush.bf16.msra.mxu0 %v2805
  %4490 = vmatpush.bf16.msra.mxu0 %v2801
  %4491 = vmatpush.bf16.msra.mxu0 %v2797
  %4492 = vmatpush.bf16.msra.mxu0 %v2793
  %4493 = vmatpush.bf16.msra.mxu0 %v2789
  %4494 = vmatpush.bf16.msra.mxu0 %v2785
  %4495 = vmatpush.bf16.msra.mxu0 %v2781
  %4496 = vmatmul.bf16.gmra.mxu0 %v673
  %v4497 = vpop.f32.mrf.mxu0
  %v4498 = vadd.f32 %v4484, %v4497
  %v4499 = vpop.f32.mrf.mxu0
  %v4500 = vadd.f32 %v4486, %v4499
  %4501 = vdwg.mxu0
  %4502 = vmatpush.bf16.msra.mxu0 %v2841
  %4503 = vmatpush.bf16.msra.mxu0 %v2837
  %4504 = vmatpush.bf16.msra.mxu0 %v2833
  %4505 = vmatpush.bf16.msra.mxu0 %v2829
  %4506 = vmatpush.bf16.msra.mxu0 %v2825
  %4507 = vmatpush.bf16.msra.mxu0 %v2821
  %4508 = vmatpush.bf16.msra.mxu0 %v2817
  %4509 = vmatpush.bf16.msra.mxu0 %v2813
  %4510 = vmatmul.bf16.gmra.mxu0 %v674
  %v4511 = vpop.f32.mrf.mxu0
  %v4512 = vadd.f32 %v4498, %v4511
  %v4513 = vpop.f32.mrf.mxu0
  %v4514 = vadd.f32 %v4500, %v4513
  %4515 = vdwg.mxu0
  %4516 = vmatpush.bf16.msra.mxu0 %v2873
  %4517 = vmatpush.bf16.msra.mxu0 %v2869
  %4518 = vmatpush.bf16.msra.mxu0 %v2865
  %4519 = vmatpush.bf16.msra.mxu0 %v2861
  %4520 = vmatpush.bf16.msra.mxu0 %v2857
  %4521 = vmatpush.bf16.msra.mxu0 %v2853
  %4522 = vmatpush.bf16.msra.mxu0 %v2849
  %4523 = vmatpush.bf16.msra.mxu0 %v2845
  %4524 = vmatmul.bf16.gmra.mxu0 %v675
  %v4525 = vpop.f32.mrf.mxu0
  %v4526 = vadd.f32 %v4512, %v4525
  %v4527 = vpop.f32.mrf.mxu0
  %v4528 = vadd.f32 %v4514, %v4527
  %4529 = vdwg.mxu0
  %4530 = vmatpush.bf16.msra.mxu0 %v2905
  %4531 = vmatpush.bf16.msra.mxu0 %v2901
  %4532 = vmatpush.bf16.msra.mxu0 %v2897
  %4533 = vmatpush.bf16.msra.mxu0 %v2893
  %4534 = vmatpush.bf16.msra.mxu0 %v2889
  %4535 = vmatpush.bf16.msra.mxu0 %v2885
  %4536 = vmatpush.bf16.msra.mxu0 %v2881
  %4537 = vmatpush.bf16.msra.mxu0 %v2877
  %4538 = vmatmul.bf16.gmra.mxu0 %v676
  %v4539 = vpop.f32.mrf.mxu0
  %v4540 = vadd.f32 %v4526, %v4539
  %v4541 = vpop.f32.mrf.mxu0
  %v4542 = vadd.f32 %v4528, %v4541
  %4543 = vdwg.mxu0
  %4544 = vmatpush.bf16.msra.mxu0 %v2937
  %4545 = vmatpush.bf16.msra.mxu0 %v2933
  %4546 = vmatpush.bf16.msra.mxu0 %v2929
  %4547 = vmatpush.bf16.msra.mxu0 %v2925
  %4548 = vmatpush.bf16.msra.mxu0 %v2921
  %4549 = vmatpush.bf16.msra.mxu0 %v2917
  %4550 = vmatpush.bf16.msra.mxu0 %v2913
  %4551 = vmatpush.bf16.msra.mxu0 %v2909
  %4552 = vmatmul.bf16.gmra.mxu0 %v677
  %v4553 = vpop.f32.mrf.mxu0
  %v4554 = vadd.f32 %v4540, %v4553
  %v4555 = vpop.f32.mrf.mxu0
  %v4556 = vadd.f32 %v4542, %v4555
  %4557 = vdwg.mxu0
  %4558 = vmatpush.bf16.msra.mxu0 %v2969
  %4559 = vmatpush.bf16.msra.mxu0 %v2965
  %4560 = vmatpush.bf16.msra.mxu0 %v2961
  %4561 = vmatpush.bf16.msra.mxu0 %v2957
  %4562 = vmatpush.bf16.msra.mxu0 %v2953
  %4563 = vmatpush.bf16.msra.mxu0 %v2949
  %4564 = vmatpush.bf16.msra.mxu0 %v2945
  %4565 = vmatpush.bf16.msra.mxu0 %v2941
  %4566 = vmatmul.bf16.gmra.mxu0 %v678
  %v4567 = vpop.f32.mrf.mxu0
  %v4568 = vadd.f32 %v4554, %v4567
  %v4569 = vpop.f32.mrf.mxu0
  %v4570 = vadd.f32 %v4556, %v4569
  %4571 = vdwg.mxu0
  %4572 = vmatpush.bf16.msra.mxu0 %v3001
  %4573 = vmatpush.bf16.msra.mxu0 %v2997
  %4574 = vmatpush.bf16.msra.mxu0 %v2993
  %4575 = vmatpush.bf16.msra.mxu0 %v2989
  %4576 = vmatpush.bf16.msra.mxu0 %v2985
  %4577 = vmatpush.bf16.msra.mxu0 %v2981
  %4578 = vmatpush.bf16.msra.mxu0 %v2977
  %4579 = vmatpush.bf16.msra.mxu0 %v2973
  %4580 = vmatmul.bf16.gmra.mxu0 %v679
  %v4581 = vpop.f32.mrf.mxu0
  %v4582 = vadd.f32 %v4568, %v4581
  %v4583 = vpop.f32.mrf.mxu0
  %v4584 = vadd.f32 %v4570, %v4583
  %4585 = vdwg.mxu0
  %v4586 = vpack.c.bf16 %v4078, %v3826
  %v4587 = vpack.c.bf16 %v4582, %v4330
  %v4588 = vpack.c.bf16 %v4080, %v3828
  %v4589 = vpack.c.bf16 %v4584, %v4332
  %4590 = vst [vmem:[%s2] sm:$0xff] %v4586
  %4591 = vst [vmem:[%s2 + $0x8] sm:$0xff] %v4587
  %4592 = vst [vmem:[%s2 + $0x10] sm:$0xff] %v4588
  %4593 = vst [vmem:[%s2 + $0x18] sm:$0xff] %v4589
  %v4594 = vadd.f32 %v3826, %v3828
  %v4595 = vrot.slane %v4594, 4
  %v4596 = vadd.f32 %v4594, %v4595
  %v4597 = vrot.slane %v4596, 2
  %v4598 = vadd.f32 %v4596, %v4597
  %v4599 = vrot.slane %v4598, 1
  %v4600 = vadd.f32 %v4598, %v4599
  %v4601 = vadd.f32 %v4078, %v4080
  %v4602 = vrot.slane %v4601, 4
  %v4603 = vadd.f32 %v4601, %v4602
  %v4604 = vrot.slane %v4603, 2
  %v4605 = vadd.f32 %v4603, %v4604
  %v4606 = vrot.slane %v4605, 1
  %v4607 = vadd.f32 %v4605, %v4606
  %v4608 = vadd.f32 %v4330, %v4332
  %v4609 = vrot.slane %v4608, 4
  %v4610 = vadd.f32 %v4608, %v4609
  %v4611 = vrot.slane %v4610, 2
  %v4612 = vadd.f32 %v4610, %v4611
  %v4613 = vrot.slane %v4612, 1
  %v4614 = vadd.f32 %v4612, %v4613
  %v4615 = vadd.f32 %v4582, %v4584
  %v4616 = vrot.slane %v4615, 4
  %v4617 = vadd.f32 %v4615, %v4616
  %v4618 = vrot.slane %v4617, 2
  %v4619 = vadd.f32 %v4617, %v4618
  %v4620 = vrot.slane %v4619, 1
  %v4621 = vadd.f32 %v4619, %v4620
  %4622 = vst [vmem:[%s3] sm:$0xff] %v4600
  %4623 = vst [vmem:[%s3 + $0x8] sm:$0xff] %v4607
  %4624 = vst [vmem:[%s3 + $0x10] sm:$0xff] %v4614
  %4625 = vst [vmem:[%s3 + $0x18] sm:$0xff] %v4621
  %v4626 = vmul.f32 %v3826, %v3826
  %v4627 = vmul.f32 %v4078, %v4078
  %v4628 = vmul.f32 %v4330, %v4330
  %v4629 = vmul.f32 %v4582, %v4582
  %v4630 = vmul.f32 %v3828, %v3828
  %v4631 = vmul.f32 %v4080, %v4080
  %v4632 = vmul.f32 %v4332, %v4332
  %v4633 = vmul.f32 %v4584, %v4584
  %v4634 = vadd.f32 %v4626, %v4630
  %v4635 = vrot.slane %v4634, 4
  %v4636 = vadd.f32 %v4634, %v4635
  %v4637 = vrot.slane %v4636, 2
  %v4638 = vadd.f32 %v4636, %v4637
  %v4639 = vrot.slane %v4638, 1
  %v4640 = vadd.f32 %v4638, %v4639
  %v4641 = vadd.f32 %v4627, %v4631
  %v4642 = vrot.slane %v4641, 4
  %v4643 = vadd.f32 %v4641, %v4642
  %v4644 = vrot.slane %v4643, 2
  %v4645 = vadd.f32 %v4643, %v4644
  %v4646 = vrot.slane %v4645, 1
  %v4647 = vadd.f32 %v4645, %v4646
  %v4648 = vadd.f32 %v4628, %v4632
  %v4649 = vrot.slane %v4648, 4
  %v4650 = vadd.f32 %v4648, %v4649
  %v4651 = vrot.slane %v4650, 2
  %v4652 = vadd.f32 %v4650, %v4651
  %v4653 = vrot.slane %v4652, 1
  %v4654 = vadd.f32 %v4652, %v4653
  %v4655 = vadd.f32 %v4629, %v4633
  %v4656 = vrot.slane %v4655, 4
  %v4657 = vadd.f32 %v4655, %v4656
  %v4658 = vrot.slane %v4657, 2
  %v4659 = vadd.f32 %v4657, %v4658
  %v4660 = vrot.slane %v4659, 1
  %v4661 = vadd.f32 %v4659, %v4660
  %4662 = vst [vmem:[%s4] sm:$0xff] %v4640
  %4663 = vst [vmem:[%s4 + $0x8] sm:$0xff] %v4647
  %4664 = vst [vmem:[%s4 + $0x10] sm:$0xff] %v4654
  %4665 = vst [vmem:[%s4 + $0x18] sm:$0xff] %v4661
  // Predicated region
  $region10: #{generator_forward.22} parent=0 // pred_check
    _
  $region11: #{generator_forward.22} parent=0 // pred_check_branch
    %4667 = sbr.rel (0) target = $region13
  $region12: #{generator_forward.22} parent=0 // pred_region
    _
  $region13: #{generator_forward.22} parent=0 // pred_fallthru
    _
  // Predicated region
  $region14: #{generator_forward.22} parent=0 // pred_check
    _
  $region15: #{generator_forward.22} parent=0 // pred_check_branch
    %4669 = sbr.rel (0) target = $region17
  $region16: #{generator_forward.22} parent=0 // pred_region
    _
  $region17: #{generator_forward.22} parent=0 // pred_fallthru
    _
  // Predicated region
  $region18: #{generator_forward.22} parent=0 // pred_check
    _
  $region19: #{generator_forward.22} parent=0 // pred_check_branch
    %4671 = sbr.rel (0) target = $region21
  $region20: #{generator_forward.22} parent=0 // pred_region
    _
  $region21: #{generator_forward.22} parent=0 // pred_fallthru
    _
  // Predicated region
  $region22: #{generator_forward.22} parent=0 // pred_check
    _
  $region23: #{generator_forward.22} parent=0 // pred_check_branch
    %4673 = sbr.rel (0) target = $region25
  $region24: #{generator_forward.22} parent=0 // pred_region
    _
  $region25: #{generator_forward.22} parent=0 // pred_fallthru
    _
  // Predicated region
  $region26: #{generator_forward.22} parent=0 // pred_check
    _
  $region27: #{generator_forward.22} parent=0 // pred_check_branch
    %4675 = sbr.rel (0) target = $region29
  $region28: #{generator_forward.22} parent=0 // pred_region
    _
  $region29: #{generator_forward.22} parent=0 // pred_fallthru
    _
  // Predicated region
  $region30: #{generator_forward.22} parent=0 // pred_check
    _
  $region31: #{generator_forward.22} parent=0 // pred_check_branch
    %4677 = sbr.rel (0) target = $region33
  $region32: #{generator_forward.22} parent=0 // pred_region
    _
  $region33: #{generator_forward.22} parent=0 // pred_fallthru
    _

// kernel: tile.43
$region0: #{tile.43}
  #allocation0 [shape = 's32[1]{0}', space=sflag, size = 0x4, scoped, tag = 'scoped memory for tile.43']
  %s0 = inlined_call_operand.vmem [shape: f32[64], index: 0, kind: input, shape index: {}]
  %s1 = inlined_call_operand.vmem [shape: f32[4,64], index: 1, kind: output, shape index: {}]
  // Predicated region
  $region2: #{tile.43} parent=0 // pred_check
    _
  $region3: #{tile.43} parent=0 // pred_check_branch
    %3 = sbr.rel (0) target = $region5
  $region4: #{tile.43} parent=0 // pred_region
    _
  $region5: #{tile.43} parent=0 // pred_fallthru
    _
  %v4 = vld [vmem:[%s0] ss:$0 sm:$0xff]
  %5 = vst [vmem:[%s1] sm:$0xf] %v4

// kernel: generator_forward.25
$region0: #{generator_forward.25}
  #allocation0 [shape = 'u32[]', space=smem, size = 0x4, offset = 0x4, fixed_abs, tag = 'smem constant byte address 0x4 - core index']
  #allocation1 [shape = 'u32[72,128]{1,0:T(1,128)}', space=vmem, size = 0x9000, scoped, tag = 'internal scratch']
  %s0 = inlined_call_operand.vmem [shape: bf16[32,256], index: 0, kind: input, shape index: {}]
  %s1 = inlined_call_operand.vmem [shape: f32[1,256], index: 1, kind: input, shape index: {}]
  %s2 = inlined_call_operand.vmem [shape: f32[1,256], index: 2, kind: input, shape index: {}]
  %s3 = inlined_call_operand.vmem [shape: bf16[32,256], index: 3, kind: output, shape index: {}]
  %s4 = sld [smem:[#allocation0]]
  $region22: #{generator_forward.25} parent=0
    _
  %s6 = ssub.s32 1, %s4
  %s7 = scalar_select 0, %s6, %s4
  // Predicated region
  $region2: #{generator_forward.25} parent=0 // pred_check
    _
  $region3: #{generator_forward.25} parent=0 // pred_check_branch
    %9 = sbr.rel (0) target = $region5
  $region4: #{generator_forward.25} parent=0 // pred_region
    _
  $region5: #{generator_forward.25} parent=0 // pred_fallthru
    _
  // Predicated region
  $region6: #{generator_forward.25} parent=0 // pred_check
    _
  $region7: #{generator_forward.25} parent=0 // pred_check_branch
    %11 = sbr.rel (0) target = $region9
  $region8: #{generator_forward.25} parent=0 // pred_region
    _
  $region9: #{generator_forward.25} parent=0 // pred_fallthru
    _
  // Predicated region
  $region10: #{generator_forward.25} parent=0 // pred_check
    _
  $region11: #{generator_forward.25} parent=0 // pred_check_branch
    %13 = sbr.rel (0) target = $region13
  $region12: #{generator_forward.25} parent=0 // pred_region
    _
  $region13: #{generator_forward.25} parent=0 // pred_fallthru
    _
  %v14 = vld [vmem:[%s0] sm:$0xff]
  %v15 = vld [vmem:[%s0 + $0x8] sm:$0xff]
  %v16 = vld [vmem:[%s0 + $0x10] sm:$0xff]
  %v17 = vld [vmem:[%s0 + $0x18] sm:$0xff]
  %v18 = vunpack.c.l.bf16 %v14
  %v19 = vunpack.c.h.bf16 %v14
  %v20 = vunpack.c.l.bf16 %v15
  %v21 = vunpack.c.h.bf16 %v15
  %v22 = vunpack.c.l.bf16 %v16
  %v23 = vunpack.c.h.bf16 %v16
  %v24 = vunpack.c.l.bf16 %v17
  %v25 = vunpack.c.h.bf16 %v17
  %v26 = vld [vmem:[%s1] sm:$0x3]
  %v28 = vperm.slane %v26, 0
  %v29 = vperm.slane %v26, 1
  %v32 = vmul.f32 %v18, %v28
  %v33 = vmul.f32 %v19, %v29
  %v34 = vmul.f32 %v20, %v28
  %v35 = vmul.f32 %v21, %v29
  %v36 = vmul.f32 %v22, %v28
  %v37 = vmul.f32 %v23, %v29
  %v38 = vmul.f32 %v24, %v28
  %v39 = vmul.f32 %v25, %v29
  %v40 = vld [vmem:[%s2] sm:$0x3]
  %v42 = vperm.slane %v40, 0
  %v43 = vperm.slane %v40, 1
  %v46 = vadd.f32 %v32, %v42
  %v47 = vadd.f32 %v33, %v43
  %v48 = vadd.f32 %v34, %v42
  %v49 = vadd.f32 %v35, %v43
  %v50 = vadd.f32 %v36, %v42
  %v51 = vadd.f32 %v37, %v43
  %v52 = vadd.f32 %v38, %v42
  %v53 = vadd.f32 %v39, %v43
  %vm54 = vcmp.ge.f32.partialorder %v46, 0.0
  %vm55 = vcmp.ge.f32.partialorder %v47, 0.0
  %vm56 = vcmp.ge.f32.partialorder %v48, 0.0
  %vm57 = vcmp.ge.f32.partialorder %v49, 0.0
  %vm58 = vcmp.ge.f32.partialorder %v50, 0.0
  %vm59 = vcmp.ge.f32.partialorder %v51, 0.0
  %vm60 = vcmp.ge.f32.partialorder %v52, 0.0
  %vm61 = vcmp.ge.f32.partialorder %v53, 0.0
  %v62 = vmul.f32 %v46, 0.2
  %v63 = vmul.f32 %v47, 0.2
  %v64 = vmul.f32 %v48, 0.2
  %v65 = vmul.f32 %v49, 0.2
  %v66 = vmul.f32 %v50, 0.2
  %v67 = vmul.f32 %v51, 0.2
  %v68 = vmul.f32 %v52, 0.2
  %v69 = vmul.f32 %v53, 0.2
  %v70 = vsel %vm54, %v46, %v62
  %v71 = vsel %vm55, %v47, %v63
  %v72 = vsel %vm56, %v48, %v64
  %v73 = vsel %vm57, %v49, %v65
  %v74 = vsel %vm58, %v50, %v66
  %v75 = vsel %vm59, %v51, %v67
  %v76 = vsel %vm60, %v52, %v68
  %v77 = vsel %vm61, %v53, %v69
  %v78 = vpack.c.bf16 %v71, %v70
  %v79 = vpack.c.bf16 %v73, %v72
  %v80 = vpack.c.bf16 %v75, %v74
  %v81 = vpack.c.bf16 %v77, %v76
  %82 = vst [vmem:[%s3] sm:$0xff] %v78
  %83 = vst [vmem:[%s3 + $0x8] sm:$0xff] %v79
  %84 = vst [vmem:[%s3 + $0x10] sm:$0xff] %v80
  %85 = vst [vmem:[%s3 + $0x18] sm:$0xff] %v81
  // Predicated region
  $region14: #{generator_forward.25} parent=0 // pred_check
    _
  $region15: #{generator_forward.25} parent=0 // pred_check_branch
    %87 = sbr.rel (0) target = $region17
  $region16: #{generator_forward.25} parent=0 // pred_region
    _
  $region17: #{generator_forward.25} parent=0 // pred_fallthru
    _
  // Predicated region
  $region18: #{generator_forward.25} parent=0 // pred_check
    _
  $region19: #{generator_forward.25} parent=0 // pred_check_branch
    %89 = sbr.rel (0) target = $region21
  $region20: #{generator_forward.25} parent=0 // pred_region
    _
  $region21: #{generator_forward.25} parent=0 // pred_fallthru
    _

// kernel: generator_forward.24
$region0: #{generator_forward.24}
  #allocation0 [shape = 'u32[]', space=smem, size = 0x4, offset = 0x4, fixed_abs, tag = 'smem constant byte address 0x4 - core index']
  #allocation1 [shape = 'u32[72,128]{1,0:T(1,128)}', space=vmem, size = 0x9000, scoped, tag = 'internal scratch']
  %s0 = inlined_call_operand.vmem [shape: bf16[32,1152], index: 0, kind: input, shape index: {}]
  %s1 = inlined_call_operand.vmem [shape: bf16[1152,256], index: 1, kind: input, shape index: {}]
  %s2 = inlined_call_operand.vmem [shape: bf16[32,256], index: 2, kind: output, shape index: {0}]
  %s3 = inlined_call_operand.vmem [shape: f32[8,256], index: 3, kind: output, shape index: {1}]
  %s4 = inlined_call_operand.vmem [shape: f32[8,256], index: 4, kind: output, shape index: {2}]
  %5 = xla_tuple %s2, %s3, %s4
  %s6 = sld [smem:[#allocation0]]
  $region34: #{generator_forward.24} parent=0
    _
  %s8 = ssub.s32 1, %s6
  %s9 = scalar_select 0, %s8, %s6
  // Predicated region
  $region2: #{generator_forward.24} parent=0 // pred_check
    _
  $region3: #{generator_forward.24} parent=0 // pred_check_branch
    %11 = sbr.rel (0) target = $region5
  $region4: #{generator_forward.24} parent=0 // pred_region
    _
  $region5: #{generator_forward.24} parent=0 // pred_fallthru
    _
  // Predicated region
  $region6: #{generator_forward.24} parent=0 // pred_check
    _
  $region7: #{generator_forward.24} parent=0 // pred_check_branch
    %13 = sbr.rel (0) target = $region9
  $region8: #{generator_forward.24} parent=0 // pred_region
    _
  $region9: #{generator_forward.24} parent=0 // pred_fallthru
    _
  %v14 = vld [vmem:[%s0] sm:$0xff]
  %v15 = vld [vmem:[%s0 + $0x8] sm:$0xff]
  %v16 = vld [vmem:[%s0 + $0x10] sm:$0xff]
  %v17 = vld [vmem:[%s0 + $0x18] sm:$0xff]
  %v18 = vld [vmem:[%s0 + $0x20] sm:$0xf]
  %v19 = vld [vmem:[%s0 + $0x24] sm:$0xff]
  %v20 = vld [vmem:[%s0 + $0x2c] sm:$0xff]
  %v21 = vld [vmem:[%s0 + $0x34] sm:$0xff]
  %v22 = vld [vmem:[%s0 + $0x3c] sm:$0xff]
  %v23 = vld [vmem:[%s0 + $0x44] sm:$0xf]
  %v24 = vld [vmem:[%s0 + $0x48] sm:$0xff]
  %v25 = vld [vmem:[%s0 + $0x50] sm:$0xff]
  %v26 = vld [vmem:[%s0 + $0x58] sm:$0xff]
  %v27 = vld [vmem:[%s0 + $0x60] sm:$0xff]
  %v28 = vld [vmem:[%s0 + $0x68] sm:$0xf]
  %v29 = vld [vmem:[%s0 + $0x6c] sm:$0xff]
  %v30 = vld [vmem:[%s0 + $0x74] sm:$0xff]
  %v31 = vld [vmem:[%s0 + $0x7c] sm:$0xff]
  %v32 = vld [vmem:[%s0 + $0x84] sm:$0xff]
  %v33 = vld [vmem:[%s0 + $0x8c] sm:$0xf]
  %v34 = vld [vmem:[%s1] sm:$0xff]
  %v35 = vld [vmem:[%s1 + $0x8] sm:$0xff]
  %v36 = vld [vmem:[%s1 + $0x10] sm:$0xff]
  %v37 = vld [vmem:[%s1 + $0x18] sm:$0xff]
  %v38 = vld [vmem:[%s1 + $0x20] sm:$0xff]
  %v39 = vld [vmem:[%s1 + $0x28] sm:$0xff]
  %v40 = vld [vmem:[%s1 + $0x30] sm:$0xff]
  %v41 = vld [vmem:[%s1 + $0x38] sm:$0xff]
  %v42 = vld [vmem:[%s1 + $0x40] sm:$0xff]
  %v43 = vld [vmem:[%s1 + $0x48] sm:$0xff]
  %v44 = vld [vmem:[%s1 + $0x50] sm:$0xff]
  %v45 = vld [vmem:[%s1 + $0x58] sm:$0xff]
  %v46 = vld [vmem:[%s1 + $0x60] sm:$0xff]
  %v47 = vld [vmem:[%s1 + $0x68] sm:$0xff]
  %v48 = vld [vmem:[%s1 + $0x70] sm:$0xff]
  %v49 = vld [vmem:[%s1 + $0x78] sm:$0xff]
  %v50 = vld [vmem:[%s1 + $0x80] sm:$0xff]
  %v51 = vld [vmem:[%s1 + $0x88] sm:$0xff]
  %v52 = vld [vmem:[%s1 + $0x90] sm:$0xff]
  %v53 = vld [vmem:[%s1 + $0x98] sm:$0xff]
  %v54 = vld [vmem:[%s1 + $0xa0] sm:$0xff]
  %v55 = vld [vmem:[%s1 + $0xa8] sm:$0xff]
  %v56 = vld [vmem:[%s1 + $0xb0] sm:$0xff]
  %v57 = vld [vmem:[%s1 + $0xb8] sm:$0xff]
  %v58 = vld [vmem:[%s1 + $0xc0] sm:$0xff]
  %v59 = vld [vmem:[%s1 + $0xc8] sm:$0xff]
  %v60 = vld [vmem:[%s1 + $0xd0] sm:$0xff]
  %v61 = vld [vmem:[%s1 + $0xd8] sm:$0xff]
  %v62 = vld [vmem:[%s1 + $0xe0] sm:$0xff]
  %v63 = vld [vmem:[%s1 + $0xe8] sm:$0xff]
  %v64 = vld [vmem:[%s1 + $0xf0] sm:$0xff]
  %v65 = vld [vmem:[%s1 + $0xf8] sm:$0xff]
  %v66 = vld [vmem:[%s1 + $0x100] sm:$0xff]
  %v67 = vld [vmem:[%s1 + $0x108] sm:$0xff]
  %v68 = vld [vmem:[%s1 + $0x110] sm:$0xff]
  %v69 = vld [vmem:[%s1 + $0x118] sm:$0xff]
  %v70 = vld [vmem:[%s1 + $0x120] sm:$0xff]
  %v71 = vld [vmem:[%s1 + $0x128] sm:$0xff]
  %v72 = vld [vmem:[%s1 + $0x130] sm:$0xff]
  %v73 = vld [vmem:[%s1 + $0x138] sm:$0xff]
  %v74 = vld [vmem:[%s1 + $0x140] sm:$0xff]
  %v75 = vld [vmem:[%s1 + $0x148] sm:$0xff]
  %v76 = vld [vmem:[%s1 + $0x150] sm:$0xff]
  %v77 = vld [vmem:[%s1 + $0x158] sm:$0xff]
  %v78 = vld [vmem:[%s1 + $0x160] sm:$0xff]
  %v79 = vld [vmem:[%s1 + $0x168] sm:$0xff]
  %v80 = vld [vmem:[%s1 + $0x170] sm:$0xff]
  %v81 = vld [vmem:[%s1 + $0x178] sm:$0xff]
  %v82 = vld [vmem:[%s1 + $0x180] sm:$0xff]
  %v83 = vld [vmem:[%s1 + $0x188] sm:$0xff]
  %v84 = vld [vmem:[%s1 + $0x190] sm:$0xff]
  %v85 = vld [vmem:[%s1 + $0x198] sm:$0xff]
  %v86 = vld [vmem:[%s1 + $0x1a0] sm:$0xff]
  %v87 = vld [vmem:[%s1 + $0x1a8] sm:$0xff]
  %v88 = vld [vmem:[%s1 + $0x1b0] sm:$0xff]
  %v89 = vld [vmem:[%s1 + $0x1b8] sm:$0xff]
  %v90 = vld [vmem:[%s1 + $0x1c0] sm:$0xff]
  %v91 = vld [vmem:[%s1 + $0x1c8] sm:$0xff]
  %v92 = vld [vmem:[%s1 + $0x1d0] sm:$0xff]
  %v93 = vld [vmem:[%s1 + $0x1d8] sm:$0xff]
  %v94 = vld [vmem:[%s1 + $0x1e0] sm:$0xff]
  %v95 = vld [vmem:[%s1 + $0x1e8] sm:$0xff]
  %v96 = vld [vmem:[%s1 + $0x1f0] sm:$0xff]
  %v97 = vld [vmem:[%s1 + $0x1f8] sm:$0xff]
  %v98 = vld [vmem:[%s1 + $0x200] sm:$0xff]
  %v99 = vld [vmem:[%s1 + $0x208] sm:$0xff]
  %v100 = vld [vmem:[%s1 + $0x210] sm:$0xff]
  %v101 = vld [vmem:[%s1 + $0x218] sm:$0xff]
  %v102 = vld [vmem:[%s1 + $0x220] sm:$0xff]
  %v103 = vld [vmem:[%s1 + $0x228] sm:$0xff]
  %v104 = vld [vmem:[%s1 + $0x230] sm:$0xff]
  %v105 = vld [vmem:[%s1 + $0x238] sm:$0xff]
  %v106 = vld [vmem:[%s1 + $0x240] sm:$0xff]
  %v107 = vld [vmem:[%s1 + $0x248] sm:$0xff]
  %v108 = vld [vmem:[%s1 + $0x250] sm:$0xff]
  %v109 = vld [vmem:[%s1 + $0x258] sm:$0xff]
  %v110 = vld [vmem:[%s1 + $0x260] sm:$0xff]
  %v111 = vld [vmem:[%s1 + $0x268] sm:$0xff]
  %v112 = vld [vmem:[%s1 + $0x270] sm:$0xff]
  %v113 = vld [vmem:[%s1 + $0x278] sm:$0xff]
  %v114 = vld [vmem:[%s1 + $0x280] sm:$0xff]
  %v115 = vld [vmem:[%s1 + $0x288] sm:$0xff]
  %v116 = vld [vmem:[%s1 + $0x290] sm:$0xff]
  %v117 = vld [vmem:[%s1 + $0x298] sm:$0xff]
  %v118 = vld [vmem:[%s1 + $0x2a0] sm:$0xff]
  %v119 = vld [vmem:[%s1 + $0x2a8] sm:$0xff]
  %v120 = vld [vmem:[%s1 + $0x2b0] sm:$0xff]
  %v121 = vld [vmem:[%s1 + $0x2b8] sm:$0xff]
  %v122 = vld [vmem:[%s1 + $0x2c0] sm:$0xff]
  %v123 = vld [vmem:[%s1 + $0x2c8] sm:$0xff]
  %v124 = vld [vmem:[%s1 + $0x2d0] sm:$0xff]
  %v125 = vld [vmem:[%s1 + $0x2d8] sm:$0xff]
  %v126 = vld [vmem:[%s1 + $0x2e0] sm:$0xff]
  %v127 = vld [vmem:[%s1 + $0x2e8] sm:$0xff]
  %v128 = vld [vmem:[%s1 + $0x2f0] sm:$0xff]
  %v129 = vld [vmem:[%s1 + $0x2f8] sm:$0xff]
  %v130 = vld [vmem:[%s1 + $0x300] sm:$0xff]
  %v131 = vld [vmem:[%s1 + $0x308] sm:$0xff]
  %v132 = vld [vmem:[%s1 + $0x310] sm:$0xff]
  %v133 = vld [vmem:[%s1 + $0x318] sm:$0xff]
  %v134 = vld [vmem:[%s1 + $0x320] sm:$0xff]
  %v135 = vld [vmem:[%s1 + $0x328] sm:$0xff]
  %v136 = vld [vmem:[%s1 + $0x330] sm:$0xff]
  %v137 = vld [vmem:[%s1 + $0x338] sm:$0xff]
  %v138 = vld [vmem:[%s1 + $0x340] sm:$0xff]
  %v139 = vld [vmem:[%s1 + $0x348] sm:$0xff]
  %v140 = vld [vmem:[%s1 + $0x350] sm:$0xff]
  %v141 = vld [vmem:[%s1 + $0x358] sm:$0xff]
  %v142 = vld [vmem:[%s1 + $0x360] sm:$0xff]
  %v143 = vld [vmem:[%s1 + $0x368] sm:$0xff]
  %v144 = vld [vmem:[%s1 + $0x370] sm:$0xff]
  %v145 = vld [vmem:[%s1 + $0x378] sm:$0xff]
  %v146 = vld [vmem:[%s1 + $0x380] sm:$0xff]
  %v147 = vld [vmem:[%s1 + $0x388] sm:$0xff]
  %v148 = vld [vmem:[%s1 + $0x390] sm:$0xff]
  %v149 = vld [vmem:[%s1 + $0x398] sm:$0xff]
  %v150 = vld [vmem:[%s1 + $0x3a0] sm:$0xff]
  %v151 = vld [vmem:[%s1 + $0x3a8] sm:$0xff]
  %v152 = vld [vmem:[%s1 + $0x3b0] sm:$0xff]
  %v153 = vld [vmem:[%s1 + $0x3b8] sm:$0xff]
  %v154 = vld [vmem:[%s1 + $0x3c0] sm:$0xff]
  %v155 = vld [vmem:[%s1 + $0x3c8] sm:$0xff]
  %v156 = vld [vmem:[%s1 + $0x3d0] sm:$0xff]
  %v157 = vld [vmem:[%s1 + $0x3d8] sm:$0xff]
  %v158 = vld [vmem:[%s1 + $0x3e0] sm:$0xff]
  %v159 = vld [vmem:[%s1 + $0x3e8] sm:$0xff]
  %v160 = vld [vmem:[%s1 + $0x3f0] sm:$0xff]
  %v161 = vld [vmem:[%s1 + $0x3f8] sm:$0xff]
  %v162 = vld [vmem:[%s1 + $0x400] sm:$0xff]
  %v163 = vld [vmem:[%s1 + $0x408] sm:$0xff]
  %v164 = vld [vmem:[%s1 + $0x410] sm:$0xff]
  %v165 = vld [vmem:[%s1 + $0x418] sm:$0xff]
  %v166 = vld [vmem:[%s1 + $0x420] sm:$0xff]
  %v167 = vld [vmem:[%s1 + $0x428] sm:$0xff]
  %v168 = vld [vmem:[%s1 + $0x430] sm:$0xff]
  %v169 = vld [vmem:[%s1 + $0x438] sm:$0xff]
  %v170 = vld [vmem:[%s1 + $0x440] sm:$0xff]
  %v171 = vld [vmem:[%s1 + $0x448] sm:$0xff]
  %v172 = vld [vmem:[%s1 + $0x450] sm:$0xff]
  %v173 = vld [vmem:[%s1 + $0x458] sm:$0xff]
  %v174 = vld [vmem:[%s1 + $0x460] sm:$0xff]
  %v175 = vld [vmem:[%s1 + $0x468] sm:$0xff]
  %v176 = vld [vmem:[%s1 + $0x470] sm:$0xff]
  %v177 = vld [vmem:[%s1 + $0x478] sm:$0xff]
  %v198 = vunpack.c.l.b16 %v14
  %v199 = vunpack.c.h.b16 %v14
  %v200 = vunpack.c.l.b16 %v15
  %v201 = vunpack.c.h.b16 %v15
  %v202 = vunpack.c.l.b16 %v16
  %v203 = vunpack.c.h.b16 %v16
  %v204 = vunpack.c.l.b16 %v17
  %v205 = vunpack.c.h.b16 %v17
  %v206 = vunpack.c.l.b16 %v18
  %v207 = vunpack.c.l.b16 %v19
  %v208 = vunpack.c.h.b16 %v19
  %v209 = vunpack.c.l.b16 %v20
  %v210 = vunpack.c.h.b16 %v20
  %v211 = vunpack.c.l.b16 %v21
  %v212 = vunpack.c.h.b16 %v21
  %v213 = vunpack.c.l.b16 %v22
  %v214 = vunpack.c.h.b16 %v22
  %v215 = vunpack.c.l.b16 %v23
  %v216 = vunpack.c.l.b16 %v24
  %v217 = vunpack.c.h.b16 %v24
  %v218 = vunpack.c.l.b16 %v25
  %v219 = vunpack.c.h.b16 %v25
  %v220 = vunpack.c.l.b16 %v26
  %v221 = vunpack.c.h.b16 %v26
  %v222 = vunpack.c.l.b16 %v27
  %v223 = vunpack.c.h.b16 %v27
  %v224 = vunpack.c.l.b16 %v28
  %v225 = vunpack.c.l.b16 %v29
  %v226 = vunpack.c.h.b16 %v29
  %v227 = vunpack.c.l.b16 %v30
  %v228 = vunpack.c.h.b16 %v30
  %v229 = vunpack.c.l.b16 %v31
  %v230 = vunpack.c.h.b16 %v31
  %v231 = vunpack.c.l.b16 %v32
  %v232 = vunpack.c.h.b16 %v32
  %v233 = vunpack.c.l.b16 %v33
  %v234 = vpack.c.b16 %v207, %v198
  %v235 = vpack.c.b16 %v208, %v199
  %v236 = vpack.c.b16 %v209, %v200
  %v237 = vpack.c.b16 %v210, %v201
  %v238 = vpack.c.b16 %v211, %v202
  %v239 = vpack.c.b16 %v212, %v203
  %v240 = vpack.c.b16 %v213, %v204
  %v241 = vpack.c.b16 %v214, %v205
  %v242 = vpack.c.b16 %v215, %v206
  %v243 = vpack.c.b16 %v225, %v216
  %v244 = vpack.c.b16 %v226, %v217
  %v245 = vpack.c.b16 %v227, %v218
  %v246 = vpack.c.b16 %v228, %v219
  %v247 = vpack.c.b16 %v229, %v220
  %v248 = vpack.c.b16 %v230, %v221
  %v249 = vpack.c.b16 %v231, %v222
  %v250 = vpack.c.b16 %v232, %v223
  %v251 = vpack.c.b16 %v233, %v224
  %v414 = vunpack.c.l.b16 %v34
  %v415 = vunpack.c.h.b16 %v34
  %v416 = vunpack.c.l.b16 %v35
  %v417 = vunpack.c.h.b16 %v35
  %v418 = vunpack.c.l.b16 %v36
  %v419 = vunpack.c.h.b16 %v36
  %v420 = vunpack.c.l.b16 %v37
  %v421 = vunpack.c.h.b16 %v37
  %v422 = vunpack.c.l.b16 %v38
  %v423 = vunpack.c.h.b16 %v38
  %v424 = vunpack.c.l.b16 %v39
  %v425 = vunpack.c.h.b16 %v39
  %v426 = vunpack.c.l.b16 %v40
  %v427 = vunpack.c.h.b16 %v40
  %v428 = vunpack.c.l.b16 %v41
  %v429 = vunpack.c.h.b16 %v41
  %v430 = vunpack.c.l.b16 %v42
  %v431 = vunpack.c.h.b16 %v42
  %v432 = vunpack.c.l.b16 %v43
  %v433 = vunpack.c.h.b16 %v43
  %v434 = vunpack.c.l.b16 %v44
  %v435 = vunpack.c.h.b16 %v44
  %v436 = vunpack.c.l.b16 %v45
  %v437 = vunpack.c.h.b16 %v45
  %v438 = vunpack.c.l.b16 %v46
  %v439 = vunpack.c.h.b16 %v46
  %v440 = vunpack.c.l.b16 %v47
  %v441 = vunpack.c.h.b16 %v47
  %v442 = vunpack.c.l.b16 %v48
  %v443 = vunpack.c.h.b16 %v48
  %v444 = vunpack.c.l.b16 %v49
  %v445 = vunpack.c.h.b16 %v49
  %v446 = vunpack.c.l.b16 %v50
  %v447 = vunpack.c.h.b16 %v50
  %v448 = vunpack.c.l.b16 %v51
  %v449 = vunpack.c.h.b16 %v51
  %v450 = vunpack.c.l.b16 %v52
  %v451 = vunpack.c.h.b16 %v52
  %v452 = vunpack.c.l.b16 %v53
  %v453 = vunpack.c.h.b16 %v53
  %v454 = vunpack.c.l.b16 %v54
  %v455 = vunpack.c.h.b16 %v54
  %v456 = vunpack.c.l.b16 %v55
  %v457 = vunpack.c.h.b16 %v55
  %v458 = vunpack.c.l.b16 %v56
  %v459 = vunpack.c.h.b16 %v56
  %v460 = vunpack.c.l.b16 %v57
  %v461 = vunpack.c.h.b16 %v57
  %v462 = vunpack.c.l.b16 %v58
  %v463 = vunpack.c.h.b16 %v58
  %v464 = vunpack.c.l.b16 %v59
  %v465 = vunpack.c.h.b16 %v59
  %v466 = vunpack.c.l.b16 %v60
  %v467 = vunpack.c.h.b16 %v60
  %v468 = vunpack.c.l.b16 %v61
  %v469 = vunpack.c.h.b16 %v61
  %v470 = vunpack.c.l.b16 %v62
  %v471 = vunpack.c.h.b16 %v62
  %v472 = vunpack.c.l.b16 %v63
  %v473 = vunpack.c.h.b16 %v63
  %v474 = vunpack.c.l.b16 %v64
  %v475 = vunpack.c.h.b16 %v64
  %v476 = vunpack.c.l.b16 %v65
  %v477 = vunpack.c.h.b16 %v65
  %v478 = vunpack.c.l.b16 %v66
  %v479 = vunpack.c.h.b16 %v66
  %v480 = vunpack.c.l.b16 %v67
  %v481 = vunpack.c.h.b16 %v67
  %v482 = vunpack.c.l.b16 %v68
  %v483 = vunpack.c.h.b16 %v68
  %v484 = vunpack.c.l.b16 %v69
  %v485 = vunpack.c.h.b16 %v69
  %v486 = vunpack.c.l.b16 %v70
  %v487 = vunpack.c.h.b16 %v70
  %v488 = vunpack.c.l.b16 %v71
  %v489 = vunpack.c.h.b16 %v71
  %v490 = vunpack.c.l.b16 %v72
  %v491 = vunpack.c.h.b16 %v72
  %v492 = vunpack.c.l.b16 %v73
  %v493 = vunpack.c.h.b16 %v73
  %v494 = vunpack.c.l.b16 %v74
  %v495 = vunpack.c.h.b16 %v74
  %v496 = vunpack.c.l.b16 %v75
  %v497 = vunpack.c.h.b16 %v75
  %v498 = vunpack.c.l.b16 %v76
  %v499 = vunpack.c.h.b16 %v76
  %v500 = vunpack.c.l.b16 %v77
  %v501 = vunpack.c.h.b16 %v77
  %v502 = vunpack.c.l.b16 %v78
  %v503 = vunpack.c.h.b16 %v78
  %v504 = vunpack.c.l.b16 %v79
  %v505 = vunpack.c.h.b16 %v79
  %v506 = vunpack.c.l.b16 %v80
  %v507 = vunpack.c.h.b16 %v80
  %v508 = vunpack.c.l.b16 %v81
  %v509 = vunpack.c.h.b16 %v81
  %v510 = vunpack.c.l.b16 %v82
  %v511 = vunpack.c.h.b16 %v82
  %v512 = vunpack.c.l.b16 %v83
  %v513 = vunpack.c.h.b16 %v83
  %v514 = vunpack.c.l.b16 %v84
  %v515 = vunpack.c.h.b16 %v84
  %v516 = vunpack.c.l.b16 %v85
  %v517 = vunpack.c.h.b16 %v85
  %v518 = vunpack.c.l.b16 %v86
  %v519 = vunpack.c.h.b16 %v86
  %v520 = vunpack.c.l.b16 %v87
  %v521 = vunpack.c.h.b16 %v87
  %v522 = vunpack.c.l.b16 %v88
  %v523 = vunpack.c.h.b16 %v88
  %v524 = vunpack.c.l.b16 %v89
  %v525 = vunpack.c.h.b16 %v89
  %v526 = vunpack.c.l.b16 %v90
  %v527 = vunpack.c.h.b16 %v90
  %v528 = vunpack.c.l.b16 %v91
  %v529 = vunpack.c.h.b16 %v91
  %v530 = vunpack.c.l.b16 %v92
  %v531 = vunpack.c.h.b16 %v92
  %v532 = vunpack.c.l.b16 %v93
  %v533 = vunpack.c.h.b16 %v93
  %v534 = vunpack.c.l.b16 %v94
  %v535 = vunpack.c.h.b16 %v94
  %v536 = vunpack.c.l.b16 %v95
  %v537 = vunpack.c.h.b16 %v95
  %v538 = vunpack.c.l.b16 %v96
  %v539 = vunpack.c.h.b16 %v96
  %v540 = vunpack.c.l.b16 %v97
  %v541 = vunpack.c.h.b16 %v97
  %v542 = vunpack.c.l.b16 %v98
  %v543 = vunpack.c.h.b16 %v98
  %v544 = vunpack.c.l.b16 %v99
  %v545 = vunpack.c.h.b16 %v99
  %v546 = vunpack.c.l.b16 %v100
  %v547 = vunpack.c.h.b16 %v100
  %v548 = vunpack.c.l.b16 %v101
  %v549 = vunpack.c.h.b16 %v101
  %v550 = vunpack.c.l.b16 %v102
  %v551 = vunpack.c.h.b16 %v102
  %v552 = vunpack.c.l.b16 %v103
  %v553 = vunpack.c.h.b16 %v103
  %v554 = vunpack.c.l.b16 %v104
  %v555 = vunpack.c.h.b16 %v104
  %v556 = vunpack.c.l.b16 %v105
  %v557 = vunpack.c.h.b16 %v105
  %v558 = vunpack.c.l.b16 %v106
  %v559 = vunpack.c.h.b16 %v106
  %v560 = vunpack.c.l.b16 %v107
  %v561 = vunpack.c.h.b16 %v107
  %v562 = vunpack.c.l.b16 %v108
  %v563 = vunpack.c.h.b16 %v108
  %v564 = vunpack.c.l.b16 %v109
  %v565 = vunpack.c.h.b16 %v109
  %v566 = vunpack.c.l.b16 %v110
  %v567 = vunpack.c.h.b16 %v110
  %v568 = vunpack.c.l.b16 %v111
  %v569 = vunpack.c.h.b16 %v111
  %v570 = vunpack.c.l.b16 %v112
  %v571 = vunpack.c.h.b16 %v112
  %v572 = vunpack.c.l.b16 %v113
  %v573 = vunpack.c.h.b16 %v113
  %v574 = vunpack.c.l.b16 %v114
  %v575 = vunpack.c.h.b16 %v114
  %v576 = vunpack.c.l.b16 %v115
  %v577 = vunpack.c.h.b16 %v115
  %v578 = vunpack.c.l.b16 %v116
  %v579 = vunpack.c.h.b16 %v116
  %v580 = vunpack.c.l.b16 %v117
  %v581 = vunpack.c.h.b16 %v117
  %v582 = vunpack.c.l.b16 %v118
  %v583 = vunpack.c.h.b16 %v118
  %v584 = vunpack.c.l.b16 %v119
  %v585 = vunpack.c.h.b16 %v119
  %v586 = vunpack.c.l.b16 %v120
  %v587 = vunpack.c.h.b16 %v120
  %v588 = vunpack.c.l.b16 %v121
  %v589 = vunpack.c.h.b16 %v121
  %v590 = vunpack.c.l.b16 %v122
  %v591 = vunpack.c.h.b16 %v122
  %v592 = vunpack.c.l.b16 %v123
  %v593 = vunpack.c.h.b16 %v123
  %v594 = vunpack.c.l.b16 %v124
  %v595 = vunpack.c.h.b16 %v124
  %v596 = vunpack.c.l.b16 %v125
  %v597 = vunpack.c.h.b16 %v125
  %v598 = vunpack.c.l.b16 %v126
  %v599 = vunpack.c.h.b16 %v126
  %v600 = vunpack.c.l.b16 %v127
  %v601 = vunpack.c.h.b16 %v127
  %v602 = vunpack.c.l.b16 %v128
  %v603 = vunpack.c.h.b16 %v128
  %v604 = vunpack.c.l.b16 %v129
  %v605 = vunpack.c.h.b16 %v129
  %v606 = vunpack.c.l.b16 %v130
  %v607 = vunpack.c.h.b16 %v130
  %v608 = vunpack.c.l.b16 %v131
  %v609 = vunpack.c.h.b16 %v131
  %v610 = vunpack.c.l.b16 %v132
  %v611 = vunpack.c.h.b16 %v132
  %v612 = vunpack.c.l.b16 %v133
  %v613 = vunpack.c.h.b16 %v133
  %v614 = vunpack.c.l.b16 %v134
  %v615 = vunpack.c.h.b16 %v134
  %v616 = vunpack.c.l.b16 %v135
  %v617 = vunpack.c.h.b16 %v135
  %v618 = vunpack.c.l.b16 %v136
  %v619 = vunpack.c.h.b16 %v136
  %v620 = vunpack.c.l.b16 %v137
  %v621 = vunpack.c.h.b16 %v137
  %v622 = vunpack.c.l.b16 %v138
  %v623 = vunpack.c.h.b16 %v138
  %v624 = vunpack.c.l.b16 %v139
  %v625 = vunpack.c.h.b16 %v139
  %v626 = vunpack.c.l.b16 %v140
  %v627 = vunpack.c.h.b16 %v140
  %v628 = vunpack.c.l.b16 %v141
  %v629 = vunpack.c.h.b16 %v141
  %v630 = vunpack.c.l.b16 %v142
  %v631 = vunpack.c.h.b16 %v142
  %v632 = vunpack.c.l.b16 %v143
  %v633 = vunpack.c.h.b16 %v143
  %v634 = vunpack.c.l.b16 %v144
  %v635 = vunpack.c.h.b16 %v144
  %v636 = vunpack.c.l.b16 %v145
  %v637 = vunpack.c.h.b16 %v145
  %v638 = vunpack.c.l.b16 %v146
  %v639 = vunpack.c.h.b16 %v146
  %v640 = vunpack.c.l.b16 %v147
  %v641 = vunpack.c.h.b16 %v147
  %v642 = vunpack.c.l.b16 %v148
  %v643 = vunpack.c.h.b16 %v148
  %v644 = vunpack.c.l.b16 %v149
  %v645 = vunpack.c.h.b16 %v149
  %v646 = vunpack.c.l.b16 %v150
  %v647 = vunpack.c.h.b16 %v150
  %v648 = vunpack.c.l.b16 %v151
  %v649 = vunpack.c.h.b16 %v151
  %v650 = vunpack.c.l.b16 %v152
  %v651 = vunpack.c.h.b16 %v152
  %v652 = vunpack.c.l.b16 %v153
  %v653 = vunpack.c.h.b16 %v153
  %v654 = vunpack.c.l.b16 %v154
  %v655 = vunpack.c.h.b16 %v154
  %v656 = vunpack.c.l.b16 %v155
  %v657 = vunpack.c.h.b16 %v155
  %v658 = vunpack.c.l.b16 %v156
  %v659 = vunpack.c.h.b16 %v156
  %v660 = vunpack.c.l.b16 %v157
  %v661 = vunpack.c.h.b16 %v157
  %v662 = vunpack.c.l.b16 %v158
  %v663 = vunpack.c.h.b16 %v158
  %v664 = vunpack.c.l.b16 %v159
  %v665 = vunpack.c.h.b16 %v159
  %v666 = vunpack.c.l.b16 %v160
  %v667 = vunpack.c.h.b16 %v160
  %v668 = vunpack.c.l.b16 %v161
  %v669 = vunpack.c.h.b16 %v161
  %v670 = vunpack.c.l.b16 %v162
  %v671 = vunpack.c.h.b16 %v162
  %v672 = vunpack.c.l.b16 %v163
  %v673 = vunpack.c.h.b16 %v163
  %v674 = vunpack.c.l.b16 %v164
  %v675 = vunpack.c.h.b16 %v164
  %v676 = vunpack.c.l.b16 %v165
  %v677 = vunpack.c.h.b16 %v165
  %v678 = vunpack.c.l.b16 %v166
  %v679 = vunpack.c.h.b16 %v166
  %v680 = vunpack.c.l.b16 %v167
  %v681 = vunpack.c.h.b16 %v167
  %v682 = vunpack.c.l.b16 %v168
  %v683 = vunpack.c.h.b16 %v168
  %v684 = vunpack.c.l.b16 %v169
  %v685 = vunpack.c.h.b16 %v169
  %v686 = vunpack.c.l.b16 %v170
  %v687 = vunpack.c.h.b16 %v170
  %v688 = vunpack.c.l.b16 %v171
  %v689 = vunpack.c.h.b16 %v171
  %v690 = vunpack.c.l.b16 %v172
  %v691 = vunpack.c.h.b16 %v172
  %v692 = vunpack.c.l.b16 %v173
  %v693 = vunpack.c.h.b16 %v173
  %v694 = vunpack.c.l.b16 %v174
  %v695 = vunpack.c.h.b16 %v174
  %v696 = vunpack.c.l.b16 %v175
  %v697 = vunpack.c.h.b16 %v175
  %v698 = vunpack.c.l.b16 %v176
  %v699 = vunpack.c.h.b16 %v176
  %v700 = vunpack.c.l.b16 %v177
  %v701 = vunpack.c.h.b16 %v177
  %v702 = vpack.c.b16 %v416, %v414
  %v703 = vpack.c.b16 %v417, %v415
  %v704 = vpack.c.b16 %v420, %v418
  %v705 = vpack.c.b16 %v421, %v419
  %v706 = vpack.c.b16 %v424, %v422
  %v707 = vpack.c.b16 %v425, %v423
  %v708 = vpack.c.b16 %v428, %v426
  %v709 = vpack.c.b16 %v429, %v427
  %v710 = vpack.c.b16 %v432, %v430
  %v711 = vpack.c.b16 %v433, %v431
  %v712 = vpack.c.b16 %v436, %v434
  %v713 = vpack.c.b16 %v437, %v435
  %v714 = vpack.c.b16 %v440, %v438
  %v715 = vpack.c.b16 %v441, %v439
  %v716 = vpack.c.b16 %v444, %v442
  %v717 = vpack.c.b16 %v445, %v443
  %v718 = vpack.c.b16 %v448, %v446
  %v719 = vpack.c.b16 %v449, %v447
  %v720 = vpack.c.b16 %v452, %v450
  %v721 = vpack.c.b16 %v453, %v451
  %v722 = vpack.c.b16 %v456, %v454
  %v723 = vpack.c.b16 %v457, %v455
  %v724 = vpack.c.b16 %v460, %v458
  %v725 = vpack.c.b16 %v461, %v459
  %v726 = vpack.c.b16 %v464, %v462
  %v727 = vpack.c.b16 %v465, %v463
  %v728 = vpack.c.b16 %v468, %v466
  %v729 = vpack.c.b16 %v469, %v467
  %v730 = vpack.c.b16 %v472, %v470
  %v731 = vpack.c.b16 %v473, %v471
  %v732 = vpack.c.b16 %v476, %v474
  %v733 = vpack.c.b16 %v477, %v475
  %v734 = vpack.c.b16 %v480, %v478
  %v735 = vpack.c.b16 %v481, %v479
  %v736 = vpack.c.b16 %v484, %v482
  %v737 = vpack.c.b16 %v485, %v483
  %v738 = vpack.c.b16 %v488, %v486
  %v739 = vpack.c.b16 %v489, %v487
  %v740 = vpack.c.b16 %v492, %v490
  %v741 = vpack.c.b16 %v493, %v491
  %v742 = vpack.c.b16 %v496, %v494
  %v743 = vpack.c.b16 %v497, %v495
  %v744 = vpack.c.b16 %v500, %v498
  %v745 = vpack.c.b16 %v501, %v499
  %v746 = vpack.c.b16 %v504, %v502
  %v747 = vpack.c.b16 %v505, %v503
  %v748 = vpack.c.b16 %v508, %v506
  %v749 = vpack.c.b16 %v509, %v507
  %v750 = vpack.c.b16 %v512, %v510
  %v751 = vpack.c.b16 %v513, %v511
  %v752 = vpack.c.b16 %v516, %v514
  %v753 = vpack.c.b16 %v517, %v515
  %v754 = vpack.c.b16 %v520, %v518
  %v755 = vpack.c.b16 %v521, %v519
  %v756 = vpack.c.b16 %v524, %v522
  %v757 = vpack.c.b16 %v525, %v523
  %v758 = vpack.c.b16 %v528, %v526
  %v759 = vpack.c.b16 %v529, %v527
  %v760 = vpack.c.b16 %v532, %v530
  %v761 = vpack.c.b16 %v533, %v531
  %v762 = vpack.c.b16 %v536, %v534
  %v763 = vpack.c.b16 %v537, %v535
  %v764 = vpack.c.b16 %v540, %v538
  %v765 = vpack.c.b16 %v541, %v539
  %v766 = vpack.c.b16 %v544, %v542
  %v767 = vpack.c.b16 %v545, %v543
  %v768 = vpack.c.b16 %v548, %v546
  %v769 = vpack.c.b16 %v549, %v547
  %v770 = vpack.c.b16 %v552, %v550
  %v771 = vpack.c.b16 %v553, %v551
  %v772 = vpack.c.b16 %v556, %v554
  %v773 = vpack.c.b16 %v557, %v555
  %v774 = vpack.c.b16 %v560, %v558
  %v775 = vpack.c.b16 %v561, %v559
  %v776 = vpack.c.b16 %v564, %v562
  %v777 = vpack.c.b16 %v565, %v563
  %v778 = vpack.c.b16 %v568, %v566
  %v779 = vpack.c.b16 %v569, %v567
  %v780 = vpack.c.b16 %v572, %v570
  %v781 = vpack.c.b16 %v573, %v571
  %v782 = vpack.c.b16 %v576, %v574
  %v783 = vpack.c.b16 %v577, %v575
  %v784 = vpack.c.b16 %v580, %v578
  %v785 = vpack.c.b16 %v581, %v579
  %v786 = vpack.c.b16 %v584, %v582
  %v787 = vpack.c.b16 %v585, %v583
  %v788 = vpack.c.b16 %v588, %v586
  %v789 = vpack.c.b16 %v589, %v587
  %v790 = vpack.c.b16 %v592, %v590
  %v791 = vpack.c.b16 %v593, %v591
  %v792 = vpack.c.b16 %v596, %v594
  %v793 = vpack.c.b16 %v597, %v595
  %v794 = vpack.c.b16 %v600, %v598
  %v795 = vpack.c.b16 %v601, %v599
  %v796 = vpack.c.b16 %v604, %v602
  %v797 = vpack.c.b16 %v605, %v603
  %v798 = vpack.c.b16 %v608, %v606
  %v799 = vpack.c.b16 %v609, %v607
  %v800 = vpack.c.b16 %v612, %v610
  %v801 = vpack.c.b16 %v613, %v611
  %v802 = vpack.c.b16 %v616, %v614
  %v803 = vpack.c.b16 %v617, %v615
  %v804 = vpack.c.b16 %v620, %v618
  %v805 = vpack.c.b16 %v621, %v619
  %v806 = vpack.c.b16 %v624, %v622
  %v807 = vpack.c.b16 %v625, %v623
  %v808 = vpack.c.b16 %v628, %v626
  %v809 = vpack.c.b16 %v629, %v627
  %v810 = vpack.c.b16 %v632, %v630
  %v811 = vpack.c.b16 %v633, %v631
  %v812 = vpack.c.b16 %v636, %v634
  %v813 = vpack.c.b16 %v637, %v635
  %v814 = vpack.c.b16 %v640, %v638
  %v815 = vpack.c.b16 %v641, %v639
  %v816 = vpack.c.b16 %v644, %v642
  %v817 = vpack.c.b16 %v645, %v643
  %v818 = vpack.c.b16 %v648, %v646
  %v819 = vpack.c.b16 %v649, %v647
  %v820 = vpack.c.b16 %v652, %v650
  %v821 = vpack.c.b16 %v653, %v651
  %v822 = vpack.c.b16 %v656, %v654
  %v823 = vpack.c.b16 %v657, %v655
  %v824 = vpack.c.b16 %v660, %v658
  %v825 = vpack.c.b16 %v661, %v659
  %v826 = vpack.c.b16 %v664, %v662
  %v827 = vpack.c.b16 %v665, %v663
  %v828 = vpack.c.b16 %v668, %v666
  %v829 = vpack.c.b16 %v669, %v667
  %v830 = vpack.c.b16 %v672, %v670
  %v831 = vpack.c.b16 %v673, %v671
  %v832 = vpack.c.b16 %v676, %v674
  %v833 = vpack.c.b16 %v677, %v675
  %v834 = vpack.c.b16 %v680, %v678
  %v835 = vpack.c.b16 %v681, %v679
  %v836 = vpack.c.b16 %v684, %v682
  %v837 = vpack.c.b16 %v685, %v683
  %v838 = vpack.c.b16 %v688, %v686
  %v839 = vpack.c.b16 %v689, %v687
  %v840 = vpack.c.b16 %v692, %v690
  %v841 = vpack.c.b16 %v693, %v691
  %v842 = vpack.c.b16 %v696, %v694
  %v843 = vpack.c.b16 %v697, %v695
  %v844 = vpack.c.b16 %v700, %v698
  %v845 = vpack.c.b16 %v701, %v699
  %990 = vmatpush.bf16.msra.mxu0 %v716
  %991 = vmatpush.bf16.msra.mxu0 %v714
  %992 = vmatpush.bf16.msra.mxu0 %v712
  %993 = vmatpush.bf16.msra.mxu0 %v710
  %994 = vmatpush.bf16.msra.mxu0 %v708
  %995 = vmatpush.bf16.msra.mxu0 %v706
  %996 = vmatpush.bf16.msra.mxu0 %v704
  %997 = vmatpush.bf16.msra.mxu0 %v702
  %998 = vmatmul.bf16.gmra.mxu0 %v234
  %v999 = vpop.f32.mrf.mxu0
  %v1000 = vadd.f32 0.0, %v999
  %v1001 = vpop.f32.mrf.mxu0
  %v1002 = vadd.f32 0.0, %v1001
  %1003 = vmatmul.bf16.gmra.mxu0 %v243
  %v1004 = vpop.f32.mrf.mxu0
  %v1005 = vadd.f32 0.0, %v1004
  %v1006 = vpop.f32.mrf.mxu0
  %v1007 = vadd.f32 0.0, %v1006
  %1008 = vdwg.mxu0
  %1009 = vmatpush.bf16.msra.mxu0 %v732
  %1010 = vmatpush.bf16.msra.mxu0 %v730
  %1011 = vmatpush.bf16.msra.mxu0 %v728
  %1012 = vmatpush.bf16.msra.mxu0 %v726
  %1013 = vmatpush.bf16.msra.mxu0 %v724
  %1014 = vmatpush.bf16.msra.mxu0 %v722
  %1015 = vmatpush.bf16.msra.mxu0 %v720
  %1016 = vmatpush.bf16.msra.mxu0 %v718
  %1017 = vmatmul.bf16.gmra.mxu0 %v235
  %v1018 = vpop.f32.mrf.mxu0
  %v1019 = vadd.f32 %v1000, %v1018
  %v1020 = vpop.f32.mrf.mxu0
  %v1021 = vadd.f32 %v1002, %v1020
  %1022 = vmatmul.bf16.gmra.mxu0 %v244
  %v1023 = vpop.f32.mrf.mxu0
  %v1024 = vadd.f32 %v1005, %v1023
  %v1025 = vpop.f32.mrf.mxu0
  %v1026 = vadd.f32 %v1007, %v1025
  %1027 = vdwg.mxu0
  %1028 = vmatpush.bf16.msra.mxu0 %v748
  %1029 = vmatpush.bf16.msra.mxu0 %v746
  %1030 = vmatpush.bf16.msra.mxu0 %v744
  %1031 = vmatpush.bf16.msra.mxu0 %v742
  %1032 = vmatpush.bf16.msra.mxu0 %v740
  %1033 = vmatpush.bf16.msra.mxu0 %v738
  %1034 = vmatpush.bf16.msra.mxu0 %v736
  %1035 = vmatpush.bf16.msra.mxu0 %v734
  %1036 = vmatmul.bf16.gmra.mxu0 %v236
  %v1037 = vpop.f32.mrf.mxu0
  %v1038 = vadd.f32 %v1019, %v1037
  %v1039 = vpop.f32.mrf.mxu0
  %v1040 = vadd.f32 %v1021, %v1039
  %1041 = vmatmul.bf16.gmra.mxu0 %v245
  %v1042 = vpop.f32.mrf.mxu0
  %v1043 = vadd.f32 %v1024, %v1042
  %v1044 = vpop.f32.mrf.mxu0
  %v1045 = vadd.f32 %v1026, %v1044
  %1046 = vdwg.mxu0
  %1047 = vmatpush.bf16.msra.mxu0 %v764
  %1048 = vmatpush.bf16.msra.mxu0 %v762
  %1049 = vmatpush.bf16.msra.mxu0 %v760
  %1050 = vmatpush.bf16.msra.mxu0 %v758
  %1051 = vmatpush.bf16.msra.mxu0 %v756
  %1052 = vmatpush.bf16.msra.mxu0 %v754
  %1053 = vmatpush.bf16.msra.mxu0 %v752
  %1054 = vmatpush.bf16.msra.mxu0 %v750
  %1055 = vmatmul.bf16.gmra.mxu0 %v237
  %v1056 = vpop.f32.mrf.mxu0
  %v1057 = vadd.f32 %v1038, %v1056
  %v1058 = vpop.f32.mrf.mxu0
  %v1059 = vadd.f32 %v1040, %v1058
  %1060 = vmatmul.bf16.gmra.mxu0 %v246
  %v1061 = vpop.f32.mrf.mxu0
  %v1062 = vadd.f32 %v1043, %v1061
  %v1063 = vpop.f32.mrf.mxu0
  %v1064 = vadd.f32 %v1045, %v1063
  %1065 = vdwg.mxu0
  %1066 = vmatpush.bf16.msra.mxu0 %v780
  %1067 = vmatpush.bf16.msra.mxu0 %v778
  %1068 = vmatpush.bf16.msra.mxu0 %v776
  %1069 = vmatpush.bf16.msra.mxu0 %v774
  %1070 = vmatpush.bf16.msra.mxu0 %v772
  %1071 = vmatpush.bf16.msra.mxu0 %v770
  %1072 = vmatpush.bf16.msra.mxu0 %v768
  %1073 = vmatpush.bf16.msra.mxu0 %v766
  %1074 = vmatmul.bf16.gmra.mxu0 %v238
  %v1075 = vpop.f32.mrf.mxu0
  %v1076 = vadd.f32 %v1057, %v1075
  %v1077 = vpop.f32.mrf.mxu0
  %v1078 = vadd.f32 %v1059, %v1077
  %1079 = vmatmul.bf16.gmra.mxu0 %v247
  %v1080 = vpop.f32.mrf.mxu0
  %v1081 = vadd.f32 %v1062, %v1080
  %v1082 = vpop.f32.mrf.mxu0
  %v1083 = vadd.f32 %v1064, %v1082
  %1084 = vdwg.mxu0
  %1085 = vmatpush.bf16.msra.mxu0 %v796
  %1086 = vmatpush.bf16.msra.mxu0 %v794
  %1087 = vmatpush.bf16.msra.mxu0 %v792
  %1088 = vmatpush.bf16.msra.mxu0 %v790
  %1089 = vmatpush.bf16.msra.mxu0 %v788
  %1090 = vmatpush.bf16.msra.mxu0 %v786
  %1091 = vmatpush.bf16.msra.mxu0 %v784
  %1092 = vmatpush.bf16.msra.mxu0 %v782
  %1093 = vmatmul.bf16.gmra.mxu0 %v239
  %v1094 = vpop.f32.mrf.mxu0
  %v1095 = vadd.f32 %v1076, %v1094
  %v1096 = vpop.f32.mrf.mxu0
  %v1097 = vadd.f32 %v1078, %v1096
  %1098 = vmatmul.bf16.gmra.mxu0 %v248
  %v1099 = vpop.f32.mrf.mxu0
  %v1100 = vadd.f32 %v1081, %v1099
  %v1101 = vpop.f32.mrf.mxu0
  %v1102 = vadd.f32 %v1083, %v1101
  %1103 = vdwg.mxu0
  %1104 = vmatpush.bf16.msra.mxu0 %v812
  %1105 = vmatpush.bf16.msra.mxu0 %v810
  %1106 = vmatpush.bf16.msra.mxu0 %v808
  %1107 = vmatpush.bf16.msra.mxu0 %v806
  %1108 = vmatpush.bf16.msra.mxu0 %v804
  %1109 = vmatpush.bf16.msra.mxu0 %v802
  %1110 = vmatpush.bf16.msra.mxu0 %v800
  %1111 = vmatpush.bf16.msra.mxu0 %v798
  %1112 = vmatmul.bf16.gmra.mxu0 %v240
  %v1113 = vpop.f32.mrf.mxu0
  %v1114 = vadd.f32 %v1095, %v1113
  %v1115 = vpop.f32.mrf.mxu0
  %v1116 = vadd.f32 %v1097, %v1115
  %1117 = vmatmul.bf16.gmra.mxu0 %v249
  %v1118 = vpop.f32.mrf.mxu0
  %v1119 = vadd.f32 %v1100, %v1118
  %v1120 = vpop.f32.mrf.mxu0
  %v1121 = vadd.f32 %v1102, %v1120
  %1122 = vdwg.mxu0
  %1123 = vmatpush.bf16.msra.mxu0 %v828
  %1124 = vmatpush.bf16.msra.mxu0 %v826
  %1125 = vmatpush.bf16.msra.mxu0 %v824
  %1126 = vmatpush.bf16.msra.mxu0 %v822
  %1127 = vmatpush.bf16.msra.mxu0 %v820
  %1128 = vmatpush.bf16.msra.mxu0 %v818
  %1129 = vmatpush.bf16.msra.mxu0 %v816
  %1130 = vmatpush.bf16.msra.mxu0 %v814
  %1131 = vmatmul.bf16.gmra.mxu0 %v241
  %v1132 = vpop.f32.mrf.mxu0
  %v1133 = vadd.f32 %v1114, %v1132
  %v1134 = vpop.f32.mrf.mxu0
  %v1135 = vadd.f32 %v1116, %v1134
  %1136 = vmatmul.bf16.gmra.mxu0 %v250
  %v1137 = vpop.f32.mrf.mxu0
  %v1138 = vadd.f32 %v1119, %v1137
  %v1139 = vpop.f32.mrf.mxu0
  %v1140 = vadd.f32 %v1121, %v1139
  %1141 = vdwg.mxu0
  %1142 = vmatpush.bf16.msra.mxu0 %v844
  %1143 = vmatpush.bf16.msra.mxu0 %v842
  %1144 = vmatpush.bf16.msra.mxu0 %v840
  %1145 = vmatpush.bf16.msra.mxu0 %v838
  %1146 = vmatpush.bf16.msra.mxu0 %v836
  %1147 = vmatpush.bf16.msra.mxu0 %v834
  %1148 = vmatpush.bf16.msra.mxu0 %v832
  %1149 = vmatpush.bf16.msra.mxu0 %v830
  %1150 = vmatmul.bf16.gmra.mxu0 %v242
  %v1151 = vpop.f32.mrf.mxu0
  %v1152 = vadd.f32 %v1133, %v1151
  %v1153 = vpop.f32.mrf.mxu0
  %v1154 = vadd.f32 %v1135, %v1153
  %1155 = vmatmul.bf16.gmra.mxu0 %v251
  %v1156 = vpop.f32.mrf.mxu0
  %v1157 = vadd.f32 %v1138, %v1156
  %v1158 = vpop.f32.mrf.mxu0
  %v1159 = vadd.f32 %v1140, %v1158
  %1160 = vdwg.mxu0
  %1161 = vmatpush.bf16.msra.mxu0 %v717
  %1162 = vmatpush.bf16.msra.mxu0 %v715
  %1163 = vmatpush.bf16.msra.mxu0 %v713
  %1164 = vmatpush.bf16.msra.mxu0 %v711
  %1165 = vmatpush.bf16.msra.mxu0 %v709
  %1166 = vmatpush.bf16.msra.mxu0 %v707
  %1167 = vmatpush.bf16.msra.mxu0 %v705
  %1168 = vmatpush.bf16.msra.mxu0 %v703
  %1169 = vmatmul.bf16.gmra.mxu0 %v234
  %v1170 = vpop.f32.mrf.mxu0
  %v1171 = vadd.f32 0.0, %v1170
  %v1172 = vpop.f32.mrf.mxu0
  %v1173 = vadd.f32 0.0, %v1172
  %1174 = vmatmul.bf16.gmra.mxu0 %v243
  %v1175 = vpop.f32.mrf.mxu0
  %v1176 = vadd.f32 0.0, %v1175
  %v1177 = vpop.f32.mrf.mxu0
  %v1178 = vadd.f32 0.0, %v1177
  %1179 = vdwg.mxu0
  %1180 = vmatpush.bf16.msra.mxu0 %v733
  %1181 = vmatpush.bf16.msra.mxu0 %v731
  %1182 = vmatpush.bf16.msra.mxu0 %v729
  %1183 = vmatpush.bf16.msra.mxu0 %v727
  %1184 = vmatpush.bf16.msra.mxu0 %v725
  %1185 = vmatpush.bf16.msra.mxu0 %v723
  %1186 = vmatpush.bf16.msra.mxu0 %v721
  %1187 = vmatpush.bf16.msra.mxu0 %v719
  %1188 = vmatmul.bf16.gmra.mxu0 %v235
  %v1189 = vpop.f32.mrf.mxu0
  %v1190 = vadd.f32 %v1171, %v1189
  %v1191 = vpop.f32.mrf.mxu0
  %v1192 = vadd.f32 %v1173, %v1191
  %1193 = vmatmul.bf16.gmra.mxu0 %v244
  %v1194 = vpop.f32.mrf.mxu0
  %v1195 = vadd.f32 %v1176, %v1194
  %v1196 = vpop.f32.mrf.mxu0
  %v1197 = vadd.f32 %v1178, %v1196
  %1198 = vdwg.mxu0
  %1199 = vmatpush.bf16.msra.mxu0 %v749
  %1200 = vmatpush.bf16.msra.mxu0 %v747
  %1201 = vmatpush.bf16.msra.mxu0 %v745
  %1202 = vmatpush.bf16.msra.mxu0 %v743
  %1203 = vmatpush.bf16.msra.mxu0 %v741
  %1204 = vmatpush.bf16.msra.mxu0 %v739
  %1205 = vmatpush.bf16.msra.mxu0 %v737
  %1206 = vmatpush.bf16.msra.mxu0 %v735
  %1207 = vmatmul.bf16.gmra.mxu0 %v236
  %v1208 = vpop.f32.mrf.mxu0
  %v1209 = vadd.f32 %v1190, %v1208
  %v1210 = vpop.f32.mrf.mxu0
  %v1211 = vadd.f32 %v1192, %v1210
  %1212 = vmatmul.bf16.gmra.mxu0 %v245
  %v1213 = vpop.f32.mrf.mxu0
  %v1214 = vadd.f32 %v1195, %v1213
  %v1215 = vpop.f32.mrf.mxu0
  %v1216 = vadd.f32 %v1197, %v1215
  %1217 = vdwg.mxu0
  %1218 = vmatpush.bf16.msra.mxu0 %v765
  %1219 = vmatpush.bf16.msra.mxu0 %v763
  %1220 = vmatpush.bf16.msra.mxu0 %v761
  %1221 = vmatpush.bf16.msra.mxu0 %v759
  %1222 = vmatpush.bf16.msra.mxu0 %v757
  %1223 = vmatpush.bf16.msra.mxu0 %v755
  %1224 = vmatpush.bf16.msra.mxu0 %v753
  %1225 = vmatpush.bf16.msra.mxu0 %v751
  %1226 = vmatmul.bf16.gmra.mxu0 %v237
  %v1227 = vpop.f32.mrf.mxu0
  %v1228 = vadd.f32 %v1209, %v1227
  %v1229 = vpop.f32.mrf.mxu0
  %v1230 = vadd.f32 %v1211, %v1229
  %1231 = vmatmul.bf16.gmra.mxu0 %v246
  %v1232 = vpop.f32.mrf.mxu0
  %v1233 = vadd.f32 %v1214, %v1232
  %v1234 = vpop.f32.mrf.mxu0
  %v1235 = vadd.f32 %v1216, %v1234
  %1236 = vdwg.mxu0
  %1237 = vmatpush.bf16.msra.mxu0 %v781
  %1238 = vmatpush.bf16.msra.mxu0 %v779
  %1239 = vmatpush.bf16.msra.mxu0 %v777
  %1240 = vmatpush.bf16.msra.mxu0 %v775
  %1241 = vmatpush.bf16.msra.mxu0 %v773
  %1242 = vmatpush.bf16.msra.mxu0 %v771
  %1243 = vmatpush.bf16.msra.mxu0 %v769
  %1244 = vmatpush.bf16.msra.mxu0 %v767
  %1245 = vmatmul.bf16.gmra.mxu0 %v238
  %v1246 = vpop.f32.mrf.mxu0
  %v1247 = vadd.f32 %v1228, %v1246
  %v1248 = vpop.f32.mrf.mxu0
  %v1249 = vadd.f32 %v1230, %v1248
  %1250 = vmatmul.bf16.gmra.mxu0 %v247
  %v1251 = vpop.f32.mrf.mxu0
  %v1252 = vadd.f32 %v1233, %v1251
  %v1253 = vpop.f32.mrf.mxu0
  %v1254 = vadd.f32 %v1235, %v1253
  %1255 = vdwg.mxu0
  %1256 = vmatpush.bf16.msra.mxu0 %v797
  %1257 = vmatpush.bf16.msra.mxu0 %v795
  %1258 = vmatpush.bf16.msra.mxu0 %v793
  %1259 = vmatpush.bf16.msra.mxu0 %v791
  %1260 = vmatpush.bf16.msra.mxu0 %v789
  %1261 = vmatpush.bf16.msra.mxu0 %v787
  %1262 = vmatpush.bf16.msra.mxu0 %v785
  %1263 = vmatpush.bf16.msra.mxu0 %v783
  %1264 = vmatmul.bf16.gmra.mxu0 %v239
  %v1265 = vpop.f32.mrf.mxu0
  %v1266 = vadd.f32 %v1247, %v1265
  %v1267 = vpop.f32.mrf.mxu0
  %v1268 = vadd.f32 %v1249, %v1267
  %1269 = vmatmul.bf16.gmra.mxu0 %v248
  %v1270 = vpop.f32.mrf.mxu0
  %v1271 = vadd.f32 %v1252, %v1270
  %v1272 = vpop.f32.mrf.mxu0
  %v1273 = vadd.f32 %v1254, %v1272
  %1274 = vdwg.mxu0
  %1275 = vmatpush.bf16.msra.mxu0 %v813
  %1276 = vmatpush.bf16.msra.mxu0 %v811
  %1277 = vmatpush.bf16.msra.mxu0 %v809
  %1278 = vmatpush.bf16.msra.mxu0 %v807
  %1279 = vmatpush.bf16.msra.mxu0 %v805
  %1280 = vmatpush.bf16.msra.mxu0 %v803
  %1281 = vmatpush.bf16.msra.mxu0 %v801
  %1282 = vmatpush.bf16.msra.mxu0 %v799
  %1283 = vmatmul.bf16.gmra.mxu0 %v240
  %v1284 = vpop.f32.mrf.mxu0
  %v1285 = vadd.f32 %v1266, %v1284
  %v1286 = vpop.f32.mrf.mxu0
  %v1287 = vadd.f32 %v1268, %v1286
  %1288 = vmatmul.bf16.gmra.mxu0 %v249
  %v1289 = vpop.f32.mrf.mxu0
  %v1290 = vadd.f32 %v1271, %v1289
  %v1291 = vpop.f32.mrf.mxu0
  %v1292 = vadd.f32 %v1273, %v1291
  %1293 = vdwg.mxu0
  %1294 = vmatpush.bf16.msra.mxu0 %v829
  %1295 = vmatpush.bf16.msra.mxu0 %v827
  %1296 = vmatpush.bf16.msra.mxu0 %v825
  %1297 = vmatpush.bf16.msra.mxu0 %v823
  %1298 = vmatpush.bf16.msra.mxu0 %v821
  %1299 = vmatpush.bf16.msra.mxu0 %v819
  %1300 = vmatpush.bf16.msra.mxu0 %v817
  %1301 = vmatpush.bf16.msra.mxu0 %v815
  %1302 = vmatmul.bf16.gmra.mxu0 %v241
  %v1303 = vpop.f32.mrf.mxu0
  %v1304 = vadd.f32 %v1285, %v1303
  %v1305 = vpop.f32.mrf.mxu0
  %v1306 = vadd.f32 %v1287, %v1305
  %1307 = vmatmul.bf16.gmra.mxu0 %v250
  %v1308 = vpop.f32.mrf.mxu0
  %v1309 = vadd.f32 %v1290, %v1308
  %v1310 = vpop.f32.mrf.mxu0
  %v1311 = vadd.f32 %v1292, %v1310
  %1312 = vdwg.mxu0
  %1313 = vmatpush.bf16.msra.mxu0 %v845
  %1314 = vmatpush.bf16.msra.mxu0 %v843
  %1315 = vmatpush.bf16.msra.mxu0 %v841
  %1316 = vmatpush.bf16.msra.mxu0 %v839
  %1317 = vmatpush.bf16.msra.mxu0 %v837
  %1318 = vmatpush.bf16.msra.mxu0 %v835
  %1319 = vmatpush.bf16.msra.mxu0 %v833
  %1320 = vmatpush.bf16.msra.mxu0 %v831
  %1321 = vmatmul.bf16.gmra.mxu0 %v242
  %v1322 = vpop.f32.mrf.mxu0
  %v1323 = vadd.f32 %v1304, %v1322
  %v1324 = vpop.f32.mrf.mxu0
  %v1325 = vadd.f32 %v1306, %v1324
  %1326 = vmatmul.bf16.gmra.mxu0 %v251
  %v1327 = vpop.f32.mrf.mxu0
  %v1328 = vadd.f32 %v1309, %v1327
  %v1329 = vpop.f32.mrf.mxu0
  %v1330 = vadd.f32 %v1311, %v1329
  %1331 = vdwg.mxu0
  %v1332 = vpack.c.bf16 %v1323, %v1152
  %v1333 = vpack.c.bf16 %v1325, %v1154
  %v1334 = vpack.c.bf16 %v1328, %v1157
  %v1335 = vpack.c.bf16 %v1330, %v1159
  %1336 = vst [vmem:[%s2] sm:$0xff] %v1332
  %1337 = vst [vmem:[%s2 + $0x8] sm:$0xff] %v1333
  %1338 = vst [vmem:[%s2 + $0x10] sm:$0xff] %v1334
  %1339 = vst [vmem:[%s2 + $0x18] sm:$0xff] %v1335
  %v1340 = vadd.f32 %v1152, %v1154
  %v1341 = vadd.f32 %v1340, %v1157
  %v1342 = vadd.f32 %v1341, %v1159
  %v1343 = vrot.slane %v1342, 4
  %v1344 = vadd.f32 %v1342, %v1343
  %v1345 = vrot.slane %v1344, 2
  %v1346 = vadd.f32 %v1344, %v1345
  %v1347 = vrot.slane %v1346, 1
  %v1348 = vadd.f32 %v1346, %v1347
  %v1349 = vadd.f32 %v1323, %v1325
  %v1350 = vadd.f32 %v1349, %v1328
  %v1351 = vadd.f32 %v1350, %v1330
  %v1352 = vrot.slane %v1351, 4
  %v1353 = vadd.f32 %v1351, %v1352
  %v1354 = vrot.slane %v1353, 2
  %v1355 = vadd.f32 %v1353, %v1354
  %v1356 = vrot.slane %v1355, 1
  %v1357 = vadd.f32 %v1355, %v1356
  %1358 = vst [vmem:[%s3] sm:$0xff] %v1348
  %1359 = vst [vmem:[%s3 + $0x8] sm:$0xff] %v1357
  %v1360 = vmul.f32 %v1152, %v1152
  %v1361 = vmul.f32 %v1323, %v1323
  %v1362 = vmul.f32 %v1154, %v1154
  %v1363 = vmul.f32 %v1325, %v1325
  %v1364 = vmul.f32 %v1157, %v1157
  %v1365 = vmul.f32 %v1328, %v1328
  %v1366 = vmul.f32 %v1159, %v1159
  %v1367 = vmul.f32 %v1330, %v1330
  %v1368 = vadd.f32 %v1360, %v1362
  %v1369 = vadd.f32 %v1368, %v1364
  %v1370 = vadd.f32 %v1369, %v1366
  %v1371 = vrot.slane %v1370, 4
  %v1372 = vadd.f32 %v1370, %v1371
  %v1373 = vrot.slane %v1372, 2
  %v1374 = vadd.f32 %v1372, %v1373
  %v1375 = vrot.slane %v1374, 1
  %v1376 = vadd.f32 %v1374, %v1375
  %v1377 = vadd.f32 %v1361, %v1363
  %v1378 = vadd.f32 %v1377, %v1365
  %v1379 = vadd.f32 %v1378, %v1367
  %v1380 = vrot.slane %v1379, 4
  %v1381 = vadd.f32 %v1379, %v1380
  %v1382 = vrot.slane %v1381, 2
  %v1383 = vadd.f32 %v1381, %v1382
  %v1384 = vrot.slane %v1383, 1
  %v1385 = vadd.f32 %v1383, %v1384
  %1386 = vst [vmem:[%s4] sm:$0xff] %v1376
  %1387 = vst [vmem:[%s4 + $0x8] sm:$0xff] %v1385
  // Predicated region
  $region10: #{generator_forward.24} parent=0 // pred_check
    _
  $region11: #{generator_forward.24} parent=0 // pred_check_branch
    %1389 = sbr.rel (0) target = $region13
  $region12: #{generator_forward.24} parent=0 // pred_region
    _
  $region13: #{generator_forward.24} parent=0 // pred_fallthru
    _
  // Predicated region
  $region14: #{generator_forward.24} parent=0 // pred_check
    _
  $region15: #{generator_forward.24} parent=0 // pred_check_branch
    %1391 = sbr.rel (0) target = $region17
  $region16: #{generator_forward.24} parent=0 // pred_region
    _
  $region17: #{generator_forward.24} parent=0 // pred_fallthru
    _
  // Predicated region
  $region18: #{generator_forward.24} parent=0 // pred_check
    _
  $region19: #{generator_forward.24} parent=0 // pred_check_branch
    %1393 = sbr.rel (0) target = $region21
  $region20: #{generator_forward.24} parent=0 // pred_region
    _
  $region21: #{generator_forward.24} parent=0 // pred_fallthru
    _
  // Predicated region
  $region22: #{generator_forward.24} parent=0 // pred_check
    _
  $region23: #{generator_forward.24} parent=0 // pred_check_branch
    %1395 = sbr.rel (0) target = $region25
  $region24: #{generator_forward.24} parent=0 // pred_region
    _
  $region25: #{generator_forward.24} parent=0 // pred_fallthru
    _
  // Predicated region
  $region26: #{generator_forward.24} parent=0 // pred_check
    _
  $region27: #{generator_forward.24} parent=0 // pred_check_branch
    %1397 = sbr.rel (0) target = $region29
  $region28: #{generator_forward.24} parent=0 // pred_region
    _
  $region29: #{generator_forward.24} parent=0 // pred_fallthru
    _
  // Predicated region
  $region30: #{generator_forward.24} parent=0 // pred_check
    _
  $region31: #{generator_forward.24} parent=0 // pred_check_branch
    %1399 = sbr.rel (0) target = $region33
  $region32: #{generator_forward.24} parent=0 // pred_region
    _
  $region33: #{generator_forward.24} parent=0 // pred_fallthru
    _

// kernel: tile.53
$region0: #{tile.53}
  #allocation0 [shape = 's32[1]{0}', space=sflag, size = 0x4, scoped, tag = 'scoped memory for tile.53']
  %s0 = inlined_call_operand.vmem [shape: f32[3], index: 0, kind: input, shape index: {}]
  %s1 = inlined_call_operand.vmem [shape: f32[4,3], index: 1, kind: output, shape index: {}]
  // Predicated region
  $region2: #{tile.53} parent=0 // pred_check
    _
  $region3: #{tile.53} parent=0 // pred_check_branch
    %3 = sbr.rel (0) target = $region5
  $region4: #{tile.53} parent=0 // pred_region
    _
  $region5: #{tile.53} parent=0 // pred_fallthru
    _
  %v4 = vld [vmem:[%s0] ss:$0 sm:$0xff]
  %5 = vst [vmem:[%s1] sm:$0xf] %v4

// kernel: tile.54
$region0: #{tile.54}
  %s0 = inlined_call_operand.vmem [shape: f32[4,3], index: 0, kind: input, shape index: {}]
  %s1 = inlined_call_operand.vmem [shape: f32[12], index: 1, kind: output, shape index: {}]
  $region1: #{tile.54} parent=0
    #allocation0 [shape = 'u8[4096]{0}', space=vmem, size = 0x1000, scoped, tag = 'scoped mem for output reshape']
    #allocation1 [shape = 'u8[4096]{0}', space=vmem, size = 0x1000, scoped, tag = 'scoped mem for input reshape']
    %s3 = ssub.s32 16, 1
    %v4 = vld [vmem:[%s0] sm:%s3]
    %5 = vst [vmem:[#allocation1] sm:%s3] %v4
    %v6 = vld [vmem:[#allocation1] sm:$0x1]
    %vm7 = vcmask 23552
    %8 = vst.msk [vmem:[#allocation0] sm:$0x1] %vm7, %v6
    %s9 = scalar_lea.vmem [#allocation1], 3
    %v10 = vld [vmem:[%s9] sm:$0x1]
    %11 = vrot.lane.b32.xlu0 %v10, 9
    %v12 = vpop.permute.xlu0 %11
    %vm13 = vcmask 97352
    %14 = vst.msk [vmem:[#allocation0] sm:$0x1] %vm13, %v12
    %s15 = scalar_lea.vmem [#allocation1], 2
    %v16 = vld [vmem:[%s15] sm:$0x1]
    %17 = vrot.lane.b32.xlu0 %v16, 6
    %v18 = vpop.permute.xlu0 %17
    %vm19 = vcmask 72752
    %20 = vst.msk [vmem:[#allocation0] sm:$0x1] %vm19, %v18
    %s21 = scalar_lea.vmem [#allocation1], 1
    %v22 = vld [vmem:[%s21] sm:$0x1]
    %23 = vrot.lane.b32.xlu0 %v22, 3
    %v24 = vpop.permute.xlu0 %23
    %vm25 = vcmask 48152
    %26 = vst.msk [vmem:[#allocation0] sm:$0x1] %vm25, %v24
    %s28 = ssub.s32 2, 1
    %v29 = vld [vmem:[#allocation0] sm:%s28]
    %s31 = ssub.s32 2, 1
    %32 = vst [vmem:[%s1] sm:%s31] %v29

// kernel: generator_forward.27
$region0: #{generator_forward.27}
  #allocation0 [shape = 'u32[]', space=smem, size = 0x4, offset = 0x4, fixed_abs, tag = 'smem constant byte address 0x4 - core index']
  #allocation1 [shape = 'u32[72,128]{1,0:T(1,128)}', space=vmem, size = 0x9000, scoped, tag = 'internal scratch']
  %s0 = inlined_call_operand.vmem [shape: bf16[128,128], index: 0, kind: input, shape index: {}]
  %s1 = inlined_call_operand.vmem [shape: f32[1,128], index: 1, kind: input, shape index: {}]
  %s2 = inlined_call_operand.vmem [shape: f32[1,128], index: 2, kind: input, shape index: {}]
  %s3 = inlined_call_operand.vmem [shape: f32[128,128], index: 3, kind: output, shape index: {}]
  %s4 = sld [smem:[#allocation0]]
  $region22: #{generator_forward.27} parent=0
    _
  %s6 = ssub.s32 1, %s4
  %s7 = scalar_select 0, %s6, %s4
  // Predicated region
  $region2: #{generator_forward.27} parent=0 // pred_check
    _
  $region3: #{generator_forward.27} parent=0 // pred_check_branch
    %9 = sbr.rel (0) target = $region5
  $region4: #{generator_forward.27} parent=0 // pred_region
    _
  $region5: #{generator_forward.27} parent=0 // pred_fallthru
    _
  // Predicated region
  $region6: #{generator_forward.27} parent=0 // pred_check
    _
  $region7: #{generator_forward.27} parent=0 // pred_check_branch
    %11 = sbr.rel (0) target = $region9
  $region8: #{generator_forward.27} parent=0 // pred_region
    _
  $region9: #{generator_forward.27} parent=0 // pred_fallthru
    _
  // Predicated region
  $region10: #{generator_forward.27} parent=0 // pred_check
    _
  $region11: #{generator_forward.27} parent=0 // pred_check_branch
    %13 = sbr.rel (0) target = $region13
  $region12: #{generator_forward.27} parent=0 // pred_region
    _
  $region13: #{generator_forward.27} parent=0 // pred_fallthru
    _
  %v14 = vld [vmem:[%s0] sm:$0xf]
  %v15 = vld [vmem:[%s0 + $0x4] sm:$0xf]
  %v16 = vld [vmem:[%s0 + $0x8] sm:$0xf]
  %v17 = vld [vmem:[%s0 + $0xc] sm:$0xf]
  %v18 = vld [vmem:[%s0 + $0x10] sm:$0xf]
  %v19 = vld [vmem:[%s0 + $0x14] sm:$0xf]
  %v20 = vld [vmem:[%s0 + $0x18] sm:$0xf]
  %v21 = vld [vmem:[%s0 + $0x1c] sm:$0xf]
  %v22 = vld [vmem:[%s0 + $0x20] sm:$0xf]
  %v23 = vld [vmem:[%s0 + $0x24] sm:$0xf]
  %v24 = vld [vmem:[%s0 + $0x28] sm:$0xf]
  %v25 = vld [vmem:[%s0 + $0x2c] sm:$0xf]
  %v26 = vld [vmem:[%s0 + $0x30] sm:$0xf]
  %v27 = vld [vmem:[%s0 + $0x34] sm:$0xf]
  %v28 = vld [vmem:[%s0 + $0x38] sm:$0xf]
  %v29 = vld [vmem:[%s0 + $0x3c] sm:$0xf]
  %v30 = vunpack.c.l.bf16 %v14
  %v31 = vunpack.c.l.bf16 %v15
  %v32 = vunpack.c.l.bf16 %v16
  %v33 = vunpack.c.l.bf16 %v17
  %v34 = vunpack.c.l.bf16 %v18
  %v35 = vunpack.c.l.bf16 %v19
  %v36 = vunpack.c.l.bf16 %v20
  %v37 = vunpack.c.l.bf16 %v21
  %v38 = vunpack.c.l.bf16 %v22
  %v39 = vunpack.c.l.bf16 %v23
  %v40 = vunpack.c.l.bf16 %v24
  %v41 = vunpack.c.l.bf16 %v25
  %v42 = vunpack.c.l.bf16 %v26
  %v43 = vunpack.c.l.bf16 %v27
  %v44 = vunpack.c.l.bf16 %v28
  %v45 = vunpack.c.l.bf16 %v29
  %v46 = vld [vmem:[%s1] sm:$0x1]
  %v48 = vperm.slane %v46, 0
  %v50 = vmul.f32 %v30, %v48
  %v51 = vmul.f32 %v31, %v48
  %v52 = vmul.f32 %v32, %v48
  %v53 = vmul.f32 %v33, %v48
  %v54 = vmul.f32 %v34, %v48
  %v55 = vmul.f32 %v35, %v48
  %v56 = vmul.f32 %v36, %v48
  %v57 = vmul.f32 %v37, %v48
  %v58 = vmul.f32 %v38, %v48
  %v59 = vmul.f32 %v39, %v48
  %v60 = vmul.f32 %v40, %v48
  %v61 = vmul.f32 %v41, %v48
  %v62 = vmul.f32 %v42, %v48
  %v63 = vmul.f32 %v43, %v48
  %v64 = vmul.f32 %v44, %v48
  %v65 = vmul.f32 %v45, %v48
  %v66 = vld [vmem:[%s2] sm:$0x1]
  %v68 = vperm.slane %v66, 0
  %v70 = vadd.f32 %v50, %v68
  %v71 = vadd.f32 %v51, %v68
  %v72 = vadd.f32 %v52, %v68
  %v73 = vadd.f32 %v53, %v68
  %v74 = vadd.f32 %v54, %v68
  %v75 = vadd.f32 %v55, %v68
  %v76 = vadd.f32 %v56, %v68
  %v77 = vadd.f32 %v57, %v68
  %v78 = vadd.f32 %v58, %v68
  %v79 = vadd.f32 %v59, %v68
  %v80 = vadd.f32 %v60, %v68
  %v81 = vadd.f32 %v61, %v68
  %v82 = vadd.f32 %v62, %v68
  %v83 = vadd.f32 %v63, %v68
  %v84 = vadd.f32 %v64, %v68
  %v85 = vadd.f32 %v65, %v68
  %v86 = vsub.f32 0.0, %v70
  %v87 = vsub.f32 0.0, %v71
  %v88 = vsub.f32 0.0, %v72
  %v89 = vsub.f32 0.0, %v73
  %v90 = vsub.f32 0.0, %v74
  %v91 = vsub.f32 0.0, %v75
  %v92 = vsub.f32 0.0, %v76
  %v93 = vsub.f32 0.0, %v77
  %v94 = vsub.f32 0.0, %v78
  %v95 = vsub.f32 0.0, %v79
  %v96 = vsub.f32 0.0, %v80
  %v97 = vsub.f32 0.0, %v81
  %v98 = vsub.f32 0.0, %v82
  %v99 = vsub.f32 0.0, %v83
  %v100 = vsub.f32 0.0, %v84
  %v101 = vsub.f32 0.0, %v85
  %v102 = vmul.f32 %v86, 1.442695
  %v103 = vpow.pop %v102
  %v104 = vmul.f32 %v87, 1.442695
  %v105 = vpow.pop %v104
  %v106 = vmul.f32 %v88, 1.442695
  %v107 = vpow.pop %v106
  %v108 = vmul.f32 %v89, 1.442695
  %v109 = vpow.pop %v108
  %v110 = vmul.f32 %v90, 1.442695
  %v111 = vpow.pop %v110
  %v112 = vmul.f32 %v91, 1.442695
  %v113 = vpow.pop %v112
  %v114 = vmul.f32 %v92, 1.442695
  %v115 = vpow.pop %v114
  %v116 = vmul.f32 %v93, 1.442695
  %v117 = vpow.pop %v116
  %v118 = vmul.f32 %v94, 1.442695
  %v119 = vpow.pop %v118
  %v120 = vmul.f32 %v95, 1.442695
  %v121 = vpow.pop %v120
  %v122 = vmul.f32 %v96, 1.442695
  %v123 = vpow.pop %v122
  %v124 = vmul.f32 %v97, 1.442695
  %v125 = vpow.pop %v124
  %v126 = vmul.f32 %v98, 1.442695
  %v127 = vpow.pop %v126
  %v128 = vmul.f32 %v99, 1.442695
  %v129 = vpow.pop %v128
  %v130 = vmul.f32 %v100, 1.442695
  %v131 = vpow.pop %v130
  %v132 = vmul.f32 %v101, 1.442695
  %v133 = vpow.pop %v132
  %v134 = vadd.f32 %v103, 1.0
  %v135 = vadd.f32 %v105, 1.0
  %v136 = vadd.f32 %v107, 1.0
  %v137 = vadd.f32 %v109, 1.0
  %v138 = vadd.f32 %v111, 1.0
  %v139 = vadd.f32 %v113, 1.0
  %v140 = vadd.f32 %v115, 1.0
  %v141 = vadd.f32 %v117, 1.0
  %v142 = vadd.f32 %v119, 1.0
  %v143 = vadd.f32 %v121, 1.0
  %v144 = vadd.f32 %v123, 1.0
  %v145 = vadd.f32 %v125, 1.0
  %v146 = vadd.f32 %v127, 1.0
  %v147 = vadd.f32 %v129, 1.0
  %v148 = vadd.f32 %v131, 1.0
  %v149 = vadd.f32 %v133, 1.0
  %v150 = vrcp.pop %v134
  %v151 = vrcp.pop %v135
  %v152 = vrcp.pop %v136
  %v153 = vrcp.pop %v137
  %v154 = vrcp.pop %v138
  %v155 = vrcp.pop %v139
  %v156 = vrcp.pop %v140
  %v157 = vrcp.pop %v141
  %v158 = vrcp.pop %v142
  %v159 = vrcp.pop %v143
  %v160 = vrcp.pop %v144
  %v161 = vrcp.pop %v145
  %v162 = vrcp.pop %v146
  %v163 = vrcp.pop %v147
  %v164 = vrcp.pop %v148
  %v165 = vrcp.pop %v149
  %v166 = vmul.f32 %v150, 255.0
  %v167 = vmul.f32 %v151, 255.0
  %v168 = vmul.f32 %v152, 255.0
  %v169 = vmul.f32 %v153, 255.0
  %v170 = vmul.f32 %v154, 255.0
  %v171 = vmul.f32 %v155, 255.0
  %v172 = vmul.f32 %v156, 255.0
  %v173 = vmul.f32 %v157, 255.0
  %v174 = vmul.f32 %v158, 255.0
  %v175 = vmul.f32 %v159, 255.0
  %v176 = vmul.f32 %v160, 255.0
  %v177 = vmul.f32 %v161, 255.0
  %v178 = vmul.f32 %v162, 255.0
  %v179 = vmul.f32 %v163, 255.0
  %v180 = vmul.f32 %v164, 255.0
  %v181 = vmul.f32 %v165, 255.0
  %182 = vst [vmem:[%s3] sm:$0xff] %v166
  %183 = vst [vmem:[%s3 + $0x8] sm:$0xff] %v167
  %184 = vst [vmem:[%s3 + $0x10] sm:$0xff] %v168
  %185 = vst [vmem:[%s3 + $0x18] sm:$0xff] %v169
  %186 = vst [vmem:[%s3 + $0x20] sm:$0xff] %v170
  %187 = vst [vmem:[%s3 + $0x28] sm:$0xff] %v171
  %188 = vst [vmem:[%s3 + $0x30] sm:$0xff] %v172
  %189 = vst [vmem:[%s3 + $0x38] sm:$0xff] %v173
  %190 = vst [vmem:[%s3 + $0x40] sm:$0xff] %v174
  %191 = vst [vmem:[%s3 + $0x48] sm:$0xff] %v175
  %192 = vst [vmem:[%s3 + $0x50] sm:$0xff] %v176
  %193 = vst [vmem:[%s3 + $0x58] sm:$0xff] %v177
  %194 = vst [vmem:[%s3 + $0x60] sm:$0xff] %v178
  %195 = vst [vmem:[%s3 + $0x68] sm:$0xff] %v179
  %196 = vst [vmem:[%s3 + $0x70] sm:$0xff] %v180
  %197 = vst [vmem:[%s3 + $0x78] sm:$0xff] %v181
  // Predicated region
  $region14: #{generator_forward.27} parent=0 // pred_check
    _
  $region15: #{generator_forward.27} parent=0 // pred_check_branch
    %199 = sbr.rel (0) target = $region17
  $region16: #{generator_forward.27} parent=0 // pred_region
    _
  $region17: #{generator_forward.27} parent=0 // pred_fallthru
    _
  // Predicated region
  $region18: #{generator_forward.27} parent=0 // pred_check
    _
  $region19: #{generator_forward.27} parent=0 // pred_check_branch
    %201 = sbr.rel (0) target = $region21
  $region20: #{generator_forward.27} parent=0 // pred_region
    _
  $region21: #{generator_forward.27} parent=0 // pred_fallthru
    _

// kernel: generator_forward.26
$region0: #{generator_forward.26}
  #allocation0 [shape = 'u32[]', space=smem, size = 0x4, offset = 0x4, fixed_abs, tag = 'smem constant byte address 0x4 - core index']
  #allocation1 [shape = 'u32[72,128]{1,0:T(1,128)}', space=vmem, size = 0x9000, scoped, tag = 'internal scratch']
  %s0 = inlined_call_operand.vmem [shape: bf16[128,640], index: 0, kind: input, shape index: {}]
  %s1 = inlined_call_operand.vmem [shape: bf16[640,128], index: 1, kind: input, shape index: {}]
  %s2 = inlined_call_operand.vmem [shape: bf16[128,128], index: 2, kind: output, shape index: {0}]
  %s3 = inlined_call_operand.vmem [shape: f32[8,128], index: 3, kind: output, shape index: {1}]
  %s4 = inlined_call_operand.vmem [shape: f32[8,128], index: 4, kind: output, shape index: {2}]
  %5 = xla_tuple %s2, %s3, %s4
  %s6 = sld [smem:[#allocation0]]
  $region34: #{generator_forward.26} parent=0
    _
  %s8 = ssub.s32 1, %s6
  %s9 = scalar_select 0, %s8, %s6
  // Predicated region
  $region2: #{generator_forward.26} parent=0 // pred_check
    _
  $region3: #{generator_forward.26} parent=0 // pred_check_branch
    %11 = sbr.rel (0) target = $region5
  $region4: #{generator_forward.26} parent=0 // pred_region
    _
  $region5: #{generator_forward.26} parent=0 // pred_fallthru
    _
  // Predicated region
  $region6: #{generator_forward.26} parent=0 // pred_check
    _
  $region7: #{generator_forward.26} parent=0 // pred_check_branch
    %13 = sbr.rel (0) target = $region9
  $region8: #{generator_forward.26} parent=0 // pred_region
    _
  $region9: #{generator_forward.26} parent=0 // pred_fallthru
    _
  %v14 = vld [vmem:[%s0] sm:$0xff]
  %v15 = vld [vmem:[%s0 + $0x8] sm:$0xff]
  %v16 = vld [vmem:[%s0 + $0x10] sm:$0xf]
  %v17 = vld [vmem:[%s0 + $0x14] sm:$0xff]
  %v18 = vld [vmem:[%s0 + $0x1c] sm:$0xff]
  %v19 = vld [vmem:[%s0 + $0x24] sm:$0xf]
  %v20 = vld [vmem:[%s0 + $0x28] sm:$0xff]
  %v21 = vld [vmem:[%s0 + $0x30] sm:$0xff]
  %v22 = vld [vmem:[%s0 + $0x38] sm:$0xf]
  %v23 = vld [vmem:[%s0 + $0x3c] sm:$0xff]
  %v24 = vld [vmem:[%s0 + $0x44] sm:$0xff]
  %v25 = vld [vmem:[%s0 + $0x4c] sm:$0xf]
  %v26 = vld [vmem:[%s0 + $0x50] sm:$0xff]
  %v27 = vld [vmem:[%s0 + $0x58] sm:$0xff]
  %v28 = vld [vmem:[%s0 + $0x60] sm:$0xf]
  %v29 = vld [vmem:[%s0 + $0x64] sm:$0xff]
  %v30 = vld [vmem:[%s0 + $0x6c] sm:$0xff]
  %v31 = vld [vmem:[%s0 + $0x74] sm:$0xf]
  %v32 = vld [vmem:[%s0 + $0x78] sm:$0xff]
  %v33 = vld [vmem:[%s0 + $0x80] sm:$0xff]
  %v34 = vld [vmem:[%s0 + $0x88] sm:$0xf]
  %v35 = vld [vmem:[%s0 + $0x8c] sm:$0xff]
  %v36 = vld [vmem:[%s0 + $0x94] sm:$0xff]
  %v37 = vld [vmem:[%s0 + $0x9c] sm:$0xf]
  %v38 = vld [vmem:[%s0 + $0xa0] sm:$0xff]
  %v39 = vld [vmem:[%s0 + $0xa8] sm:$0xff]
  %v40 = vld [vmem:[%s0 + $0xb0] sm:$0xf]
  %v41 = vld [vmem:[%s0 + $0xb4] sm:$0xff]
  %v42 = vld [vmem:[%s0 + $0xbc] sm:$0xff]
  %v43 = vld [vmem:[%s0 + $0xc4] sm:$0xf]
  %v44 = vld [vmem:[%s0 + $0xc8] sm:$0xff]
  %v45 = vld [vmem:[%s0 + $0xd0] sm:$0xff]
  %v46 = vld [vmem:[%s0 + $0xd8] sm:$0xf]
  %v47 = vld [vmem:[%s0 + $0xdc] sm:$0xff]
  %v48 = vld [vmem:[%s0 + $0xe4] sm:$0xff]
  %v49 = vld [vmem:[%s0 + $0xec] sm:$0xf]
  %v50 = vld [vmem:[%s0 + $0xf0] sm:$0xff]
  %v51 = vld [vmem:[%s0 + $0xf8] sm:$0xff]
  %v52 = vld [vmem:[%s0 + $0x100] sm:$0xf]
  %v53 = vld [vmem:[%s0 + $0x104] sm:$0xff]
  %v54 = vld [vmem:[%s0 + $0x10c] sm:$0xff]
  %v55 = vld [vmem:[%s0 + $0x114] sm:$0xf]
  %v56 = vld [vmem:[%s0 + $0x118] sm:$0xff]
  %v57 = vld [vmem:[%s0 + $0x120] sm:$0xff]
  %v58 = vld [vmem:[%s0 + $0x128] sm:$0xf]
  %v59 = vld [vmem:[%s0 + $0x12c] sm:$0xff]
  %v60 = vld [vmem:[%s0 + $0x134] sm:$0xff]
  %v61 = vld [vmem:[%s0 + $0x13c] sm:$0xf]
  %v62 = vld [vmem:[%s1] sm:$0xf]
  %v63 = vld [vmem:[%s1 + $0x4] sm:$0xf]
  %v64 = vld [vmem:[%s1 + $0x8] sm:$0xf]
  %v65 = vld [vmem:[%s1 + $0xc] sm:$0xf]
  %v66 = vld [vmem:[%s1 + $0x10] sm:$0xf]
  %v67 = vld [vmem:[%s1 + $0x14] sm:$0xf]
  %v68 = vld [vmem:[%s1 + $0x18] sm:$0xf]
  %v69 = vld [vmem:[%s1 + $0x1c] sm:$0xf]
  %v70 = vld [vmem:[%s1 + $0x20] sm:$0xf]
  %v71 = vld [vmem:[%s1 + $0x24] sm:$0xf]
  %v72 = vld [vmem:[%s1 + $0x28] sm:$0xf]
  %v73 = vld [vmem:[%s1 + $0x2c] sm:$0xf]
  %v74 = vld [vmem:[%s1 + $0x30] sm:$0xf]
  %v75 = vld [vmem:[%s1 + $0x34] sm:$0xf]
  %v76 = vld [vmem:[%s1 + $0x38] sm:$0xf]
  %v77 = vld [vmem:[%s1 + $0x3c] sm:$0xf]
  %v78 = vld [vmem:[%s1 + $0x40] sm:$0xf]
  %v79 = vld [vmem:[%s1 + $0x44] sm:$0xf]
  %v80 = vld [vmem:[%s1 + $0x48] sm:$0xf]
  %v81 = vld [vmem:[%s1 + $0x4c] sm:$0xf]
  %v82 = vld [vmem:[%s1 + $0x50] sm:$0xf]
  %v83 = vld [vmem:[%s1 + $0x54] sm:$0xf]
  %v84 = vld [vmem:[%s1 + $0x58] sm:$0xf]
  %v85 = vld [vmem:[%s1 + $0x5c] sm:$0xf]
  %v86 = vld [vmem:[%s1 + $0x60] sm:$0xf]
  %v87 = vld [vmem:[%s1 + $0x64] sm:$0xf]
  %v88 = vld [vmem:[%s1 + $0x68] sm:$0xf]
  %v89 = vld [vmem:[%s1 + $0x6c] sm:$0xf]
  %v90 = vld [vmem:[%s1 + $0x70] sm:$0xf]
  %v91 = vld [vmem:[%s1 + $0x74] sm:$0xf]
  %v92 = vld [vmem:[%s1 + $0x78] sm:$0xf]
  %v93 = vld [vmem:[%s1 + $0x7c] sm:$0xf]
  %v94 = vld [vmem:[%s1 + $0x80] sm:$0xf]
  %v95 = vld [vmem:[%s1 + $0x84] sm:$0xf]
  %v96 = vld [vmem:[%s1 + $0x88] sm:$0xf]
  %v97 = vld [vmem:[%s1 + $0x8c] sm:$0xf]
  %v98 = vld [vmem:[%s1 + $0x90] sm:$0xf]
  %v99 = vld [vmem:[%s1 + $0x94] sm:$0xf]
  %v100 = vld [vmem:[%s1 + $0x98] sm:$0xf]
  %v101 = vld [vmem:[%s1 + $0x9c] sm:$0xf]
  %v102 = vld [vmem:[%s1 + $0xa0] sm:$0xf]
  %v103 = vld [vmem:[%s1 + $0xa4] sm:$0xf]
  %v104 = vld [vmem:[%s1 + $0xa8] sm:$0xf]
  %v105 = vld [vmem:[%s1 + $0xac] sm:$0xf]
  %v106 = vld [vmem:[%s1 + $0xb0] sm:$0xf]
  %v107 = vld [vmem:[%s1 + $0xb4] sm:$0xf]
  %v108 = vld [vmem:[%s1 + $0xb8] sm:$0xf]
  %v109 = vld [vmem:[%s1 + $0xbc] sm:$0xf]
  %v110 = vld [vmem:[%s1 + $0xc0] sm:$0xf]
  %v111 = vld [vmem:[%s1 + $0xc4] sm:$0xf]
  %v112 = vld [vmem:[%s1 + $0xc8] sm:$0xf]
  %v113 = vld [vmem:[%s1 + $0xcc] sm:$0xf]
  %v114 = vld [vmem:[%s1 + $0xd0] sm:$0xf]
  %v115 = vld [vmem:[%s1 + $0xd4] sm:$0xf]
  %v116 = vld [vmem:[%s1 + $0xd8] sm:$0xf]
  %v117 = vld [vmem:[%s1 + $0xdc] sm:$0xf]
  %v118 = vld [vmem:[%s1 + $0xe0] sm:$0xf]
  %v119 = vld [vmem:[%s1 + $0xe4] sm:$0xf]
  %v120 = vld [vmem:[%s1 + $0xe8] sm:$0xf]
  %v121 = vld [vmem:[%s1 + $0xec] sm:$0xf]
  %v122 = vld [vmem:[%s1 + $0xf0] sm:$0xf]
  %v123 = vld [vmem:[%s1 + $0xf4] sm:$0xf]
  %v124 = vld [vmem:[%s1 + $0xf8] sm:$0xf]
  %v125 = vld [vmem:[%s1 + $0xfc] sm:$0xf]
  %v126 = vld [vmem:[%s1 + $0x100] sm:$0xf]
  %v127 = vld [vmem:[%s1 + $0x104] sm:$0xf]
  %v128 = vld [vmem:[%s1 + $0x108] sm:$0xf]
  %v129 = vld [vmem:[%s1 + $0x10c] sm:$0xf]
  %v130 = vld [vmem:[%s1 + $0x110] sm:$0xf]
  %v131 = vld [vmem:[%s1 + $0x114] sm:$0xf]
  %v132 = vld [vmem:[%s1 + $0x118] sm:$0xf]
  %v133 = vld [vmem:[%s1 + $0x11c] sm:$0xf]
  %v134 = vld [vmem:[%s1 + $0x120] sm:$0xf]
  %v135 = vld [vmem:[%s1 + $0x124] sm:$0xf]
  %v136 = vld [vmem:[%s1 + $0x128] sm:$0xf]
  %v137 = vld [vmem:[%s1 + $0x12c] sm:$0xf]
  %v138 = vld [vmem:[%s1 + $0x130] sm:$0xf]
  %v139 = vld [vmem:[%s1 + $0x134] sm:$0xf]
  %v140 = vld [vmem:[%s1 + $0x138] sm:$0xf]
  %v141 = vld [vmem:[%s1 + $0x13c] sm:$0xf]
  %v190 = vunpack.c.l.b16 %v14
  %v191 = vunpack.c.h.b16 %v14
  %v192 = vunpack.c.l.b16 %v15
  %v193 = vunpack.c.h.b16 %v15
  %v194 = vunpack.c.l.b16 %v16
  %v195 = vunpack.c.l.b16 %v17
  %v196 = vunpack.c.h.b16 %v17
  %v197 = vunpack.c.l.b16 %v18
  %v198 = vunpack.c.h.b16 %v18
  %v199 = vunpack.c.l.b16 %v19
  %v200 = vunpack.c.l.b16 %v20
  %v201 = vunpack.c.h.b16 %v20
  %v202 = vunpack.c.l.b16 %v21
  %v203 = vunpack.c.h.b16 %v21
  %v204 = vunpack.c.l.b16 %v22
  %v205 = vunpack.c.l.b16 %v23
  %v206 = vunpack.c.h.b16 %v23
  %v207 = vunpack.c.l.b16 %v24
  %v208 = vunpack.c.h.b16 %v24
  %v209 = vunpack.c.l.b16 %v25
  %v210 = vunpack.c.l.b16 %v26
  %v211 = vunpack.c.h.b16 %v26
  %v212 = vunpack.c.l.b16 %v27
  %v213 = vunpack.c.h.b16 %v27
  %v214 = vunpack.c.l.b16 %v28
  %v215 = vunpack.c.l.b16 %v29
  %v216 = vunpack.c.h.b16 %v29
  %v217 = vunpack.c.l.b16 %v30
  %v218 = vunpack.c.h.b16 %v30
  %v219 = vunpack.c.l.b16 %v31
  %v220 = vunpack.c.l.b16 %v32
  %v221 = vunpack.c.h.b16 %v32
  %v222 = vunpack.c.l.b16 %v33
  %v223 = vunpack.c.h.b16 %v33
  %v224 = vunpack.c.l.b16 %v34
  %v225 = vunpack.c.l.b16 %v35
  %v226 = vunpack.c.h.b16 %v35
  %v227 = vunpack.c.l.b16 %v36
  %v228 = vunpack.c.h.b16 %v36
  %v229 = vunpack.c.l.b16 %v37
  %v230 = vunpack.c.l.b16 %v38
  %v231 = vunpack.c.h.b16 %v38
  %v232 = vunpack.c.l.b16 %v39
  %v233 = vunpack.c.h.b16 %v39
  %v234 = vunpack.c.l.b16 %v40
  %v235 = vunpack.c.l.b16 %v41
  %v236 = vunpack.c.h.b16 %v41
  %v237 = vunpack.c.l.b16 %v42
  %v238 = vunpack.c.h.b16 %v42
  %v239 = vunpack.c.l.b16 %v43
  %v240 = vunpack.c.l.b16 %v44
  %v241 = vunpack.c.h.b16 %v44
  %v242 = vunpack.c.l.b16 %v45
  %v243 = vunpack.c.h.b16 %v45
  %v244 = vunpack.c.l.b16 %v46
  %v245 = vunpack.c.l.b16 %v47
  %v246 = vunpack.c.h.b16 %v47
  %v247 = vunpack.c.l.b16 %v48
  %v248 = vunpack.c.h.b16 %v48
  %v249 = vunpack.c.l.b16 %v49
  %v250 = vunpack.c.l.b16 %v50
  %v251 = vunpack.c.h.b16 %v50
  %v252 = vunpack.c.l.b16 %v51
  %v253 = vunpack.c.h.b16 %v51
  %v254 = vunpack.c.l.b16 %v52
  %v255 = vunpack.c.l.b16 %v53
  %v256 = vunpack.c.h.b16 %v53
  %v257 = vunpack.c.l.b16 %v54
  %v258 = vunpack.c.h.b16 %v54
  %v259 = vunpack.c.l.b16 %v55
  %v260 = vunpack.c.l.b16 %v56
  %v261 = vunpack.c.h.b16 %v56
  %v262 = vunpack.c.l.b16 %v57
  %v263 = vunpack.c.h.b16 %v57
  %v264 = vunpack.c.l.b16 %v58
  %v265 = vunpack.c.l.b16 %v59
  %v266 = vunpack.c.h.b16 %v59
  %v267 = vunpack.c.l.b16 %v60
  %v268 = vunpack.c.h.b16 %v60
  %v269 = vunpack.c.l.b16 %v61
  %v270 = vpack.c.b16 %v195, %v190
  %v271 = vpack.c.b16 %v196, %v191
  %v272 = vpack.c.b16 %v197, %v192
  %v273 = vpack.c.b16 %v198, %v193
  %v274 = vpack.c.b16 %v199, %v194
  %v275 = vpack.c.b16 %v205, %v200
  %v276 = vpack.c.b16 %v206, %v201
  %v277 = vpack.c.b16 %v207, %v202
  %v278 = vpack.c.b16 %v208, %v203
  %v279 = vpack.c.b16 %v209, %v204
  %v280 = vpack.c.b16 %v215, %v210
  %v281 = vpack.c.b16 %v216, %v211
  %v282 = vpack.c.b16 %v217, %v212
  %v283 = vpack.c.b16 %v218, %v213
  %v284 = vpack.c.b16 %v219, %v214
  %v285 = vpack.c.b16 %v225, %v220
  %v286 = vpack.c.b16 %v226, %v221
  %v287 = vpack.c.b16 %v227, %v222
  %v288 = vpack.c.b16 %v228, %v223
  %v289 = vpack.c.b16 %v229, %v224
  %v290 = vpack.c.b16 %v235, %v230
  %v291 = vpack.c.b16 %v236, %v231
  %v292 = vpack.c.b16 %v237, %v232
  %v293 = vpack.c.b16 %v238, %v233
  %v294 = vpack.c.b16 %v239, %v234
  %v295 = vpack.c.b16 %v245, %v240
  %v296 = vpack.c.b16 %v246, %v241
  %v297 = vpack.c.b16 %v247, %v242
  %v298 = vpack.c.b16 %v248, %v243
  %v299 = vpack.c.b16 %v249, %v244
  %v300 = vpack.c.b16 %v255, %v250
  %v301 = vpack.c.b16 %v256, %v251
  %v302 = vpack.c.b16 %v257, %v252
  %v303 = vpack.c.b16 %v258, %v253
  %v304 = vpack.c.b16 %v259, %v254
  %v305 = vpack.c.b16 %v265, %v260
  %v306 = vpack.c.b16 %v266, %v261
  %v307 = vpack.c.b16 %v267, %v262
  %v308 = vpack.c.b16 %v268, %v263
  %v309 = vpack.c.b16 %v269, %v264
  %v430 = vunpack.c.l.b16 %v62
  %v431 = vunpack.c.l.b16 %v63
  %v432 = vunpack.c.l.b16 %v64
  %v433 = vunpack.c.l.b16 %v65
  %v434 = vunpack.c.l.b16 %v66
  %v435 = vunpack.c.l.b16 %v67
  %v436 = vunpack.c.l.b16 %v68
  %v437 = vunpack.c.l.b16 %v69
  %v438 = vunpack.c.l.b16 %v70
  %v439 = vunpack.c.l.b16 %v71
  %v440 = vunpack.c.l.b16 %v72
  %v441 = vunpack.c.l.b16 %v73
  %v442 = vunpack.c.l.b16 %v74
  %v443 = vunpack.c.l.b16 %v75
  %v444 = vunpack.c.l.b16 %v76
  %v445 = vunpack.c.l.b16 %v77
  %v446 = vunpack.c.l.b16 %v78
  %v447 = vunpack.c.l.b16 %v79
  %v448 = vunpack.c.l.b16 %v80
  %v449 = vunpack.c.l.b16 %v81
  %v450 = vunpack.c.l.b16 %v82
  %v451 = vunpack.c.l.b16 %v83
  %v452 = vunpack.c.l.b16 %v84
  %v453 = vunpack.c.l.b16 %v85
  %v454 = vunpack.c.l.b16 %v86
  %v455 = vunpack.c.l.b16 %v87
  %v456 = vunpack.c.l.b16 %v88
  %v457 = vunpack.c.l.b16 %v89
  %v458 = vunpack.c.l.b16 %v90
  %v459 = vunpack.c.l.b16 %v91
  %v460 = vunpack.c.l.b16 %v92
  %v461 = vunpack.c.l.b16 %v93
  %v462 = vunpack.c.l.b16 %v94
  %v463 = vunpack.c.l.b16 %v95
  %v464 = vunpack.c.l.b16 %v96
  %v465 = vunpack.c.l.b16 %v97
  %v466 = vunpack.c.l.b16 %v98
  %v467 = vunpack.c.l.b16 %v99
  %v468 = vunpack.c.l.b16 %v100
  %v469 = vunpack.c.l.b16 %v101
  %v470 = vunpack.c.l.b16 %v102
  %v471 = vunpack.c.l.b16 %v103
  %v472 = vunpack.c.l.b16 %v104
  %v473 = vunpack.c.l.b16 %v105
  %v474 = vunpack.c.l.b16 %v106
  %v475 = vunpack.c.l.b16 %v107
  %v476 = vunpack.c.l.b16 %v108
  %v477 = vunpack.c.l.b16 %v109
  %v478 = vunpack.c.l.b16 %v110
  %v479 = vunpack.c.l.b16 %v111
  %v480 = vunpack.c.l.b16 %v112
  %v481 = vunpack.c.l.b16 %v113
  %v482 = vunpack.c.l.b16 %v114
  %v483 = vunpack.c.l.b16 %v115
  %v484 = vunpack.c.l.b16 %v116
  %v485 = vunpack.c.l.b16 %v117
  %v486 = vunpack.c.l.b16 %v118
  %v487 = vunpack.c.l.b16 %v119
  %v488 = vunpack.c.l.b16 %v120
  %v489 = vunpack.c.l.b16 %v121
  %v490 = vunpack.c.l.b16 %v122
  %v491 = vunpack.c.l.b16 %v123
  %v492 = vunpack.c.l.b16 %v124
  %v493 = vunpack.c.l.b16 %v125
  %v494 = vunpack.c.l.b16 %v126
  %v495 = vunpack.c.l.b16 %v127
  %v496 = vunpack.c.l.b16 %v128
  %v497 = vunpack.c.l.b16 %v129
  %v498 = vunpack.c.l.b16 %v130
  %v499 = vunpack.c.l.b16 %v131
  %v500 = vunpack.c.l.b16 %v132
  %v501 = vunpack.c.l.b16 %v133
  %v502 = vunpack.c.l.b16 %v134
  %v503 = vunpack.c.l.b16 %v135
  %v504 = vunpack.c.l.b16 %v136
  %v505 = vunpack.c.l.b16 %v137
  %v506 = vunpack.c.l.b16 %v138
  %v507 = vunpack.c.l.b16 %v139
  %v508 = vunpack.c.l.b16 %v140
  %v509 = vunpack.c.l.b16 %v141
  %v510 = vpack.c.b16 %v431, %v430
  %v511 = vpack.c.b16 %v433, %v432
  %v512 = vpack.c.b16 %v435, %v434
  %v513 = vpack.c.b16 %v437, %v436
  %v514 = vpack.c.b16 %v439, %v438
  %v515 = vpack.c.b16 %v441, %v440
  %v516 = vpack.c.b16 %v443, %v442
  %v517 = vpack.c.b16 %v445, %v444
  %v518 = vpack.c.b16 %v447, %v446
  %v519 = vpack.c.b16 %v449, %v448
  %v520 = vpack.c.b16 %v451, %v450
  %v521 = vpack.c.b16 %v453, %v452
  %v522 = vpack.c.b16 %v455, %v454
  %v523 = vpack.c.b16 %v457, %v456
  %v524 = vpack.c.b16 %v459, %v458
  %v525 = vpack.c.b16 %v461, %v460
  %v526 = vpack.c.b16 %v463, %v462
  %v527 = vpack.c.b16 %v465, %v464
  %v528 = vpack.c.b16 %v467, %v466
  %v529 = vpack.c.b16 %v469, %v468
  %v530 = vpack.c.b16 %v471, %v470
  %v531 = vpack.c.b16 %v473, %v472
  %v532 = vpack.c.b16 %v475, %v474
  %v533 = vpack.c.b16 %v477, %v476
  %v534 = vpack.c.b16 %v479, %v478
  %v535 = vpack.c.b16 %v481, %v480
  %v536 = vpack.c.b16 %v483, %v482
  %v537 = vpack.c.b16 %v485, %v484
  %v538 = vpack.c.b16 %v487, %v486
  %v539 = vpack.c.b16 %v489, %v488
  %v540 = vpack.c.b16 %v491, %v490
  %v541 = vpack.c.b16 %v493, %v492
  %v542 = vpack.c.b16 %v495, %v494
  %v543 = vpack.c.b16 %v497, %v496
  %v544 = vpack.c.b16 %v499, %v498
  %v545 = vpack.c.b16 %v501, %v500
  %v546 = vpack.c.b16 %v503, %v502
  %v547 = vpack.c.b16 %v505, %v504
  %v548 = vpack.c.b16 %v507, %v506
  %v549 = vpack.c.b16 %v509, %v508
  %590 = vmatpush.bf16.msra.mxu0 %v517
  %591 = vmatpush.bf16.msra.mxu0 %v516
  %592 = vmatpush.bf16.msra.mxu0 %v515
  %593 = vmatpush.bf16.msra.mxu0 %v514
  %594 = vmatpush.bf16.msra.mxu0 %v513
  %595 = vmatpush.bf16.msra.mxu0 %v512
  %596 = vmatpush.bf16.msra.mxu0 %v511
  %597 = vmatpush.bf16.msra.mxu0 %v510
  %598 = vmatmul.bf16.gmra.mxu0 %v270
  %v599 = vpop.f32.mrf.mxu0
  %v600 = vadd.f32 0.0, %v599
  %v601 = vpop.f32.mrf.mxu0
  %v602 = vadd.f32 0.0, %v601
  %603 = vmatmul.bf16.gmra.mxu0 %v275
  %v604 = vpop.f32.mrf.mxu0
  %v605 = vadd.f32 0.0, %v604
  %v606 = vpop.f32.mrf.mxu0
  %v607 = vadd.f32 0.0, %v606
  %608 = vmatmul.bf16.gmra.mxu0 %v280
  %v609 = vpop.f32.mrf.mxu0
  %v610 = vadd.f32 0.0, %v609
  %v611 = vpop.f32.mrf.mxu0
  %v612 = vadd.f32 0.0, %v611
  %613 = vmatmul.bf16.gmra.mxu0 %v285
  %v614 = vpop.f32.mrf.mxu0
  %v615 = vadd.f32 0.0, %v614
  %v616 = vpop.f32.mrf.mxu0
  %v617 = vadd.f32 0.0, %v616
  %618 = vmatmul.bf16.gmra.mxu0 %v290
  %v619 = vpop.f32.mrf.mxu0
  %v620 = vadd.f32 0.0, %v619
  %v621 = vpop.f32.mrf.mxu0
  %v622 = vadd.f32 0.0, %v621
  %623 = vmatmul.bf16.gmra.mxu0 %v295
  %v624 = vpop.f32.mrf.mxu0
  %v625 = vadd.f32 0.0, %v624
  %v626 = vpop.f32.mrf.mxu0
  %v627 = vadd.f32 0.0, %v626
  %628 = vmatmul.bf16.gmra.mxu0 %v300
  %v629 = vpop.f32.mrf.mxu0
  %v630 = vadd.f32 0.0, %v629
  %v631 = vpop.f32.mrf.mxu0
  %v632 = vadd.f32 0.0, %v631
  %633 = vmatmul.bf16.gmra.mxu0 %v305
  %v634 = vpop.f32.mrf.mxu0
  %v635 = vadd.f32 0.0, %v634
  %v636 = vpop.f32.mrf.mxu0
  %v637 = vadd.f32 0.0, %v636
  %638 = vdwg.mxu0
  %639 = vmatpush.bf16.msra.mxu0 %v525
  %640 = vmatpush.bf16.msra.mxu0 %v524
  %641 = vmatpush.bf16.msra.mxu0 %v523
  %642 = vmatpush.bf16.msra.mxu0 %v522
  %643 = vmatpush.bf16.msra.mxu0 %v521
  %644 = vmatpush.bf16.msra.mxu0 %v520
  %645 = vmatpush.bf16.msra.mxu0 %v519
  %646 = vmatpush.bf16.msra.mxu0 %v518
  %647 = vmatmul.bf16.gmra.mxu0 %v271
  %v648 = vpop.f32.mrf.mxu0
  %v649 = vadd.f32 %v600, %v648
  %v650 = vpop.f32.mrf.mxu0
  %v651 = vadd.f32 %v602, %v650
  %652 = vmatmul.bf16.gmra.mxu0 %v276
  %v653 = vpop.f32.mrf.mxu0
  %v654 = vadd.f32 %v605, %v653
  %v655 = vpop.f32.mrf.mxu0
  %v656 = vadd.f32 %v607, %v655
  %657 = vmatmul.bf16.gmra.mxu0 %v281
  %v658 = vpop.f32.mrf.mxu0
  %v659 = vadd.f32 %v610, %v658
  %v660 = vpop.f32.mrf.mxu0
  %v661 = vadd.f32 %v612, %v660
  %662 = vmatmul.bf16.gmra.mxu0 %v286
  %v663 = vpop.f32.mrf.mxu0
  %v664 = vadd.f32 %v615, %v663
  %v665 = vpop.f32.mrf.mxu0
  %v666 = vadd.f32 %v617, %v665
  %667 = vmatmul.bf16.gmra.mxu0 %v291
  %v668 = vpop.f32.mrf.mxu0
  %v669 = vadd.f32 %v620, %v668
  %v670 = vpop.f32.mrf.mxu0
  %v671 = vadd.f32 %v622, %v670
  %672 = vmatmul.bf16.gmra.mxu0 %v296
  %v673 = vpop.f32.mrf.mxu0
  %v674 = vadd.f32 %v625, %v673
  %v675 = vpop.f32.mrf.mxu0
  %v676 = vadd.f32 %v627, %v675
  %677 = vmatmul.bf16.gmra.mxu0 %v301
  %v678 = vpop.f32.mrf.mxu0
  %v679 = vadd.f32 %v630, %v678
  %v680 = vpop.f32.mrf.mxu0
  %v681 = vadd.f32 %v632, %v680
  %682 = vmatmul.bf16.gmra.mxu0 %v306
  %v683 = vpop.f32.mrf.mxu0
  %v684 = vadd.f32 %v635, %v683
  %v685 = vpop.f32.mrf.mxu0
  %v686 = vadd.f32 %v637, %v685
  %687 = vdwg.mxu0
  %688 = vmatpush.bf16.msra.mxu0 %v533
  %689 = vmatpush.bf16.msra.mxu0 %v532
  %690 = vmatpush.bf16.msra.mxu0 %v531
  %691 = vmatpush.bf16.msra.mxu0 %v530
  %692 = vmatpush.bf16.msra.mxu0 %v529
  %693 = vmatpush.bf16.msra.mxu0 %v528
  %694 = vmatpush.bf16.msra.mxu0 %v527
  %695 = vmatpush.bf16.msra.mxu0 %v526
  %696 = vmatmul.bf16.gmra.mxu0 %v272
  %v697 = vpop.f32.mrf.mxu0
  %v698 = vadd.f32 %v649, %v697
  %v699 = vpop.f32.mrf.mxu0
  %v700 = vadd.f32 %v651, %v699
  %701 = vmatmul.bf16.gmra.mxu0 %v277
  %v702 = vpop.f32.mrf.mxu0
  %v703 = vadd.f32 %v654, %v702
  %v704 = vpop.f32.mrf.mxu0
  %v705 = vadd.f32 %v656, %v704
  %706 = vmatmul.bf16.gmra.mxu0 %v282
  %v707 = vpop.f32.mrf.mxu0
  %v708 = vadd.f32 %v659, %v707
  %v709 = vpop.f32.mrf.mxu0
  %v710 = vadd.f32 %v661, %v709
  %711 = vmatmul.bf16.gmra.mxu0 %v287
  %v712 = vpop.f32.mrf.mxu0
  %v713 = vadd.f32 %v664, %v712
  %v714 = vpop.f32.mrf.mxu0
  %v715 = vadd.f32 %v666, %v714
  %716 = vmatmul.bf16.gmra.mxu0 %v292
  %v717 = vpop.f32.mrf.mxu0
  %v718 = vadd.f32 %v669, %v717
  %v719 = vpop.f32.mrf.mxu0
  %v720 = vadd.f32 %v671, %v719
  %721 = vmatmul.bf16.gmra.mxu0 %v297
  %v722 = vpop.f32.mrf.mxu0
  %v723 = vadd.f32 %v674, %v722
  %v724 = vpop.f32.mrf.mxu0
  %v725 = vadd.f32 %v676, %v724
  %726 = vmatmul.bf16.gmra.mxu0 %v302
  %v727 = vpop.f32.mrf.mxu0
  %v728 = vadd.f32 %v679, %v727
  %v729 = vpop.f32.mrf.mxu0
  %v730 = vadd.f32 %v681, %v729
  %731 = vmatmul.bf16.gmra.mxu0 %v307
  %v732 = vpop.f32.mrf.mxu0
  %v733 = vadd.f32 %v684, %v732
  %v734 = vpop.f32.mrf.mxu0
  %v735 = vadd.f32 %v686, %v734
  %736 = vdwg.mxu0
  %737 = vmatpush.bf16.msra.mxu0 %v541
  %738 = vmatpush.bf16.msra.mxu0 %v540
  %739 = vmatpush.bf16.msra.mxu0 %v539
  %740 = vmatpush.bf16.msra.mxu0 %v538
  %741 = vmatpush.bf16.msra.mxu0 %v537
  %742 = vmatpush.bf16.msra.mxu0 %v536
  %743 = vmatpush.bf16.msra.mxu0 %v535
  %744 = vmatpush.bf16.msra.mxu0 %v534
  %745 = vmatmul.bf16.gmra.mxu0 %v273
  %v746 = vpop.f32.mrf.mxu0
  %v747 = vadd.f32 %v698, %v746
  %v748 = vpop.f32.mrf.mxu0
  %v749 = vadd.f32 %v700, %v748
  %750 = vmatmul.bf16.gmra.mxu0 %v278
  %v751 = vpop.f32.mrf.mxu0
  %v752 = vadd.f32 %v703, %v751
  %v753 = vpop.f32.mrf.mxu0
  %v754 = vadd.f32 %v705, %v753
  %755 = vmatmul.bf16.gmra.mxu0 %v283
  %v756 = vpop.f32.mrf.mxu0
  %v757 = vadd.f32 %v708, %v756
  %v758 = vpop.f32.mrf.mxu0
  %v759 = vadd.f32 %v710, %v758
  %760 = vmatmul.bf16.gmra.mxu0 %v288
  %v761 = vpop.f32.mrf.mxu0
  %v762 = vadd.f32 %v713, %v761
  %v763 = vpop.f32.mrf.mxu0
  %v764 = vadd.f32 %v715, %v763
  %765 = vmatmul.bf16.gmra.mxu0 %v293
  %v766 = vpop.f32.mrf.mxu0
  %v767 = vadd.f32 %v718, %v766
  %v768 = vpop.f32.mrf.mxu0
  %v769 = vadd.f32 %v720, %v768
  %770 = vmatmul.bf16.gmra.mxu0 %v298
  %v771 = vpop.f32.mrf.mxu0
  %v772 = vadd.f32 %v723, %v771
  %v773 = vpop.f32.mrf.mxu0
  %v774 = vadd.f32 %v725, %v773
  %775 = vmatmul.bf16.gmra.mxu0 %v303
  %v776 = vpop.f32.mrf.mxu0
  %v777 = vadd.f32 %v728, %v776
  %v778 = vpop.f32.mrf.mxu0
  %v779 = vadd.f32 %v730, %v778
  %780 = vmatmul.bf16.gmra.mxu0 %v308
  %v781 = vpop.f32.mrf.mxu0
  %v782 = vadd.f32 %v733, %v781
  %v783 = vpop.f32.mrf.mxu0
  %v784 = vadd.f32 %v735, %v783
  %785 = vdwg.mxu0
  %786 = vmatpush.bf16.msra.mxu0 %v549
  %787 = vmatpush.bf16.msra.mxu0 %v548
  %788 = vmatpush.bf16.msra.mxu0 %v547
  %789 = vmatpush.bf16.msra.mxu0 %v546
  %790 = vmatpush.bf16.msra.mxu0 %v545
  %791 = vmatpush.bf16.msra.mxu0 %v544
  %792 = vmatpush.bf16.msra.mxu0 %v543
  %793 = vmatpush.bf16.msra.mxu0 %v542
  %794 = vmatmul.bf16.gmra.mxu0 %v274
  %v795 = vpop.f32.mrf.mxu0
  %v796 = vadd.f32 %v747, %v795
  %v797 = vpop.f32.mrf.mxu0
  %v798 = vadd.f32 %v749, %v797
  %799 = vmatmul.bf16.gmra.mxu0 %v279
  %v800 = vpop.f32.mrf.mxu0
  %v801 = vadd.f32 %v752, %v800
  %v802 = vpop.f32.mrf.mxu0
  %v803 = vadd.f32 %v754, %v802
  %804 = vmatmul.bf16.gmra.mxu0 %v284
  %v805 = vpop.f32.mrf.mxu0
  %v806 = vadd.f32 %v757, %v805
  %v807 = vpop.f32.mrf.mxu0
  %v808 = vadd.f32 %v759, %v807
  %809 = vmatmul.bf16.gmra.mxu0 %v289
  %v810 = vpop.f32.mrf.mxu0
  %v811 = vadd.f32 %v762, %v810
  %v812 = vpop.f32.mrf.mxu0
  %v813 = vadd.f32 %v764, %v812
  %814 = vmatmul.bf16.gmra.mxu0 %v294
  %v815 = vpop.f32.mrf.mxu0
  %v816 = vadd.f32 %v767, %v815
  %v817 = vpop.f32.mrf.mxu0
  %v818 = vadd.f32 %v769, %v817
  %819 = vmatmul.bf16.gmra.mxu0 %v299
  %v820 = vpop.f32.mrf.mxu0
  %v821 = vadd.f32 %v772, %v820
  %v822 = vpop.f32.mrf.mxu0
  %v823 = vadd.f32 %v774, %v822
  %824 = vmatmul.bf16.gmra.mxu0 %v304
  %v825 = vpop.f32.mrf.mxu0
  %v826 = vadd.f32 %v777, %v825
  %v827 = vpop.f32.mrf.mxu0
  %v828 = vadd.f32 %v779, %v827
  %829 = vmatmul.bf16.gmra.mxu0 %v309
  %v830 = vpop.f32.mrf.mxu0
  %v831 = vadd.f32 %v782, %v830
  %v832 = vpop.f32.mrf.mxu0
  %v833 = vadd.f32 %v784, %v832
  %834 = vdwg.mxu0
  %v835 = vpack.c.bf16 %v796, %v796
  %v836 = vpack.c.bf16 %v798, %v798
  %v837 = vpack.c.bf16 %v801, %v801
  %v838 = vpack.c.bf16 %v803, %v803
  %v839 = vpack.c.bf16 %v806, %v806
  %v840 = vpack.c.bf16 %v808, %v808
  %v841 = vpack.c.bf16 %v811, %v811
  %v842 = vpack.c.bf16 %v813, %v813
  %v843 = vpack.c.bf16 %v816, %v816
  %v844 = vpack.c.bf16 %v818, %v818
  %v845 = vpack.c.bf16 %v821, %v821
  %v846 = vpack.c.bf16 %v823, %v823
  %v847 = vpack.c.bf16 %v826, %v826
  %v848 = vpack.c.bf16 %v828, %v828
  %v849 = vpack.c.bf16 %v831, %v831
  %v850 = vpack.c.bf16 %v833, %v833
  %851 = vst [vmem:[%s2] sm:$0xf] %v835
  %852 = vst [vmem:[%s2 + $0x4] sm:$0xf] %v836
  %853 = vst [vmem:[%s2 + $0x8] sm:$0xf] %v837
  %854 = vst [vmem:[%s2 + $0xc] sm:$0xf] %v838
  %855 = vst [vmem:[%s2 + $0x10] sm:$0xf] %v839
  %856 = vst [vmem:[%s2 + $0x14] sm:$0xf] %v840
  %857 = vst [vmem:[%s2 + $0x18] sm:$0xf] %v841
  %858 = vst [vmem:[%s2 + $0x1c] sm:$0xf] %v842
  %859 = vst [vmem:[%s2 + $0x20] sm:$0xf] %v843
  %860 = vst [vmem:[%s2 + $0x24] sm:$0xf] %v844
  %861 = vst [vmem:[%s2 + $0x28] sm:$0xf] %v845
  %862 = vst [vmem:[%s2 + $0x2c] sm:$0xf] %v846
  %863 = vst [vmem:[%s2 + $0x30] sm:$0xf] %v847
  %864 = vst [vmem:[%s2 + $0x34] sm:$0xf] %v848
  %865 = vst [vmem:[%s2 + $0x38] sm:$0xf] %v849
  %866 = vst [vmem:[%s2 + $0x3c] sm:$0xf] %v850
  %v867 = vadd.f32 %v796, %v798
  %v868 = vadd.f32 %v867, %v801
  %v869 = vadd.f32 %v868, %v803
  %v870 = vadd.f32 %v869, %v806
  %v871 = vadd.f32 %v870, %v808
  %v872 = vadd.f32 %v871, %v811
  %v873 = vadd.f32 %v872, %v813
  %v874 = vadd.f32 %v873, %v816
  %v875 = vadd.f32 %v874, %v818
  %v876 = vadd.f32 %v875, %v821
  %v877 = vadd.f32 %v876, %v823
  %v878 = vadd.f32 %v877, %v826
  %v879 = vadd.f32 %v878, %v828
  %v880 = vadd.f32 %v879, %v831
  %v881 = vadd.f32 %v880, %v833
  %v882 = vrot.slane %v881, 4
  %v883 = vadd.f32 %v881, %v882
  %v884 = vrot.slane %v883, 2
  %v885 = vadd.f32 %v883, %v884
  %v886 = vrot.slane %v885, 1
  %v887 = vadd.f32 %v885, %v886
  %888 = vst [vmem:[%s3] sm:$0xff] %v887
  %v889 = vmul.f32 %v796, %v796
  %v890 = vmul.f32 %v798, %v798
  %v891 = vmul.f32 %v801, %v801
  %v892 = vmul.f32 %v803, %v803
  %v893 = vmul.f32 %v806, %v806
  %v894 = vmul.f32 %v808, %v808
  %v895 = vmul.f32 %v811, %v811
  %v896 = vmul.f32 %v813, %v813
  %v897 = vmul.f32 %v816, %v816
  %v898 = vmul.f32 %v818, %v818
  %v899 = vmul.f32 %v821, %v821
  %v900 = vmul.f32 %v823, %v823
  %v901 = vmul.f32 %v826, %v826
  %v902 = vmul.f32 %v828, %v828
  %v903 = vmul.f32 %v831, %v831
  %v904 = vmul.f32 %v833, %v833
  %v905 = vadd.f32 %v889, %v890
  %v906 = vadd.f32 %v905, %v891
  %v907 = vadd.f32 %v906, %v892
  %v908 = vadd.f32 %v907, %v893
  %v909 = vadd.f32 %v908, %v894
  %v910 = vadd.f32 %v909, %v895
  %v911 = vadd.f32 %v910, %v896
  %v912 = vadd.f32 %v911, %v897
  %v913 = vadd.f32 %v912, %v898
  %v914 = vadd.f32 %v913, %v899
  %v915 = vadd.f32 %v914, %v900
  %v916 = vadd.f32 %v915, %v901
  %v917 = vadd.f32 %v916, %v902
  %v918 = vadd.f32 %v917, %v903
  %v919 = vadd.f32 %v918, %v904
  %v920 = vrot.slane %v919, 4
  %v921 = vadd.f32 %v919, %v920
  %v922 = vrot.slane %v921, 2
  %v923 = vadd.f32 %v921, %v922
  %v924 = vrot.slane %v923, 1
  %v925 = vadd.f32 %v923, %v924
  %926 = vst [vmem:[%s4] sm:$0xff] %v925
  // Predicated region
  $region10: #{generator_forward.26} parent=0 // pred_check
    _
  $region11: #{generator_forward.26} parent=0 // pred_check_branch
    %928 = sbr.rel (0) target = $region13
  $region12: #{generator_forward.26} parent=0 // pred_region
    _
  $region13: #{generator_forward.26} parent=0 // pred_fallthru
    _
  // Predicated region
  $region14: #{generator_forward.26} parent=0 // pred_check
    _
  $region15: #{generator_forward.26} parent=0 // pred_check_branch
    %930 = sbr.rel (0) target = $region17
  $region16: #{generator_forward.26} parent=0 // pred_region
    _
  $region17: #{generator_forward.26} parent=0 // pred_fallthru
    _
  // Predicated region
  $region18: #{generator_forward.26} parent=0 // pred_check
    _
  $region19: #{generator_forward.26} parent=0 // pred_check_branch
    %932 = sbr.rel (0) target = $region21
  $region20: #{generator_forward.26} parent=0 // pred_region
    _
  $region21: #{generator_forward.26} parent=0 // pred_fallthru
    _
  // Predicated region
  $region22: #{generator_forward.26} parent=0 // pred_check
    _
  $region23: #{generator_forward.26} parent=0 // pred_check_branch
    %934 = sbr.rel (0) target = $region25
  $region24: #{generator_forward.26} parent=0 // pred_region
    _
  $region25: #{generator_forward.26} parent=0 // pred_fallthru
    _
  // Predicated region
  $region26: #{generator_forward.26} parent=0 // pred_check
    _
  $region27: #{generator_forward.26} parent=0 // pred_check_branch
    %936 = sbr.rel (0) target = $region29
  $region28: #{generator_forward.26} parent=0 // pred_region
    _
  $region29: #{generator_forward.26} parent=0 // pred_fallthru
    _
  // Predicated region
  $region30: #{generator_forward.26} parent=0 // pred_check
    _
  $region31: #{generator_forward.26} parent=0 // pred_check_branch
    %938 = sbr.rel (0) target = $region33
  $region32: #{generator_forward.26} parent=0 // pred_region
    _
  $region33: #{generator_forward.26} parent=0 // pred_fallthru
    _

</llo_original>
